<compile_context>
chip_gen: v6e
topology: v6e:2x2x1
jax: 0.10.0
libtpu: 0.0.40
codegen_flags: <defaults>
</compile_context>

<pallas_src>
import functools

import jax
import jax.numpy as jnp
import numpy as np
from jax import lax
from jax.experimental import pallas as pl
from jax.experimental.pallas import tpu as pltpu


def _div_const(v, m):
    """v // m for an int32 vector, using shifts when m is a power of two."""
    if m & (m - 1) == 0:
        return v >> (m.bit_length() - 1)
    return v // m


def _mod_const(v, m):
    """v % m for an int32 vector, using bit-ands when m is a power of two."""
    if m & (m - 1) == 0:
        return v & (m - 1)
    return v % m


# ----------------------------------------------------------------------------
# Fused kernel: 3 x [conv2(relu(conv1(relu(x + wide))))]  +  fc1
# ----------------------------------------------------------------------------
def _modely_kernel(x_ref, w1aug_ref, w2pad_ref, wfc_ref, b2_ref, bfc_ref,
                   out_ref, ts_ref, g_ref, *, batch, height, width, dhw):
    N = x_ref.shape[1]          # B*D*H*W, flat lane axis
    H, W = height, width

    wide = x_ref[...]           # (1, N)

    # --- in-slice (h, w) coordinates of every lane; masks are reused 54 times ---
    lane = lax.broadcasted_iota(jnp.int32, (1, N), 1)
    w_idx = _mod_const(lane, W)
    h_idx = _mod_const(_div_const(lane, W), H)

    m_h = {-1: h_idx >= 1, 0: None, 1: h_idx <= H - 2}
    m_w = {-1: w_idx >= 1, 0: None, 1: w_idx <= W - 2}
    taps = [(dh, dw) for dh in (-1, 0, 1) for dw in (-1, 0, 1)]  # t = kh*3 + kw
    masks = {}
    for dh, dw in taps:
        mh, mw = m_h[dh], m_w[dw]
        if mh is None:
            masks[(dh, dw)] = mw
        elif mw is None:
            masks[(dh, dw)] = mh
        else:
            masks[(dh, dw)] = jnp.logical_and(mh, mw)

    def shift_and_mask(a, dh, dw):
        # value[i] = a[i + dh*W + dw] if (h+dh, w+dw) is inside the HxW slice else 0
        d = dh * W + dw
        if d != 0:
            a = pltpu.roll(a, (-d) % N, axis=1)     # XLU lane rotation
        m = masks[(dh, dw)]
        if m is not None:
            a = jnp.where(m, a, 0.0)
        return a

    # ts rows 0..8 = masked shifted taps of the conv1 input, row 9 = ones (bias),
    # rows 10..15 = zeros.  Initialised exactly once; only rows 0..8 are rewritten.
    ts_ref[...] = jnp.zeros_like(ts_ref)
    ts_ref[9:10, :] = jnp.ones((1, N), jnp.float32)

    w1aug = w1aug_ref[...]      # (C, 16): cols 0..8 = conv1 taps, col 9 = conv1 bias
    w2pad = w2pad_ref[...]      # (16, C): rows 0..8 = conv2 taps, rest zero
    b2 = b2_ref[0, 0]           # conv2 bias (SMEM scalar)

    def conv_block(a):
        # --- conv1 (1 -> C) as one MXU matmul over the stacked taps (+ bias row) ---
        for t, (dh, dw) in enumerate(taps):
            ts_ref[t:t + 1, :] = shift_and_mask(a, dh, dw)
        hidden = jnp.maximum(
            jnp.dot(w1aug, ts_ref[...], preferred_element_type=jnp.float32),
            0.0)                                                  # (C, N), relu
        # --- conv2 (C -> 1): contract channels on the MXU, then shift + sum rows ---
        g_ref[...] = jnp.dot(w2pad, hidden, preferred_element_type=jnp.float32)
        out = None
        for t, (dh, dw) in enumerate(taps):
            v = shift_and_mask(g_ref[t:t + 1, :], dh, dw)
            out = v if out is None else out + v
        return out + b2                                           # (1, N)

    x1 = conv_block(jnp.maximum(wide, 0.0))            # block 1: no residual add
    x2 = conv_block(jnp.maximum(x1 + wide, 0.0))
    x3 = conv_block(jnp.maximum(x2 + wide, 0.0))

    # --- fc1(x3.view(B, -1)): lane-dense multiply + one reduction per batch row ---
    wfc = wfc_ref[...]          # (1, D*H*W)
    bfc = bfc_ref[0, 0]         # fc bias (SMEM scalar)
    for b in range(batch):
        seg = x3[:, b * dhw:(b + 1) * dhw]                        # (1, D*H*W)
        val = jnp.sum(seg * wfc, axis=1, keepdims=True)           # (1, 1)
        out_ref[b:b + 1, :] = val + bfc


# ----------------------------------------------------------------------------
# Wrapper: reshapes / weight packing + the single pallas_call
# ----------------------------------------------------------------------------
@jax.jit
def modely_forward(x, w1, b1, w2, b2, w_fc, b_fc):
    """x: (B, D, H, W) float32  ->  (B, 1) float32."""
    B, D, H, W = x.shape
    C = w1.shape[1]
    DHW = D * H * W
    N = B * DHW
    TAP_PAD = 16                # pad the 9(+1 bias) tap dim to a tile-friendly 16

    x_flat = x.reshape(1, N)

    # conv1 weights augmented with the bias column, tap-major (t = kh*3 + kw).
    w1aug = jnp.zeros((C, TAP_PAD), jnp.float32)
    w1aug = w1aug.at[:, 0:9].set(w1.T)
    w1aug = w1aug.at[:, 9].set(b1.reshape(-1))
    # conv2 weights padded to (16, C).
    w2pad = jnp.zeros((TAP_PAD, C), jnp.float32).at[0:9, :].set(w2)

    wfc_row = w_fc.reshape(1, DHW)
    b2_s = b2.reshape(1, 1)
    bfc_s = b_fc.reshape(1, 1)

    kernel = functools.partial(_modely_kernel, batch=B, height=H, width=W, dhw=DHW)
    return pl.pallas_call(
        kernel,
        out_shape=jax.ShapeDtypeStruct((B, 1), jnp.float32),
        grid=(1,),
        in_specs=[
            pl.BlockSpec((1, N), lambda i: (0, 0)),
            pl.BlockSpec((C, TAP_PAD), lambda i: (0, 0)),
            pl.BlockSpec((TAP_PAD, C), lambda i: (0, 0)),
            pl.BlockSpec((1, DHW), lambda i: (0, 0)),
            pl.BlockSpec(memory_space=pltpu.SMEM),   # conv2 bias scalar
            pl.BlockSpec(memory_space=pltpu.SMEM),   # fc bias scalar
        ],
        out_specs=pl.BlockSpec((B, 1), lambda i: (0, 0)),
        scratch_shapes=[
            pltpu.VMEM((TAP_PAD, N), jnp.float32),   # stacked conv1 taps (+ bias row)
            pltpu.VMEM((TAP_PAD, N), jnp.float32),   # channel-contracted conv2 rows
        ],
        compiler_params=pltpu.CompilerParams(
            dimension_semantics=("arbitrary",)),
    )(x_flat, w1aug, w2pad, wfc_row, b2_s, bfc_s)


# ----------------------------------------------------------------------------
# Pure-JAX reference (lax.conv) to validate the Pallas kernel
# ----------------------------------------------------------------------------
def reference_forward(x, w1, b1, w2, b2, w_fc, b_fc):
    B, D, H, W = x.shape
    C = w1.shape[1]
    wide = x.reshape(B * D, H, W, 1)
    w1_hwio = w1.reshape(3, 3, C)[:, :, None, :]     # (3,3,1,C)
    w2_hwio = w2.reshape(3, 3, C)[:, :, :, None]     # (3,3,C,1)

    def conv(inp, w, b):
        y = lax.conv_general_dilated(
            inp, w, window_strides=(1, 1), padding="SAME",
            dimension_numbers=("NHWC", "HWIO", "NHWC"),
            precision=lax.Precision.HIGHEST)
        return y + b

    def full_block(inp):
        h = conv(jax.nn.relu(inp), w1_hwio, b1.reshape(1, 1, 1, C))
        h = jax.nn.relu(h)
        return conv(h, w2_hwio, b2.reshape(1, 1, 1, 1))

    x1 = full_block(wide)
    x2 = full_block(x1 + wide)
    x3 = full_block(x2 + wide)
    flat = x3.reshape(B, D * H * W)
    return jnp.dot(flat, w_fc, precision=lax.Precision.HIGHEST) + b_fc


# ----------------------------------------------------------------------------
if __name__ == "__main__":
    # x is (B, D, H, W); Conv3d sees (B, 1, D, H, W); fc1 input_size = D*H*W
    B, D, H, W = 2, 4, 16, 16
    C = 16
    input_size = D * H * W

    key = jax.random.PRNGKey(0)
    kx, k1, k2, k3, k4, k5, k6 = jax.random.split(key, 7)

    x = jax.random.normal(kx, (B, D, H, W), dtype=jnp.float32)

    # PyTorch-style uniform(-1/sqrt(fan_in), 1/sqrt(fan_in)) init.
    bnd1 = 1.0 / np.sqrt(1 * 3 * 3)          # conv1 fan_in = 9
    bnd2 = 1.0 / np.sqrt(16 * 3 * 3)         # conv2 fan_in = 144
    bndf = 1.0 / np.sqrt(input_size)         # fc1 fan_in
    # tap-major weights: w[t, c] with t = kh*3 + kw (== torch weight[c, 0, 0, kh, kw])
    w1 = jax.random.uniform(k1, (9, C), minval=-bnd1, maxval=bnd1, dtype=jnp.float32)
    b1 = jax.random.uniform(k2, (1, C), minval=-bnd1, maxval=bnd1, dtype=jnp.float32)
    w2 = jax.random.uniform(k3, (9, C), minval=-bnd2, maxval=bnd2, dtype=jnp.float32)
    b2 = jax.random.uniform(k4, (1, 1), minval=-bnd2, maxval=bnd2, dtype=jnp.float32)
    w_fc = jax.random.uniform(k5, (input_size, 1), minval=-bndf, maxval=bndf,
                              dtype=jnp.float32)
    b_fc = jax.random.uniform(k6, (1, 1), minval=-bndf, maxval=bndf,
                              dtype=jnp.float32)

    out = modely_forward(x, w1, b1, w2, b2, w_fc, b_fc)
    out = jax.block_until_ready(out)
    assert out.shape == (B, 1), out.shape

    ref = reference_forward(x, w1, b1, w2, b2, w_fc, b_fc)
    # Tolerance covers the MXU f32 matmul pass precision vs the HIGHEST-precision
    # lax.conv reference; structural bugs give errors orders of magnitude larger.
    np.testing.assert_allclose(np.asarray(out), np.asarray(ref),
                               rtol=1e-2, atol=1e-2)

    print("KERNEL_OK")
</pallas_src>

<mosaic_0001>
module attributes {stable_mosaic.version = 11 : i64} {
  func.func @_modely_kernel(%arg0: i32, %arg1: memref<1x2048xf32, #tpu.memory_space<vmem>>, %arg2: memref<16x16xf32, #tpu.memory_space<vmem>>, %arg3: memref<16x16xf32, #tpu.memory_space<vmem>>, %arg4: memref<1x1024xf32, #tpu.memory_space<vmem>>, %arg5: memref<1x1xf32, #tpu.memory_space<smem>>, %arg6: memref<1x1xf32, #tpu.memory_space<smem>>, %arg7: memref<2x1xf32, #tpu.memory_space<vmem>>, %arg8: memref<16x2048xf32, #tpu.memory_space<vmem>>, %arg9: memref<16x2048xf32, #tpu.memory_space<vmem>>) attributes {dimension_semantics = [#tpu.dimension_semantics<arbitrary>], iteration_bounds = array<i64: 1>, scalar_prefetch = 0 : i64, scratch_operands = 2 : i64, tpu.core_type = #tpu.core_type<tc>, window_params = [{pipeline_mode = #tpu.pipeline_mode<synchronous>, transform_indices = @transform_0, window_bounds = array<i64: 1, 2048>}, {pipeline_mode = #tpu.pipeline_mode<synchronous>, transform_indices = @transform_1, window_bounds = array<i64: 16, 16>}, {pipeline_mode = #tpu.pipeline_mode<synchronous>, transform_indices = @transform_2, window_bounds = array<i64: 16, 16>}, {pipeline_mode = #tpu.pipeline_mode<synchronous>, transform_indices = @transform_3, window_bounds = array<i64: 1, 1024>}, {transform_indices = @transform_4, window_bounds = array<i64: 1, 1>}, {transform_indices = @transform_5, window_bounds = array<i64: 1, 1>}, {pipeline_mode = #tpu.pipeline_mode<synchronous>, transform_indices = @transform_6, window_bounds = array<i64: 2, 1>}]} {
    %c0 = arith.constant 0 : index
    %c0_0 = arith.constant 0 : index
    %0 = vector.load %arg1[%c0, %c0_0] : memref<1x2048xf32, #tpu.memory_space<vmem>>, vector<1x2048xf32>
    %1 = tpu.iota {dimensions = array<i32: 1>} : vector<1x2048xi32>
    %c15_i32 = arith.constant 15 : i32
    %2 = vector.broadcast %c15_i32 : i32 to vector<1x2048xi32>
    %3 = arith.andi %1, %2 : vector<1x2048xi32>
    %c4_i32 = arith.constant 4 : i32
    %4 = vector.broadcast %c4_i32 : i32 to vector<1x2048xi32>
    %5 = arith.shrsi %1, %4 : vector<1x2048xi32>
    %c15_i32_1 = arith.constant 15 : i32
    %6 = vector.broadcast %c15_i32_1 : i32 to vector<1x2048xi32>
    %7 = arith.andi %5, %6 : vector<1x2048xi32>
    %c1_i32 = arith.constant 1 : i32
    %8 = vector.broadcast %c1_i32 : i32 to vector<1x2048xi32>
    %9 = arith.cmpi sge, %7, %8 : vector<1x2048xi32>
    %c14_i32 = arith.constant 14 : i32
    %10 = vector.broadcast %c14_i32 : i32 to vector<1x2048xi32>
    %11 = arith.cmpi sle, %7, %10 : vector<1x2048xi32>
    %c1_i32_2 = arith.constant 1 : i32
    %12 = vector.broadcast %c1_i32_2 : i32 to vector<1x2048xi32>
    %13 = arith.cmpi sge, %3, %12 : vector<1x2048xi32>
    %c14_i32_3 = arith.constant 14 : i32
    %14 = vector.broadcast %c14_i32_3 : i32 to vector<1x2048xi32>
    %15 = arith.cmpi sle, %3, %14 : vector<1x2048xi32>
    %16 = arith.andi %9, %13 : vector<1x2048xi1>
    %17 = arith.andi %9, %15 : vector<1x2048xi1>
    %18 = arith.andi %11, %13 : vector<1x2048xi1>
    %19 = arith.andi %11, %15 : vector<1x2048xi1>
    %cst = arith.constant 0.000000e+00 : f32
    %20 = vector.broadcast %cst : f32 to vector<16x2048xf32>
    %c0_4 = arith.constant 0 : index
    %c0_5 = arith.constant 0 : index
    %21 = vector.load %arg8[%c0_4, %c0_5] : memref<16x2048xf32, #tpu.memory_space<vmem>>, vector<16x2048xf32>
    tpu.vector_store %arg8[%c0_4, %c0_5], %20 {strides = array<i32>} : memref<16x2048xf32, #tpu.memory_space<vmem>>, vector<16x2048xf32>,
    %cst_6 = arith.constant 1.000000e+00 : f32
    %22 = vector.broadcast %cst_6 : f32 to vector<1x2048xf32>
    %c9 = arith.constant 9 : index
    %c0_7 = arith.constant 0 : index
    %23 = vector.load %arg8[%c9, %c0_7] : memref<16x2048xf32, #tpu.memory_space<vmem>>, vector<1x2048xf32>
    tpu.vector_store %arg8[%c9, %c0_7], %22 {strides = array<i32>} : memref<16x2048xf32, #tpu.memory_space<vmem>>, vector<1x2048xf32>,
    %c0_8 = arith.constant 0 : index
    %c0_9 = arith.constant 0 : index
    %24 = vector.load %arg2[%c0_8, %c0_9] : memref<16x16xf32, #tpu.memory_space<vmem>>, vector<16x16xf32>
    %c0_10 = arith.constant 0 : index
    %c0_11 = arith.constant 0 : index
    %25 = vector.load %arg3[%c0_10, %c0_11] : memref<16x16xf32, #tpu.memory_space<vmem>>, vector<16x16xf32>
    %c0_12 = arith.constant 0 : index
    %c0_13 = arith.constant 0 : index
    %26 = memref.load %arg5[%c0_12, %c0_13] : memref<1x1xf32, #tpu.memory_space<smem>>
    %cst_14 = arith.constant 0.000000e+00 : f32
    %27 = vector.broadcast %cst_14 : f32 to vector<1x2048xf32>
    %28 = arith.maximumf %0, %27 : vector<1x2048xf32>
    %c17_i32 = arith.constant 17 : i32
    %29 = tpu.dynamic_rotate %28 by %c17_i32 dim 1 : vector<1x2048xf32>, i32 -> vector<1x2048xf32>
    %cst_15 = arith.constant 0.000000e+00 : f32
    %30 = vector.broadcast %cst_15 : f32 to vector<1x2048xf32>
    %31 = arith.select %16, %29, %30 : vector<1x2048xi1>, vector<1x2048xf32>
    %c0_16 = arith.constant 0 : index
    %c0_17 = arith.constant 0 : index
    %32 = vector.load %arg8[%c0_16, %c0_17] : memref<16x2048xf32, #tpu.memory_space<vmem>>, vector<1x2048xf32>
    tpu.vector_store %arg8[%c0_16, %c0_17], %31 {strides = array<i32>} : memref<16x2048xf32, #tpu.memory_space<vmem>>, vector<1x2048xf32>,
    %c16_i32 = arith.constant 16 : i32
    %33 = tpu.dynamic_rotate %28 by %c16_i32 dim 1 : vector<1x2048xf32>, i32 -> vector<1x2048xf32>
    %cst_18 = arith.constant 0.000000e+00 : f32
    %34 = vector.broadcast %cst_18 : f32 to vector<1x2048xf32>
    %35 = arith.select %9, %33, %34 : vector<1x2048xi1>, vector<1x2048xf32>
    %c1 = arith.constant 1 : index
    %c0_19 = arith.constant 0 : index
    %36 = vector.load %arg8[%c1, %c0_19] : memref<16x2048xf32, #tpu.memory_space<vmem>>, vector<1x2048xf32>
    tpu.vector_store %arg8[%c1, %c0_19], %35 {strides = array<i32>} : memref<16x2048xf32, #tpu.memory_space<vmem>>, vector<1x2048xf32>,
    %c15_i32_20 = arith.constant 15 : i32
    %37 = tpu.dynamic_rotate %28 by %c15_i32_20 dim 1 : vector<1x2048xf32>, i32 -> vector<1x2048xf32>
    %cst_21 = arith.constant 0.000000e+00 : f32
    %38 = vector.broadcast %cst_21 : f32 to vector<1x2048xf32>
    %39 = arith.select %17, %37, %38 : vector<1x2048xi1>, vector<1x2048xf32>
    %c2 = arith.constant 2 : index
    %c0_22 = arith.constant 0 : index
    %40 = vector.load %arg8[%c2, %c0_22] : memref<16x2048xf32, #tpu.memory_space<vmem>>, vector<1x2048xf32>
    tpu.vector_store %arg8[%c2, %c0_22], %39 {strides = array<i32>} : memref<16x2048xf32, #tpu.memory_space<vmem>>, vector<1x2048xf32>,
    %c1_i32_23 = arith.constant 1 : i32
    %41 = tpu.dynamic_rotate %28 by %c1_i32_23 dim 1 : vector<1x2048xf32>, i32 -> vector<1x2048xf32>
    %cst_24 = arith.constant 0.000000e+00 : f32
    %42 = vector.broadcast %cst_24 : f32 to vector<1x2048xf32>
    %43 = arith.select %13, %41, %42 : vector<1x2048xi1>, vector<1x2048xf32>
    %c3 = arith.constant 3 : index
    %c0_25 = arith.constant 0 : index
    %44 = vector.load %arg8[%c3, %c0_25] : memref<16x2048xf32, #tpu.memory_space<vmem>>, vector<1x2048xf32>
    tpu.vector_store %arg8[%c3, %c0_25], %43 {strides = array<i32>} : memref<16x2048xf32, #tpu.memory_space<vmem>>, vector<1x2048xf32>,
    %c4 = arith.constant 4 : index
    %c0_26 = arith.constant 0 : index
    %45 = vector.load %arg8[%c4, %c0_26] : memref<16x2048xf32, #tpu.memory_space<vmem>>, vector<1x2048xf32>
    tpu.vector_store %arg8[%c4, %c0_26], %28 {strides = array<i32>} : memref<16x2048xf32, #tpu.memory_space<vmem>>, vector<1x2048xf32>,
    %c2047_i32 = arith.constant 2047 : i32
    %46 = tpu.dynamic_rotate %28 by %c2047_i32 dim 1 : vector<1x2048xf32>, i32 -> vector<1x2048xf32>
    %cst_27 = arith.constant 0.000000e+00 : f32
    %47 = vector.broadcast %cst_27 : f32 to vector<1x2048xf32>
    %48 = arith.select %15, %46, %47 : vector<1x2048xi1>, vector<1x2048xf32>
    %c5 = arith.constant 5 : index
    %c0_28 = arith.constant 0 : index
    %49 = vector.load %arg8[%c5, %c0_28] : memref<16x2048xf32, #tpu.memory_space<vmem>>, vector<1x2048xf32>
    tpu.vector_store %arg8[%c5, %c0_28], %48 {strides = array<i32>} : memref<16x2048xf32, #tpu.memory_space<vmem>>, vector<1x2048xf32>,
    %c2033_i32 = arith.constant 2033 : i32
    %50 = tpu.dynamic_rotate %28 by %c2033_i32 dim 1 : vector<1x2048xf32>, i32 -> vector<1x2048xf32>
    %cst_29 = arith.constant 0.000000e+00 : f32
    %51 = vector.broadcast %cst_29 : f32 to vector<1x2048xf32>
    %52 = arith.select %18, %50, %51 : vector<1x2048xi1>, vector<1x2048xf32>
    %c6 = arith.constant 6 : index
    %c0_30 = arith.constant 0 : index
    %53 = vector.load %arg8[%c6, %c0_30] : memref<16x2048xf32, #tpu.memory_space<vmem>>, vector<1x2048xf32>
    tpu.vector_store %arg8[%c6, %c0_30], %52 {strides = array<i32>} : memref<16x2048xf32, #tpu.memory_space<vmem>>, vector<1x2048xf32>,
    %c2032_i32 = arith.constant 2032 : i32
    %54 = tpu.dynamic_rotate %28 by %c2032_i32 dim 1 : vector<1x2048xf32>, i32 -> vector<1x2048xf32>
    %cst_31 = arith.constant 0.000000e+00 : f32
    %55 = vector.broadcast %cst_31 : f32 to vector<1x2048xf32>
    %56 = arith.select %11, %54, %55 : vector<1x2048xi1>, vector<1x2048xf32>
    %c7 = arith.constant 7 : index
    %c0_32 = arith.constant 0 : index
    %57 = vector.load %arg8[%c7, %c0_32] : memref<16x2048xf32, #tpu.memory_space<vmem>>, vector<1x2048xf32>
    tpu.vector_store %arg8[%c7, %c0_32], %56 {strides = array<i32>} : memref<16x2048xf32, #tpu.memory_space<vmem>>, vector<1x2048xf32>,
    %c2031_i32 = arith.constant 2031 : i32
    %58 = tpu.dynamic_rotate %28 by %c2031_i32 dim 1 : vector<1x2048xf32>, i32 -> vector<1x2048xf32>
    %cst_33 = arith.constant 0.000000e+00 : f32
    %59 = vector.broadcast %cst_33 : f32 to vector<1x2048xf32>
    %60 = arith.select %19, %58, %59 : vector<1x2048xi1>, vector<1x2048xf32>
    %c8 = arith.constant 8 : index
    %c0_34 = arith.constant 0 : index
    %61 = vector.load %arg8[%c8, %c0_34] : memref<16x2048xf32, #tpu.memory_space<vmem>>, vector<1x2048xf32>
    tpu.vector_store %arg8[%c8, %c0_34], %60 {strides = array<i32>} : memref<16x2048xf32, #tpu.memory_space<vmem>>, vector<1x2048xf32>,
    %c0_35 = arith.constant 0 : index
    %c0_36 = arith.constant 0 : index
    %62 = vector.load %arg8[%c0_35, %c0_36] : memref<16x2048xf32, #tpu.memory_space<vmem>>, vector<16x2048xf32>
    %cst_37 = arith.constant dense<0.000000e+00> : vector<16x2048xf32>
    %63 = tpu.matmul %24, %62, %cst_37 {dimension_numbers = #tpu.dot_dimension_numbers<[1], [0], [0], [1], [0, 0, 1, 1], [], []>} : vector<16x16xf32>, vector<16x2048xf32>, vector<16x2048xf32> -> vector<16x2048xf32>
    %cst_38 = arith.constant 0.000000e+00 : f32
    %64 = vector.broadcast %cst_38 : f32 to vector<16x2048xf32>
    %65 = arith.maximumf %63, %64 : vector<16x2048xf32>
    %cst_39 = arith.constant dense<0.000000e+00> : vector<16x2048xf32>
    %66 = tpu.matmul %25, %65, %cst_39 {dimension_numbers = #tpu.dot_dimension_numbers<[1], [0], [0], [1], [0, 0, 1, 1], [], []>} : vector<16x16xf32>, vector<16x2048xf32>, vector<16x2048xf32> -> vector<16x2048xf32>
    %c0_40 = arith.constant 0 : index
    %c0_41 = arith.constant 0 : index
    %67 = vector.load %arg9[%c0_40, %c0_41] : memref<16x2048xf32, #tpu.memory_space<vmem>>, vector<16x2048xf32>
    tpu.vector_store %arg9[%c0_40, %c0_41], %66 {strides = array<i32>} : memref<16x2048xf32, #tpu.memory_space<vmem>>, vector<16x2048xf32>,
    %c0_42 = arith.constant 0 : index
    %c0_43 = arith.constant 0 : index
    %68 = vector.load %arg9[%c0_42, %c0_43] : memref<16x2048xf32, #tpu.memory_space<vmem>>, vector<1x2048xf32>
    %c17_i32_44 = arith.constant 17 : i32
    %69 = tpu.dynamic_rotate %68 by %c17_i32_44 dim 1 : vector<1x2048xf32>, i32 -> vector<1x2048xf32>
    %cst_45 = arith.constant 0.000000e+00 : f32
    %70 = vector.broadcast %cst_45 : f32 to vector<1x2048xf32>
    %71 = arith.select %16, %69, %70 : vector<1x2048xi1>, vector<1x2048xf32>
    %c1_46 = arith.constant 1 : index
    %c0_47 = arith.constant 0 : index
    %72 = vector.load %arg9[%c1_46, %c0_47] : memref<16x2048xf32, #tpu.memory_space<vmem>>, vector<1x2048xf32>
    %c16_i32_48 = arith.constant 16 : i32
    %73 = tpu.dynamic_rotate %72 by %c16_i32_48 dim 1 : vector<1x2048xf32>, i32 -> vector<1x2048xf32>
    %cst_49 = arith.constant 0.000000e+00 : f32
    %74 = vector.broadcast %cst_49 : f32 to vector<1x2048xf32>
    %75 = arith.select %9, %73, %74 : vector<1x2048xi1>, vector<1x2048xf32>
    %76 = arith.addf %71, %75 : vector<1x2048xf32>
    %c2_50 = arith.constant 2 : index
    %c0_51 = arith.constant 0 : index
    %77 = vector.load %arg9[%c2_50, %c0_51] : memref<16x2048xf32, #tpu.memory_space<vmem>>, vector<1x2048xf32>
    %c15_i32_52 = arith.constant 15 : i32
    %78 = tpu.dynamic_rotate %77 by %c15_i32_52 dim 1 : vector<1x2048xf32>, i32 -> vector<1x2048xf32>
    %cst_53 = arith.constant 0.000000e+00 : f32
    %79 = vector.broadcast %cst_53 : f32 to vector<1x2048xf32>
    %80 = arith.select %17, %78, %79 : vector<1x2048xi1>, vector<1x2048xf32>
    %81 = arith.addf %76, %80 : vector<1x2048xf32>
    %c3_54 = arith.constant 3 : index
    %c0_55 = arith.constant 0 : index
    %82 = vector.load %arg9[%c3_54, %c0_55] : memref<16x2048xf32, #tpu.memory_space<vmem>>, vector<1x2048xf32>
    %c1_i32_56 = arith.constant 1 : i32
    %83 = tpu.dynamic_rotate %82 by %c1_i32_56 dim 1 : vector<1x2048xf32>, i32 -> vector<1x2048xf32>
    %cst_57 = arith.constant 0.000000e+00 : f32
    %84 = vector.broadcast %cst_57 : f32 to vector<1x2048xf32>
    %85 = arith.select %13, %83, %84 : vector<1x2048xi1>, vector<1x2048xf32>
    %86 = arith.addf %81, %85 : vector<1x2048xf32>
    %c4_58 = arith.constant 4 : index
    %c0_59 = arith.constant 0 : index
    %87 = vector.load %arg9[%c4_58, %c0_59] : memref<16x2048xf32, #tpu.memory_space<vmem>>, vector<1x2048xf32>
    %88 = arith.addf %86, %87 : vector<1x2048xf32>
    %c5_60 = arith.constant 5 : index
    %c0_61 = arith.constant 0 : index
    %89 = vector.load %arg9[%c5_60, %c0_61] : memref<16x2048xf32, #tpu.memory_space<vmem>>, vector<1x2048xf32>
    %c2047_i32_62 = arith.constant 2047 : i32
    %90 = tpu.dynamic_rotate %89 by %c2047_i32_62 dim 1 : vector<1x2048xf32>, i32 -> vector<1x2048xf32>
    %cst_63 = arith.constant 0.000000e+00 : f32
    %91 = vector.broadcast %cst_63 : f32 to vector<1x2048xf32>
    %92 = arith.select %15, %90, %91 : vector<1x2048xi1>, vector<1x2048xf32>
    %93 = arith.addf %88, %92 : vector<1x2048xf32>
    %c6_64 = arith.constant 6 : index
    %c0_65 = arith.constant 0 : index
    %94 = vector.load %arg9[%c6_64, %c0_65] : memref<16x2048xf32, #tpu.memory_space<vmem>>, vector<1x2048xf32>
    %c2033_i32_66 = arith.constant 2033 : i32
    %95 = tpu.dynamic_rotate %94 by %c2033_i32_66 dim 1 : vector<1x2048xf32>, i32 -> vector<1x2048xf32>
    %cst_67 = arith.constant 0.000000e+00 : f32
    %96 = vector.broadcast %cst_67 : f32 to vector<1x2048xf32>
    %97 = arith.select %18, %95, %96 : vector<1x2048xi1>, vector<1x2048xf32>
    %98 = arith.addf %93, %97 : vector<1x2048xf32>
    %c7_68 = arith.constant 7 : index
    %c0_69 = arith.constant 0 : index
    %99 = vector.load %arg9[%c7_68, %c0_69] : memref<16x2048xf32, #tpu.memory_space<vmem>>, vector<1x2048xf32>
    %c2032_i32_70 = arith.constant 2032 : i32
    %100 = tpu.dynamic_rotate %99 by %c2032_i32_70 dim 1 : vector<1x2048xf32>, i32 -> vector<1x2048xf32>
    %cst_71 = arith.constant 0.000000e+00 : f32
    %101 = vector.broadcast %cst_71 : f32 to vector<1x2048xf32>
    %102 = arith.select %11, %100, %101 : vector<1x2048xi1>, vector<1x2048xf32>
    %103 = arith.addf %98, %102 : vector<1x2048xf32>
    %c8_72 = arith.constant 8 : index
    %c0_73 = arith.constant 0 : index
    %104 = vector.load %arg9[%c8_72, %c0_73] : memref<16x2048xf32, #tpu.memory_space<vmem>>, vector<1x2048xf32>
    %c2031_i32_74 = arith.constant 2031 : i32
    %105 = tpu.dynamic_rotate %104 by %c2031_i32_74 dim 1 : vector<1x2048xf32>, i32 -> vector<1x2048xf32>
    %cst_75 = arith.constant 0.000000e+00 : f32
    %106 = vector.broadcast %cst_75 : f32 to vector<1x2048xf32>
    %107 = arith.select %19, %105, %106 : vector<1x2048xi1>, vector<1x2048xf32>
    %108 = arith.addf %103, %107 : vector<1x2048xf32>
    %109 = vector.broadcast %26 : f32 to vector<1x2048xf32>
    %110 = arith.addf %108, %109 : vector<1x2048xf32>
    %111 = arith.addf %110, %0 : vector<1x2048xf32>
    %cst_76 = arith.constant 0.000000e+00 : f32
    %112 = vector.broadcast %cst_76 : f32 to vector<1x2048xf32>
    %113 = arith.maximumf %111, %112 : vector<1x2048xf32>
    %c17_i32_77 = arith.constant 17 : i32
    %114 = tpu.dynamic_rotate %113 by %c17_i32_77 dim 1 : vector<1x2048xf32>, i32 -> vector<1x2048xf32>
    %cst_78 = arith.constant 0.000000e+00 : f32
    %115 = vector.broadcast %cst_78 : f32 to vector<1x2048xf32>
    %116 = arith.select %16, %114, %115 : vector<1x2048xi1>, vector<1x2048xf32>
    %c0_79 = arith.constant 0 : index
    %c0_80 = arith.constant 0 : index
    %117 = vector.load %arg8[%c0_79, %c0_80] : memref<16x2048xf32, #tpu.memory_space<vmem>>, vector<1x2048xf32>
    tpu.vector_store %arg8[%c0_79, %c0_80], %116 {strides = array<i32>} : memref<16x2048xf32, #tpu.memory_space<vmem>>, vector<1x2048xf32>,
    %c16_i32_81 = arith.constant 16 : i32
    %118 = tpu.dynamic_rotate %113 by %c16_i32_81 dim 1 : vector<1x2048xf32>, i32 -> vector<1x2048xf32>
    %cst_82 = arith.constant 0.000000e+00 : f32
    %119 = vector.broadcast %cst_82 : f32 to vector<1x2048xf32>
    %120 = arith.select %9, %118, %119 : vector<1x2048xi1>, vector<1x2048xf32>
    %c1_83 = arith.constant 1 : index
    %c0_84 = arith.constant 0 : index
    %121 = vector.load %arg8[%c1_83, %c0_84] : memref<16x2048xf32, #tpu.memory_space<vmem>>, vector<1x2048xf32>
    tpu.vector_store %arg8[%c1_83, %c0_84], %120 {strides = array<i32>} : memref<16x2048xf32, #tpu.memory_space<vmem>>, vector<1x2048xf32>,
    %c15_i32_85 = arith.constant 15 : i32
    %122 = tpu.dynamic_rotate %113 by %c15_i32_85 dim 1 : vector<1x2048xf32>, i32 -> vector<1x2048xf32>
    %cst_86 = arith.constant 0.000000e+00 : f32
    %123 = vector.broadcast %cst_86 : f32 to vector<1x2048xf32>
    %124 = arith.select %17, %122, %123 : vector<1x2048xi1>, vector<1x2048xf32>
    %c2_87 = arith.constant 2 : index
    %c0_88 = arith.constant 0 : index
    %125 = vector.load %arg8[%c2_87, %c0_88] : memref<16x2048xf32, #tpu.memory_space<vmem>>, vector<1x2048xf32>
    tpu.vector_store %arg8[%c2_87, %c0_88], %124 {strides = array<i32>} : memref<16x2048xf32, #tpu.memory_space<vmem>>, vector<1x2048xf32>,
    %c1_i32_89 = arith.constant 1 : i32
    %126 = tpu.dynamic_rotate %113 by %c1_i32_89 dim 1 : vector<1x2048xf32>, i32 -> vector<1x2048xf32>
    %cst_90 = arith.constant 0.000000e+00 : f32
    %127 = vector.broadcast %cst_90 : f32 to vector<1x2048xf32>
    %128 = arith.select %13, %126, %127 : vector<1x2048xi1>, vector<1x2048xf32>
    %c3_91 = arith.constant 3 : index
    %c0_92 = arith.constant 0 : index
    %129 = vector.load %arg8[%c3_91, %c0_92] : memref<16x2048xf32, #tpu.memory_space<vmem>>, vector<1x2048xf32>
    tpu.vector_store %arg8[%c3_91, %c0_92], %128 {strides = array<i32>} : memref<16x2048xf32, #tpu.memory_space<vmem>>, vector<1x2048xf32>,
    %c4_93 = arith.constant 4 : index
    %c0_94 = arith.constant 0 : index
    %130 = vector.load %arg8[%c4_93, %c0_94] : memref<16x2048xf32, #tpu.memory_space<vmem>>, vector<1x2048xf32>
    tpu.vector_store %arg8[%c4_93, %c0_94], %113 {strides = array<i32>} : memref<16x2048xf32, #tpu.memory_space<vmem>>, vector<1x2048xf32>,
    %c2047_i32_95 = arith.constant 2047 : i32
    %131 = tpu.dynamic_rotate %113 by %c2047_i32_95 dim 1 : vector<1x2048xf32>, i32 -> vector<1x2048xf32>
    %cst_96 = arith.constant 0.000000e+00 : f32
    %132 = vector.broadcast %cst_96 : f32 to vector<1x2048xf32>
    %133 = arith.select %15, %131, %132 : vector<1x2048xi1>, vector<1x2048xf32>
    %c5_97 = arith.constant 5 : index
    %c0_98 = arith.constant 0 : index
    %134 = vector.load %arg8[%c5_97, %c0_98] : memref<16x2048xf32, #tpu.memory_space<vmem>>, vector<1x2048xf32>
    tpu.vector_store %arg8[%c5_97, %c0_98], %133 {strides = array<i32>} : memref<16x2048xf32, #tpu.memory_space<vmem>>, vector<1x2048xf32>,
    %c2033_i32_99 = arith.constant 2033 : i32
    %135 = tpu.dynamic_rotate %113 by %c2033_i32_99 dim 1 : vector<1x2048xf32>, i32 -> vector<1x2048xf32>
    %cst_100 = arith.constant 0.000000e+00 : f32
    %136 = vector.broadcast %cst_100 : f32 to vector<1x2048xf32>
    %137 = arith.select %18, %135, %136 : vector<1x2048xi1>, vector<1x2048xf32>
    %c6_101 = arith.constant 6 : index
    %c0_102 = arith.constant 0 : index
    %138 = vector.load %arg8[%c6_101, %c0_102] : memref<16x2048xf32, #tpu.memory_space<vmem>>, vector<1x2048xf32>
    tpu.vector_store %arg8[%c6_101, %c0_102], %137 {strides = array<i32>} : memref<16x2048xf32, #tpu.memory_space<vmem>>, vector<1x2048xf32>,
    %c2032_i32_103 = arith.constant 2032 : i32
    %139 = tpu.dynamic_rotate %113 by %c2032_i32_103 dim 1 : vector<1x2048xf32>, i32 -> vector<1x2048xf32>
    %cst_104 = arith.constant 0.000000e+00 : f32
    %140 = vector.broadcast %cst_104 : f32 to vector<1x2048xf32>
    %141 = arith.select %11, %139, %140 : vector<1x2048xi1>, vector<1x2048xf32>
    %c7_105 = arith.constant 7 : index
    %c0_106 = arith.constant 0 : index
    %142 = vector.load %arg8[%c7_105, %c0_106] : memref<16x2048xf32, #tpu.memory_space<vmem>>, vector<1x2048xf32>
    tpu.vector_store %arg8[%c7_105, %c0_106], %141 {strides = array<i32>} : memref<16x2048xf32, #tpu.memory_space<vmem>>, vector<1x2048xf32>,
    %c2031_i32_107 = arith.constant 2031 : i32
    %143 = tpu.dynamic_rotate %113 by %c2031_i32_107 dim 1 : vector<1x2048xf32>, i32 -> vector<1x2048xf32>
    %cst_108 = arith.constant 0.000000e+00 : f32
    %144 = vector.broadcast %cst_108 : f32 to vector<1x2048xf32>
    %145 = arith.select %19, %143, %144 : vector<1x2048xi1>, vector<1x2048xf32>
    %c8_109 = arith.constant 8 : index
    %c0_110 = arith.constant 0 : index
    %146 = vector.load %arg8[%c8_109, %c0_110] : memref<16x2048xf32, #tpu.memory_space<vmem>>, vector<1x2048xf32>
    tpu.vector_store %arg8[%c8_109, %c0_110], %145 {strides = array<i32>} : memref<16x2048xf32, #tpu.memory_space<vmem>>, vector<1x2048xf32>,
    %c0_111 = arith.constant 0 : index
    %c0_112 = arith.constant 0 : index
    %147 = vector.load %arg8[%c0_111, %c0_112] : memref<16x2048xf32, #tpu.memory_space<vmem>>, vector<16x2048xf32>
    %cst_113 = arith.constant dense<0.000000e+00> : vector<16x2048xf32>
    %148 = tpu.matmul %24, %147, %cst_113 {dimension_numbers = #tpu.dot_dimension_numbers<[1], [0], [0], [1], [0, 0, 1, 1], [], []>} : vector<16x16xf32>, vector<16x2048xf32>, vector<16x2048xf32> -> vector<16x2048xf32>
    %cst_114 = arith.constant 0.000000e+00 : f32
    %149 = vector.broadcast %cst_114 : f32 to vector<16x2048xf32>
    %150 = arith.maximumf %148, %149 : vector<16x2048xf32>
    %cst_115 = arith.constant dense<0.000000e+00> : vector<16x2048xf32>
    %151 = tpu.matmul %25, %150, %cst_115 {dimension_numbers = #tpu.dot_dimension_numbers<[1], [0], [0], [1], [0, 0, 1, 1], [], []>} : vector<16x16xf32>, vector<16x2048xf32>, vector<16x2048xf32> -> vector<16x2048xf32>
    %c0_116 = arith.constant 0 : index
    %c0_117 = arith.constant 0 : index
    %152 = vector.load %arg9[%c0_116, %c0_117] : memref<16x2048xf32, #tpu.memory_space<vmem>>, vector<16x2048xf32>
    tpu.vector_store %arg9[%c0_116, %c0_117], %151 {strides = array<i32>} : memref<16x2048xf32, #tpu.memory_space<vmem>>, vector<16x2048xf32>,
    %c0_118 = arith.constant 0 : index
    %c0_119 = arith.constant 0 : index
    %153 = vector.load %arg9[%c0_118, %c0_119] : memref<16x2048xf32, #tpu.memory_space<vmem>>, vector<1x2048xf32>
    %c17_i32_120 = arith.constant 17 : i32
    %154 = tpu.dynamic_rotate %153 by %c17_i32_120 dim 1 : vector<1x2048xf32>, i32 -> vector<1x2048xf32>
    %cst_121 = arith.constant 0.000000e+00 : f32
    %155 = vector.broadcast %cst_121 : f32 to vector<1x2048xf32>
    %156 = arith.select %16, %154, %155 : vector<1x2048xi1>, vector<1x2048xf32>
    %c1_122 = arith.constant 1 : index
    %c0_123 = arith.constant 0 : index
    %157 = vector.load %arg9[%c1_122, %c0_123] : memref<16x2048xf32, #tpu.memory_space<vmem>>, vector<1x2048xf32>
    %c16_i32_124 = arith.constant 16 : i32
    %158 = tpu.dynamic_rotate %157 by %c16_i32_124 dim 1 : vector<1x2048xf32>, i32 -> vector<1x2048xf32>
    %cst_125 = arith.constant 0.000000e+00 : f32
    %159 = vector.broadcast %cst_125 : f32 to vector<1x2048xf32>
    %160 = arith.select %9, %158, %159 : vector<1x2048xi1>, vector<1x2048xf32>
    %161 = arith.addf %156, %160 : vector<1x2048xf32>
    %c2_126 = arith.constant 2 : index
    %c0_127 = arith.constant 0 : index
    %162 = vector.load %arg9[%c2_126, %c0_127] : memref<16x2048xf32, #tpu.memory_space<vmem>>, vector<1x2048xf32>
    %c15_i32_128 = arith.constant 15 : i32
    %163 = tpu.dynamic_rotate %162 by %c15_i32_128 dim 1 : vector<1x2048xf32>, i32 -> vector<1x2048xf32>
    %cst_129 = arith.constant 0.000000e+00 : f32
    %164 = vector.broadcast %cst_129 : f32 to vector<1x2048xf32>
    %165 = arith.select %17, %163, %164 : vector<1x2048xi1>, vector<1x2048xf32>
    %166 = arith.addf %161, %165 : vector<1x2048xf32>
    %c3_130 = arith.constant 3 : index
    %c0_131 = arith.constant 0 : index
    %167 = vector.load %arg9[%c3_130, %c0_131] : memref<16x2048xf32, #tpu.memory_space<vmem>>, vector<1x2048xf32>
    %c1_i32_132 = arith.constant 1 : i32
    %168 = tpu.dynamic_rotate %167 by %c1_i32_132 dim 1 : vector<1x2048xf32>, i32 -> vector<1x2048xf32>
    %cst_133 = arith.constant 0.000000e+00 : f32
    %169 = vector.broadcast %cst_133 : f32 to vector<1x2048xf32>
    %170 = arith.select %13, %168, %169 : vector<1x2048xi1>, vector<1x2048xf32>
    %171 = arith.addf %166, %170 : vector<1x2048xf32>
    %c4_134 = arith.constant 4 : index
    %c0_135 = arith.constant 0 : index
    %172 = vector.load %arg9[%c4_134, %c0_135] : memref<16x2048xf32, #tpu.memory_space<vmem>>, vector<1x2048xf32>
    %173 = arith.addf %171, %172 : vector<1x2048xf32>
    %c5_136 = arith.constant 5 : index
    %c0_137 = arith.constant 0 : index
    %174 = vector.load %arg9[%c5_136, %c0_137] : memref<16x2048xf32, #tpu.memory_space<vmem>>, vector<1x2048xf32>
    %c2047_i32_138 = arith.constant 2047 : i32
    %175 = tpu.dynamic_rotate %174 by %c2047_i32_138 dim 1 : vector<1x2048xf32>, i32 -> vector<1x2048xf32>
    %cst_139 = arith.constant 0.000000e+00 : f32
    %176 = vector.broadcast %cst_139 : f32 to vector<1x2048xf32>
    %177 = arith.select %15, %175, %176 : vector<1x2048xi1>, vector<1x2048xf32>
    %178 = arith.addf %173, %177 : vector<1x2048xf32>
    %c6_140 = arith.constant 6 : index
    %c0_141 = arith.constant 0 : index
    %179 = vector.load %arg9[%c6_140, %c0_141] : memref<16x2048xf32, #tpu.memory_space<vmem>>, vector<1x2048xf32>
    %c2033_i32_142 = arith.constant 2033 : i32
    %180 = tpu.dynamic_rotate %179 by %c2033_i32_142 dim 1 : vector<1x2048xf32>, i32 -> vector<1x2048xf32>
    %cst_143 = arith.constant 0.000000e+00 : f32
    %181 = vector.broadcast %cst_143 : f32 to vector<1x2048xf32>
    %182 = arith.select %18, %180, %181 : vector<1x2048xi1>, vector<1x2048xf32>
    %183 = arith.addf %178, %182 : vector<1x2048xf32>
    %c7_144 = arith.constant 7 : index
    %c0_145 = arith.constant 0 : index
    %184 = vector.load %arg9[%c7_144, %c0_145] : memref<16x2048xf32, #tpu.memory_space<vmem>>, vector<1x2048xf32>
    %c2032_i32_146 = arith.constant 2032 : i32
    %185 = tpu.dynamic_rotate %184 by %c2032_i32_146 dim 1 : vector<1x2048xf32>, i32 -> vector<1x2048xf32>
    %cst_147 = arith.constant 0.000000e+00 : f32
    %186 = vector.broadcast %cst_147 : f32 to vector<1x2048xf32>
    %187 = arith.select %11, %185, %186 : vector<1x2048xi1>, vector<1x2048xf32>
    %188 = arith.addf %183, %187 : vector<1x2048xf32>
    %c8_148 = arith.constant 8 : index
    %c0_149 = arith.constant 0 : index
    %189 = vector.load %arg9[%c8_148, %c0_149] : memref<16x2048xf32, #tpu.memory_space<vmem>>, vector<1x2048xf32>
    %c2031_i32_150 = arith.constant 2031 : i32
    %190 = tpu.dynamic_rotate %189 by %c2031_i32_150 dim 1 : vector<1x2048xf32>, i32 -> vector<1x2048xf32>
    %cst_151 = arith.constant 0.000000e+00 : f32
    %191 = vector.broadcast %cst_151 : f32 to vector<1x2048xf32>
    %192 = arith.select %19, %190, %191 : vector<1x2048xi1>, vector<1x2048xf32>
    %193 = arith.addf %188, %192 : vector<1x2048xf32>
    %194 = vector.broadcast %26 : f32 to vector<1x2048xf32>
    %195 = arith.addf %193, %194 : vector<1x2048xf32>
    %196 = arith.addf %195, %0 : vector<1x2048xf32>
    %cst_152 = arith.constant 0.000000e+00 : f32
    %197 = vector.broadcast %cst_152 : f32 to vector<1x2048xf32>
    %198 = arith.maximumf %196, %197 : vector<1x2048xf32>
    %c17_i32_153 = arith.constant 17 : i32
    %199 = tpu.dynamic_rotate %198 by %c17_i32_153 dim 1 : vector<1x2048xf32>, i32 -> vector<1x2048xf32>
    %cst_154 = arith.constant 0.000000e+00 : f32
    %200 = vector.broadcast %cst_154 : f32 to vector<1x2048xf32>
    %201 = arith.select %16, %199, %200 : vector<1x2048xi1>, vector<1x2048xf32>
    %c0_155 = arith.constant 0 : index
    %c0_156 = arith.constant 0 : index
    %202 = vector.load %arg8[%c0_155, %c0_156] : memref<16x2048xf32, #tpu.memory_space<vmem>>, vector<1x2048xf32>
    tpu.vector_store %arg8[%c0_155, %c0_156], %201 {strides = array<i32>} : memref<16x2048xf32, #tpu.memory_space<vmem>>, vector<1x2048xf32>,
    %c16_i32_157 = arith.constant 16 : i32
    %203 = tpu.dynamic_rotate %198 by %c16_i32_157 dim 1 : vector<1x2048xf32>, i32 -> vector<1x2048xf32>
    %cst_158 = arith.constant 0.000000e+00 : f32
    %204 = vector.broadcast %cst_158 : f32 to vector<1x2048xf32>
    %205 = arith.select %9, %203, %204 : vector<1x2048xi1>, vector<1x2048xf32>
    %c1_159 = arith.constant 1 : index
    %c0_160 = arith.constant 0 : index
    %206 = vector.load %arg8[%c1_159, %c0_160] : memref<16x2048xf32, #tpu.memory_space<vmem>>, vector<1x2048xf32>
    tpu.vector_store %arg8[%c1_159, %c0_160], %205 {strides = array<i32>} : memref<16x2048xf32, #tpu.memory_space<vmem>>, vector<1x2048xf32>,
    %c15_i32_161 = arith.constant 15 : i32
    %207 = tpu.dynamic_rotate %198 by %c15_i32_161 dim 1 : vector<1x2048xf32>, i32 -> vector<1x2048xf32>
    %cst_162 = arith.constant 0.000000e+00 : f32
    %208 = vector.broadcast %cst_162 : f32 to vector<1x2048xf32>
    %209 = arith.select %17, %207, %208 : vector<1x2048xi1>, vector<1x2048xf32>
    %c2_163 = arith.constant 2 : index
    %c0_164 = arith.constant 0 : index
    %210 = vector.load %arg8[%c2_163, %c0_164] : memref<16x2048xf32, #tpu.memory_space<vmem>>, vector<1x2048xf32>
    tpu.vector_store %arg8[%c2_163, %c0_164], %209 {strides = array<i32>} : memref<16x2048xf32, #tpu.memory_space<vmem>>, vector<1x2048xf32>,
    %c1_i32_165 = arith.constant 1 : i32
    %211 = tpu.dynamic_rotate %198 by %c1_i32_165 dim 1 : vector<1x2048xf32>, i32 -> vector<1x2048xf32>
    %cst_166 = arith.constant 0.000000e+00 : f32
    %212 = vector.broadcast %cst_166 : f32 to vector<1x2048xf32>
    %213 = arith.select %13, %211, %212 : vector<1x2048xi1>, vector<1x2048xf32>
    %c3_167 = arith.constant 3 : index
    %c0_168 = arith.constant 0 : index
    %214 = vector.load %arg8[%c3_167, %c0_168] : memref<16x2048xf32, #tpu.memory_space<vmem>>, vector<1x2048xf32>
    tpu.vector_store %arg8[%c3_167, %c0_168], %213 {strides = array<i32>} : memref<16x2048xf32, #tpu.memory_space<vmem>>, vector<1x2048xf32>,
    %c4_169 = arith.constant 4 : index
    %c0_170 = arith.constant 0 : index
    %215 = vector.load %arg8[%c4_169, %c0_170] : memref<16x2048xf32, #tpu.memory_space<vmem>>, vector<1x2048xf32>
    tpu.vector_store %arg8[%c4_169, %c0_170], %198 {strides = array<i32>} : memref<16x2048xf32, #tpu.memory_space<vmem>>, vector<1x2048xf32>,
    %c2047_i32_171 = arith.constant 2047 : i32
    %216 = tpu.dynamic_rotate %198 by %c2047_i32_171 dim 1 : vector<1x2048xf32>, i32 -> vector<1x2048xf32>
    %cst_172 = arith.constant 0.000000e+00 : f32
    %217 = vector.broadcast %cst_172 : f32 to vector<1x2048xf32>
    %218 = arith.select %15, %216, %217 : vector<1x2048xi1>, vector<1x2048xf32>
    %c5_173 = arith.constant 5 : index
    %c0_174 = arith.constant 0 : index
    %219 = vector.load %arg8[%c5_173, %c0_174] : memref<16x2048xf32, #tpu.memory_space<vmem>>, vector<1x2048xf32>
    tpu.vector_store %arg8[%c5_173, %c0_174], %218 {strides = array<i32>} : memref<16x2048xf32, #tpu.memory_space<vmem>>, vector<1x2048xf32>,
    %c2033_i32_175 = arith.constant 2033 : i32
    %220 = tpu.dynamic_rotate %198 by %c2033_i32_175 dim 1 : vector<1x2048xf32>, i32 -> vector<1x2048xf32>
    %cst_176 = arith.constant 0.000000e+00 : f32
    %221 = vector.broadcast %cst_176 : f32 to vector<1x2048xf32>
    %222 = arith.select %18, %220, %221 : vector<1x2048xi1>, vector<1x2048xf32>
    %c6_177 = arith.constant 6 : index
    %c0_178 = arith.constant 0 : index
    %223 = vector.load %arg8[%c6_177, %c0_178] : memref<16x2048xf32, #tpu.memory_space<vmem>>, vector<1x2048xf32>
    tpu.vector_store %arg8[%c6_177, %c0_178], %222 {strides = array<i32>} : memref<16x2048xf32, #tpu.memory_space<vmem>>, vector<1x2048xf32>,
    %c2032_i32_179 = arith.constant 2032 : i32
    %224 = tpu.dynamic_rotate %198 by %c2032_i32_179 dim 1 : vector<1x2048xf32>, i32 -> vector<1x2048xf32>
    %cst_180 = arith.constant 0.000000e+00 : f32
    %225 = vector.broadcast %cst_180 : f32 to vector<1x2048xf32>
    %226 = arith.select %11, %224, %225 : vector<1x2048xi1>, vector<1x2048xf32>
    %c7_181 = arith.constant 7 : index
    %c0_182 = arith.constant 0 : index
    %227 = vector.load %arg8[%c7_181, %c0_182] : memref<16x2048xf32, #tpu.memory_space<vmem>>, vector<1x2048xf32>
    tpu.vector_store %arg8[%c7_181, %c0_182], %226 {strides = array<i32>} : memref<16x2048xf32, #tpu.memory_space<vmem>>, vector<1x2048xf32>,
    %c2031_i32_183 = arith.constant 2031 : i32
    %228 = tpu.dynamic_rotate %198 by %c2031_i32_183 dim 1 : vector<1x2048xf32>, i32 -> vector<1x2048xf32>
    %cst_184 = arith.constant 0.000000e+00 : f32
    %229 = vector.broadcast %cst_184 : f32 to vector<1x2048xf32>
    %230 = arith.select %19, %228, %229 : vector<1x2048xi1>, vector<1x2048xf32>
    %c8_185 = arith.constant 8 : index
    %c0_186 = arith.constant 0 : index
    %231 = vector.load %arg8[%c8_185, %c0_186] : memref<16x2048xf32, #tpu.memory_space<vmem>>, vector<1x2048xf32>
    tpu.vector_store %arg8[%c8_185, %c0_186], %230 {strides = array<i32>} : memref<16x2048xf32, #tpu.memory_space<vmem>>, vector<1x2048xf32>,
    %c0_187 = arith.constant 0 : index
    %c0_188 = arith.constant 0 : index
    %232 = vector.load %arg8[%c0_187, %c0_188] : memref<16x2048xf32, #tpu.memory_space<vmem>>, vector<16x2048xf32>
    %cst_189 = arith.constant dense<0.000000e+00> : vector<16x2048xf32>
    %233 = tpu.matmul %24, %232, %cst_189 {dimension_numbers = #tpu.dot_dimension_numbers<[1], [0], [0], [1], [0, 0, 1, 1], [], []>} : vector<16x16xf32>, vector<16x2048xf32>, vector<16x2048xf32> -> vector<16x2048xf32>
    %cst_190 = arith.constant 0.000000e+00 : f32
    %234 = vector.broadcast %cst_190 : f32 to vector<16x2048xf32>
    %235 = arith.maximumf %233, %234 : vector<16x2048xf32>
    %cst_191 = arith.constant dense<0.000000e+00> : vector<16x2048xf32>
    %236 = tpu.matmul %25, %235, %cst_191 {dimension_numbers = #tpu.dot_dimension_numbers<[1], [0], [0], [1], [0, 0, 1, 1], [], []>} : vector<16x16xf32>, vector<16x2048xf32>, vector<16x2048xf32> -> vector<16x2048xf32>
    %c0_192 = arith.constant 0 : index
    %c0_193 = arith.constant 0 : index
    %237 = vector.load %arg9[%c0_192, %c0_193] : memref<16x2048xf32, #tpu.memory_space<vmem>>, vector<16x2048xf32>
    tpu.vector_store %arg9[%c0_192, %c0_193], %236 {strides = array<i32>} : memref<16x2048xf32, #tpu.memory_space<vmem>>, vector<16x2048xf32>,
    %c0_194 = arith.constant 0 : index
    %c0_195 = arith.constant 0 : index
    %238 = vector.load %arg9[%c0_194, %c0_195] : memref<16x2048xf32, #tpu.memory_space<vmem>>, vector<1x2048xf32>
    %c17_i32_196 = arith.constant 17 : i32
    %239 = tpu.dynamic_rotate %238 by %c17_i32_196 dim 1 : vector<1x2048xf32>, i32 -> vector<1x2048xf32>
    %cst_197 = arith.constant 0.000000e+00 : f32
    %240 = vector.broadcast %cst_197 : f32 to vector<1x2048xf32>
    %241 = arith.select %16, %239, %240 : vector<1x2048xi1>, vector<1x2048xf32>
    %c1_198 = arith.constant 1 : index
    %c0_199 = arith.constant 0 : index
    %242 = vector.load %arg9[%c1_198, %c0_199] : memref<16x2048xf32, #tpu.memory_space<vmem>>, vector<1x2048xf32>
    %c16_i32_200 = arith.constant 16 : i32
    %243 = tpu.dynamic_rotate %242 by %c16_i32_200 dim 1 : vector<1x2048xf32>, i32 -> vector<1x2048xf32>
    %cst_201 = arith.constant 0.000000e+00 : f32
    %244 = vector.broadcast %cst_201 : f32 to vector<1x2048xf32>
    %245 = arith.select %9, %243, %244 : vector<1x2048xi1>, vector<1x2048xf32>
    %246 = arith.addf %241, %245 : vector<1x2048xf32>
    %c2_202 = arith.constant 2 : index
    %c0_203 = arith.constant 0 : index
    %247 = vector.load %arg9[%c2_202, %c0_203] : memref<16x2048xf32, #tpu.memory_space<vmem>>, vector<1x2048xf32>
    %c15_i32_204 = arith.constant 15 : i32
    %248 = tpu.dynamic_rotate %247 by %c15_i32_204 dim 1 : vector<1x2048xf32>, i32 -> vector<1x2048xf32>
    %cst_205 = arith.constant 0.000000e+00 : f32
    %249 = vector.broadcast %cst_205 : f32 to vector<1x2048xf32>
    %250 = arith.select %17, %248, %249 : vector<1x2048xi1>, vector<1x2048xf32>
    %251 = arith.addf %246, %250 : vector<1x2048xf32>
    %c3_206 = arith.constant 3 : index
    %c0_207 = arith.constant 0 : index
    %252 = vector.load %arg9[%c3_206, %c0_207] : memref<16x2048xf32, #tpu.memory_space<vmem>>, vector<1x2048xf32>
    %c1_i32_208 = arith.constant 1 : i32
    %253 = tpu.dynamic_rotate %252 by %c1_i32_208 dim 1 : vector<1x2048xf32>, i32 -> vector<1x2048xf32>
    %cst_209 = arith.constant 0.000000e+00 : f32
    %254 = vector.broadcast %cst_209 : f32 to vector<1x2048xf32>
    %255 = arith.select %13, %253, %254 : vector<1x2048xi1>, vector<1x2048xf32>
    %256 = arith.addf %251, %255 : vector<1x2048xf32>
    %c4_210 = arith.constant 4 : index
    %c0_211 = arith.constant 0 : index
    %257 = vector.load %arg9[%c4_210, %c0_211] : memref<16x2048xf32, #tpu.memory_space<vmem>>, vector<1x2048xf32>
    %258 = arith.addf %256, %257 : vector<1x2048xf32>
    %c5_212 = arith.constant 5 : index
    %c0_213 = arith.constant 0 : index
    %259 = vector.load %arg9[%c5_212, %c0_213] : memref<16x2048xf32, #tpu.memory_space<vmem>>, vector<1x2048xf32>
    %c2047_i32_214 = arith.constant 2047 : i32
    %260 = tpu.dynamic_rotate %259 by %c2047_i32_214 dim 1 : vector<1x2048xf32>, i32 -> vector<1x2048xf32>
    %cst_215 = arith.constant 0.000000e+00 : f32
    %261 = vector.broadcast %cst_215 : f32 to vector<1x2048xf32>
    %262 = arith.select %15, %260, %261 : vector<1x2048xi1>, vector<1x2048xf32>
    %263 = arith.addf %258, %262 : vector<1x2048xf32>
    %c6_216 = arith.constant 6 : index
    %c0_217 = arith.constant 0 : index
    %264 = vector.load %arg9[%c6_216, %c0_217] : memref<16x2048xf32, #tpu.memory_space<vmem>>, vector<1x2048xf32>
    %c2033_i32_218 = arith.constant 2033 : i32
    %265 = tpu.dynamic_rotate %264 by %c2033_i32_218 dim 1 : vector<1x2048xf32>, i32 -> vector<1x2048xf32>
    %cst_219 = arith.constant 0.000000e+00 : f32
    %266 = vector.broadcast %cst_219 : f32 to vector<1x2048xf32>
    %267 = arith.select %18, %265, %266 : vector<1x2048xi1>, vector<1x2048xf32>
    %268 = arith.addf %263, %267 : vector<1x2048xf32>
    %c7_220 = arith.constant 7 : index
    %c0_221 = arith.constant 0 : index
    %269 = vector.load %arg9[%c7_220, %c0_221] : memref<16x2048xf32, #tpu.memory_space<vmem>>, vector<1x2048xf32>
    %c2032_i32_222 = arith.constant 2032 : i32
    %270 = tpu.dynamic_rotate %269 by %c2032_i32_222 dim 1 : vector<1x2048xf32>, i32 -> vector<1x2048xf32>
    %cst_223 = arith.constant 0.000000e+00 : f32
    %271 = vector.broadcast %cst_223 : f32 to vector<1x2048xf32>
    %272 = arith.select %11, %270, %271 : vector<1x2048xi1>, vector<1x2048xf32>
    %273 = arith.addf %268, %272 : vector<1x2048xf32>
    %c8_224 = arith.constant 8 : index
    %c0_225 = arith.constant 0 : index
    %274 = vector.load %arg9[%c8_224, %c0_225] : memref<16x2048xf32, #tpu.memory_space<vmem>>, vector<1x2048xf32>
    %c2031_i32_226 = arith.constant 2031 : i32
    %275 = tpu.dynamic_rotate %274 by %c2031_i32_226 dim 1 : vector<1x2048xf32>, i32 -> vector<1x2048xf32>
    %cst_227 = arith.constant 0.000000e+00 : f32
    %276 = vector.broadcast %cst_227 : f32 to vector<1x2048xf32>
    %277 = arith.select %19, %275, %276 : vector<1x2048xi1>, vector<1x2048xf32>
    %278 = arith.addf %273, %277 : vector<1x2048xf32>
    %279 = vector.broadcast %26 : f32 to vector<1x2048xf32>
    %280 = arith.addf %278, %279 : vector<1x2048xf32>
    %c0_228 = arith.constant 0 : index
    %c0_229 = arith.constant 0 : index
    %281 = vector.load %arg4[%c0_228, %c0_229] : memref<1x1024xf32, #tpu.memory_space<vmem>>, vector<1x1024xf32>
    %c0_230 = arith.constant 0 : index
    %c0_231 = arith.constant 0 : index
    %282 = memref.load %arg6[%c0_230, %c0_231] : memref<1x1xf32, #tpu.memory_space<smem>>
    %283 = vector.extract_strided_slice %280 {offsets = [0, 0], sizes = [1, 1024], strides = [1, 1]} : vector<1x2048xf32> to vector<1x1024xf32>
    %284 = arith.mulf %283, %281 : vector<1x1024xf32>
    %cst_232 = arith.constant dense<0.000000e+00> : vector<1xf32>
    %285 = vector.multi_reduction <add>, %284, %cst_232 [1] : vector<1x1024xf32> to vector<1xf32>
    %286 = vector.shape_cast %285 : vector<1xf32> to vector<1x1xf32>
    %287 = vector.broadcast %282 : f32 to vector<1x1xf32>
    %288 = arith.addf %286, %287 : vector<1x1xf32>
    %c0_233 = arith.constant 0 : index
    %c0_234 = arith.constant 0 : index
    %289 = vector.load %arg7[%c0_233, %c0_234] : memref<2x1xf32, #tpu.memory_space<vmem>>, vector<1x1xf32>
    tpu.vector_store %arg7[%c0_233, %c0_234], %288 {strides = array<i32>} : memref<2x1xf32, #tpu.memory_space<vmem>>, vector<1x1xf32>,
    %290 = vector.extract_strided_slice %280 {offsets = [0, 1024], sizes = [1, 1024], strides = [1, 1]} : vector<1x2048xf32> to vector<1x1024xf32>
    %291 = arith.mulf %290, %281 : vector<1x1024xf32>
    %cst_235 = arith.constant dense<0.000000e+00> : vector<1xf32>
    %292 = vector.multi_reduction <add>, %291, %cst_235 [1] : vector<1x1024xf32> to vector<1xf32>
    %293 = vector.shape_cast %292 : vector<1xf32> to vector<1x1xf32>
    %294 = vector.broadcast %282 : f32 to vector<1x1xf32>
    %295 = arith.addf %293, %294 : vector<1x1xf32>
    %c1_236 = arith.constant 1 : index
    %c0_237 = arith.constant 0 : index
    %296 = vector.load %arg7[%c1_236, %c0_237] : memref<2x1xf32, #tpu.memory_space<vmem>>, vector<1x1xf32>
    tpu.vector_store %arg7[%c1_236, %c0_237], %295 {strides = array<i32>} : memref<2x1xf32, #tpu.memory_space<vmem>>, vector<1x1xf32>,
    return
  }
  func.func @transform_0(%arg0: i32) -> (i32, i32) {
    %c0_i32 = arith.constant 0 : i32
    %c0_i32_0 = arith.constant 0 : i32
    %c0_i32_1 = arith.constant 0 : i32
    return %c0_i32, %c0_i32_0 : i32, i32
  }
  func.func @transform_1(%arg0: i32) -> (i32, i32) {
    %c0_i32 = arith.constant 0 : i32
    %c0_i32_0 = arith.constant 0 : i32
    %c0_i32_1 = arith.constant 0 : i32
    return %c0_i32, %c0_i32_0 : i32, i32
  }
  func.func @transform_2(%arg0: i32) -> (i32, i32) {
    %c0_i32 = arith.constant 0 : i32
    %c0_i32_0 = arith.constant 0 : i32
    %c0_i32_1 = arith.constant 0 : i32
    return %c0_i32, %c0_i32_0 : i32, i32
  }
  func.func @transform_3(%arg0: i32) -> (i32, i32) {
    %c0_i32 = arith.constant 0 : i32
    %c0_i32_0 = arith.constant 0 : i32
    %c0_i32_1 = arith.constant 0 : i32
    return %c0_i32, %c0_i32_0 : i32, i32
  }
  func.func @transform_4(%arg0: i32) -> (i32, i32) {
    %c0_i32 = arith.constant 0 : i32
    %c0_i32_0 = arith.constant 0 : i32
    %c0_i32_1 = arith.constant 0 : i32
    return %c0_i32, %c0_i32_0 : i32, i32
  }
  func.func @transform_5(%arg0: i32) -> (i32, i32) {
    %c0_i32 = arith.constant 0 : i32
    %c0_i32_0 = arith.constant 0 : i32
    %c0_i32_1 = arith.constant 0 : i32
    return %c0_i32, %c0_i32_0 : i32, i32
  }
  func.func @transform_6(%arg0: i32) -> (i32, i32) {
    %c0_i32 = arith.constant 0 : i32
    %c0_i32_0 = arith.constant 0 : i32
    %c0_i32_1 = arith.constant 0 : i32
    return %c0_i32, %c0_i32_0 : i32, i32
  }
}

</mosaic_0001>

<llo_original>
// kernel: modely_forward.1
$region0: #{modely_forward.1}
  #allocation0 [shape = 'u32[]', space=smem, size = 0x4, offset = 0x4, fixed_abs, tag = 'smem constant byte address 0x4 - core index']
  #allocation1 [shape = 'u32[144,128]{1,0:T(1,128)}', space=vmem, size = 0x12000, scoped, tag = 'internal scratch']
  #allocation2 [shape = 'f32[16,2048]{1,0:T(8,128)}', space=vmem, size = 0x20000, scoped, tag = 'scratch operand']
  #allocation3 [shape = 'f32[16,2048]{1,0:T(8,128)}', space=vmem, size = 0x20000, scoped, tag = 'scratch operand']
  #allocation4 [shape = 'f32[1,1]{1,0:T(1,128)S(6)}', space=smem, size = 0x200, scoped, tag = 'scoped memory for modely_forward.1']
  #allocation5 [shape = 'f32[1,1]{1,0:T(1,128)S(6)}', space=smem, size = 0x200, scoped, tag = 'scoped memory for modely_forward.1']
  %s0 = inlined_call_operand.vmem [shape: f32[1,2048], index: 0, kind: input, shape index: {}]
  %s1 = inlined_call_operand.vmem [shape: f32[16,16], index: 1, kind: input, shape index: {}]
  %s2 = inlined_call_operand.vmem [shape: f32[16,16], index: 2, kind: input, shape index: {}]
  %s3 = inlined_call_operand.vmem [shape: f32[1,1024], index: 3, kind: input, shape index: {}]
  %s4 = inlined_call_operand.<no memory space> [shape: f32[1,1], index: 4, kind: input, shape index: {}]
  %s5 = inlined_call_operand.<no memory space> [shape: f32[1,1], index: 5, kind: input, shape index: {}]
  %s6 = inlined_call_operand.vmem [shape: f32[2,1], index: 6, kind: output, shape index: {}]
  %s7 = sld [smem:[#allocation0]]
  $region34: #{modely_forward.1} parent=0
    _
  %s9 = ssub.s32 1, %s7
  %s10 = scalar_select 0, %s9, %s7
  %11 = sst [smem:[#allocation4]] %s4
  %12 = sst [smem:[#allocation5]] %s5
  // Predicated region
  $region2: #{modely_forward.1} parent=0 // pred_check
    _
  $region3: #{modely_forward.1} parent=0 // pred_check_branch
    %14 = sbr.rel (0) target = $region5
  $region4: #{modely_forward.1} parent=0 // pred_region
    _
  $region5: #{modely_forward.1} parent=0 // pred_fallthru
    _
  // Predicated region
  $region6: #{modely_forward.1} parent=0 // pred_check
    _
  $region7: #{modely_forward.1} parent=0 // pred_check_branch
    %16 = sbr.rel (0) target = $region9
  $region8: #{modely_forward.1} parent=0 // pred_region
    _
  $region9: #{modely_forward.1} parent=0 // pred_fallthru
    _
  // Predicated region
  $region10: #{modely_forward.1} parent=0 // pred_check
    _
  $region11: #{modely_forward.1} parent=0 // pred_check_branch
    %18 = sbr.rel (0) target = $region13
  $region12: #{modely_forward.1} parent=0 // pred_region
    _
  $region13: #{modely_forward.1} parent=0 // pred_fallthru
    _
  // Predicated region
  $region14: #{modely_forward.1} parent=0 // pred_check
    _
  $region15: #{modely_forward.1} parent=0 // pred_check_branch
    %20 = sbr.rel (0) target = $region17
  $region16: #{modely_forward.1} parent=0 // pred_region
    _
  $region17: #{modely_forward.1} parent=0 // pred_fallthru
    _
  // Predicated region
  $region18: #{modely_forward.1} parent=0 // pred_check
    _
  $region19: #{modely_forward.1} parent=0 // pred_check_branch
    %22 = sbr.rel (0) target = $region21
  $region20: #{modely_forward.1} parent=0 // pred_region
    _
  $region21: #{modely_forward.1} parent=0 // pred_fallthru
    _
  // Predicated region
  $region22: #{modely_forward.1} parent=0 // pred_check
    _
  $region23: #{modely_forward.1} parent=0 // pred_check_branch
    %24 = sbr.rel (0) target = $region25
  $region24: #{modely_forward.1} parent=0 // pred_region
    _
  $region25: #{modely_forward.1} parent=0 // pred_fallthru
    _
  %v25 = vld [vmem:[%s0] sm:$0xff]
  %v26 = vld [vmem:[%s0 + $0x8] sm:$0xff]
  %v27 = vlaneseq
  %v28 = vand.u32 %v27, 127
  %v29 = vadd.s32 %v28, 128
  %v30 = vadd.s32 %v28, 256
  %v31 = vadd.s32 %v28, 384
  %v32 = vadd.s32 %v28, 512
  %v33 = vadd.s32 %v28, 640
  %v34 = vadd.s32 %v28, 768
  %v35 = vadd.s32 %v28, 896
  %v36 = vadd.s32 %v28, 1024
  %v37 = vadd.s32 %v28, 1152
  %v38 = vadd.s32 %v28, 1280
  %v39 = vadd.s32 %v28, 1408
  %v40 = vadd.s32 %v28, 1536
  %v41 = vadd.s32 %v28, 1664
  %v42 = vadd.s32 %v28, 1792
  %v43 = vadd.s32 %v28, 1920
  %v44 = vand.u32 %v28, 15
  %v45 = vand.u32 %v29, 15
  %v46 = vand.u32 %v30, 15
  %v47 = vand.u32 %v31, 15
  %v48 = vand.u32 %v32, 15
  %v49 = vand.u32 %v33, 15
  %v50 = vand.u32 %v34, 15
  %v51 = vand.u32 %v35, 15
  %v52 = vand.u32 %v36, 15
  %v53 = vand.u32 %v37, 15
  %v54 = vand.u32 %v38, 15
  %v55 = vand.u32 %v39, 15
  %v56 = vand.u32 %v40, 15
  %v57 = vand.u32 %v41, 15
  %v58 = vand.u32 %v42, 15
  %v59 = vand.u32 %v43, 15
  %v60 = vshra.s32 %v28, 4
  %v61 = vshra.s32 %v29, 4
  %v62 = vshra.s32 %v30, 4
  %v63 = vshra.s32 %v31, 4
  %v64 = vshra.s32 %v32, 4
  %v65 = vshra.s32 %v33, 4
  %v66 = vshra.s32 %v34, 4
  %v67 = vshra.s32 %v35, 4
  %v68 = vshra.s32 %v36, 4
  %v69 = vshra.s32 %v37, 4
  %v70 = vshra.s32 %v38, 4
  %v71 = vshra.s32 %v39, 4
  %v72 = vshra.s32 %v40, 4
  %v73 = vshra.s32 %v41, 4
  %v74 = vshra.s32 %v42, 4
  %v75 = vshra.s32 %v43, 4
  %v76 = vand.u32 %v60, 15
  %v77 = vand.u32 %v61, 15
  %v78 = vand.u32 %v62, 15
  %v79 = vand.u32 %v63, 15
  %v80 = vand.u32 %v64, 15
  %v81 = vand.u32 %v65, 15
  %v82 = vand.u32 %v66, 15
  %v83 = vand.u32 %v67, 15
  %v84 = vand.u32 %v68, 15
  %v85 = vand.u32 %v69, 15
  %v86 = vand.u32 %v70, 15
  %v87 = vand.u32 %v71, 15
  %v88 = vand.u32 %v72, 15
  %v89 = vand.u32 %v73, 15
  %v90 = vand.u32 %v74, 15
  %v91 = vand.u32 %v75, 15
  %vm92 = vcmp.ge.s32.totalorder %v76, 1
  %vm93 = vcmp.ge.s32.totalorder %v77, 1
  %vm94 = vcmp.ge.s32.totalorder %v78, 1
  %vm95 = vcmp.ge.s32.totalorder %v79, 1
  %vm96 = vcmp.ge.s32.totalorder %v80, 1
  %vm97 = vcmp.ge.s32.totalorder %v81, 1
  %vm98 = vcmp.ge.s32.totalorder %v82, 1
  %vm99 = vcmp.ge.s32.totalorder %v83, 1
  %vm100 = vcmp.ge.s32.totalorder %v84, 1
  %vm101 = vcmp.ge.s32.totalorder %v85, 1
  %vm102 = vcmp.ge.s32.totalorder %v86, 1
  %vm103 = vcmp.ge.s32.totalorder %v87, 1
  %vm104 = vcmp.ge.s32.totalorder %v88, 1
  %vm105 = vcmp.ge.s32.totalorder %v89, 1
  %vm106 = vcmp.ge.s32.totalorder %v90, 1
  %vm107 = vcmp.ge.s32.totalorder %v91, 1
  %vm108 = vcmp.le.s32.totalorder %v76, 14
  %vm109 = vcmp.le.s32.totalorder %v77, 14
  %vm110 = vcmp.le.s32.totalorder %v78, 14
  %vm111 = vcmp.le.s32.totalorder %v79, 14
  %vm112 = vcmp.le.s32.totalorder %v80, 14
  %vm113 = vcmp.le.s32.totalorder %v81, 14
  %vm114 = vcmp.le.s32.totalorder %v82, 14
  %vm115 = vcmp.le.s32.totalorder %v83, 14
  %vm116 = vcmp.le.s32.totalorder %v84, 14
  %vm117 = vcmp.le.s32.totalorder %v85, 14
  %vm118 = vcmp.le.s32.totalorder %v86, 14
  %vm119 = vcmp.le.s32.totalorder %v87, 14
  %vm120 = vcmp.le.s32.totalorder %v88, 14
  %vm121 = vcmp.le.s32.totalorder %v89, 14
  %vm122 = vcmp.le.s32.totalorder %v90, 14
  %vm123 = vcmp.le.s32.totalorder %v91, 14
  %vm124 = vcmp.ge.s32.totalorder %v44, 1
  %vm125 = vcmp.ge.s32.totalorder %v45, 1
  %vm126 = vcmp.ge.s32.totalorder %v46, 1
  %vm127 = vcmp.ge.s32.totalorder %v47, 1
  %vm128 = vcmp.ge.s32.totalorder %v48, 1
  %vm129 = vcmp.ge.s32.totalorder %v49, 1
  %vm130 = vcmp.ge.s32.totalorder %v50, 1
  %vm131 = vcmp.ge.s32.totalorder %v51, 1
  %vm132 = vcmp.ge.s32.totalorder %v52, 1
  %vm133 = vcmp.ge.s32.totalorder %v53, 1
  %vm134 = vcmp.ge.s32.totalorder %v54, 1
  %vm135 = vcmp.ge.s32.totalorder %v55, 1
  %vm136 = vcmp.ge.s32.totalorder %v56, 1
  %vm137 = vcmp.ge.s32.totalorder %v57, 1
  %vm138 = vcmp.ge.s32.totalorder %v58, 1
  %vm139 = vcmp.ge.s32.totalorder %v59, 1
  %vm140 = vcmp.le.s32.totalorder %v44, 14
  %vm141 = vcmp.le.s32.totalorder %v45, 14
  %vm142 = vcmp.le.s32.totalorder %v46, 14
  %vm143 = vcmp.le.s32.totalorder %v47, 14
  %vm144 = vcmp.le.s32.totalorder %v48, 14
  %vm145 = vcmp.le.s32.totalorder %v49, 14
  %vm146 = vcmp.le.s32.totalorder %v50, 14
  %vm147 = vcmp.le.s32.totalorder %v51, 14
  %vm148 = vcmp.le.s32.totalorder %v52, 14
  %vm149 = vcmp.le.s32.totalorder %v53, 14
  %vm150 = vcmp.le.s32.totalorder %v54, 14
  %vm151 = vcmp.le.s32.totalorder %v55, 14
  %vm152 = vcmp.le.s32.totalorder %v56, 14
  %vm153 = vcmp.le.s32.totalorder %v57, 14
  %vm154 = vcmp.le.s32.totalorder %v58, 14
  %vm155 = vcmp.le.s32.totalorder %v59, 14
  %vm156 = vmand %vm92, %vm124
  %vm157 = vmand %vm93, %vm125
  %vm158 = vmand %vm94, %vm126
  %vm159 = vmand %vm95, %vm127
  %vm160 = vmand %vm96, %vm128
  %vm161 = vmand %vm97, %vm129
  %vm162 = vmand %vm98, %vm130
  %vm163 = vmand %vm99, %vm131
  %vm164 = vmand %vm100, %vm132
  %vm165 = vmand %vm101, %vm133
  %vm166 = vmand %vm102, %vm134
  %vm167 = vmand %vm103, %vm135
  %vm168 = vmand %vm104, %vm136
  %vm169 = vmand %vm105, %vm137
  %vm170 = vmand %vm106, %vm138
  %vm171 = vmand %vm107, %vm139
  %vm172 = vmand %vm92, %vm140
  %vm173 = vmand %vm93, %vm141
  %vm174 = vmand %vm94, %vm142
  %vm175 = vmand %vm95, %vm143
  %vm176 = vmand %vm96, %vm144
  %vm177 = vmand %vm97, %vm145
  %vm178 = vmand %vm98, %vm146
  %vm179 = vmand %vm99, %vm147
  %vm180 = vmand %vm100, %vm148
  %vm181 = vmand %vm101, %vm149
  %vm182 = vmand %vm102, %vm150
  %vm183 = vmand %vm103, %vm151
  %vm184 = vmand %vm104, %vm152
  %vm185 = vmand %vm105, %vm153
  %vm186 = vmand %vm106, %vm154
  %vm187 = vmand %vm107, %vm155
  %vm188 = vmand %vm108, %vm124
  %vm189 = vmand %vm109, %vm125
  %vm190 = vmand %vm110, %vm126
  %vm191 = vmand %vm111, %vm127
  %vm192 = vmand %vm112, %vm128
  %vm193 = vmand %vm113, %vm129
  %vm194 = vmand %vm114, %vm130
  %vm195 = vmand %vm115, %vm131
  %vm196 = vmand %vm116, %vm132
  %vm197 = vmand %vm117, %vm133
  %vm198 = vmand %vm118, %vm134
  %vm199 = vmand %vm119, %vm135
  %vm200 = vmand %vm120, %vm136
  %vm201 = vmand %vm121, %vm137
  %vm202 = vmand %vm122, %vm138
  %vm203 = vmand %vm123, %vm139
  %vm204 = vmand %vm108, %vm140
  %vm205 = vmand %vm109, %vm141
  %vm206 = vmand %vm110, %vm142
  %vm207 = vmand %vm111, %vm143
  %vm208 = vmand %vm112, %vm144
  %vm209 = vmand %vm113, %vm145
  %vm210 = vmand %vm114, %vm146
  %vm211 = vmand %vm115, %vm147
  %vm212 = vmand %vm116, %vm148
  %vm213 = vmand %vm117, %vm149
  %vm214 = vmand %vm118, %vm150
  %vm215 = vmand %vm119, %vm151
  %vm216 = vmand %vm120, %vm152
  %vm217 = vmand %vm121, %vm153
  %vm218 = vmand %vm122, %vm154
  %vm219 = vmand %vm123, %vm155
  %220 = vst [vmem:[#allocation2] sm:$0xff] 0.0
  %221 = vst [vmem:[#allocation2 + $0x8] sm:$0xff] 0.0
  %222 = vst [vmem:[#allocation2 + $0x10] sm:$0xff] 0.0
  %223 = vst [vmem:[#allocation2 + $0x18] sm:$0xff] 0.0
  %224 = vst [vmem:[#allocation2 + $0x20] sm:$0xff] 0.0
  %225 = vst [vmem:[#allocation2 + $0x28] sm:$0xff] 0.0
  %226 = vst [vmem:[#allocation2 + $0x30] sm:$0xff] 0.0
  %227 = vst [vmem:[#allocation2 + $0x38] sm:$0xff] 0.0
  %228 = vst [vmem:[#allocation2 + $0x40] sm:$0xff] 0.0
  %229 = vst [vmem:[#allocation2 + $0x48] sm:$0xff] 0.0
  %230 = vst [vmem:[#allocation2 + $0x50] sm:$0xff] 0.0
  %231 = vst [vmem:[#allocation2 + $0x58] sm:$0xff] 0.0
  %232 = vst [vmem:[#allocation2 + $0x60] sm:$0xff] 0.0
  %233 = vst [vmem:[#allocation2 + $0x68] sm:$0xff] 0.0
  %234 = vst [vmem:[#allocation2 + $0x70] sm:$0xff] 0.0
  %235 = vst [vmem:[#allocation2 + $0x78] sm:$0xff] 0.0
  %236 = vst [vmem:[#allocation2 + $0x80] sm:$0xff] 0.0
  %237 = vst [vmem:[#allocation2 + $0x88] sm:$0xff] 0.0
  %238 = vst [vmem:[#allocation2 + $0x90] sm:$0xff] 0.0
  %239 = vst [vmem:[#allocation2 + $0x98] sm:$0xff] 0.0
  %240 = vst [vmem:[#allocation2 + $0xa0] sm:$0xff] 0.0
  %241 = vst [vmem:[#allocation2 + $0xa8] sm:$0xff] 0.0
  %242 = vst [vmem:[#allocation2 + $0xb0] sm:$0xff] 0.0
  %243 = vst [vmem:[#allocation2 + $0xb8] sm:$0xff] 0.0
  %244 = vst [vmem:[#allocation2 + $0xc0] sm:$0xff] 0.0
  %245 = vst [vmem:[#allocation2 + $0xc8] sm:$0xff] 0.0
  %246 = vst [vmem:[#allocation2 + $0xd0] sm:$0xff] 0.0
  %247 = vst [vmem:[#allocation2 + $0xd8] sm:$0xff] 0.0
  %248 = vst [vmem:[#allocation2 + $0xe0] sm:$0xff] 0.0
  %249 = vst [vmem:[#allocation2 + $0xe8] sm:$0xff] 0.0
  %250 = vst [vmem:[#allocation2 + $0xf0] sm:$0xff] 0.0
  %251 = vst [vmem:[#allocation2 + $0xf8] sm:$0xff] 0.0
  %s252 = scalar_lea.vmem [#allocation2], 129
  %253 = vst [vmem:[%s252] ss:$8 sm:$0xf] 1.0
  %254 = vst [vmem:[%s252] ss:$8 sm:$0xf0] 1.0
  %s255 = scalar_lea.vmem [#allocation2], 193
  %256 = vst [vmem:[%s255] ss:$8 sm:$0xf] 1.0
  %257 = vst [vmem:[%s255] ss:$8 sm:$0xf0] 1.0
  %v258 = vld [vmem:[%s1] sm:$0xff]
  %v259 = vld [vmem:[%s1 + $0x8] sm:$0xff]
  %v260 = vld [vmem:[%s2] sm:$0xff]
  %v261 = vld [vmem:[%s2 + $0x8] sm:$0xff]
  %s262 = sld [smem:[#allocation4]]
  %v263 = vmax.f32 %v25, 0.0
  %v264 = vmax.f32 %v26, 0.0
  %v267 = vlaneseq
  %v268 = vshrl.u32 %v267, 7
  %v269 = vsub.s32 0, %v268
  %v270 = vrot.slane %v263, %v269
  %v271 = vlaneseq
  %v272 = vshrl.u32 %v271, 7
  %v273 = vsub.s32 1, %v272
  %v274 = vrot.slane %v263, %v273
  %v275 = vlaneseq
  %v276 = vshrl.u32 %v275, 7
  %v277 = vsub.s32 2, %v276
  %v278 = vrot.slane %v263, %v277
  %v279 = vlaneseq
  %v280 = vshrl.u32 %v279, 7
  %v281 = vsub.s32 3, %v280
  %v282 = vrot.slane %v263, %v281
  %v283 = vlaneseq
  %v284 = vshrl.u32 %v283, 7
  %v285 = vsub.s32 4, %v284
  %v286 = vrot.slane %v263, %v285
  %v287 = vlaneseq
  %v288 = vshrl.u32 %v287, 7
  %v289 = vsub.s32 5, %v288
  %v290 = vrot.slane %v263, %v289
  %v291 = vlaneseq
  %v292 = vshrl.u32 %v291, 7
  %v293 = vsub.s32 6, %v292
  %v294 = vrot.slane %v263, %v293
  %v295 = vlaneseq
  %v296 = vshrl.u32 %v295, 7
  %v297 = vsub.s32 7, %v296
  %v298 = vrot.slane %v263, %v297
  %v299 = vlaneseq
  %v300 = vshrl.u32 %v299, 7
  %v301 = vsub.s32 0, %v300
  %v302 = vrot.slane %v264, %v301
  %v303 = vlaneseq
  %v304 = vshrl.u32 %v303, 7
  %v305 = vsub.s32 1, %v304
  %v306 = vrot.slane %v264, %v305
  %v307 = vlaneseq
  %v308 = vshrl.u32 %v307, 7
  %v309 = vsub.s32 2, %v308
  %v310 = vrot.slane %v264, %v309
  %v311 = vlaneseq
  %v312 = vshrl.u32 %v311, 7
  %v313 = vsub.s32 3, %v312
  %v314 = vrot.slane %v264, %v313
  %v315 = vlaneseq
  %v316 = vshrl.u32 %v315, 7
  %v317 = vsub.s32 4, %v316
  %v318 = vrot.slane %v264, %v317
  %v319 = vlaneseq
  %v320 = vshrl.u32 %v319, 7
  %v321 = vsub.s32 5, %v320
  %v322 = vrot.slane %v264, %v321
  %v323 = vlaneseq
  %v324 = vshrl.u32 %v323, 7
  %v325 = vsub.s32 6, %v324
  %v326 = vrot.slane %v264, %v325
  %v327 = vlaneseq
  %v328 = vshrl.u32 %v327, 7
  %v329 = vsub.s32 7, %v328
  %v330 = vrot.slane %v264, %v329
  %347 = vrot.lane.b32.xlu0 %v270, 17
  %v348 = vpop.permute.xlu0 %347
  %349 = vrot.lane.b32.xlu0 %v274, 17
  %v350 = vpop.permute.xlu0 %349
  %351 = vrot.lane.b32.xlu0 %v278, 17
  %v352 = vpop.permute.xlu0 %351
  %353 = vrot.lane.b32.xlu0 %v282, 17
  %v354 = vpop.permute.xlu0 %353
  %355 = vrot.lane.b32.xlu0 %v286, 17
  %v356 = vpop.permute.xlu0 %355
  %357 = vrot.lane.b32.xlu0 %v290, 17
  %v358 = vpop.permute.xlu0 %357
  %359 = vrot.lane.b32.xlu0 %v294, 17
  %v360 = vpop.permute.xlu0 %359
  %361 = vrot.lane.b32.xlu0 %v298, 17
  %v362 = vpop.permute.xlu0 %361
  %363 = vrot.lane.b32.xlu0 %v302, 17
  %v364 = vpop.permute.xlu0 %363
  %365 = vrot.lane.b32.xlu0 %v306, 17
  %v366 = vpop.permute.xlu0 %365
  %367 = vrot.lane.b32.xlu0 %v310, 17
  %v368 = vpop.permute.xlu0 %367
  %369 = vrot.lane.b32.xlu0 %v314, 17
  %v370 = vpop.permute.xlu0 %369
  %371 = vrot.lane.b32.xlu0 %v318, 17
  %v372 = vpop.permute.xlu0 %371
  %373 = vrot.lane.b32.xlu0 %v322, 17
  %v374 = vpop.permute.xlu0 %373
  %375 = vrot.lane.b32.xlu0 %v326, 17
  %v376 = vpop.permute.xlu0 %375
  %377 = vrot.lane.b32.xlu0 %v330, 17
  %v378 = vpop.permute.xlu0 %377
  %vm379 = vcmp.lt.s32.totalorder %v28, 17
  %v380 = vsel %vm379, %v376, %v378
  %v381 = vsel %vm379, %v374, %v376
  %v382 = vsel %vm379, %v372, %v374
  %v383 = vsel %vm379, %v370, %v372
  %v384 = vsel %vm379, %v368, %v370
  %v385 = vsel %vm379, %v366, %v368
  %v386 = vsel %vm379, %v364, %v366
  %v387 = vsel %vm379, %v362, %v364
  %v388 = vsel %vm379, %v360, %v362
  %v389 = vsel %vm379, %v358, %v360
  %v390 = vsel %vm379, %v356, %v358
  %v391 = vsel %vm379, %v354, %v356
  %v392 = vsel %vm379, %v352, %v354
  %v393 = vsel %vm379, %v350, %v352
  %v394 = vsel %vm379, %v348, %v350
  %v395 = vsel %vm379, %v378, %v348
  %v396 = vsel %vm156, %v395, 0.0
  %v397 = vsel %vm157, %v394, 0.0
  %v398 = vsel %vm158, %v393, 0.0
  %v399 = vsel %vm159, %v392, 0.0
  %v400 = vsel %vm160, %v391, 0.0
  %v401 = vsel %vm161, %v390, 0.0
  %v402 = vsel %vm162, %v389, 0.0
  %v403 = vsel %vm163, %v388, 0.0
  %v404 = vsel %vm164, %v387, 0.0
  %v405 = vsel %vm165, %v386, 0.0
  %v406 = vsel %vm166, %v385, 0.0
  %v407 = vsel %vm167, %v384, 0.0
  %v408 = vsel %vm168, %v383, 0.0
  %v409 = vsel %vm169, %v382, 0.0
  %v410 = vsel %vm170, %v381, 0.0
  %v411 = vsel %vm171, %v380, 0.0
  %v428 = vcombine.low %v396, %v397
  %v429 = vcombine.low %v398, %v399
  %v430 = vcombine.low %v400, %v401
  %v431 = vcombine.low %v402, %v403
  %v433 = vunpack.c.l.s4 1966171168
  %v434 = vunpack.c.0.s8 %v433
  %v435 = vlaneseq
  %v436 = vshrl.u32 %v435, 7
  %v437 = vsub.s32 %v434, %v436
  %v438 = vrot.slane %v428, %v437
  %v440 = vunpack.c.l.s4 1966171168
  %v441 = vunpack.c.0.s8 %v440
  %v442 = vlaneseq
  %v443 = vshrl.u32 %v442, 7
  %v444 = vsub.s32 %v441, %v443
  %v445 = vrot.slane %v429, %v444
  %v447 = vunpack.c.l.s4 1966171168
  %v448 = vunpack.c.0.s8 %v447
  %v449 = vlaneseq
  %v450 = vshrl.u32 %v449, 7
  %v451 = vsub.s32 %v448, %v450
  %v452 = vrot.slane %v430, %v451
  %v454 = vunpack.c.l.s4 1966171168
  %v455 = vunpack.c.0.s8 %v454
  %v456 = vlaneseq
  %v457 = vshrl.u32 %v456, 7
  %v458 = vsub.s32 %v455, %v457
  %v459 = vrot.slane %v431, %v458
  %v460 = vcombine.low %v438, %v445
  %v461 = vcombine.low %v452, %v459
  %v463 = vunpack.c.l.s4 1966171168
  %v464 = vunpack.c.0.s8 %v463
  %v465 = vlaneseq
  %v466 = vshrl.u32 %v465, 7
  %v467 = vsub.s32 %v464, %v466
  %v468 = vrot.slane %v460, %v467
  %v470 = vunpack.c.l.s4 1966171168
  %v471 = vunpack.c.0.s8 %v470
  %v472 = vlaneseq
  %v473 = vshrl.u32 %v472, 7
  %v474 = vsub.s32 %v471, %v473
  %v475 = vrot.slane %v461, %v474
  %v476 = vcombine.low %v468, %v475
  %v477 = vcombine.low %v404, %v405
  %v478 = vcombine.low %v406, %v407
  %v479 = vcombine.low %v408, %v409
  %v480 = vcombine.low %v410, %v411
  %v482 = vunpack.c.l.s4 1966171168
  %v483 = vunpack.c.0.s8 %v482
  %v484 = vlaneseq
  %v485 = vshrl.u32 %v484, 7
  %v486 = vsub.s32 %v483, %v485
  %v487 = vrot.slane %v477, %v486
  %v489 = vunpack.c.l.s4 1966171168
  %v490 = vunpack.c.0.s8 %v489
  %v491 = vlaneseq
  %v492 = vshrl.u32 %v491, 7
  %v493 = vsub.s32 %v490, %v492
  %v494 = vrot.slane %v478, %v493
  %v496 = vunpack.c.l.s4 1966171168
  %v497 = vunpack.c.0.s8 %v496
  %v498 = vlaneseq
  %v499 = vshrl.u32 %v498, 7
  %v500 = vsub.s32 %v497, %v499
  %v501 = vrot.slane %v479, %v500
  %v503 = vunpack.c.l.s4 1966171168
  %v504 = vunpack.c.0.s8 %v503
  %v505 = vlaneseq
  %v506 = vshrl.u32 %v505, 7
  %v507 = vsub.s32 %v504, %v506
  %v508 = vrot.slane %v480, %v507
  %v509 = vcombine.low %v487, %v494
  %v510 = vcombine.low %v501, %v508
  %v512 = vunpack.c.l.s4 1966171168
  %v513 = vunpack.c.0.s8 %v512
  %v514 = vlaneseq
  %v515 = vshrl.u32 %v514, 7
  %v516 = vsub.s32 %v513, %v515
  %v517 = vrot.slane %v509, %v516
  %v519 = vunpack.c.l.s4 1966171168
  %v520 = vunpack.c.0.s8 %v519
  %v521 = vlaneseq
  %v522 = vshrl.u32 %v521, 7
  %v523 = vsub.s32 %v520, %v522
  %v524 = vrot.slane %v510, %v523
  %v525 = vcombine.low %v517, %v524
  %528 = vst [vmem:[#allocation2] ss:$8 sm:$0xf] %v476
  %529 = vst [vmem:[#allocation2] ss:$8 sm:$0xf0] %v476
  %s530 = scalar_lea.vmem [#allocation2], 64
  %531 = vst [vmem:[%s530] ss:$8 sm:$0xf] %v525
  %532 = vst [vmem:[%s530] ss:$8 sm:$0xf0] %v525
  %533 = vrot.lane.b32.xlu0 %v270, 16
  %v534 = vpop.permute.xlu0 %533
  %535 = vrot.lane.b32.xlu0 %v274, 16
  %v536 = vpop.permute.xlu0 %535
  %537 = vrot.lane.b32.xlu0 %v278, 16
  %v538 = vpop.permute.xlu0 %537
  %539 = vrot.lane.b32.xlu0 %v282, 16
  %v540 = vpop.permute.xlu0 %539
  %541 = vrot.lane.b32.xlu0 %v286, 16
  %v542 = vpop.permute.xlu0 %541
  %543 = vrot.lane.b32.xlu0 %v290, 16
  %v544 = vpop.permute.xlu0 %543
  %545 = vrot.lane.b32.xlu0 %v294, 16
  %v546 = vpop.permute.xlu0 %545
  %547 = vrot.lane.b32.xlu0 %v298, 16
  %v548 = vpop.permute.xlu0 %547
  %549 = vrot.lane.b32.xlu0 %v302, 16
  %v550 = vpop.permute.xlu0 %549
  %551 = vrot.lane.b32.xlu0 %v306, 16
  %v552 = vpop.permute.xlu0 %551
  %553 = vrot.lane.b32.xlu0 %v310, 16
  %v554 = vpop.permute.xlu0 %553
  %555 = vrot.lane.b32.xlu0 %v314, 16
  %v556 = vpop.permute.xlu0 %555
  %557 = vrot.lane.b32.xlu0 %v318, 16
  %v558 = vpop.permute.xlu0 %557
  %559 = vrot.lane.b32.xlu0 %v322, 16
  %v560 = vpop.permute.xlu0 %559
  %561 = vrot.lane.b32.xlu0 %v326, 16
  %v562 = vpop.permute.xlu0 %561
  %563 = vrot.lane.b32.xlu0 %v330, 16
  %v564 = vpop.permute.xlu0 %563
  %vm565 = vcmp.lt.s32.totalorder %v28, 16
  %v566 = vsel %vm565, %v562, %v564
  %v567 = vsel %vm565, %v560, %v562
  %v568 = vsel %vm565, %v558, %v560
  %v569 = vsel %vm565, %v556, %v558
  %v570 = vsel %vm565, %v554, %v556
  %v571 = vsel %vm565, %v552, %v554
  %v572 = vsel %vm565, %v550, %v552
  %v573 = vsel %vm565, %v548, %v550
  %v574 = vsel %vm565, %v546, %v548
  %v575 = vsel %vm565, %v544, %v546
  %v576 = vsel %vm565, %v542, %v544
  %v577 = vsel %vm565, %v540, %v542
  %v578 = vsel %vm565, %v538, %v540
  %v579 = vsel %vm565, %v536, %v538
  %v580 = vsel %vm565, %v534, %v536
  %v581 = vsel %vm565, %v564, %v534
  %v582 = vsel %vm92, %v581, 0.0
  %v583 = vsel %vm93, %v580, 0.0
  %v584 = vsel %vm94, %v579, 0.0
  %v585 = vsel %vm95, %v578, 0.0
  %v586 = vsel %vm96, %v577, 0.0
  %v587 = vsel %vm97, %v576, 0.0
  %v588 = vsel %vm98, %v575, 0.0
  %v589 = vsel %vm99, %v574, 0.0
  %v590 = vsel %vm100, %v573, 0.0
  %v591 = vsel %vm101, %v572, 0.0
  %v592 = vsel %vm102, %v571, 0.0
  %v593 = vsel %vm103, %v570, 0.0
  %v594 = vsel %vm104, %v569, 0.0
  %v595 = vsel %vm105, %v568, 0.0
  %v596 = vsel %vm106, %v567, 0.0
  %v597 = vsel %vm107, %v566, 0.0
  %v614 = vcombine.low %v582, %v583
  %v615 = vcombine.low %v584, %v585
  %v616 = vcombine.low %v586, %v587
  %v617 = vcombine.low %v588, %v589
  %v619 = vunpack.c.l.s4 1966171168
  %v620 = vunpack.c.0.s8 %v619
  %v621 = vlaneseq
  %v622 = vshrl.u32 %v621, 7
  %v623 = vsub.s32 %v620, %v622
  %v624 = vrot.slane %v614, %v623
  %v626 = vunpack.c.l.s4 1966171168
  %v627 = vunpack.c.0.s8 %v626
  %v628 = vlaneseq
  %v629 = vshrl.u32 %v628, 7
  %v630 = vsub.s32 %v627, %v629
  %v631 = vrot.slane %v615, %v630
  %v633 = vunpack.c.l.s4 1966171168
  %v634 = vunpack.c.0.s8 %v633
  %v635 = vlaneseq
  %v636 = vshrl.u32 %v635, 7
  %v637 = vsub.s32 %v634, %v636
  %v638 = vrot.slane %v616, %v637
  %v640 = vunpack.c.l.s4 1966171168
  %v641 = vunpack.c.0.s8 %v640
  %v642 = vlaneseq
  %v643 = vshrl.u32 %v642, 7
  %v644 = vsub.s32 %v641, %v643
  %v645 = vrot.slane %v617, %v644
  %v646 = vcombine.low %v624, %v631
  %v647 = vcombine.low %v638, %v645
  %v649 = vunpack.c.l.s4 1966171168
  %v650 = vunpack.c.0.s8 %v649
  %v651 = vlaneseq
  %v652 = vshrl.u32 %v651, 7
  %v653 = vsub.s32 %v650, %v652
  %v654 = vrot.slane %v646, %v653
  %v656 = vunpack.c.l.s4 1966171168
  %v657 = vunpack.c.0.s8 %v656
  %v658 = vlaneseq
  %v659 = vshrl.u32 %v658, 7
  %v660 = vsub.s32 %v657, %v659
  %v661 = vrot.slane %v647, %v660
  %v662 = vcombine.low %v654, %v661
  %v663 = vcombine.low %v590, %v591
  %v664 = vcombine.low %v592, %v593
  %v665 = vcombine.low %v594, %v595
  %v666 = vcombine.low %v596, %v597
  %v668 = vunpack.c.l.s4 1966171168
  %v669 = vunpack.c.0.s8 %v668
  %v670 = vlaneseq
  %v671 = vshrl.u32 %v670, 7
  %v672 = vsub.s32 %v669, %v671
  %v673 = vrot.slane %v663, %v672
  %v675 = vunpack.c.l.s4 1966171168
  %v676 = vunpack.c.0.s8 %v675
  %v677 = vlaneseq
  %v678 = vshrl.u32 %v677, 7
  %v679 = vsub.s32 %v676, %v678
  %v680 = vrot.slane %v664, %v679
  %v682 = vunpack.c.l.s4 1966171168
  %v683 = vunpack.c.0.s8 %v682
  %v684 = vlaneseq
  %v685 = vshrl.u32 %v684, 7
  %v686 = vsub.s32 %v683, %v685
  %v687 = vrot.slane %v665, %v686
  %v689 = vunpack.c.l.s4 1966171168
  %v690 = vunpack.c.0.s8 %v689
  %v691 = vlaneseq
  %v692 = vshrl.u32 %v691, 7
  %v693 = vsub.s32 %v690, %v692
  %v694 = vrot.slane %v666, %v693
  %v695 = vcombine.low %v673, %v680
  %v696 = vcombine.low %v687, %v694
  %v698 = vunpack.c.l.s4 1966171168
  %v699 = vunpack.c.0.s8 %v698
  %v700 = vlaneseq
  %v701 = vshrl.u32 %v700, 7
  %v702 = vsub.s32 %v699, %v701
  %v703 = vrot.slane %v695, %v702
  %v705 = vunpack.c.l.s4 1966171168
  %v706 = vunpack.c.0.s8 %v705
  %v707 = vlaneseq
  %v708 = vshrl.u32 %v707, 7
  %v709 = vsub.s32 %v706, %v708
  %v710 = vrot.slane %v696, %v709
  %v711 = vcombine.low %v703, %v710
  %s714 = scalar_lea.vmem [#allocation2], 1
  %715 = vst [vmem:[%s714] ss:$8 sm:$0xf] %v662
  %716 = vst [vmem:[%s714] ss:$8 sm:$0xf0] %v662
  %s717 = scalar_lea.vmem [#allocation2], 65
  %718 = vst [vmem:[%s717] ss:$8 sm:$0xf] %v711
  %719 = vst [vmem:[%s717] ss:$8 sm:$0xf0] %v711
  %720 = vrot.lane.b32.xlu0 %v270, 15
  %v721 = vpop.permute.xlu0 %720
  %722 = vrot.lane.b32.xlu0 %v274, 15
  %v723 = vpop.permute.xlu0 %722
  %724 = vrot.lane.b32.xlu0 %v278, 15
  %v725 = vpop.permute.xlu0 %724
  %726 = vrot.lane.b32.xlu0 %v282, 15
  %v727 = vpop.permute.xlu0 %726
  %728 = vrot.lane.b32.xlu0 %v286, 15
  %v729 = vpop.permute.xlu0 %728
  %730 = vrot.lane.b32.xlu0 %v290, 15
  %v731 = vpop.permute.xlu0 %730
  %732 = vrot.lane.b32.xlu0 %v294, 15
  %v733 = vpop.permute.xlu0 %732
  %734 = vrot.lane.b32.xlu0 %v298, 15
  %v735 = vpop.permute.xlu0 %734
  %736 = vrot.lane.b32.xlu0 %v302, 15
  %v737 = vpop.permute.xlu0 %736
  %738 = vrot.lane.b32.xlu0 %v306, 15
  %v739 = vpop.permute.xlu0 %738
  %740 = vrot.lane.b32.xlu0 %v310, 15
  %v741 = vpop.permute.xlu0 %740
  %742 = vrot.lane.b32.xlu0 %v314, 15
  %v743 = vpop.permute.xlu0 %742
  %744 = vrot.lane.b32.xlu0 %v318, 15
  %v745 = vpop.permute.xlu0 %744
  %746 = vrot.lane.b32.xlu0 %v322, 15
  %v747 = vpop.permute.xlu0 %746
  %748 = vrot.lane.b32.xlu0 %v326, 15
  %v749 = vpop.permute.xlu0 %748
  %750 = vrot.lane.b32.xlu0 %v330, 15
  %v751 = vpop.permute.xlu0 %750
  %vm752 = vcmp.lt.s32.totalorder %v28, 15
  %v753 = vsel %vm752, %v749, %v751
  %v754 = vsel %vm752, %v747, %v749
  %v755 = vsel %vm752, %v745, %v747
  %v756 = vsel %vm752, %v743, %v745
  %v757 = vsel %vm752, %v741, %v743
  %v758 = vsel %vm752, %v739, %v741
  %v759 = vsel %vm752, %v737, %v739
  %v760 = vsel %vm752, %v735, %v737
  %v761 = vsel %vm752, %v733, %v735
  %v762 = vsel %vm752, %v731, %v733
  %v763 = vsel %vm752, %v729, %v731
  %v764 = vsel %vm752, %v727, %v729
  %v765 = vsel %vm752, %v725, %v727
  %v766 = vsel %vm752, %v723, %v725
  %v767 = vsel %vm752, %v721, %v723
  %v768 = vsel %vm752, %v751, %v721
  %v769 = vsel %vm172, %v768, 0.0
  %v770 = vsel %vm173, %v767, 0.0
  %v771 = vsel %vm174, %v766, 0.0
  %v772 = vsel %vm175, %v765, 0.0
  %v773 = vsel %vm176, %v764, 0.0
  %v774 = vsel %vm177, %v763, 0.0
  %v775 = vsel %vm178, %v762, 0.0
  %v776 = vsel %vm179, %v761, 0.0
  %v777 = vsel %vm180, %v760, 0.0
  %v778 = vsel %vm181, %v759, 0.0
  %v779 = vsel %vm182, %v758, 0.0
  %v780 = vsel %vm183, %v757, 0.0
  %v781 = vsel %vm184, %v756, 0.0
  %v782 = vsel %vm185, %v755, 0.0
  %v783 = vsel %vm186, %v754, 0.0
  %v784 = vsel %vm187, %v753, 0.0
  %v801 = vcombine.low %v769, %v770
  %v802 = vcombine.low %v771, %v772
  %v803 = vcombine.low %v773, %v774
  %v804 = vcombine.low %v775, %v776
  %v806 = vunpack.c.l.s4 1966171168
  %v807 = vunpack.c.0.s8 %v806
  %v808 = vlaneseq
  %v809 = vshrl.u32 %v808, 7
  %v810 = vsub.s32 %v807, %v809
  %v811 = vrot.slane %v801, %v810
  %v813 = vunpack.c.l.s4 1966171168
  %v814 = vunpack.c.0.s8 %v813
  %v815 = vlaneseq
  %v816 = vshrl.u32 %v815, 7
  %v817 = vsub.s32 %v814, %v816
  %v818 = vrot.slane %v802, %v817
  %v820 = vunpack.c.l.s4 1966171168
  %v821 = vunpack.c.0.s8 %v820
  %v822 = vlaneseq
  %v823 = vshrl.u32 %v822, 7
  %v824 = vsub.s32 %v821, %v823
  %v825 = vrot.slane %v803, %v824
  %v827 = vunpack.c.l.s4 1966171168
  %v828 = vunpack.c.0.s8 %v827
  %v829 = vlaneseq
  %v830 = vshrl.u32 %v829, 7
  %v831 = vsub.s32 %v828, %v830
  %v832 = vrot.slane %v804, %v831
  %v833 = vcombine.low %v811, %v818
  %v834 = vcombine.low %v825, %v832
  %v836 = vunpack.c.l.s4 1966171168
  %v837 = vunpack.c.0.s8 %v836
  %v838 = vlaneseq
  %v839 = vshrl.u32 %v838, 7
  %v840 = vsub.s32 %v837, %v839
  %v841 = vrot.slane %v833, %v840
  %v843 = vunpack.c.l.s4 1966171168
  %v844 = vunpack.c.0.s8 %v843
  %v845 = vlaneseq
  %v846 = vshrl.u32 %v845, 7
  %v847 = vsub.s32 %v844, %v846
  %v848 = vrot.slane %v834, %v847
  %v849 = vcombine.low %v841, %v848
  %v850 = vcombine.low %v777, %v778
  %v851 = vcombine.low %v779, %v780
  %v852 = vcombine.low %v781, %v782
  %v853 = vcombine.low %v783, %v784
  %v855 = vunpack.c.l.s4 1966171168
  %v856 = vunpack.c.0.s8 %v855
  %v857 = vlaneseq
  %v858 = vshrl.u32 %v857, 7
  %v859 = vsub.s32 %v856, %v858
  %v860 = vrot.slane %v850, %v859
  %v862 = vunpack.c.l.s4 1966171168
  %v863 = vunpack.c.0.s8 %v862
  %v864 = vlaneseq
  %v865 = vshrl.u32 %v864, 7
  %v866 = vsub.s32 %v863, %v865
  %v867 = vrot.slane %v851, %v866
  %v869 = vunpack.c.l.s4 1966171168
  %v870 = vunpack.c.0.s8 %v869
  %v871 = vlaneseq
  %v872 = vshrl.u32 %v871, 7
  %v873 = vsub.s32 %v870, %v872
  %v874 = vrot.slane %v852, %v873
  %v876 = vunpack.c.l.s4 1966171168
  %v877 = vunpack.c.0.s8 %v876
  %v878 = vlaneseq
  %v879 = vshrl.u32 %v878, 7
  %v880 = vsub.s32 %v877, %v879
  %v881 = vrot.slane %v853, %v880
  %v882 = vcombine.low %v860, %v867
  %v883 = vcombine.low %v874, %v881
  %v885 = vunpack.c.l.s4 1966171168
  %v886 = vunpack.c.0.s8 %v885
  %v887 = vlaneseq
  %v888 = vshrl.u32 %v887, 7
  %v889 = vsub.s32 %v886, %v888
  %v890 = vrot.slane %v882, %v889
  %v892 = vunpack.c.l.s4 1966171168
  %v893 = vunpack.c.0.s8 %v892
  %v894 = vlaneseq
  %v895 = vshrl.u32 %v894, 7
  %v896 = vsub.s32 %v893, %v895
  %v897 = vrot.slane %v883, %v896
  %v898 = vcombine.low %v890, %v897
  %s901 = scalar_lea.vmem [#allocation2], 2
  %902 = vst [vmem:[%s901] ss:$8 sm:$0xf] %v849
  %903 = vst [vmem:[%s901] ss:$8 sm:$0xf0] %v849
  %s904 = scalar_lea.vmem [#allocation2], 66
  %905 = vst [vmem:[%s904] ss:$8 sm:$0xf] %v898
  %906 = vst [vmem:[%s904] ss:$8 sm:$0xf0] %v898
  %907 = vrot.lane.b32.xlu0 %v270, 1
  %v908 = vpop.permute.xlu0 %907
  %909 = vrot.lane.b32.xlu0 %v274, 1
  %v910 = vpop.permute.xlu0 %909
  %911 = vrot.lane.b32.xlu0 %v278, 1
  %v912 = vpop.permute.xlu0 %911
  %913 = vrot.lane.b32.xlu0 %v282, 1
  %v914 = vpop.permute.xlu0 %913
  %915 = vrot.lane.b32.xlu0 %v286, 1
  %v916 = vpop.permute.xlu0 %915
  %917 = vrot.lane.b32.xlu0 %v290, 1
  %v918 = vpop.permute.xlu0 %917
  %919 = vrot.lane.b32.xlu0 %v294, 1
  %v920 = vpop.permute.xlu0 %919
  %921 = vrot.lane.b32.xlu0 %v298, 1
  %v922 = vpop.permute.xlu0 %921
  %923 = vrot.lane.b32.xlu0 %v302, 1
  %v924 = vpop.permute.xlu0 %923
  %925 = vrot.lane.b32.xlu0 %v306, 1
  %v926 = vpop.permute.xlu0 %925
  %927 = vrot.lane.b32.xlu0 %v310, 1
  %v928 = vpop.permute.xlu0 %927
  %929 = vrot.lane.b32.xlu0 %v314, 1
  %v930 = vpop.permute.xlu0 %929
  %931 = vrot.lane.b32.xlu0 %v318, 1
  %v932 = vpop.permute.xlu0 %931
  %933 = vrot.lane.b32.xlu0 %v322, 1
  %v934 = vpop.permute.xlu0 %933
  %935 = vrot.lane.b32.xlu0 %v326, 1
  %v936 = vpop.permute.xlu0 %935
  %937 = vrot.lane.b32.xlu0 %v330, 1
  %v938 = vpop.permute.xlu0 %937
  %vm939 = vcmp.lt.s32.totalorder %v28, 1
  %v940 = vsel %vm939, %v936, %v938
  %v941 = vsel %vm939, %v934, %v936
  %v942 = vsel %vm939, %v932, %v934
  %v943 = vsel %vm939, %v930, %v932
  %v944 = vsel %vm939, %v928, %v930
  %v945 = vsel %vm939, %v926, %v928
  %v946 = vsel %vm939, %v924, %v926
  %v947 = vsel %vm939, %v922, %v924
  %v948 = vsel %vm939, %v920, %v922
  %v949 = vsel %vm939, %v918, %v920
  %v950 = vsel %vm939, %v916, %v918
  %v951 = vsel %vm939, %v914, %v916
  %v952 = vsel %vm939, %v912, %v914
  %v953 = vsel %vm939, %v910, %v912
  %v954 = vsel %vm939, %v908, %v910
  %v955 = vsel %vm939, %v938, %v908
  %v956 = vsel %vm124, %v955, 0.0
  %v957 = vsel %vm125, %v954, 0.0
  %v958 = vsel %vm126, %v953, 0.0
  %v959 = vsel %vm127, %v952, 0.0
  %v960 = vsel %vm128, %v951, 0.0
  %v961 = vsel %vm129, %v950, 0.0
  %v962 = vsel %vm130, %v949, 0.0
  %v963 = vsel %vm131, %v948, 0.0
  %v964 = vsel %vm132, %v947, 0.0
  %v965 = vsel %vm133, %v946, 0.0
  %v966 = vsel %vm134, %v945, 0.0
  %v967 = vsel %vm135, %v944, 0.0
  %v968 = vsel %vm136, %v943, 0.0
  %v969 = vsel %vm137, %v942, 0.0
  %v970 = vsel %vm138, %v941, 0.0
  %v971 = vsel %vm139, %v940, 0.0
  %v988 = vcombine.low %v956, %v957
  %v989 = vcombine.low %v958, %v959
  %v990 = vcombine.low %v960, %v961
  %v991 = vcombine.low %v962, %v963
  %v993 = vunpack.c.l.s4 1966171168
  %v994 = vunpack.c.0.s8 %v993
  %v995 = vlaneseq
  %v996 = vshrl.u32 %v995, 7
  %v997 = vsub.s32 %v994, %v996
  %v998 = vrot.slane %v988, %v997
  %v1000 = vunpack.c.l.s4 1966171168
  %v1001 = vunpack.c.0.s8 %v1000
  %v1002 = vlaneseq
  %v1003 = vshrl.u32 %v1002, 7
  %v1004 = vsub.s32 %v1001, %v1003
  %v1005 = vrot.slane %v989, %v1004
  %v1007 = vunpack.c.l.s4 1966171168
  %v1008 = vunpack.c.0.s8 %v1007
  %v1009 = vlaneseq
  %v1010 = vshrl.u32 %v1009, 7
  %v1011 = vsub.s32 %v1008, %v1010
  %v1012 = vrot.slane %v990, %v1011
  %v1014 = vunpack.c.l.s4 1966171168
  %v1015 = vunpack.c.0.s8 %v1014
  %v1016 = vlaneseq
  %v1017 = vshrl.u32 %v1016, 7
  %v1018 = vsub.s32 %v1015, %v1017
  %v1019 = vrot.slane %v991, %v1018
  %v1020 = vcombine.low %v998, %v1005
  %v1021 = vcombine.low %v1012, %v1019
  %v1023 = vunpack.c.l.s4 1966171168
  %v1024 = vunpack.c.0.s8 %v1023
  %v1025 = vlaneseq
  %v1026 = vshrl.u32 %v1025, 7
  %v1027 = vsub.s32 %v1024, %v1026
  %v1028 = vrot.slane %v1020, %v1027
  %v1030 = vunpack.c.l.s4 1966171168
  %v1031 = vunpack.c.0.s8 %v1030
  %v1032 = vlaneseq
  %v1033 = vshrl.u32 %v1032, 7
  %v1034 = vsub.s32 %v1031, %v1033
  %v1035 = vrot.slane %v1021, %v1034
  %v1036 = vcombine.low %v1028, %v1035
  %v1037 = vcombine.low %v964, %v965
  %v1038 = vcombine.low %v966, %v967
  %v1039 = vcombine.low %v968, %v969
  %v1040 = vcombine.low %v970, %v971
  %v1042 = vunpack.c.l.s4 1966171168
  %v1043 = vunpack.c.0.s8 %v1042
  %v1044 = vlaneseq
  %v1045 = vshrl.u32 %v1044, 7
  %v1046 = vsub.s32 %v1043, %v1045
  %v1047 = vrot.slane %v1037, %v1046
  %v1049 = vunpack.c.l.s4 1966171168
  %v1050 = vunpack.c.0.s8 %v1049
  %v1051 = vlaneseq
  %v1052 = vshrl.u32 %v1051, 7
  %v1053 = vsub.s32 %v1050, %v1052
  %v1054 = vrot.slane %v1038, %v1053
  %v1056 = vunpack.c.l.s4 1966171168
  %v1057 = vunpack.c.0.s8 %v1056
  %v1058 = vlaneseq
  %v1059 = vshrl.u32 %v1058, 7
  %v1060 = vsub.s32 %v1057, %v1059
  %v1061 = vrot.slane %v1039, %v1060
  %v1063 = vunpack.c.l.s4 1966171168
  %v1064 = vunpack.c.0.s8 %v1063
  %v1065 = vlaneseq
  %v1066 = vshrl.u32 %v1065, 7
  %v1067 = vsub.s32 %v1064, %v1066
  %v1068 = vrot.slane %v1040, %v1067
  %v1069 = vcombine.low %v1047, %v1054
  %v1070 = vcombine.low %v1061, %v1068
  %v1072 = vunpack.c.l.s4 1966171168
  %v1073 = vunpack.c.0.s8 %v1072
  %v1074 = vlaneseq
  %v1075 = vshrl.u32 %v1074, 7
  %v1076 = vsub.s32 %v1073, %v1075
  %v1077 = vrot.slane %v1069, %v1076
  %v1079 = vunpack.c.l.s4 1966171168
  %v1080 = vunpack.c.0.s8 %v1079
  %v1081 = vlaneseq
  %v1082 = vshrl.u32 %v1081, 7
  %v1083 = vsub.s32 %v1080, %v1082
  %v1084 = vrot.slane %v1070, %v1083
  %v1085 = vcombine.low %v1077, %v1084
  %s1088 = scalar_lea.vmem [#allocation2], 3
  %1089 = vst [vmem:[%s1088] ss:$8 sm:$0xf] %v1036
  %1090 = vst [vmem:[%s1088] ss:$8 sm:$0xf0] %v1036
  %s1091 = scalar_lea.vmem [#allocation2], 67
  %1092 = vst [vmem:[%s1091] ss:$8 sm:$0xf] %v1085
  %1093 = vst [vmem:[%s1091] ss:$8 sm:$0xf0] %v1085
  %s1094 = scalar_lea.vmem [#allocation2], 4
  %1095 = vst [vmem:[%s1094] ss:$8 sm:$0xf] %v263
  %1096 = vst [vmem:[%s1094] ss:$8 sm:$0xf0] %v263
  %s1097 = scalar_lea.vmem [#allocation2], 68
  %1098 = vst [vmem:[%s1097] ss:$8 sm:$0xf] %v264
  %1099 = vst [vmem:[%s1097] ss:$8 sm:$0xf0] %v264
  %1100 = vrot.lane.b32.xlu0 %v270, 127
  %v1101 = vpop.permute.xlu0 %1100
  %1102 = vrot.lane.b32.xlu0 %v274, 127
  %v1103 = vpop.permute.xlu0 %1102
  %1104 = vrot.lane.b32.xlu0 %v278, 127
  %v1105 = vpop.permute.xlu0 %1104
  %1106 = vrot.lane.b32.xlu0 %v282, 127
  %v1107 = vpop.permute.xlu0 %1106
  %1108 = vrot.lane.b32.xlu0 %v286, 127
  %v1109 = vpop.permute.xlu0 %1108
  %1110 = vrot.lane.b32.xlu0 %v290, 127
  %v1111 = vpop.permute.xlu0 %1110
  %1112 = vrot.lane.b32.xlu0 %v294, 127
  %v1113 = vpop.permute.xlu0 %1112
  %1114 = vrot.lane.b32.xlu0 %v298, 127
  %v1115 = vpop.permute.xlu0 %1114
  %1116 = vrot.lane.b32.xlu0 %v302, 127
  %v1117 = vpop.permute.xlu0 %1116
  %1118 = vrot.lane.b32.xlu0 %v306, 127
  %v1119 = vpop.permute.xlu0 %1118
  %1120 = vrot.lane.b32.xlu0 %v310, 127
  %v1121 = vpop.permute.xlu0 %1120
  %1122 = vrot.lane.b32.xlu0 %v314, 127
  %v1123 = vpop.permute.xlu0 %1122
  %1124 = vrot.lane.b32.xlu0 %v318, 127
  %v1125 = vpop.permute.xlu0 %1124
  %1126 = vrot.lane.b32.xlu0 %v322, 127
  %v1127 = vpop.permute.xlu0 %1126
  %1128 = vrot.lane.b32.xlu0 %v326, 127
  %v1129 = vpop.permute.xlu0 %1128
  %1130 = vrot.lane.b32.xlu0 %v330, 127
  %v1131 = vpop.permute.xlu0 %1130
  %vm1132 = vcmp.lt.s32.totalorder %v28, 127
  %v1133 = vsel %vm1132, %v1129, %v1131
  %v1134 = vsel %vm1132, %v1127, %v1129
  %v1135 = vsel %vm1132, %v1125, %v1127
  %v1136 = vsel %vm1132, %v1123, %v1125
  %v1137 = vsel %vm1132, %v1121, %v1123
  %v1138 = vsel %vm1132, %v1119, %v1121
  %v1139 = vsel %vm1132, %v1117, %v1119
  %v1140 = vsel %vm1132, %v1115, %v1117
  %v1141 = vsel %vm1132, %v1113, %v1115
  %v1142 = vsel %vm1132, %v1111, %v1113
  %v1143 = vsel %vm1132, %v1109, %v1111
  %v1144 = vsel %vm1132, %v1107, %v1109
  %v1145 = vsel %vm1132, %v1105, %v1107
  %v1146 = vsel %vm1132, %v1103, %v1105
  %v1147 = vsel %vm1132, %v1101, %v1103
  %v1148 = vsel %vm1132, %v1131, %v1101
  %v1149 = vsel %vm140, %v1147, 0.0
  %v1150 = vsel %vm141, %v1146, 0.0
  %v1151 = vsel %vm142, %v1145, 0.0
  %v1152 = vsel %vm143, %v1144, 0.0
  %v1153 = vsel %vm144, %v1143, 0.0
  %v1154 = vsel %vm145, %v1142, 0.0
  %v1155 = vsel %vm146, %v1141, 0.0
  %v1156 = vsel %vm147, %v1140, 0.0
  %v1157 = vsel %vm148, %v1139, 0.0
  %v1158 = vsel %vm149, %v1138, 0.0
  %v1159 = vsel %vm150, %v1137, 0.0
  %v1160 = vsel %vm151, %v1136, 0.0
  %v1161 = vsel %vm152, %v1135, 0.0
  %v1162 = vsel %vm153, %v1134, 0.0
  %v1163 = vsel %vm154, %v1133, 0.0
  %v1164 = vsel %vm155, %v1148, 0.0
  %v1181 = vcombine.low %v1149, %v1150
  %v1182 = vcombine.low %v1151, %v1152
  %v1183 = vcombine.low %v1153, %v1154
  %v1184 = vcombine.low %v1155, %v1156
  %v1186 = vunpack.c.l.s4 1966171168
  %v1187 = vunpack.c.0.s8 %v1186
  %v1188 = vlaneseq
  %v1189 = vshrl.u32 %v1188, 7
  %v1190 = vsub.s32 %v1187, %v1189
  %v1191 = vrot.slane %v1181, %v1190
  %v1193 = vunpack.c.l.s4 1966171168
  %v1194 = vunpack.c.0.s8 %v1193
  %v1195 = vlaneseq
  %v1196 = vshrl.u32 %v1195, 7
  %v1197 = vsub.s32 %v1194, %v1196
  %v1198 = vrot.slane %v1182, %v1197
  %v1200 = vunpack.c.l.s4 1966171168
  %v1201 = vunpack.c.0.s8 %v1200
  %v1202 = vlaneseq
  %v1203 = vshrl.u32 %v1202, 7
  %v1204 = vsub.s32 %v1201, %v1203
  %v1205 = vrot.slane %v1183, %v1204
  %v1207 = vunpack.c.l.s4 1966171168
  %v1208 = vunpack.c.0.s8 %v1207
  %v1209 = vlaneseq
  %v1210 = vshrl.u32 %v1209, 7
  %v1211 = vsub.s32 %v1208, %v1210
  %v1212 = vrot.slane %v1184, %v1211
  %v1213 = vcombine.low %v1191, %v1198
  %v1214 = vcombine.low %v1205, %v1212
  %v1216 = vunpack.c.l.s4 1966171168
  %v1217 = vunpack.c.0.s8 %v1216
  %v1218 = vlaneseq
  %v1219 = vshrl.u32 %v1218, 7
  %v1220 = vsub.s32 %v1217, %v1219
  %v1221 = vrot.slane %v1213, %v1220
  %v1223 = vunpack.c.l.s4 1966171168
  %v1224 = vunpack.c.0.s8 %v1223
  %v1225 = vlaneseq
  %v1226 = vshrl.u32 %v1225, 7
  %v1227 = vsub.s32 %v1224, %v1226
  %v1228 = vrot.slane %v1214, %v1227
  %v1229 = vcombine.low %v1221, %v1228
  %v1230 = vcombine.low %v1157, %v1158
  %v1231 = vcombine.low %v1159, %v1160
  %v1232 = vcombine.low %v1161, %v1162
  %v1233 = vcombine.low %v1163, %v1164
  %v1235 = vunpack.c.l.s4 1966171168
  %v1236 = vunpack.c.0.s8 %v1235
  %v1237 = vlaneseq
  %v1238 = vshrl.u32 %v1237, 7
  %v1239 = vsub.s32 %v1236, %v1238
  %v1240 = vrot.slane %v1230, %v1239
  %v1242 = vunpack.c.l.s4 1966171168
  %v1243 = vunpack.c.0.s8 %v1242
  %v1244 = vlaneseq
  %v1245 = vshrl.u32 %v1244, 7
  %v1246 = vsub.s32 %v1243, %v1245
  %v1247 = vrot.slane %v1231, %v1246
  %v1249 = vunpack.c.l.s4 1966171168
  %v1250 = vunpack.c.0.s8 %v1249
  %v1251 = vlaneseq
  %v1252 = vshrl.u32 %v1251, 7
  %v1253 = vsub.s32 %v1250, %v1252
  %v1254 = vrot.slane %v1232, %v1253
  %v1256 = vunpack.c.l.s4 1966171168
  %v1257 = vunpack.c.0.s8 %v1256
  %v1258 = vlaneseq
  %v1259 = vshrl.u32 %v1258, 7
  %v1260 = vsub.s32 %v1257, %v1259
  %v1261 = vrot.slane %v1233, %v1260
  %v1262 = vcombine.low %v1240, %v1247
  %v1263 = vcombine.low %v1254, %v1261
  %v1265 = vunpack.c.l.s4 1966171168
  %v1266 = vunpack.c.0.s8 %v1265
  %v1267 = vlaneseq
  %v1268 = vshrl.u32 %v1267, 7
  %v1269 = vsub.s32 %v1266, %v1268
  %v1270 = vrot.slane %v1262, %v1269
  %v1272 = vunpack.c.l.s4 1966171168
  %v1273 = vunpack.c.0.s8 %v1272
  %v1274 = vlaneseq
  %v1275 = vshrl.u32 %v1274, 7
  %v1276 = vsub.s32 %v1273, %v1275
  %v1277 = vrot.slane %v1263, %v1276
  %v1278 = vcombine.low %v1270, %v1277
  %s1281 = scalar_lea.vmem [#allocation2], 5
  %1282 = vst [vmem:[%s1281] ss:$8 sm:$0xf] %v1229
  %1283 = vst [vmem:[%s1281] ss:$8 sm:$0xf0] %v1229
  %s1284 = scalar_lea.vmem [#allocation2], 69
  %1285 = vst [vmem:[%s1284] ss:$8 sm:$0xf] %v1278
  %1286 = vst [vmem:[%s1284] ss:$8 sm:$0xf0] %v1278
  %1287 = vrot.lane.b32.xlu0 %v270, 113
  %v1288 = vpop.permute.xlu0 %1287
  %1289 = vrot.lane.b32.xlu0 %v274, 113
  %v1290 = vpop.permute.xlu0 %1289
  %1291 = vrot.lane.b32.xlu0 %v278, 113
  %v1292 = vpop.permute.xlu0 %1291
  %1293 = vrot.lane.b32.xlu0 %v282, 113
  %v1294 = vpop.permute.xlu0 %1293
  %1295 = vrot.lane.b32.xlu0 %v286, 113
  %v1296 = vpop.permute.xlu0 %1295
  %1297 = vrot.lane.b32.xlu0 %v290, 113
  %v1298 = vpop.permute.xlu0 %1297
  %1299 = vrot.lane.b32.xlu0 %v294, 113
  %v1300 = vpop.permute.xlu0 %1299
  %1301 = vrot.lane.b32.xlu0 %v298, 113
  %v1302 = vpop.permute.xlu0 %1301
  %1303 = vrot.lane.b32.xlu0 %v302, 113
  %v1304 = vpop.permute.xlu0 %1303
  %1305 = vrot.lane.b32.xlu0 %v306, 113
  %v1306 = vpop.permute.xlu0 %1305
  %1307 = vrot.lane.b32.xlu0 %v310, 113
  %v1308 = vpop.permute.xlu0 %1307
  %1309 = vrot.lane.b32.xlu0 %v314, 113
  %v1310 = vpop.permute.xlu0 %1309
  %1311 = vrot.lane.b32.xlu0 %v318, 113
  %v1312 = vpop.permute.xlu0 %1311
  %1313 = vrot.lane.b32.xlu0 %v322, 113
  %v1314 = vpop.permute.xlu0 %1313
  %1315 = vrot.lane.b32.xlu0 %v326, 113
  %v1316 = vpop.permute.xlu0 %1315
  %1317 = vrot.lane.b32.xlu0 %v330, 113
  %v1318 = vpop.permute.xlu0 %1317
  %vm1319 = vcmp.lt.s32.totalorder %v28, 113
  %v1320 = vsel %vm1319, %v1316, %v1318
  %v1321 = vsel %vm1319, %v1314, %v1316
  %v1322 = vsel %vm1319, %v1312, %v1314
  %v1323 = vsel %vm1319, %v1310, %v1312
  %v1324 = vsel %vm1319, %v1308, %v1310
  %v1325 = vsel %vm1319, %v1306, %v1308
  %v1326 = vsel %vm1319, %v1304, %v1306
  %v1327 = vsel %vm1319, %v1302, %v1304
  %v1328 = vsel %vm1319, %v1300, %v1302
  %v1329 = vsel %vm1319, %v1298, %v1300
  %v1330 = vsel %vm1319, %v1296, %v1298
  %v1331 = vsel %vm1319, %v1294, %v1296
  %v1332 = vsel %vm1319, %v1292, %v1294
  %v1333 = vsel %vm1319, %v1290, %v1292
  %v1334 = vsel %vm1319, %v1288, %v1290
  %v1335 = vsel %vm1319, %v1318, %v1288
  %v1336 = vsel %vm188, %v1334, 0.0
  %v1337 = vsel %vm189, %v1333, 0.0
  %v1338 = vsel %vm190, %v1332, 0.0
  %v1339 = vsel %vm191, %v1331, 0.0
  %v1340 = vsel %vm192, %v1330, 0.0
  %v1341 = vsel %vm193, %v1329, 0.0
  %v1342 = vsel %vm194, %v1328, 0.0
  %v1343 = vsel %vm195, %v1327, 0.0
  %v1344 = vsel %vm196, %v1326, 0.0
  %v1345 = vsel %vm197, %v1325, 0.0
  %v1346 = vsel %vm198, %v1324, 0.0
  %v1347 = vsel %vm199, %v1323, 0.0
  %v1348 = vsel %vm200, %v1322, 0.0
  %v1349 = vsel %vm201, %v1321, 0.0
  %v1350 = vsel %vm202, %v1320, 0.0
  %v1351 = vsel %vm203, %v1335, 0.0
  %v1368 = vcombine.low %v1336, %v1337
  %v1369 = vcombine.low %v1338, %v1339
  %v1370 = vcombine.low %v1340, %v1341
  %v1371 = vcombine.low %v1342, %v1343
  %v1373 = vunpack.c.l.s4 1966171168
  %v1374 = vunpack.c.0.s8 %v1373
  %v1375 = vlaneseq
  %v1376 = vshrl.u32 %v1375, 7
  %v1377 = vsub.s32 %v1374, %v1376
  %v1378 = vrot.slane %v1368, %v1377
  %v1380 = vunpack.c.l.s4 1966171168
  %v1381 = vunpack.c.0.s8 %v1380
  %v1382 = vlaneseq
  %v1383 = vshrl.u32 %v1382, 7
  %v1384 = vsub.s32 %v1381, %v1383
  %v1385 = vrot.slane %v1369, %v1384
  %v1387 = vunpack.c.l.s4 1966171168
  %v1388 = vunpack.c.0.s8 %v1387
  %v1389 = vlaneseq
  %v1390 = vshrl.u32 %v1389, 7
  %v1391 = vsub.s32 %v1388, %v1390
  %v1392 = vrot.slane %v1370, %v1391
  %v1394 = vunpack.c.l.s4 1966171168
  %v1395 = vunpack.c.0.s8 %v1394
  %v1396 = vlaneseq
  %v1397 = vshrl.u32 %v1396, 7
  %v1398 = vsub.s32 %v1395, %v1397
  %v1399 = vrot.slane %v1371, %v1398
  %v1400 = vcombine.low %v1378, %v1385
  %v1401 = vcombine.low %v1392, %v1399
  %v1403 = vunpack.c.l.s4 1966171168
  %v1404 = vunpack.c.0.s8 %v1403
  %v1405 = vlaneseq
  %v1406 = vshrl.u32 %v1405, 7
  %v1407 = vsub.s32 %v1404, %v1406
  %v1408 = vrot.slane %v1400, %v1407
  %v1410 = vunpack.c.l.s4 1966171168
  %v1411 = vunpack.c.0.s8 %v1410
  %v1412 = vlaneseq
  %v1413 = vshrl.u32 %v1412, 7
  %v1414 = vsub.s32 %v1411, %v1413
  %v1415 = vrot.slane %v1401, %v1414
  %v1416 = vcombine.low %v1408, %v1415
  %v1417 = vcombine.low %v1344, %v1345
  %v1418 = vcombine.low %v1346, %v1347
  %v1419 = vcombine.low %v1348, %v1349
  %v1420 = vcombine.low %v1350, %v1351
  %v1422 = vunpack.c.l.s4 1966171168
  %v1423 = vunpack.c.0.s8 %v1422
  %v1424 = vlaneseq
  %v1425 = vshrl.u32 %v1424, 7
  %v1426 = vsub.s32 %v1423, %v1425
  %v1427 = vrot.slane %v1417, %v1426
  %v1429 = vunpack.c.l.s4 1966171168
  %v1430 = vunpack.c.0.s8 %v1429
  %v1431 = vlaneseq
  %v1432 = vshrl.u32 %v1431, 7
  %v1433 = vsub.s32 %v1430, %v1432
  %v1434 = vrot.slane %v1418, %v1433
  %v1436 = vunpack.c.l.s4 1966171168
  %v1437 = vunpack.c.0.s8 %v1436
  %v1438 = vlaneseq
  %v1439 = vshrl.u32 %v1438, 7
  %v1440 = vsub.s32 %v1437, %v1439
  %v1441 = vrot.slane %v1419, %v1440
  %v1443 = vunpack.c.l.s4 1966171168
  %v1444 = vunpack.c.0.s8 %v1443
  %v1445 = vlaneseq
  %v1446 = vshrl.u32 %v1445, 7
  %v1447 = vsub.s32 %v1444, %v1446
  %v1448 = vrot.slane %v1420, %v1447
  %v1449 = vcombine.low %v1427, %v1434
  %v1450 = vcombine.low %v1441, %v1448
  %v1452 = vunpack.c.l.s4 1966171168
  %v1453 = vunpack.c.0.s8 %v1452
  %v1454 = vlaneseq
  %v1455 = vshrl.u32 %v1454, 7
  %v1456 = vsub.s32 %v1453, %v1455
  %v1457 = vrot.slane %v1449, %v1456
  %v1459 = vunpack.c.l.s4 1966171168
  %v1460 = vunpack.c.0.s8 %v1459
  %v1461 = vlaneseq
  %v1462 = vshrl.u32 %v1461, 7
  %v1463 = vsub.s32 %v1460, %v1462
  %v1464 = vrot.slane %v1450, %v1463
  %v1465 = vcombine.low %v1457, %v1464
  %s1468 = scalar_lea.vmem [#allocation2], 6
  %1469 = vst [vmem:[%s1468] ss:$8 sm:$0xf] %v1416
  %1470 = vst [vmem:[%s1468] ss:$8 sm:$0xf0] %v1416
  %s1471 = scalar_lea.vmem [#allocation2], 70
  %1472 = vst [vmem:[%s1471] ss:$8 sm:$0xf] %v1465
  %1473 = vst [vmem:[%s1471] ss:$8 sm:$0xf0] %v1465
  %1474 = vrot.lane.b32.xlu0 %v270, 112
  %v1475 = vpop.permute.xlu0 %1474
  %1476 = vrot.lane.b32.xlu0 %v274, 112
  %v1477 = vpop.permute.xlu0 %1476
  %1478 = vrot.lane.b32.xlu0 %v278, 112
  %v1479 = vpop.permute.xlu0 %1478
  %1480 = vrot.lane.b32.xlu0 %v282, 112
  %v1481 = vpop.permute.xlu0 %1480
  %1482 = vrot.lane.b32.xlu0 %v286, 112
  %v1483 = vpop.permute.xlu0 %1482
  %1484 = vrot.lane.b32.xlu0 %v290, 112
  %v1485 = vpop.permute.xlu0 %1484
  %1486 = vrot.lane.b32.xlu0 %v294, 112
  %v1487 = vpop.permute.xlu0 %1486
  %1488 = vrot.lane.b32.xlu0 %v298, 112
  %v1489 = vpop.permute.xlu0 %1488
  %1490 = vrot.lane.b32.xlu0 %v302, 112
  %v1491 = vpop.permute.xlu0 %1490
  %1492 = vrot.lane.b32.xlu0 %v306, 112
  %v1493 = vpop.permute.xlu0 %1492
  %1494 = vrot.lane.b32.xlu0 %v310, 112
  %v1495 = vpop.permute.xlu0 %1494
  %1496 = vrot.lane.b32.xlu0 %v314, 112
  %v1497 = vpop.permute.xlu0 %1496
  %1498 = vrot.lane.b32.xlu0 %v318, 112
  %v1499 = vpop.permute.xlu0 %1498
  %1500 = vrot.lane.b32.xlu0 %v322, 112
  %v1501 = vpop.permute.xlu0 %1500
  %1502 = vrot.lane.b32.xlu0 %v326, 112
  %v1503 = vpop.permute.xlu0 %1502
  %1504 = vrot.lane.b32.xlu0 %v330, 112
  %v1505 = vpop.permute.xlu0 %1504
  %vm1506 = vcmp.lt.s32.totalorder %v28, 112
  %v1507 = vsel %vm1506, %v1503, %v1505
  %v1508 = vsel %vm1506, %v1501, %v1503
  %v1509 = vsel %vm1506, %v1499, %v1501
  %v1510 = vsel %vm1506, %v1497, %v1499
  %v1511 = vsel %vm1506, %v1495, %v1497
  %v1512 = vsel %vm1506, %v1493, %v1495
  %v1513 = vsel %vm1506, %v1491, %v1493
  %v1514 = vsel %vm1506, %v1489, %v1491
  %v1515 = vsel %vm1506, %v1487, %v1489
  %v1516 = vsel %vm1506, %v1485, %v1487
  %v1517 = vsel %vm1506, %v1483, %v1485
  %v1518 = vsel %vm1506, %v1481, %v1483
  %v1519 = vsel %vm1506, %v1479, %v1481
  %v1520 = vsel %vm1506, %v1477, %v1479
  %v1521 = vsel %vm1506, %v1475, %v1477
  %v1522 = vsel %vm1506, %v1505, %v1475
  %v1523 = vsel %vm108, %v1521, 0.0
  %v1524 = vsel %vm109, %v1520, 0.0
  %v1525 = vsel %vm110, %v1519, 0.0
  %v1526 = vsel %vm111, %v1518, 0.0
  %v1527 = vsel %vm112, %v1517, 0.0
  %v1528 = vsel %vm113, %v1516, 0.0
  %v1529 = vsel %vm114, %v1515, 0.0
  %v1530 = vsel %vm115, %v1514, 0.0
  %v1531 = vsel %vm116, %v1513, 0.0
  %v1532 = vsel %vm117, %v1512, 0.0
  %v1533 = vsel %vm118, %v1511, 0.0
  %v1534 = vsel %vm119, %v1510, 0.0
  %v1535 = vsel %vm120, %v1509, 0.0
  %v1536 = vsel %vm121, %v1508, 0.0
  %v1537 = vsel %vm122, %v1507, 0.0
  %v1538 = vsel %vm123, %v1522, 0.0
  %v1555 = vcombine.low %v1523, %v1524
  %v1556 = vcombine.low %v1525, %v1526
  %v1557 = vcombine.low %v1527, %v1528
  %v1558 = vcombine.low %v1529, %v1530
  %v1560 = vunpack.c.l.s4 1966171168
  %v1561 = vunpack.c.0.s8 %v1560
  %v1562 = vlaneseq
  %v1563 = vshrl.u32 %v1562, 7
  %v1564 = vsub.s32 %v1561, %v1563
  %v1565 = vrot.slane %v1555, %v1564
  %v1567 = vunpack.c.l.s4 1966171168
  %v1568 = vunpack.c.0.s8 %v1567
  %v1569 = vlaneseq
  %v1570 = vshrl.u32 %v1569, 7
  %v1571 = vsub.s32 %v1568, %v1570
  %v1572 = vrot.slane %v1556, %v1571
  %v1574 = vunpack.c.l.s4 1966171168
  %v1575 = vunpack.c.0.s8 %v1574
  %v1576 = vlaneseq
  %v1577 = vshrl.u32 %v1576, 7
  %v1578 = vsub.s32 %v1575, %v1577
  %v1579 = vrot.slane %v1557, %v1578
  %v1581 = vunpack.c.l.s4 1966171168
  %v1582 = vunpack.c.0.s8 %v1581
  %v1583 = vlaneseq
  %v1584 = vshrl.u32 %v1583, 7
  %v1585 = vsub.s32 %v1582, %v1584
  %v1586 = vrot.slane %v1558, %v1585
  %v1587 = vcombine.low %v1565, %v1572
  %v1588 = vcombine.low %v1579, %v1586
  %v1590 = vunpack.c.l.s4 1966171168
  %v1591 = vunpack.c.0.s8 %v1590
  %v1592 = vlaneseq
  %v1593 = vshrl.u32 %v1592, 7
  %v1594 = vsub.s32 %v1591, %v1593
  %v1595 = vrot.slane %v1587, %v1594
  %v1597 = vunpack.c.l.s4 1966171168
  %v1598 = vunpack.c.0.s8 %v1597
  %v1599 = vlaneseq
  %v1600 = vshrl.u32 %v1599, 7
  %v1601 = vsub.s32 %v1598, %v1600
  %v1602 = vrot.slane %v1588, %v1601
  %v1603 = vcombine.low %v1595, %v1602
  %v1604 = vcombine.low %v1531, %v1532
  %v1605 = vcombine.low %v1533, %v1534
  %v1606 = vcombine.low %v1535, %v1536
  %v1607 = vcombine.low %v1537, %v1538
  %v1609 = vunpack.c.l.s4 1966171168
  %v1610 = vunpack.c.0.s8 %v1609
  %v1611 = vlaneseq
  %v1612 = vshrl.u32 %v1611, 7
  %v1613 = vsub.s32 %v1610, %v1612
  %v1614 = vrot.slane %v1604, %v1613
  %v1616 = vunpack.c.l.s4 1966171168
  %v1617 = vunpack.c.0.s8 %v1616
  %v1618 = vlaneseq
  %v1619 = vshrl.u32 %v1618, 7
  %v1620 = vsub.s32 %v1617, %v1619
  %v1621 = vrot.slane %v1605, %v1620
  %v1623 = vunpack.c.l.s4 1966171168
  %v1624 = vunpack.c.0.s8 %v1623
  %v1625 = vlaneseq
  %v1626 = vshrl.u32 %v1625, 7
  %v1627 = vsub.s32 %v1624, %v1626
  %v1628 = vrot.slane %v1606, %v1627
  %v1630 = vunpack.c.l.s4 1966171168
  %v1631 = vunpack.c.0.s8 %v1630
  %v1632 = vlaneseq
  %v1633 = vshrl.u32 %v1632, 7
  %v1634 = vsub.s32 %v1631, %v1633
  %v1635 = vrot.slane %v1607, %v1634
  %v1636 = vcombine.low %v1614, %v1621
  %v1637 = vcombine.low %v1628, %v1635
  %v1639 = vunpack.c.l.s4 1966171168
  %v1640 = vunpack.c.0.s8 %v1639
  %v1641 = vlaneseq
  %v1642 = vshrl.u32 %v1641, 7
  %v1643 = vsub.s32 %v1640, %v1642
  %v1644 = vrot.slane %v1636, %v1643
  %v1646 = vunpack.c.l.s4 1966171168
  %v1647 = vunpack.c.0.s8 %v1646
  %v1648 = vlaneseq
  %v1649 = vshrl.u32 %v1648, 7
  %v1650 = vsub.s32 %v1647, %v1649
  %v1651 = vrot.slane %v1637, %v1650
  %v1652 = vcombine.low %v1644, %v1651
  %s1655 = scalar_lea.vmem [#allocation2], 7
  %1656 = vst [vmem:[%s1655] ss:$8 sm:$0xf] %v1603
  %1657 = vst [vmem:[%s1655] ss:$8 sm:$0xf0] %v1603
  %s1658 = scalar_lea.vmem [#allocation2], 71
  %1659 = vst [vmem:[%s1658] ss:$8 sm:$0xf] %v1652
  %1660 = vst [vmem:[%s1658] ss:$8 sm:$0xf0] %v1652
  %1661 = vrot.lane.b32.xlu0 %v270, 111
  %v1662 = vpop.permute.xlu0 %1661
  %1663 = vrot.lane.b32.xlu0 %v274, 111
  %v1664 = vpop.permute.xlu0 %1663
  %1665 = vrot.lane.b32.xlu0 %v278, 111
  %v1666 = vpop.permute.xlu0 %1665
  %1667 = vrot.lane.b32.xlu0 %v282, 111
  %v1668 = vpop.permute.xlu0 %1667
  %1669 = vrot.lane.b32.xlu0 %v286, 111
  %v1670 = vpop.permute.xlu0 %1669
  %1671 = vrot.lane.b32.xlu0 %v290, 111
  %v1672 = vpop.permute.xlu0 %1671
  %1673 = vrot.lane.b32.xlu0 %v294, 111
  %v1674 = vpop.permute.xlu0 %1673
  %1675 = vrot.lane.b32.xlu0 %v298, 111
  %v1676 = vpop.permute.xlu0 %1675
  %1677 = vrot.lane.b32.xlu0 %v302, 111
  %v1678 = vpop.permute.xlu0 %1677
  %1679 = vrot.lane.b32.xlu0 %v306, 111
  %v1680 = vpop.permute.xlu0 %1679
  %1681 = vrot.lane.b32.xlu0 %v310, 111
  %v1682 = vpop.permute.xlu0 %1681
  %1683 = vrot.lane.b32.xlu0 %v314, 111
  %v1684 = vpop.permute.xlu0 %1683
  %1685 = vrot.lane.b32.xlu0 %v318, 111
  %v1686 = vpop.permute.xlu0 %1685
  %1687 = vrot.lane.b32.xlu0 %v322, 111
  %v1688 = vpop.permute.xlu0 %1687
  %1689 = vrot.lane.b32.xlu0 %v326, 111
  %v1690 = vpop.permute.xlu0 %1689
  %1691 = vrot.lane.b32.xlu0 %v330, 111
  %v1692 = vpop.permute.xlu0 %1691
  %vm1693 = vcmp.lt.s32.totalorder %v28, 111
  %v1694 = vsel %vm1693, %v1690, %v1692
  %v1695 = vsel %vm1693, %v1688, %v1690
  %v1696 = vsel %vm1693, %v1686, %v1688
  %v1697 = vsel %vm1693, %v1684, %v1686
  %v1698 = vsel %vm1693, %v1682, %v1684
  %v1699 = vsel %vm1693, %v1680, %v1682
  %v1700 = vsel %vm1693, %v1678, %v1680
  %v1701 = vsel %vm1693, %v1676, %v1678
  %v1702 = vsel %vm1693, %v1674, %v1676
  %v1703 = vsel %vm1693, %v1672, %v1674
  %v1704 = vsel %vm1693, %v1670, %v1672
  %v1705 = vsel %vm1693, %v1668, %v1670
  %v1706 = vsel %vm1693, %v1666, %v1668
  %v1707 = vsel %vm1693, %v1664, %v1666
  %v1708 = vsel %vm1693, %v1662, %v1664
  %v1709 = vsel %vm1693, %v1692, %v1662
  %v1710 = vsel %vm204, %v1708, 0.0
  %v1711 = vsel %vm205, %v1707, 0.0
  %v1712 = vsel %vm206, %v1706, 0.0
  %v1713 = vsel %vm207, %v1705, 0.0
  %v1714 = vsel %vm208, %v1704, 0.0
  %v1715 = vsel %vm209, %v1703, 0.0
  %v1716 = vsel %vm210, %v1702, 0.0
  %v1717 = vsel %vm211, %v1701, 0.0
  %v1718 = vsel %vm212, %v1700, 0.0
  %v1719 = vsel %vm213, %v1699, 0.0
  %v1720 = vsel %vm214, %v1698, 0.0
  %v1721 = vsel %vm215, %v1697, 0.0
  %v1722 = vsel %vm216, %v1696, 0.0
  %v1723 = vsel %vm217, %v1695, 0.0
  %v1724 = vsel %vm218, %v1694, 0.0
  %v1725 = vsel %vm219, %v1709, 0.0
  %v1742 = vcombine.low %v1710, %v1711
  %v1743 = vcombine.low %v1712, %v1713
  %v1744 = vcombine.low %v1714, %v1715
  %v1745 = vcombine.low %v1716, %v1717
  %v1747 = vunpack.c.l.s4 1966171168
  %v1748 = vunpack.c.0.s8 %v1747
  %v1749 = vlaneseq
  %v1750 = vshrl.u32 %v1749, 7
  %v1751 = vsub.s32 %v1748, %v1750
  %v1752 = vrot.slane %v1742, %v1751
  %v1754 = vunpack.c.l.s4 1966171168
  %v1755 = vunpack.c.0.s8 %v1754
  %v1756 = vlaneseq
  %v1757 = vshrl.u32 %v1756, 7
  %v1758 = vsub.s32 %v1755, %v1757
  %v1759 = vrot.slane %v1743, %v1758
  %v1761 = vunpack.c.l.s4 1966171168
  %v1762 = vunpack.c.0.s8 %v1761
  %v1763 = vlaneseq
  %v1764 = vshrl.u32 %v1763, 7
  %v1765 = vsub.s32 %v1762, %v1764
  %v1766 = vrot.slane %v1744, %v1765
  %v1768 = vunpack.c.l.s4 1966171168
  %v1769 = vunpack.c.0.s8 %v1768
  %v1770 = vlaneseq
  %v1771 = vshrl.u32 %v1770, 7
  %v1772 = vsub.s32 %v1769, %v1771
  %v1773 = vrot.slane %v1745, %v1772
  %v1774 = vcombine.low %v1752, %v1759
  %v1775 = vcombine.low %v1766, %v1773
  %v1777 = vunpack.c.l.s4 1966171168
  %v1778 = vunpack.c.0.s8 %v1777
  %v1779 = vlaneseq
  %v1780 = vshrl.u32 %v1779, 7
  %v1781 = vsub.s32 %v1778, %v1780
  %v1782 = vrot.slane %v1774, %v1781
  %v1784 = vunpack.c.l.s4 1966171168
  %v1785 = vunpack.c.0.s8 %v1784
  %v1786 = vlaneseq
  %v1787 = vshrl.u32 %v1786, 7
  %v1788 = vsub.s32 %v1785, %v1787
  %v1789 = vrot.slane %v1775, %v1788
  %v1790 = vcombine.low %v1782, %v1789
  %v1791 = vcombine.low %v1718, %v1719
  %v1792 = vcombine.low %v1720, %v1721
  %v1793 = vcombine.low %v1722, %v1723
  %v1794 = vcombine.low %v1724, %v1725
  %v1796 = vunpack.c.l.s4 1966171168
  %v1797 = vunpack.c.0.s8 %v1796
  %v1798 = vlaneseq
  %v1799 = vshrl.u32 %v1798, 7
  %v1800 = vsub.s32 %v1797, %v1799
  %v1801 = vrot.slane %v1791, %v1800
  %v1803 = vunpack.c.l.s4 1966171168
  %v1804 = vunpack.c.0.s8 %v1803
  %v1805 = vlaneseq
  %v1806 = vshrl.u32 %v1805, 7
  %v1807 = vsub.s32 %v1804, %v1806
  %v1808 = vrot.slane %v1792, %v1807
  %v1810 = vunpack.c.l.s4 1966171168
  %v1811 = vunpack.c.0.s8 %v1810
  %v1812 = vlaneseq
  %v1813 = vshrl.u32 %v1812, 7
  %v1814 = vsub.s32 %v1811, %v1813
  %v1815 = vrot.slane %v1793, %v1814
  %v1817 = vunpack.c.l.s4 1966171168
  %v1818 = vunpack.c.0.s8 %v1817
  %v1819 = vlaneseq
  %v1820 = vshrl.u32 %v1819, 7
  %v1821 = vsub.s32 %v1818, %v1820
  %v1822 = vrot.slane %v1794, %v1821
  %v1823 = vcombine.low %v1801, %v1808
  %v1824 = vcombine.low %v1815, %v1822
  %v1826 = vunpack.c.l.s4 1966171168
  %v1827 = vunpack.c.0.s8 %v1826
  %v1828 = vlaneseq
  %v1829 = vshrl.u32 %v1828, 7
  %v1830 = vsub.s32 %v1827, %v1829
  %v1831 = vrot.slane %v1823, %v1830
  %v1833 = vunpack.c.l.s4 1966171168
  %v1834 = vunpack.c.0.s8 %v1833
  %v1835 = vlaneseq
  %v1836 = vshrl.u32 %v1835, 7
  %v1837 = vsub.s32 %v1834, %v1836
  %v1838 = vrot.slane %v1824, %v1837
  %v1839 = vcombine.low %v1831, %v1838
  %s1842 = scalar_lea.vmem [#allocation2], 128
  %1843 = vst [vmem:[%s1842] ss:$8 sm:$0xf] %v1790
  %1844 = vst [vmem:[%s1842] ss:$8 sm:$0xf0] %v1790
  %s1845 = scalar_lea.vmem [#allocation2], 192
  %1846 = vst [vmem:[%s1845] ss:$8 sm:$0xf] %v1839
  %1847 = vst [vmem:[%s1845] ss:$8 sm:$0xf0] %v1839
  %v1848 = vld [vmem:[#allocation2] sm:$0xff]
  %v1849 = vld [vmem:[#allocation2 + $0x8] sm:$0xff]
  %v1850 = vld [vmem:[#allocation2 + $0x10] sm:$0xff]
  %v1851 = vld [vmem:[#allocation2 + $0x18] sm:$0xff]
  %v1852 = vld [vmem:[#allocation2 + $0x20] sm:$0xff]
  %v1853 = vld [vmem:[#allocation2 + $0x28] sm:$0xff]
  %v1854 = vld [vmem:[#allocation2 + $0x30] sm:$0xff]
  %v1855 = vld [vmem:[#allocation2 + $0x38] sm:$0xff]
  %v1856 = vld [vmem:[#allocation2 + $0x40] sm:$0xff]
  %v1857 = vld [vmem:[#allocation2 + $0x48] sm:$0xff]
  %v1858 = vld [vmem:[#allocation2 + $0x50] sm:$0xff]
  %v1859 = vld [vmem:[#allocation2 + $0x58] sm:$0xff]
  %v1860 = vld [vmem:[#allocation2 + $0x60] sm:$0xff]
  %v1861 = vld [vmem:[#allocation2 + $0x68] sm:$0xff]
  %v1862 = vld [vmem:[#allocation2 + $0x70] sm:$0xff]
  %v1863 = vld [vmem:[#allocation2 + $0x78] sm:$0xff]
  %v1864 = vld [vmem:[#allocation2 + $0x80] sm:$0xff]
  %v1865 = vld [vmem:[#allocation2 + $0x88] sm:$0xff]
  %v1866 = vld [vmem:[#allocation2 + $0x90] sm:$0xff]
  %v1867 = vld [vmem:[#allocation2 + $0x98] sm:$0xff]
  %v1868 = vld [vmem:[#allocation2 + $0xa0] sm:$0xff]
  %v1869 = vld [vmem:[#allocation2 + $0xa8] sm:$0xff]
  %v1870 = vld [vmem:[#allocation2 + $0xb0] sm:$0xff]
  %v1871 = vld [vmem:[#allocation2 + $0xb8] sm:$0xff]
  %v1872 = vld [vmem:[#allocation2 + $0xc0] sm:$0xff]
  %v1873 = vld [vmem:[#allocation2 + $0xc8] sm:$0xff]
  %v1874 = vld [vmem:[#allocation2 + $0xd0] sm:$0xff]
  %v1875 = vld [vmem:[#allocation2 + $0xd8] sm:$0xff]
  %v1876 = vld [vmem:[#allocation2 + $0xe0] sm:$0xff]
  %v1877 = vld [vmem:[#allocation2 + $0xe8] sm:$0xff]
  %v1878 = vld [vmem:[#allocation2 + $0xf0] sm:$0xff]
  %v1879 = vld [vmem:[#allocation2 + $0xf8] sm:$0xff]
  %vm1880 = vcmask 130048
  %v1882 = vsel %vm1880, %v258, 0
  %v1885 = vsel %vm1880, %v259, 0
  %1887 = vmatprep.subr.mxu0 0.0
  %1888 = vmatpush1.msra.mxu0 0.0
  %1889 = vmatprep.subr.mxu0 0.0
  %1890 = vmatpush1.msra.mxu0 0.0
  %1891 = vmatprep.subr.mxu0 0.0
  %1892 = vmatpush1.msra.mxu0 0.0
  %1893 = vmatprep.subr.mxu0 0.0
  %1894 = vmatpush1.msra.mxu0 0.0
  %1895 = vmatprep.subr.mxu0 0.0
  %1896 = vmatpush1.msra.mxu0 0.0
  %1897 = vmatprep.subr.mxu0 0.0
  %1898 = vmatpush1.msra.mxu0 0.0
  %1899 = vmatprep.subr.mxu0 0.0
  %1900 = vmatpush1.msra.mxu0 0.0
  %1901 = vmatprep.subr.mxu0 0.0
  %1902 = vmatpush1.msra.mxu0 0.0
  %1903 = vmatprep.subr.mxu0 0.0
  %1904 = vmatpush1.msra.mxu0 0.0
  %1905 = vmatprep.subr.mxu0 0.0
  %1906 = vmatpush1.msra.mxu0 0.0
  %1907 = vmatprep.subr.mxu0 0.0
  %1908 = vmatpush1.msra.mxu0 0.0
  %1909 = vmatprep.subr.mxu0 0.0
  %1910 = vmatpush1.msra.mxu0 0.0
  %1911 = vmatprep.subr.mxu0 0.0
  %1912 = vmatpush1.msra.mxu0 0.0
  %1913 = vmatprep.subr.mxu0 0.0
  %1914 = vmatpush1.msra.mxu0 0.0
  %1915 = vmatprep.subr.mxu0 %v1865
  %1916 = vmatpush1.msra.mxu0 %v1864
  %1917 = vmatprep.subr.mxu0 %v1849
  %1918 = vmatpush1.msra.mxu0 %v1848
  %1919 = vmatprep.subr.mxu0 0.0
  %1920 = vmatpush2.msra.mxu0 0.0
  %1921 = vmatprep.subr.mxu0 0.0
  %1922 = vmatpush2.msra.mxu0 0.0
  %1923 = vmatprep.subr.mxu0 0.0
  %1924 = vmatpush2.msra.mxu0 0.0
  %1925 = vmatprep.subr.mxu0 0.0
  %1926 = vmatpush2.msra.mxu0 0.0
  %1927 = vmatprep.subr.mxu0 0.0
  %1928 = vmatpush2.msra.mxu0 0.0
  %1929 = vmatprep.subr.mxu0 0.0
  %1930 = vmatpush2.msra.mxu0 0.0
  %1931 = vmatprep.subr.mxu0 0.0
  %1932 = vmatpush2.msra.mxu0 0.0
  %1933 = vmatprep.subr.mxu0 0.0
  %1934 = vmatpush2.msra.mxu0 0.0
  %1935 = vmatprep.subr.mxu0 0.0
  %1936 = vmatpush2.msra.mxu0 0.0
  %1937 = vmatprep.subr.mxu0 0.0
  %1938 = vmatpush2.msra.mxu0 0.0
  %1939 = vmatprep.subr.mxu0 0.0
  %1940 = vmatpush2.msra.mxu0 0.0
  %1941 = vmatprep.subr.mxu0 0.0
  %1942 = vmatpush2.msra.mxu0 0.0
  %1943 = vmatprep.subr.mxu0 0.0
  %1944 = vmatpush2.msra.mxu0 0.0
  %1945 = vmatprep.subr.mxu0 0.0
  %1946 = vmatpush2.msra.mxu0 0.0
  %1947 = vmatprep.subr.mxu0 0.0
  %1948 = vmatpush2.msra.mxu0 0.0
  %1949 = vmatprep.subr.mxu0 0.0
  %1950 = vmatpush2.msra.mxu0 0.0
  %1951 = vmatprep.mubr.f32.mxu0 0.0
  %1952 = vmatmul.mubr.f32.gmra.mxu0 %v1882
  %v1953 = vpop.f32.mrf.mxu0
  %v1954 = vadd.f32 0.0, %v1953
  %v1955 = vpop.f32.mrf.mxu0
  %v1956 = vadd.f32 0.0, %v1955
  %1957 = vmatprep.mubr.f32.mxu0 0.0
  %1958 = vmatmul.mubr.f32.gmra.mxu0 %v1885
  %v1959 = vpop.f32.mrf.mxu0
  %v1960 = vadd.f32 0.0, %v1959
  %v1961 = vpop.f32.mrf.mxu0
  %v1962 = vadd.f32 0.0, %v1961
  %1963 = vdwg.mxu0
  %1964 = vmatprep.subr.mxu0 0.0
  %1965 = vmatpush1.msra.mxu0 0.0
  %1966 = vmatprep.subr.mxu0 0.0
  %1967 = vmatpush1.msra.mxu0 0.0
  %1968 = vmatprep.subr.mxu0 0.0
  %1969 = vmatpush1.msra.mxu0 0.0
  %1970 = vmatprep.subr.mxu0 0.0
  %1971 = vmatpush1.msra.mxu0 0.0
  %1972 = vmatprep.subr.mxu0 0.0
  %1973 = vmatpush1.msra.mxu0 0.0
  %1974 = vmatprep.subr.mxu0 0.0
  %1975 = vmatpush1.msra.mxu0 0.0
  %1976 = vmatprep.subr.mxu0 0.0
  %1977 = vmatpush1.msra.mxu0 0.0
  %1978 = vmatprep.subr.mxu0 0.0
  %1979 = vmatpush1.msra.mxu0 0.0
  %1980 = vmatprep.subr.mxu0 0.0
  %1981 = vmatpush1.msra.mxu0 0.0
  %1982 = vmatprep.subr.mxu0 0.0
  %1983 = vmatpush1.msra.mxu0 0.0
  %1984 = vmatprep.subr.mxu0 0.0
  %1985 = vmatpush1.msra.mxu0 0.0
  %1986 = vmatprep.subr.mxu0 0.0
  %1987 = vmatpush1.msra.mxu0 0.0
  %1988 = vmatprep.subr.mxu0 0.0
  %1989 = vmatpush1.msra.mxu0 0.0
  %1990 = vmatprep.subr.mxu0 0.0
  %1991 = vmatpush1.msra.mxu0 0.0
  %1992 = vmatprep.subr.mxu0 %v1867
  %1993 = vmatpush1.msra.mxu0 %v1866
  %1994 = vmatprep.subr.mxu0 %v1851
  %1995 = vmatpush1.msra.mxu0 %v1850
  %1996 = vmatprep.subr.mxu0 0.0
  %1997 = vmatpush2.msra.mxu0 0.0
  %1998 = vmatprep.subr.mxu0 0.0
  %1999 = vmatpush2.msra.mxu0 0.0
  %2000 = vmatprep.subr.mxu0 0.0
  %2001 = vmatpush2.msra.mxu0 0.0
  %2002 = vmatprep.subr.mxu0 0.0
  %2003 = vmatpush2.msra.mxu0 0.0
  %2004 = vmatprep.subr.mxu0 0.0
  %2005 = vmatpush2.msra.mxu0 0.0
  %2006 = vmatprep.subr.mxu0 0.0
  %2007 = vmatpush2.msra.mxu0 0.0
  %2008 = vmatprep.subr.mxu0 0.0
  %2009 = vmatpush2.msra.mxu0 0.0
  %2010 = vmatprep.subr.mxu0 0.0
  %2011 = vmatpush2.msra.mxu0 0.0
  %2012 = vmatprep.subr.mxu0 0.0
  %2013 = vmatpush2.msra.mxu0 0.0
  %2014 = vmatprep.subr.mxu0 0.0
  %2015 = vmatpush2.msra.mxu0 0.0
  %2016 = vmatprep.subr.mxu0 0.0
  %2017 = vmatpush2.msra.mxu0 0.0
  %2018 = vmatprep.subr.mxu0 0.0
  %2019 = vmatpush2.msra.mxu0 0.0
  %2020 = vmatprep.subr.mxu0 0.0
  %2021 = vmatpush2.msra.mxu0 0.0
  %2022 = vmatprep.subr.mxu0 0.0
  %2023 = vmatpush2.msra.mxu0 0.0
  %2024 = vmatprep.subr.mxu0 0.0
  %2025 = vmatpush2.msra.mxu0 0.0
  %2026 = vmatprep.subr.mxu0 0.0
  %2027 = vmatpush2.msra.mxu0 0.0
  %2028 = vmatprep.mubr.f32.mxu0 0.0
  %2029 = vmatmul.mubr.f32.gmra.mxu0 %v1882
  %v2030 = vpop.f32.mrf.mxu0
  %v2031 = vadd.f32 0.0, %v2030
  %v2032 = vpop.f32.mrf.mxu0
  %v2033 = vadd.f32 0.0, %v2032
  %2034 = vmatprep.mubr.f32.mxu0 0.0
  %2035 = vmatmul.mubr.f32.gmra.mxu0 %v1885
  %v2036 = vpop.f32.mrf.mxu0
  %v2037 = vadd.f32 0.0, %v2036
  %v2038 = vpop.f32.mrf.mxu0
  %v2039 = vadd.f32 0.0, %v2038
  %2040 = vdwg.mxu0
  %2041 = vmatprep.subr.mxu0 0.0
  %2042 = vmatpush1.msra.mxu0 0.0
  %2043 = vmatprep.subr.mxu0 0.0
  %2044 = vmatpush1.msra.mxu0 0.0
  %2045 = vmatprep.subr.mxu0 0.0
  %2046 = vmatpush1.msra.mxu0 0.0
  %2047 = vmatprep.subr.mxu0 0.0
  %2048 = vmatpush1.msra.mxu0 0.0
  %2049 = vmatprep.subr.mxu0 0.0
  %2050 = vmatpush1.msra.mxu0 0.0
  %2051 = vmatprep.subr.mxu0 0.0
  %2052 = vmatpush1.msra.mxu0 0.0
  %2053 = vmatprep.subr.mxu0 0.0
  %2054 = vmatpush1.msra.mxu0 0.0
  %2055 = vmatprep.subr.mxu0 0.0
  %2056 = vmatpush1.msra.mxu0 0.0
  %2057 = vmatprep.subr.mxu0 0.0
  %2058 = vmatpush1.msra.mxu0 0.0
  %2059 = vmatprep.subr.mxu0 0.0
  %2060 = vmatpush1.msra.mxu0 0.0
  %2061 = vmatprep.subr.mxu0 0.0
  %2062 = vmatpush1.msra.mxu0 0.0
  %2063 = vmatprep.subr.mxu0 0.0
  %2064 = vmatpush1.msra.mxu0 0.0
  %2065 = vmatprep.subr.mxu0 0.0
  %2066 = vmatpush1.msra.mxu0 0.0
  %2067 = vmatprep.subr.mxu0 0.0
  %2068 = vmatpush1.msra.mxu0 0.0
  %2069 = vmatprep.subr.mxu0 %v1869
  %2070 = vmatpush1.msra.mxu0 %v1868
  %2071 = vmatprep.subr.mxu0 %v1853
  %2072 = vmatpush1.msra.mxu0 %v1852
  %2073 = vmatprep.subr.mxu0 0.0
  %2074 = vmatpush2.msra.mxu0 0.0
  %2075 = vmatprep.subr.mxu0 0.0
  %2076 = vmatpush2.msra.mxu0 0.0
  %2077 = vmatprep.subr.mxu0 0.0
  %2078 = vmatpush2.msra.mxu0 0.0
  %2079 = vmatprep.subr.mxu0 0.0
  %2080 = vmatpush2.msra.mxu0 0.0
  %2081 = vmatprep.subr.mxu0 0.0
  %2082 = vmatpush2.msra.mxu0 0.0
  %2083 = vmatprep.subr.mxu0 0.0
  %2084 = vmatpush2.msra.mxu0 0.0
  %2085 = vmatprep.subr.mxu0 0.0
  %2086 = vmatpush2.msra.mxu0 0.0
  %2087 = vmatprep.subr.mxu0 0.0
  %2088 = vmatpush2.msra.mxu0 0.0
  %2089 = vmatprep.subr.mxu0 0.0
  %2090 = vmatpush2.msra.mxu0 0.0
  %2091 = vmatprep.subr.mxu0 0.0
  %2092 = vmatpush2.msra.mxu0 0.0
  %2093 = vmatprep.subr.mxu0 0.0
  %2094 = vmatpush2.msra.mxu0 0.0
  %2095 = vmatprep.subr.mxu0 0.0
  %2096 = vmatpush2.msra.mxu0 0.0
  %2097 = vmatprep.subr.mxu0 0.0
  %2098 = vmatpush2.msra.mxu0 0.0
  %2099 = vmatprep.subr.mxu0 0.0
  %2100 = vmatpush2.msra.mxu0 0.0
  %2101 = vmatprep.subr.mxu0 0.0
  %2102 = vmatpush2.msra.mxu0 0.0
  %2103 = vmatprep.subr.mxu0 0.0
  %2104 = vmatpush2.msra.mxu0 0.0
  %2105 = vmatprep.mubr.f32.mxu0 0.0
  %2106 = vmatmul.mubr.f32.gmra.mxu0 %v1882
  %v2107 = vpop.f32.mrf.mxu0
  %v2108 = vadd.f32 0.0, %v2107
  %v2109 = vpop.f32.mrf.mxu0
  %v2110 = vadd.f32 0.0, %v2109
  %2111 = vmatprep.mubr.f32.mxu0 0.0
  %2112 = vmatmul.mubr.f32.gmra.mxu0 %v1885
  %v2113 = vpop.f32.mrf.mxu0
  %v2114 = vadd.f32 0.0, %v2113
  %v2115 = vpop.f32.mrf.mxu0
  %v2116 = vadd.f32 0.0, %v2115
  %2117 = vdwg.mxu0
  %2118 = vmatprep.subr.mxu0 0.0
  %2119 = vmatpush1.msra.mxu0 0.0
  %2120 = vmatprep.subr.mxu0 0.0
  %2121 = vmatpush1.msra.mxu0 0.0
  %2122 = vmatprep.subr.mxu0 0.0
  %2123 = vmatpush1.msra.mxu0 0.0
  %2124 = vmatprep.subr.mxu0 0.0
  %2125 = vmatpush1.msra.mxu0 0.0
  %2126 = vmatprep.subr.mxu0 0.0
  %2127 = vmatpush1.msra.mxu0 0.0
  %2128 = vmatprep.subr.mxu0 0.0
  %2129 = vmatpush1.msra.mxu0 0.0
  %2130 = vmatprep.subr.mxu0 0.0
  %2131 = vmatpush1.msra.mxu0 0.0
  %2132 = vmatprep.subr.mxu0 0.0
  %2133 = vmatpush1.msra.mxu0 0.0
  %2134 = vmatprep.subr.mxu0 0.0
  %2135 = vmatpush1.msra.mxu0 0.0
  %2136 = vmatprep.subr.mxu0 0.0
  %2137 = vmatpush1.msra.mxu0 0.0
  %2138 = vmatprep.subr.mxu0 0.0
  %2139 = vmatpush1.msra.mxu0 0.0
  %2140 = vmatprep.subr.mxu0 0.0
  %2141 = vmatpush1.msra.mxu0 0.0
  %2142 = vmatprep.subr.mxu0 0.0
  %2143 = vmatpush1.msra.mxu0 0.0
  %2144 = vmatprep.subr.mxu0 0.0
  %2145 = vmatpush1.msra.mxu0 0.0
  %2146 = vmatprep.subr.mxu0 %v1871
  %2147 = vmatpush1.msra.mxu0 %v1870
  %2148 = vmatprep.subr.mxu0 %v1855
  %2149 = vmatpush1.msra.mxu0 %v1854
  %2150 = vmatprep.subr.mxu0 0.0
  %2151 = vmatpush2.msra.mxu0 0.0
  %2152 = vmatprep.subr.mxu0 0.0
  %2153 = vmatpush2.msra.mxu0 0.0
  %2154 = vmatprep.subr.mxu0 0.0
  %2155 = vmatpush2.msra.mxu0 0.0
  %2156 = vmatprep.subr.mxu0 0.0
  %2157 = vmatpush2.msra.mxu0 0.0
  %2158 = vmatprep.subr.mxu0 0.0
  %2159 = vmatpush2.msra.mxu0 0.0
  %2160 = vmatprep.subr.mxu0 0.0
  %2161 = vmatpush2.msra.mxu0 0.0
  %2162 = vmatprep.subr.mxu0 0.0
  %2163 = vmatpush2.msra.mxu0 0.0
  %2164 = vmatprep.subr.mxu0 0.0
  %2165 = vmatpush2.msra.mxu0 0.0
  %2166 = vmatprep.subr.mxu0 0.0
  %2167 = vmatpush2.msra.mxu0 0.0
  %2168 = vmatprep.subr.mxu0 0.0
  %2169 = vmatpush2.msra.mxu0 0.0
  %2170 = vmatprep.subr.mxu0 0.0
  %2171 = vmatpush2.msra.mxu0 0.0
  %2172 = vmatprep.subr.mxu0 0.0
  %2173 = vmatpush2.msra.mxu0 0.0
  %2174 = vmatprep.subr.mxu0 0.0
  %2175 = vmatpush2.msra.mxu0 0.0
  %2176 = vmatprep.subr.mxu0 0.0
  %2177 = vmatpush2.msra.mxu0 0.0
  %2178 = vmatprep.subr.mxu0 0.0
  %2179 = vmatpush2.msra.mxu0 0.0
  %2180 = vmatprep.subr.mxu0 0.0
  %2181 = vmatpush2.msra.mxu0 0.0
  %2182 = vmatprep.mubr.f32.mxu0 0.0
  %2183 = vmatmul.mubr.f32.gmra.mxu0 %v1882
  %v2184 = vpop.f32.mrf.mxu0
  %v2185 = vadd.f32 0.0, %v2184
  %v2186 = vpop.f32.mrf.mxu0
  %v2187 = vadd.f32 0.0, %v2186
  %2188 = vmatprep.mubr.f32.mxu0 0.0
  %2189 = vmatmul.mubr.f32.gmra.mxu0 %v1885
  %v2190 = vpop.f32.mrf.mxu0
  %v2191 = vadd.f32 0.0, %v2190
  %v2192 = vpop.f32.mrf.mxu0
  %v2193 = vadd.f32 0.0, %v2192
  %2194 = vdwg.mxu0
  %2195 = vmatprep.subr.mxu0 0.0
  %2196 = vmatpush1.msra.mxu0 0.0
  %2197 = vmatprep.subr.mxu0 0.0
  %2198 = vmatpush1.msra.mxu0 0.0
  %2199 = vmatprep.subr.mxu0 0.0
  %2200 = vmatpush1.msra.mxu0 0.0
  %2201 = vmatprep.subr.mxu0 0.0
  %2202 = vmatpush1.msra.mxu0 0.0
  %2203 = vmatprep.subr.mxu0 0.0
  %2204 = vmatpush1.msra.mxu0 0.0
  %2205 = vmatprep.subr.mxu0 0.0
  %2206 = vmatpush1.msra.mxu0 0.0
  %2207 = vmatprep.subr.mxu0 0.0
  %2208 = vmatpush1.msra.mxu0 0.0
  %2209 = vmatprep.subr.mxu0 0.0
  %2210 = vmatpush1.msra.mxu0 0.0
  %2211 = vmatprep.subr.mxu0 0.0
  %2212 = vmatpush1.msra.mxu0 0.0
  %2213 = vmatprep.subr.mxu0 0.0
  %2214 = vmatpush1.msra.mxu0 0.0
  %2215 = vmatprep.subr.mxu0 0.0
  %2216 = vmatpush1.msra.mxu0 0.0
  %2217 = vmatprep.subr.mxu0 0.0
  %2218 = vmatpush1.msra.mxu0 0.0
  %2219 = vmatprep.subr.mxu0 0.0
  %2220 = vmatpush1.msra.mxu0 0.0
  %2221 = vmatprep.subr.mxu0 0.0
  %2222 = vmatpush1.msra.mxu0 0.0
  %2223 = vmatprep.subr.mxu0 %v1873
  %2224 = vmatpush1.msra.mxu0 %v1872
  %2225 = vmatprep.subr.mxu0 %v1857
  %2226 = vmatpush1.msra.mxu0 %v1856
  %2227 = vmatprep.subr.mxu0 0.0
  %2228 = vmatpush2.msra.mxu0 0.0
  %2229 = vmatprep.subr.mxu0 0.0
  %2230 = vmatpush2.msra.mxu0 0.0
  %2231 = vmatprep.subr.mxu0 0.0
  %2232 = vmatpush2.msra.mxu0 0.0
  %2233 = vmatprep.subr.mxu0 0.0
  %2234 = vmatpush2.msra.mxu0 0.0
  %2235 = vmatprep.subr.mxu0 0.0
  %2236 = vmatpush2.msra.mxu0 0.0
  %2237 = vmatprep.subr.mxu0 0.0
  %2238 = vmatpush2.msra.mxu0 0.0
  %2239 = vmatprep.subr.mxu0 0.0
  %2240 = vmatpush2.msra.mxu0 0.0
  %2241 = vmatprep.subr.mxu0 0.0
  %2242 = vmatpush2.msra.mxu0 0.0
  %2243 = vmatprep.subr.mxu0 0.0
  %2244 = vmatpush2.msra.mxu0 0.0
  %2245 = vmatprep.subr.mxu0 0.0
  %2246 = vmatpush2.msra.mxu0 0.0
  %2247 = vmatprep.subr.mxu0 0.0
  %2248 = vmatpush2.msra.mxu0 0.0
  %2249 = vmatprep.subr.mxu0 0.0
  %2250 = vmatpush2.msra.mxu0 0.0
  %2251 = vmatprep.subr.mxu0 0.0
  %2252 = vmatpush2.msra.mxu0 0.0
  %2253 = vmatprep.subr.mxu0 0.0
  %2254 = vmatpush2.msra.mxu0 0.0
  %2255 = vmatprep.subr.mxu0 0.0
  %2256 = vmatpush2.msra.mxu0 0.0
  %2257 = vmatprep.subr.mxu0 0.0
  %2258 = vmatpush2.msra.mxu0 0.0
  %2259 = vmatprep.mubr.f32.mxu0 0.0
  %2260 = vmatmul.mubr.f32.gmra.mxu0 %v1882
  %v2261 = vpop.f32.mrf.mxu0
  %v2262 = vadd.f32 0.0, %v2261
  %v2263 = vpop.f32.mrf.mxu0
  %v2264 = vadd.f32 0.0, %v2263
  %2265 = vmatprep.mubr.f32.mxu0 0.0
  %2266 = vmatmul.mubr.f32.gmra.mxu0 %v1885
  %v2267 = vpop.f32.mrf.mxu0
  %v2268 = vadd.f32 0.0, %v2267
  %v2269 = vpop.f32.mrf.mxu0
  %v2270 = vadd.f32 0.0, %v2269
  %2271 = vdwg.mxu0
  %2272 = vmatprep.subr.mxu0 0.0
  %2273 = vmatpush1.msra.mxu0 0.0
  %2274 = vmatprep.subr.mxu0 0.0
  %2275 = vmatpush1.msra.mxu0 0.0
  %2276 = vmatprep.subr.mxu0 0.0
  %2277 = vmatpush1.msra.mxu0 0.0
  %2278 = vmatprep.subr.mxu0 0.0
  %2279 = vmatpush1.msra.mxu0 0.0
  %2280 = vmatprep.subr.mxu0 0.0
  %2281 = vmatpush1.msra.mxu0 0.0
  %2282 = vmatprep.subr.mxu0 0.0
  %2283 = vmatpush1.msra.mxu0 0.0
  %2284 = vmatprep.subr.mxu0 0.0
  %2285 = vmatpush1.msra.mxu0 0.0
  %2286 = vmatprep.subr.mxu0 0.0
  %2287 = vmatpush1.msra.mxu0 0.0
  %2288 = vmatprep.subr.mxu0 0.0
  %2289 = vmatpush1.msra.mxu0 0.0
  %2290 = vmatprep.subr.mxu0 0.0
  %2291 = vmatpush1.msra.mxu0 0.0
  %2292 = vmatprep.subr.mxu0 0.0
  %2293 = vmatpush1.msra.mxu0 0.0
  %2294 = vmatprep.subr.mxu0 0.0
  %2295 = vmatpush1.msra.mxu0 0.0
  %2296 = vmatprep.subr.mxu0 0.0
  %2297 = vmatpush1.msra.mxu0 0.0
  %2298 = vmatprep.subr.mxu0 0.0
  %2299 = vmatpush1.msra.mxu0 0.0
  %2300 = vmatprep.subr.mxu0 %v1875
  %2301 = vmatpush1.msra.mxu0 %v1874
  %2302 = vmatprep.subr.mxu0 %v1859
  %2303 = vmatpush1.msra.mxu0 %v1858
  %2304 = vmatprep.subr.mxu0 0.0
  %2305 = vmatpush2.msra.mxu0 0.0
  %2306 = vmatprep.subr.mxu0 0.0
  %2307 = vmatpush2.msra.mxu0 0.0
  %2308 = vmatprep.subr.mxu0 0.0
  %2309 = vmatpush2.msra.mxu0 0.0
  %2310 = vmatprep.subr.mxu0 0.0
  %2311 = vmatpush2.msra.mxu0 0.0
  %2312 = vmatprep.subr.mxu0 0.0
  %2313 = vmatpush2.msra.mxu0 0.0
  %2314 = vmatprep.subr.mxu0 0.0
  %2315 = vmatpush2.msra.mxu0 0.0
  %2316 = vmatprep.subr.mxu0 0.0
  %2317 = vmatpush2.msra.mxu0 0.0
  %2318 = vmatprep.subr.mxu0 0.0
  %2319 = vmatpush2.msra.mxu0 0.0
  %2320 = vmatprep.subr.mxu0 0.0
  %2321 = vmatpush2.msra.mxu0 0.0
  %2322 = vmatprep.subr.mxu0 0.0
  %2323 = vmatpush2.msra.mxu0 0.0
  %2324 = vmatprep.subr.mxu0 0.0
  %2325 = vmatpush2.msra.mxu0 0.0
  %2326 = vmatprep.subr.mxu0 0.0
  %2327 = vmatpush2.msra.mxu0 0.0
  %2328 = vmatprep.subr.mxu0 0.0
  %2329 = vmatpush2.msra.mxu0 0.0
  %2330 = vmatprep.subr.mxu0 0.0
  %2331 = vmatpush2.msra.mxu0 0.0
  %2332 = vmatprep.subr.mxu0 0.0
  %2333 = vmatpush2.msra.mxu0 0.0
  %2334 = vmatprep.subr.mxu0 0.0
  %2335 = vmatpush2.msra.mxu0 0.0
  %2336 = vmatprep.mubr.f32.mxu0 0.0
  %2337 = vmatmul.mubr.f32.gmra.mxu0 %v1882
  %v2338 = vpop.f32.mrf.mxu0
  %v2339 = vadd.f32 0.0, %v2338
  %v2340 = vpop.f32.mrf.mxu0
  %v2341 = vadd.f32 0.0, %v2340
  %2342 = vmatprep.mubr.f32.mxu0 0.0
  %2343 = vmatmul.mubr.f32.gmra.mxu0 %v1885
  %v2344 = vpop.f32.mrf.mxu0
  %v2345 = vadd.f32 0.0, %v2344
  %v2346 = vpop.f32.mrf.mxu0
  %v2347 = vadd.f32 0.0, %v2346
  %2348 = vdwg.mxu0
  %2349 = vmatprep.subr.mxu0 0.0
  %2350 = vmatpush1.msra.mxu0 0.0
  %2351 = vmatprep.subr.mxu0 0.0
  %2352 = vmatpush1.msra.mxu0 0.0
  %2353 = vmatprep.subr.mxu0 0.0
  %2354 = vmatpush1.msra.mxu0 0.0
  %2355 = vmatprep.subr.mxu0 0.0
  %2356 = vmatpush1.msra.mxu0 0.0
  %2357 = vmatprep.subr.mxu0 0.0
  %2358 = vmatpush1.msra.mxu0 0.0
  %2359 = vmatprep.subr.mxu0 0.0
  %2360 = vmatpush1.msra.mxu0 0.0
  %2361 = vmatprep.subr.mxu0 0.0
  %2362 = vmatpush1.msra.mxu0 0.0
  %2363 = vmatprep.subr.mxu0 0.0
  %2364 = vmatpush1.msra.mxu0 0.0
  %2365 = vmatprep.subr.mxu0 0.0
  %2366 = vmatpush1.msra.mxu0 0.0
  %2367 = vmatprep.subr.mxu0 0.0
  %2368 = vmatpush1.msra.mxu0 0.0
  %2369 = vmatprep.subr.mxu0 0.0
  %2370 = vmatpush1.msra.mxu0 0.0
  %2371 = vmatprep.subr.mxu0 0.0
  %2372 = vmatpush1.msra.mxu0 0.0
  %2373 = vmatprep.subr.mxu0 0.0
  %2374 = vmatpush1.msra.mxu0 0.0
  %2375 = vmatprep.subr.mxu0 0.0
  %2376 = vmatpush1.msra.mxu0 0.0
  %2377 = vmatprep.subr.mxu0 %v1877
  %2378 = vmatpush1.msra.mxu0 %v1876
  %2379 = vmatprep.subr.mxu0 %v1861
  %2380 = vmatpush1.msra.mxu0 %v1860
  %2381 = vmatprep.subr.mxu0 0.0
  %2382 = vmatpush2.msra.mxu0 0.0
  %2383 = vmatprep.subr.mxu0 0.0
  %2384 = vmatpush2.msra.mxu0 0.0
  %2385 = vmatprep.subr.mxu0 0.0
  %2386 = vmatpush2.msra.mxu0 0.0
  %2387 = vmatprep.subr.mxu0 0.0
  %2388 = vmatpush2.msra.mxu0 0.0
  %2389 = vmatprep.subr.mxu0 0.0
  %2390 = vmatpush2.msra.mxu0 0.0
  %2391 = vmatprep.subr.mxu0 0.0
  %2392 = vmatpush2.msra.mxu0 0.0
  %2393 = vmatprep.subr.mxu0 0.0
  %2394 = vmatpush2.msra.mxu0 0.0
  %2395 = vmatprep.subr.mxu0 0.0
  %2396 = vmatpush2.msra.mxu0 0.0
  %2397 = vmatprep.subr.mxu0 0.0
  %2398 = vmatpush2.msra.mxu0 0.0
  %2399 = vmatprep.subr.mxu0 0.0
  %2400 = vmatpush2.msra.mxu0 0.0
  %2401 = vmatprep.subr.mxu0 0.0
  %2402 = vmatpush2.msra.mxu0 0.0
  %2403 = vmatprep.subr.mxu0 0.0
  %2404 = vmatpush2.msra.mxu0 0.0
  %2405 = vmatprep.subr.mxu0 0.0
  %2406 = vmatpush2.msra.mxu0 0.0
  %2407 = vmatprep.subr.mxu0 0.0
  %2408 = vmatpush2.msra.mxu0 0.0
  %2409 = vmatprep.subr.mxu0 0.0
  %2410 = vmatpush2.msra.mxu0 0.0
  %2411 = vmatprep.subr.mxu0 0.0
  %2412 = vmatpush2.msra.mxu0 0.0
  %2413 = vmatprep.mubr.f32.mxu0 0.0
  %2414 = vmatmul.mubr.f32.gmra.mxu0 %v1882
  %v2415 = vpop.f32.mrf.mxu0
  %v2416 = vadd.f32 0.0, %v2415
  %v2417 = vpop.f32.mrf.mxu0
  %v2418 = vadd.f32 0.0, %v2417
  %2419 = vmatprep.mubr.f32.mxu0 0.0
  %2420 = vmatmul.mubr.f32.gmra.mxu0 %v1885
  %v2421 = vpop.f32.mrf.mxu0
  %v2422 = vadd.f32 0.0, %v2421
  %v2423 = vpop.f32.mrf.mxu0
  %v2424 = vadd.f32 0.0, %v2423
  %2425 = vdwg.mxu0
  %2426 = vmatprep.subr.mxu0 0.0
  %2427 = vmatpush1.msra.mxu0 0.0
  %2428 = vmatprep.subr.mxu0 0.0
  %2429 = vmatpush1.msra.mxu0 0.0
  %2430 = vmatprep.subr.mxu0 0.0
  %2431 = vmatpush1.msra.mxu0 0.0
  %2432 = vmatprep.subr.mxu0 0.0
  %2433 = vmatpush1.msra.mxu0 0.0
  %2434 = vmatprep.subr.mxu0 0.0
  %2435 = vmatpush1.msra.mxu0 0.0
  %2436 = vmatprep.subr.mxu0 0.0
  %2437 = vmatpush1.msra.mxu0 0.0
  %2438 = vmatprep.subr.mxu0 0.0
  %2439 = vmatpush1.msra.mxu0 0.0
  %2440 = vmatprep.subr.mxu0 0.0
  %2441 = vmatpush1.msra.mxu0 0.0
  %2442 = vmatprep.subr.mxu0 0.0
  %2443 = vmatpush1.msra.mxu0 0.0
  %2444 = vmatprep.subr.mxu0 0.0
  %2445 = vmatpush1.msra.mxu0 0.0
  %2446 = vmatprep.subr.mxu0 0.0
  %2447 = vmatpush1.msra.mxu0 0.0
  %2448 = vmatprep.subr.mxu0 0.0
  %2449 = vmatpush1.msra.mxu0 0.0
  %2450 = vmatprep.subr.mxu0 0.0
  %2451 = vmatpush1.msra.mxu0 0.0
  %2452 = vmatprep.subr.mxu0 0.0
  %2453 = vmatpush1.msra.mxu0 0.0
  %2454 = vmatprep.subr.mxu0 %v1879
  %2455 = vmatpush1.msra.mxu0 %v1878
  %2456 = vmatprep.subr.mxu0 %v1863
  %2457 = vmatpush1.msra.mxu0 %v1862
  %2458 = vmatprep.subr.mxu0 0.0
  %2459 = vmatpush2.msra.mxu0 0.0
  %2460 = vmatprep.subr.mxu0 0.0
  %2461 = vmatpush2.msra.mxu0 0.0
  %2462 = vmatprep.subr.mxu0 0.0
  %2463 = vmatpush2.msra.mxu0 0.0
  %2464 = vmatprep.subr.mxu0 0.0
  %2465 = vmatpush2.msra.mxu0 0.0
  %2466 = vmatprep.subr.mxu0 0.0
  %2467 = vmatpush2.msra.mxu0 0.0
  %2468 = vmatprep.subr.mxu0 0.0
  %2469 = vmatpush2.msra.mxu0 0.0
  %2470 = vmatprep.subr.mxu0 0.0
  %2471 = vmatpush2.msra.mxu0 0.0
  %2472 = vmatprep.subr.mxu0 0.0
  %2473 = vmatpush2.msra.mxu0 0.0
  %2474 = vmatprep.subr.mxu0 0.0
  %2475 = vmatpush2.msra.mxu0 0.0
  %2476 = vmatprep.subr.mxu0 0.0
  %2477 = vmatpush2.msra.mxu0 0.0
  %2478 = vmatprep.subr.mxu0 0.0
  %2479 = vmatpush2.msra.mxu0 0.0
  %2480 = vmatprep.subr.mxu0 0.0
  %2481 = vmatpush2.msra.mxu0 0.0
  %2482 = vmatprep.subr.mxu0 0.0
  %2483 = vmatpush2.msra.mxu0 0.0
  %2484 = vmatprep.subr.mxu0 0.0
  %2485 = vmatpush2.msra.mxu0 0.0
  %2486 = vmatprep.subr.mxu0 0.0
  %2487 = vmatpush2.msra.mxu0 0.0
  %2488 = vmatprep.subr.mxu0 0.0
  %2489 = vmatpush2.msra.mxu0 0.0
  %2490 = vmatprep.mubr.f32.mxu0 0.0
  %2491 = vmatmul.mubr.f32.gmra.mxu0 %v1882
  %v2492 = vpop.f32.mrf.mxu0
  %v2493 = vadd.f32 0.0, %v2492
  %v2494 = vpop.f32.mrf.mxu0
  %v2495 = vadd.f32 0.0, %v2494
  %2496 = vmatprep.mubr.f32.mxu0 0.0
  %2497 = vmatmul.mubr.f32.gmra.mxu0 %v1885
  %v2498 = vpop.f32.mrf.mxu0
  %v2499 = vadd.f32 0.0, %v2498
  %v2500 = vpop.f32.mrf.mxu0
  %v2501 = vadd.f32 0.0, %v2500
  %2502 = vdwg.mxu0
  %v2503 = vmax.f32 %v1954, 0.0
  %v2504 = vmax.f32 %v1956, 0.0
  %v2505 = vmax.f32 %v2031, 0.0
  %v2506 = vmax.f32 %v2033, 0.0
  %v2507 = vmax.f32 %v2108, 0.0
  %v2508 = vmax.f32 %v2110, 0.0
  %v2509 = vmax.f32 %v2185, 0.0
  %v2510 = vmax.f32 %v2187, 0.0
  %v2511 = vmax.f32 %v2262, 0.0
  %v2512 = vmax.f32 %v2264, 0.0
  %v2513 = vmax.f32 %v2339, 0.0
  %v2514 = vmax.f32 %v2341, 0.0
  %v2515 = vmax.f32 %v2416, 0.0
  %v2516 = vmax.f32 %v2418, 0.0
  %v2517 = vmax.f32 %v2493, 0.0
  %v2518 = vmax.f32 %v2495, 0.0
  %v2519 = vmax.f32 %v1960, 0.0
  %v2520 = vmax.f32 %v1962, 0.0
  %v2521 = vmax.f32 %v2037, 0.0
  %v2522 = vmax.f32 %v2039, 0.0
  %v2523 = vmax.f32 %v2114, 0.0
  %v2524 = vmax.f32 %v2116, 0.0
  %v2525 = vmax.f32 %v2191, 0.0
  %v2526 = vmax.f32 %v2193, 0.0
  %v2527 = vmax.f32 %v2268, 0.0
  %v2528 = vmax.f32 %v2270, 0.0
  %v2529 = vmax.f32 %v2345, 0.0
  %v2530 = vmax.f32 %v2347, 0.0
  %v2531 = vmax.f32 %v2422, 0.0
  %v2532 = vmax.f32 %v2424, 0.0
  %v2533 = vmax.f32 %v2499, 0.0
  %v2534 = vmax.f32 %v2501, 0.0
  %v2536 = vsel %vm1880, %v260, 0
  %v2539 = vsel %vm1880, %v261, 0
  %2541 = vmatprep.subr.mxu0 0.0
  %2542 = vmatpush1.msra.mxu0 0.0
  %2543 = vmatprep.subr.mxu0 0.0
  %2544 = vmatpush1.msra.mxu0 0.0
  %2545 = vmatprep.subr.mxu0 0.0
  %2546 = vmatpush1.msra.mxu0 0.0
  %2547 = vmatprep.subr.mxu0 0.0
  %2548 = vmatpush1.msra.mxu0 0.0
  %2549 = vmatprep.subr.mxu0 0.0
  %2550 = vmatpush1.msra.mxu0 0.0
  %2551 = vmatprep.subr.mxu0 0.0
  %2552 = vmatpush1.msra.mxu0 0.0
  %2553 = vmatprep.subr.mxu0 0.0
  %2554 = vmatpush1.msra.mxu0 0.0
  %2555 = vmatprep.subr.mxu0 0.0
  %2556 = vmatpush1.msra.mxu0 0.0
  %2557 = vmatprep.subr.mxu0 0.0
  %2558 = vmatpush1.msra.mxu0 0.0
  %2559 = vmatprep.subr.mxu0 0.0
  %2560 = vmatpush1.msra.mxu0 0.0
  %2561 = vmatprep.subr.mxu0 0.0
  %2562 = vmatpush1.msra.mxu0 0.0
  %2563 = vmatprep.subr.mxu0 0.0
  %2564 = vmatpush1.msra.mxu0 0.0
  %2565 = vmatprep.subr.mxu0 0.0
  %2566 = vmatpush1.msra.mxu0 0.0
  %2567 = vmatprep.subr.mxu0 0.0
  %2568 = vmatpush1.msra.mxu0 0.0
  %2569 = vmatprep.subr.mxu0 %v2520
  %2570 = vmatpush1.msra.mxu0 %v2519
  %2571 = vmatprep.subr.mxu0 %v2504
  %2572 = vmatpush1.msra.mxu0 %v2503
  %2573 = vmatprep.subr.mxu0 0.0
  %2574 = vmatpush2.msra.mxu0 0.0
  %2575 = vmatprep.subr.mxu0 0.0
  %2576 = vmatpush2.msra.mxu0 0.0
  %2577 = vmatprep.subr.mxu0 0.0
  %2578 = vmatpush2.msra.mxu0 0.0
  %2579 = vmatprep.subr.mxu0 0.0
  %2580 = vmatpush2.msra.mxu0 0.0
  %2581 = vmatprep.subr.mxu0 0.0
  %2582 = vmatpush2.msra.mxu0 0.0
  %2583 = vmatprep.subr.mxu0 0.0
  %2584 = vmatpush2.msra.mxu0 0.0
  %2585 = vmatprep.subr.mxu0 0.0
  %2586 = vmatpush2.msra.mxu0 0.0
  %2587 = vmatprep.subr.mxu0 0.0
  %2588 = vmatpush2.msra.mxu0 0.0
  %2589 = vmatprep.subr.mxu0 0.0
  %2590 = vmatpush2.msra.mxu0 0.0
  %2591 = vmatprep.subr.mxu0 0.0
  %2592 = vmatpush2.msra.mxu0 0.0
  %2593 = vmatprep.subr.mxu0 0.0
  %2594 = vmatpush2.msra.mxu0 0.0
  %2595 = vmatprep.subr.mxu0 0.0
  %2596 = vmatpush2.msra.mxu0 0.0
  %2597 = vmatprep.subr.mxu0 0.0
  %2598 = vmatpush2.msra.mxu0 0.0
  %2599 = vmatprep.subr.mxu0 0.0
  %2600 = vmatpush2.msra.mxu0 0.0
  %2601 = vmatprep.subr.mxu0 0.0
  %2602 = vmatpush2.msra.mxu0 0.0
  %2603 = vmatprep.subr.mxu0 0.0
  %2604 = vmatpush2.msra.mxu0 0.0
  %2605 = vmatprep.mubr.f32.mxu0 0.0
  %2606 = vmatmul.mubr.f32.gmra.mxu0 %v2536
  %v2607 = vpop.f32.mrf.mxu0
  %v2608 = vadd.f32 0.0, %v2607
  %v2609 = vpop.f32.mrf.mxu0
  %v2610 = vadd.f32 0.0, %v2609
  %2611 = vmatprep.mubr.f32.mxu0 0.0
  %2612 = vmatmul.mubr.f32.gmra.mxu0 %v2539
  %v2613 = vpop.f32.mrf.mxu0
  %v2614 = vadd.f32 0.0, %v2613
  %v2615 = vpop.f32.mrf.mxu0
  %v2616 = vadd.f32 0.0, %v2615
  %2617 = vdwg.mxu0
  %2618 = vmatprep.subr.mxu0 0.0
  %2619 = vmatpush1.msra.mxu0 0.0
  %2620 = vmatprep.subr.mxu0 0.0
  %2621 = vmatpush1.msra.mxu0 0.0
  %2622 = vmatprep.subr.mxu0 0.0
  %2623 = vmatpush1.msra.mxu0 0.0
  %2624 = vmatprep.subr.mxu0 0.0
  %2625 = vmatpush1.msra.mxu0 0.0
  %2626 = vmatprep.subr.mxu0 0.0
  %2627 = vmatpush1.msra.mxu0 0.0
  %2628 = vmatprep.subr.mxu0 0.0
  %2629 = vmatpush1.msra.mxu0 0.0
  %2630 = vmatprep.subr.mxu0 0.0
  %2631 = vmatpush1.msra.mxu0 0.0
  %2632 = vmatprep.subr.mxu0 0.0
  %2633 = vmatpush1.msra.mxu0 0.0
  %2634 = vmatprep.subr.mxu0 0.0
  %2635 = vmatpush1.msra.mxu0 0.0
  %2636 = vmatprep.subr.mxu0 0.0
  %2637 = vmatpush1.msra.mxu0 0.0
  %2638 = vmatprep.subr.mxu0 0.0
  %2639 = vmatpush1.msra.mxu0 0.0
  %2640 = vmatprep.subr.mxu0 0.0
  %2641 = vmatpush1.msra.mxu0 0.0
  %2642 = vmatprep.subr.mxu0 0.0
  %2643 = vmatpush1.msra.mxu0 0.0
  %2644 = vmatprep.subr.mxu0 0.0
  %2645 = vmatpush1.msra.mxu0 0.0
  %2646 = vmatprep.subr.mxu0 %v2522
  %2647 = vmatpush1.msra.mxu0 %v2521
  %2648 = vmatprep.subr.mxu0 %v2506
  %2649 = vmatpush1.msra.mxu0 %v2505
  %2650 = vmatprep.subr.mxu0 0.0
  %2651 = vmatpush2.msra.mxu0 0.0
  %2652 = vmatprep.subr.mxu0 0.0
  %2653 = vmatpush2.msra.mxu0 0.0
  %2654 = vmatprep.subr.mxu0 0.0
  %2655 = vmatpush2.msra.mxu0 0.0
  %2656 = vmatprep.subr.mxu0 0.0
  %2657 = vmatpush2.msra.mxu0 0.0
  %2658 = vmatprep.subr.mxu0 0.0
  %2659 = vmatpush2.msra.mxu0 0.0
  %2660 = vmatprep.subr.mxu0 0.0
  %2661 = vmatpush2.msra.mxu0 0.0
  %2662 = vmatprep.subr.mxu0 0.0
  %2663 = vmatpush2.msra.mxu0 0.0
  %2664 = vmatprep.subr.mxu0 0.0
  %2665 = vmatpush2.msra.mxu0 0.0
  %2666 = vmatprep.subr.mxu0 0.0
  %2667 = vmatpush2.msra.mxu0 0.0
  %2668 = vmatprep.subr.mxu0 0.0
  %2669 = vmatpush2.msra.mxu0 0.0
  %2670 = vmatprep.subr.mxu0 0.0
  %2671 = vmatpush2.msra.mxu0 0.0
  %2672 = vmatprep.subr.mxu0 0.0
  %2673 = vmatpush2.msra.mxu0 0.0
  %2674 = vmatprep.subr.mxu0 0.0
  %2675 = vmatpush2.msra.mxu0 0.0
  %2676 = vmatprep.subr.mxu0 0.0
  %2677 = vmatpush2.msra.mxu0 0.0
  %2678 = vmatprep.subr.mxu0 0.0
  %2679 = vmatpush2.msra.mxu0 0.0
  %2680 = vmatprep.subr.mxu0 0.0
  %2681 = vmatpush2.msra.mxu0 0.0
  %2682 = vmatprep.mubr.f32.mxu0 0.0
  %2683 = vmatmul.mubr.f32.gmra.mxu0 %v2536
  %v2684 = vpop.f32.mrf.mxu0
  %v2685 = vadd.f32 0.0, %v2684
  %v2686 = vpop.f32.mrf.mxu0
  %v2687 = vadd.f32 0.0, %v2686
  %2688 = vmatprep.mubr.f32.mxu0 0.0
  %2689 = vmatmul.mubr.f32.gmra.mxu0 %v2539
  %v2690 = vpop.f32.mrf.mxu0
  %v2691 = vadd.f32 0.0, %v2690
  %v2692 = vpop.f32.mrf.mxu0
  %v2693 = vadd.f32 0.0, %v2692
  %2694 = vdwg.mxu0
  %2695 = vmatprep.subr.mxu0 0.0
  %2696 = vmatpush1.msra.mxu0 0.0
  %2697 = vmatprep.subr.mxu0 0.0
  %2698 = vmatpush1.msra.mxu0 0.0
  %2699 = vmatprep.subr.mxu0 0.0
  %2700 = vmatpush1.msra.mxu0 0.0
  %2701 = vmatprep.subr.mxu0 0.0
  %2702 = vmatpush1.msra.mxu0 0.0
  %2703 = vmatprep.subr.mxu0 0.0
  %2704 = vmatpush1.msra.mxu0 0.0
  %2705 = vmatprep.subr.mxu0 0.0
  %2706 = vmatpush1.msra.mxu0 0.0
  %2707 = vmatprep.subr.mxu0 0.0
  %2708 = vmatpush1.msra.mxu0 0.0
  %2709 = vmatprep.subr.mxu0 0.0
  %2710 = vmatpush1.msra.mxu0 0.0
  %2711 = vmatprep.subr.mxu0 0.0
  %2712 = vmatpush1.msra.mxu0 0.0
  %2713 = vmatprep.subr.mxu0 0.0
  %2714 = vmatpush1.msra.mxu0 0.0
  %2715 = vmatprep.subr.mxu0 0.0
  %2716 = vmatpush1.msra.mxu0 0.0
  %2717 = vmatprep.subr.mxu0 0.0
  %2718 = vmatpush1.msra.mxu0 0.0
  %2719 = vmatprep.subr.mxu0 0.0
  %2720 = vmatpush1.msra.mxu0 0.0
  %2721 = vmatprep.subr.mxu0 0.0
  %2722 = vmatpush1.msra.mxu0 0.0
  %2723 = vmatprep.subr.mxu0 %v2524
  %2724 = vmatpush1.msra.mxu0 %v2523
  %2725 = vmatprep.subr.mxu0 %v2508
  %2726 = vmatpush1.msra.mxu0 %v2507
  %2727 = vmatprep.subr.mxu0 0.0
  %2728 = vmatpush2.msra.mxu0 0.0
  %2729 = vmatprep.subr.mxu0 0.0
  %2730 = vmatpush2.msra.mxu0 0.0
  %2731 = vmatprep.subr.mxu0 0.0
  %2732 = vmatpush2.msra.mxu0 0.0
  %2733 = vmatprep.subr.mxu0 0.0
  %2734 = vmatpush2.msra.mxu0 0.0
  %2735 = vmatprep.subr.mxu0 0.0
  %2736 = vmatpush2.msra.mxu0 0.0
  %2737 = vmatprep.subr.mxu0 0.0
  %2738 = vmatpush2.msra.mxu0 0.0
  %2739 = vmatprep.subr.mxu0 0.0
  %2740 = vmatpush2.msra.mxu0 0.0
  %2741 = vmatprep.subr.mxu0 0.0
  %2742 = vmatpush2.msra.mxu0 0.0
  %2743 = vmatprep.subr.mxu0 0.0
  %2744 = vmatpush2.msra.mxu0 0.0
  %2745 = vmatprep.subr.mxu0 0.0
  %2746 = vmatpush2.msra.mxu0 0.0
  %2747 = vmatprep.subr.mxu0 0.0
  %2748 = vmatpush2.msra.mxu0 0.0
  %2749 = vmatprep.subr.mxu0 0.0
  %2750 = vmatpush2.msra.mxu0 0.0
  %2751 = vmatprep.subr.mxu0 0.0
  %2752 = vmatpush2.msra.mxu0 0.0
  %2753 = vmatprep.subr.mxu0 0.0
  %2754 = vmatpush2.msra.mxu0 0.0
  %2755 = vmatprep.subr.mxu0 0.0
  %2756 = vmatpush2.msra.mxu0 0.0
  %2757 = vmatprep.subr.mxu0 0.0
  %2758 = vmatpush2.msra.mxu0 0.0
  %2759 = vmatprep.mubr.f32.mxu0 0.0
  %2760 = vmatmul.mubr.f32.gmra.mxu0 %v2536
  %v2761 = vpop.f32.mrf.mxu0
  %v2762 = vadd.f32 0.0, %v2761
  %v2763 = vpop.f32.mrf.mxu0
  %v2764 = vadd.f32 0.0, %v2763
  %2765 = vmatprep.mubr.f32.mxu0 0.0
  %2766 = vmatmul.mubr.f32.gmra.mxu0 %v2539
  %v2767 = vpop.f32.mrf.mxu0
  %v2768 = vadd.f32 0.0, %v2767
  %v2769 = vpop.f32.mrf.mxu0
  %v2770 = vadd.f32 0.0, %v2769
  %2771 = vdwg.mxu0
  %2772 = vmatprep.subr.mxu0 0.0
  %2773 = vmatpush1.msra.mxu0 0.0
  %2774 = vmatprep.subr.mxu0 0.0
  %2775 = vmatpush1.msra.mxu0 0.0
  %2776 = vmatprep.subr.mxu0 0.0
  %2777 = vmatpush1.msra.mxu0 0.0
  %2778 = vmatprep.subr.mxu0 0.0
  %2779 = vmatpush1.msra.mxu0 0.0
  %2780 = vmatprep.subr.mxu0 0.0
  %2781 = vmatpush1.msra.mxu0 0.0
  %2782 = vmatprep.subr.mxu0 0.0
  %2783 = vmatpush1.msra.mxu0 0.0
  %2784 = vmatprep.subr.mxu0 0.0
  %2785 = vmatpush1.msra.mxu0 0.0
  %2786 = vmatprep.subr.mxu0 0.0
  %2787 = vmatpush1.msra.mxu0 0.0
  %2788 = vmatprep.subr.mxu0 0.0
  %2789 = vmatpush1.msra.mxu0 0.0
  %2790 = vmatprep.subr.mxu0 0.0
  %2791 = vmatpush1.msra.mxu0 0.0
  %2792 = vmatprep.subr.mxu0 0.0
  %2793 = vmatpush1.msra.mxu0 0.0
  %2794 = vmatprep.subr.mxu0 0.0
  %2795 = vmatpush1.msra.mxu0 0.0
  %2796 = vmatprep.subr.mxu0 0.0
  %2797 = vmatpush1.msra.mxu0 0.0
  %2798 = vmatprep.subr.mxu0 0.0
  %2799 = vmatpush1.msra.mxu0 0.0
  %2800 = vmatprep.subr.mxu0 %v2526
  %2801 = vmatpush1.msra.mxu0 %v2525
  %2802 = vmatprep.subr.mxu0 %v2510
  %2803 = vmatpush1.msra.mxu0 %v2509
  %2804 = vmatprep.subr.mxu0 0.0
  %2805 = vmatpush2.msra.mxu0 0.0
  %2806 = vmatprep.subr.mxu0 0.0
  %2807 = vmatpush2.msra.mxu0 0.0
  %2808 = vmatprep.subr.mxu0 0.0
  %2809 = vmatpush2.msra.mxu0 0.0
  %2810 = vmatprep.subr.mxu0 0.0
  %2811 = vmatpush2.msra.mxu0 0.0
  %2812 = vmatprep.subr.mxu0 0.0
  %2813 = vmatpush2.msra.mxu0 0.0
  %2814 = vmatprep.subr.mxu0 0.0
  %2815 = vmatpush2.msra.mxu0 0.0
  %2816 = vmatprep.subr.mxu0 0.0
  %2817 = vmatpush2.msra.mxu0 0.0
  %2818 = vmatprep.subr.mxu0 0.0
  %2819 = vmatpush2.msra.mxu0 0.0
  %2820 = vmatprep.subr.mxu0 0.0
  %2821 = vmatpush2.msra.mxu0 0.0
  %2822 = vmatprep.subr.mxu0 0.0
  %2823 = vmatpush2.msra.mxu0 0.0
  %2824 = vmatprep.subr.mxu0 0.0
  %2825 = vmatpush2.msra.mxu0 0.0
  %2826 = vmatprep.subr.mxu0 0.0
  %2827 = vmatpush2.msra.mxu0 0.0
  %2828 = vmatprep.subr.mxu0 0.0
  %2829 = vmatpush2.msra.mxu0 0.0
  %2830 = vmatprep.subr.mxu0 0.0
  %2831 = vmatpush2.msra.mxu0 0.0
  %2832 = vmatprep.subr.mxu0 0.0
  %2833 = vmatpush2.msra.mxu0 0.0
  %2834 = vmatprep.subr.mxu0 0.0
  %2835 = vmatpush2.msra.mxu0 0.0
  %2836 = vmatprep.mubr.f32.mxu0 0.0
  %2837 = vmatmul.mubr.f32.gmra.mxu0 %v2536
  %v2838 = vpop.f32.mrf.mxu0
  %v2839 = vadd.f32 0.0, %v2838
  %v2840 = vpop.f32.mrf.mxu0
  %v2841 = vadd.f32 0.0, %v2840
  %2842 = vmatprep.mubr.f32.mxu0 0.0
  %2843 = vmatmul.mubr.f32.gmra.mxu0 %v2539
  %v2844 = vpop.f32.mrf.mxu0
  %v2845 = vadd.f32 0.0, %v2844
  %v2846 = vpop.f32.mrf.mxu0
  %v2847 = vadd.f32 0.0, %v2846
  %2848 = vdwg.mxu0
  %2849 = vmatprep.subr.mxu0 0.0
  %2850 = vmatpush1.msra.mxu0 0.0
  %2851 = vmatprep.subr.mxu0 0.0
  %2852 = vmatpush1.msra.mxu0 0.0
  %2853 = vmatprep.subr.mxu0 0.0
  %2854 = vmatpush1.msra.mxu0 0.0
  %2855 = vmatprep.subr.mxu0 0.0
  %2856 = vmatpush1.msra.mxu0 0.0
  %2857 = vmatprep.subr.mxu0 0.0
  %2858 = vmatpush1.msra.mxu0 0.0
  %2859 = vmatprep.subr.mxu0 0.0
  %2860 = vmatpush1.msra.mxu0 0.0
  %2861 = vmatprep.subr.mxu0 0.0
  %2862 = vmatpush1.msra.mxu0 0.0
  %2863 = vmatprep.subr.mxu0 0.0
  %2864 = vmatpush1.msra.mxu0 0.0
  %2865 = vmatprep.subr.mxu0 0.0
  %2866 = vmatpush1.msra.mxu0 0.0
  %2867 = vmatprep.subr.mxu0 0.0
  %2868 = vmatpush1.msra.mxu0 0.0
  %2869 = vmatprep.subr.mxu0 0.0
  %2870 = vmatpush1.msra.mxu0 0.0
  %2871 = vmatprep.subr.mxu0 0.0
  %2872 = vmatpush1.msra.mxu0 0.0
  %2873 = vmatprep.subr.mxu0 0.0
  %2874 = vmatpush1.msra.mxu0 0.0
  %2875 = vmatprep.subr.mxu0 0.0
  %2876 = vmatpush1.msra.mxu0 0.0
  %2877 = vmatprep.subr.mxu0 %v2528
  %2878 = vmatpush1.msra.mxu0 %v2527
  %2879 = vmatprep.subr.mxu0 %v2512
  %2880 = vmatpush1.msra.mxu0 %v2511
  %2881 = vmatprep.subr.mxu0 0.0
  %2882 = vmatpush2.msra.mxu0 0.0
  %2883 = vmatprep.subr.mxu0 0.0
  %2884 = vmatpush2.msra.mxu0 0.0
  %2885 = vmatprep.subr.mxu0 0.0
  %2886 = vmatpush2.msra.mxu0 0.0
  %2887 = vmatprep.subr.mxu0 0.0
  %2888 = vmatpush2.msra.mxu0 0.0
  %2889 = vmatprep.subr.mxu0 0.0
  %2890 = vmatpush2.msra.mxu0 0.0
  %2891 = vmatprep.subr.mxu0 0.0
  %2892 = vmatpush2.msra.mxu0 0.0
  %2893 = vmatprep.subr.mxu0 0.0
  %2894 = vmatpush2.msra.mxu0 0.0
  %2895 = vmatprep.subr.mxu0 0.0
  %2896 = vmatpush2.msra.mxu0 0.0
  %2897 = vmatprep.subr.mxu0 0.0
  %2898 = vmatpush2.msra.mxu0 0.0
  %2899 = vmatprep.subr.mxu0 0.0
  %2900 = vmatpush2.msra.mxu0 0.0
  %2901 = vmatprep.subr.mxu0 0.0
  %2902 = vmatpush2.msra.mxu0 0.0
  %2903 = vmatprep.subr.mxu0 0.0
  %2904 = vmatpush2.msra.mxu0 0.0
  %2905 = vmatprep.subr.mxu0 0.0
  %2906 = vmatpush2.msra.mxu0 0.0
  %2907 = vmatprep.subr.mxu0 0.0
  %2908 = vmatpush2.msra.mxu0 0.0
  %2909 = vmatprep.subr.mxu0 0.0
  %2910 = vmatpush2.msra.mxu0 0.0
  %2911 = vmatprep.subr.mxu0 0.0
  %2912 = vmatpush2.msra.mxu0 0.0
  %2913 = vmatprep.mubr.f32.mxu0 0.0
  %2914 = vmatmul.mubr.f32.gmra.mxu0 %v2536
  %v2915 = vpop.f32.mrf.mxu0
  %v2916 = vadd.f32 0.0, %v2915
  %v2917 = vpop.f32.mrf.mxu0
  %v2918 = vadd.f32 0.0, %v2917
  %2919 = vmatprep.mubr.f32.mxu0 0.0
  %2920 = vmatmul.mubr.f32.gmra.mxu0 %v2539
  %v2921 = vpop.f32.mrf.mxu0
  %v2922 = vadd.f32 0.0, %v2921
  %v2923 = vpop.f32.mrf.mxu0
  %v2924 = vadd.f32 0.0, %v2923
  %2925 = vdwg.mxu0
  %2926 = vmatprep.subr.mxu0 0.0
  %2927 = vmatpush1.msra.mxu0 0.0
  %2928 = vmatprep.subr.mxu0 0.0
  %2929 = vmatpush1.msra.mxu0 0.0
  %2930 = vmatprep.subr.mxu0 0.0
  %2931 = vmatpush1.msra.mxu0 0.0
  %2932 = vmatprep.subr.mxu0 0.0
  %2933 = vmatpush1.msra.mxu0 0.0
  %2934 = vmatprep.subr.mxu0 0.0
  %2935 = vmatpush1.msra.mxu0 0.0
  %2936 = vmatprep.subr.mxu0 0.0
  %2937 = vmatpush1.msra.mxu0 0.0
  %2938 = vmatprep.subr.mxu0 0.0
  %2939 = vmatpush1.msra.mxu0 0.0
  %2940 = vmatprep.subr.mxu0 0.0
  %2941 = vmatpush1.msra.mxu0 0.0
  %2942 = vmatprep.subr.mxu0 0.0
  %2943 = vmatpush1.msra.mxu0 0.0
  %2944 = vmatprep.subr.mxu0 0.0
  %2945 = vmatpush1.msra.mxu0 0.0
  %2946 = vmatprep.subr.mxu0 0.0
  %2947 = vmatpush1.msra.mxu0 0.0
  %2948 = vmatprep.subr.mxu0 0.0
  %2949 = vmatpush1.msra.mxu0 0.0
  %2950 = vmatprep.subr.mxu0 0.0
  %2951 = vmatpush1.msra.mxu0 0.0
  %2952 = vmatprep.subr.mxu0 0.0
  %2953 = vmatpush1.msra.mxu0 0.0
  %2954 = vmatprep.subr.mxu0 %v2530
  %2955 = vmatpush1.msra.mxu0 %v2529
  %2956 = vmatprep.subr.mxu0 %v2514
  %2957 = vmatpush1.msra.mxu0 %v2513
  %2958 = vmatprep.subr.mxu0 0.0
  %2959 = vmatpush2.msra.mxu0 0.0
  %2960 = vmatprep.subr.mxu0 0.0
  %2961 = vmatpush2.msra.mxu0 0.0
  %2962 = vmatprep.subr.mxu0 0.0
  %2963 = vmatpush2.msra.mxu0 0.0
  %2964 = vmatprep.subr.mxu0 0.0
  %2965 = vmatpush2.msra.mxu0 0.0
  %2966 = vmatprep.subr.mxu0 0.0
  %2967 = vmatpush2.msra.mxu0 0.0
  %2968 = vmatprep.subr.mxu0 0.0
  %2969 = vmatpush2.msra.mxu0 0.0
  %2970 = vmatprep.subr.mxu0 0.0
  %2971 = vmatpush2.msra.mxu0 0.0
  %2972 = vmatprep.subr.mxu0 0.0
  %2973 = vmatpush2.msra.mxu0 0.0
  %2974 = vmatprep.subr.mxu0 0.0
  %2975 = vmatpush2.msra.mxu0 0.0
  %2976 = vmatprep.subr.mxu0 0.0
  %2977 = vmatpush2.msra.mxu0 0.0
  %2978 = vmatprep.subr.mxu0 0.0
  %2979 = vmatpush2.msra.mxu0 0.0
  %2980 = vmatprep.subr.mxu0 0.0
  %2981 = vmatpush2.msra.mxu0 0.0
  %2982 = vmatprep.subr.mxu0 0.0
  %2983 = vmatpush2.msra.mxu0 0.0
  %2984 = vmatprep.subr.mxu0 0.0
  %2985 = vmatpush2.msra.mxu0 0.0
  %2986 = vmatprep.subr.mxu0 0.0
  %2987 = vmatpush2.msra.mxu0 0.0
  %2988 = vmatprep.subr.mxu0 0.0
  %2989 = vmatpush2.msra.mxu0 0.0
  %2990 = vmatprep.mubr.f32.mxu0 0.0
  %2991 = vmatmul.mubr.f32.gmra.mxu0 %v2536
  %v2992 = vpop.f32.mrf.mxu0
  %v2993 = vadd.f32 0.0, %v2992
  %v2994 = vpop.f32.mrf.mxu0
  %v2995 = vadd.f32 0.0, %v2994
  %2996 = vmatprep.mubr.f32.mxu0 0.0
  %2997 = vmatmul.mubr.f32.gmra.mxu0 %v2539
  %v2998 = vpop.f32.mrf.mxu0
  %v2999 = vadd.f32 0.0, %v2998
  %v3000 = vpop.f32.mrf.mxu0
  %v3001 = vadd.f32 0.0, %v3000
  %3002 = vdwg.mxu0
  %3003 = vmatprep.subr.mxu0 0.0
  %3004 = vmatpush1.msra.mxu0 0.0
  %3005 = vmatprep.subr.mxu0 0.0
  %3006 = vmatpush1.msra.mxu0 0.0
  %3007 = vmatprep.subr.mxu0 0.0
  %3008 = vmatpush1.msra.mxu0 0.0
  %3009 = vmatprep.subr.mxu0 0.0
  %3010 = vmatpush1.msra.mxu0 0.0
  %3011 = vmatprep.subr.mxu0 0.0
  %3012 = vmatpush1.msra.mxu0 0.0
  %3013 = vmatprep.subr.mxu0 0.0
  %3014 = vmatpush1.msra.mxu0 0.0
  %3015 = vmatprep.subr.mxu0 0.0
  %3016 = vmatpush1.msra.mxu0 0.0
  %3017 = vmatprep.subr.mxu0 0.0
  %3018 = vmatpush1.msra.mxu0 0.0
  %3019 = vmatprep.subr.mxu0 0.0
  %3020 = vmatpush1.msra.mxu0 0.0
  %3021 = vmatprep.subr.mxu0 0.0
  %3022 = vmatpush1.msra.mxu0 0.0
  %3023 = vmatprep.subr.mxu0 0.0
  %3024 = vmatpush1.msra.mxu0 0.0
  %3025 = vmatprep.subr.mxu0 0.0
  %3026 = vmatpush1.msra.mxu0 0.0
  %3027 = vmatprep.subr.mxu0 0.0
  %3028 = vmatpush1.msra.mxu0 0.0
  %3029 = vmatprep.subr.mxu0 0.0
  %3030 = vmatpush1.msra.mxu0 0.0
  %3031 = vmatprep.subr.mxu0 %v2532
  %3032 = vmatpush1.msra.mxu0 %v2531
  %3033 = vmatprep.subr.mxu0 %v2516
  %3034 = vmatpush1.msra.mxu0 %v2515
  %3035 = vmatprep.subr.mxu0 0.0
  %3036 = vmatpush2.msra.mxu0 0.0
  %3037 = vmatprep.subr.mxu0 0.0
  %3038 = vmatpush2.msra.mxu0 0.0
  %3039 = vmatprep.subr.mxu0 0.0
  %3040 = vmatpush2.msra.mxu0 0.0
  %3041 = vmatprep.subr.mxu0 0.0
  %3042 = vmatpush2.msra.mxu0 0.0
  %3043 = vmatprep.subr.mxu0 0.0
  %3044 = vmatpush2.msra.mxu0 0.0
  %3045 = vmatprep.subr.mxu0 0.0
  %3046 = vmatpush2.msra.mxu0 0.0
  %3047 = vmatprep.subr.mxu0 0.0
  %3048 = vmatpush2.msra.mxu0 0.0
  %3049 = vmatprep.subr.mxu0 0.0
  %3050 = vmatpush2.msra.mxu0 0.0
  %3051 = vmatprep.subr.mxu0 0.0
  %3052 = vmatpush2.msra.mxu0 0.0
  %3053 = vmatprep.subr.mxu0 0.0
  %3054 = vmatpush2.msra.mxu0 0.0
  %3055 = vmatprep.subr.mxu0 0.0
  %3056 = vmatpush2.msra.mxu0 0.0
  %3057 = vmatprep.subr.mxu0 0.0
  %3058 = vmatpush2.msra.mxu0 0.0
  %3059 = vmatprep.subr.mxu0 0.0
  %3060 = vmatpush2.msra.mxu0 0.0
  %3061 = vmatprep.subr.mxu0 0.0
  %3062 = vmatpush2.msra.mxu0 0.0
  %3063 = vmatprep.subr.mxu0 0.0
  %3064 = vmatpush2.msra.mxu0 0.0
  %3065 = vmatprep.subr.mxu0 0.0
  %3066 = vmatpush2.msra.mxu0 0.0
  %3067 = vmatprep.mubr.f32.mxu0 0.0
  %3068 = vmatmul.mubr.f32.gmra.mxu0 %v2536
  %v3069 = vpop.f32.mrf.mxu0
  %v3070 = vadd.f32 0.0, %v3069
  %v3071 = vpop.f32.mrf.mxu0
  %v3072 = vadd.f32 0.0, %v3071
  %3073 = vmatprep.mubr.f32.mxu0 0.0
  %3074 = vmatmul.mubr.f32.gmra.mxu0 %v2539
  %v3075 = vpop.f32.mrf.mxu0
  %v3076 = vadd.f32 0.0, %v3075
  %v3077 = vpop.f32.mrf.mxu0
  %v3078 = vadd.f32 0.0, %v3077
  %3079 = vdwg.mxu0
  %3080 = vmatprep.subr.mxu0 0.0
  %3081 = vmatpush1.msra.mxu0 0.0
  %3082 = vmatprep.subr.mxu0 0.0
  %3083 = vmatpush1.msra.mxu0 0.0
  %3084 = vmatprep.subr.mxu0 0.0
  %3085 = vmatpush1.msra.mxu0 0.0
  %3086 = vmatprep.subr.mxu0 0.0
  %3087 = vmatpush1.msra.mxu0 0.0
  %3088 = vmatprep.subr.mxu0 0.0
  %3089 = vmatpush1.msra.mxu0 0.0
  %3090 = vmatprep.subr.mxu0 0.0
  %3091 = vmatpush1.msra.mxu0 0.0
  %3092 = vmatprep.subr.mxu0 0.0
  %3093 = vmatpush1.msra.mxu0 0.0
  %3094 = vmatprep.subr.mxu0 0.0
  %3095 = vmatpush1.msra.mxu0 0.0
  %3096 = vmatprep.subr.mxu0 0.0
  %3097 = vmatpush1.msra.mxu0 0.0
  %3098 = vmatprep.subr.mxu0 0.0
  %3099 = vmatpush1.msra.mxu0 0.0
  %3100 = vmatprep.subr.mxu0 0.0
  %3101 = vmatpush1.msra.mxu0 0.0
  %3102 = vmatprep.subr.mxu0 0.0
  %3103 = vmatpush1.msra.mxu0 0.0
  %3104 = vmatprep.subr.mxu0 0.0
  %3105 = vmatpush1.msra.mxu0 0.0
  %3106 = vmatprep.subr.mxu0 0.0
  %3107 = vmatpush1.msra.mxu0 0.0
  %3108 = vmatprep.subr.mxu0 %v2534
  %3109 = vmatpush1.msra.mxu0 %v2533
  %3110 = vmatprep.subr.mxu0 %v2518
  %3111 = vmatpush1.msra.mxu0 %v2517
  %3112 = vmatprep.subr.mxu0 0.0
  %3113 = vmatpush2.msra.mxu0 0.0
  %3114 = vmatprep.subr.mxu0 0.0
  %3115 = vmatpush2.msra.mxu0 0.0
  %3116 = vmatprep.subr.mxu0 0.0
  %3117 = vmatpush2.msra.mxu0 0.0
  %3118 = vmatprep.subr.mxu0 0.0
  %3119 = vmatpush2.msra.mxu0 0.0
  %3120 = vmatprep.subr.mxu0 0.0
  %3121 = vmatpush2.msra.mxu0 0.0
  %3122 = vmatprep.subr.mxu0 0.0
  %3123 = vmatpush2.msra.mxu0 0.0
  %3124 = vmatprep.subr.mxu0 0.0
  %3125 = vmatpush2.msra.mxu0 0.0
  %3126 = vmatprep.subr.mxu0 0.0
  %3127 = vmatpush2.msra.mxu0 0.0
  %3128 = vmatprep.subr.mxu0 0.0
  %3129 = vmatpush2.msra.mxu0 0.0
  %3130 = vmatprep.subr.mxu0 0.0
  %3131 = vmatpush2.msra.mxu0 0.0
  %3132 = vmatprep.subr.mxu0 0.0
  %3133 = vmatpush2.msra.mxu0 0.0
  %3134 = vmatprep.subr.mxu0 0.0
  %3135 = vmatpush2.msra.mxu0 0.0
  %3136 = vmatprep.subr.mxu0 0.0
  %3137 = vmatpush2.msra.mxu0 0.0
  %3138 = vmatprep.subr.mxu0 0.0
  %3139 = vmatpush2.msra.mxu0 0.0
  %3140 = vmatprep.subr.mxu0 0.0
  %3141 = vmatpush2.msra.mxu0 0.0
  %3142 = vmatprep.subr.mxu0 0.0
  %3143 = vmatpush2.msra.mxu0 0.0
  %3144 = vmatprep.mubr.f32.mxu0 0.0
  %3145 = vmatmul.mubr.f32.gmra.mxu0 %v2536
  %v3146 = vpop.f32.mrf.mxu0
  %v3147 = vadd.f32 0.0, %v3146
  %v3148 = vpop.f32.mrf.mxu0
  %v3149 = vadd.f32 0.0, %v3148
  %3150 = vmatprep.mubr.f32.mxu0 0.0
  %3151 = vmatmul.mubr.f32.gmra.mxu0 %v2539
  %v3152 = vpop.f32.mrf.mxu0
  %v3153 = vadd.f32 0.0, %v3152
  %v3154 = vpop.f32.mrf.mxu0
  %v3155 = vadd.f32 0.0, %v3154
  %3156 = vdwg.mxu0
  %3157 = vst [vmem:[#allocation3] sm:$0xff] %v2608
  %3158 = vst [vmem:[#allocation3 + $0x8] sm:$0xff] %v2610
  %3159 = vst [vmem:[#allocation3 + $0x10] sm:$0xff] %v2685
  %3160 = vst [vmem:[#allocation3 + $0x18] sm:$0xff] %v2687
  %3161 = vst [vmem:[#allocation3 + $0x20] sm:$0xff] %v2762
  %3162 = vst [vmem:[#allocation3 + $0x28] sm:$0xff] %v2764
  %3163 = vst [vmem:[#allocation3 + $0x30] sm:$0xff] %v2839
  %3164 = vst [vmem:[#allocation3 + $0x38] sm:$0xff] %v2841
  %3165 = vst [vmem:[#allocation3 + $0x40] sm:$0xff] %v2916
  %3166 = vst [vmem:[#allocation3 + $0x48] sm:$0xff] %v2918
  %3167 = vst [vmem:[#allocation3 + $0x50] sm:$0xff] %v2993
  %3168 = vst [vmem:[#allocation3 + $0x58] sm:$0xff] %v2995
  %3169 = vst [vmem:[#allocation3 + $0x60] sm:$0xff] %v3070
  %3170 = vst [vmem:[#allocation3 + $0x68] sm:$0xff] %v3072
  %3171 = vst [vmem:[#allocation3 + $0x70] sm:$0xff] %v3147
  %3172 = vst [vmem:[#allocation3 + $0x78] sm:$0xff] %v3149
  %3173 = vst [vmem:[#allocation3 + $0x80] sm:$0xff] %v2614
  %3174 = vst [vmem:[#allocation3 + $0x88] sm:$0xff] %v2616
  %3175 = vst [vmem:[#allocation3 + $0x90] sm:$0xff] %v2691
  %3176 = vst [vmem:[#allocation3 + $0x98] sm:$0xff] %v2693
  %3177 = vst [vmem:[#allocation3 + $0xa0] sm:$0xff] %v2768
  %3178 = vst [vmem:[#allocation3 + $0xa8] sm:$0xff] %v2770
  %3179 = vst [vmem:[#allocation3 + $0xb0] sm:$0xff] %v2845
  %3180 = vst [vmem:[#allocation3 + $0xb8] sm:$0xff] %v2847
  %3181 = vst [vmem:[#allocation3 + $0xc0] sm:$0xff] %v2922
  %3182 = vst [vmem:[#allocation3 + $0xc8] sm:$0xff] %v2924
  %3183 = vst [vmem:[#allocation3 + $0xd0] sm:$0xff] %v2999
  %3184 = vst [vmem:[#allocation3 + $0xd8] sm:$0xff] %v3001
  %3185 = vst [vmem:[#allocation3 + $0xe0] sm:$0xff] %v3076
  %3186 = vst [vmem:[#allocation3 + $0xe8] sm:$0xff] %v3078
  %3187 = vst [vmem:[#allocation3 + $0xf0] sm:$0xff] %v3153
  %3188 = vst [vmem:[#allocation3 + $0xf8] sm:$0xff] %v3155
  %v3189 = vld [vmem:[#allocation3] ss:$8 sm:$0xf]
  %v3190 = vld [vmem:[#allocation3] ss:$8 sm:$0xf0]
  %v3191 = vor.u32 %v3189, %v3190
  %s3192 = scalar_lea.vmem [#allocation3], 64
  %v3193 = vld [vmem:[%s3192] ss:$8 sm:$0xf]
  %v3194 = vld [vmem:[%s3192] ss:$8 sm:$0xf0]
  %v3195 = vor.u32 %v3193, %v3194
  %v3198 = vlaneseq
  %v3199 = vshrl.u32 %v3198, 7
  %v3200 = vsub.s32 0, %v3199
  %v3201 = vrot.slane %v3191, %v3200
  %v3202 = vlaneseq
  %v3203 = vshrl.u32 %v3202, 7
  %v3204 = vsub.s32 1, %v3203
  %v3205 = vrot.slane %v3191, %v3204
  %v3206 = vlaneseq
  %v3207 = vshrl.u32 %v3206, 7
  %v3208 = vsub.s32 2, %v3207
  %v3209 = vrot.slane %v3191, %v3208
  %v3210 = vlaneseq
  %v3211 = vshrl.u32 %v3210, 7
  %v3212 = vsub.s32 3, %v3211
  %v3213 = vrot.slane %v3191, %v3212
  %v3214 = vlaneseq
  %v3215 = vshrl.u32 %v3214, 7
  %v3216 = vsub.s32 4, %v3215
  %v3217 = vrot.slane %v3191, %v3216
  %v3218 = vlaneseq
  %v3219 = vshrl.u32 %v3218, 7
  %v3220 = vsub.s32 5, %v3219
  %v3221 = vrot.slane %v3191, %v3220
  %v3222 = vlaneseq
  %v3223 = vshrl.u32 %v3222, 7
  %v3224 = vsub.s32 6, %v3223
  %v3225 = vrot.slane %v3191, %v3224
  %v3226 = vlaneseq
  %v3227 = vshrl.u32 %v3226, 7
  %v3228 = vsub.s32 7, %v3227
  %v3229 = vrot.slane %v3191, %v3228
  %v3230 = vlaneseq
  %v3231 = vshrl.u32 %v3230, 7
  %v3232 = vsub.s32 0, %v3231
  %v3233 = vrot.slane %v3195, %v3232
  %v3234 = vlaneseq
  %v3235 = vshrl.u32 %v3234, 7
  %v3236 = vsub.s32 1, %v3235
  %v3237 = vrot.slane %v3195, %v3236
  %v3238 = vlaneseq
  %v3239 = vshrl.u32 %v3238, 7
  %v3240 = vsub.s32 2, %v3239
  %v3241 = vrot.slane %v3195, %v3240
  %v3242 = vlaneseq
  %v3243 = vshrl.u32 %v3242, 7
  %v3244 = vsub.s32 3, %v3243
  %v3245 = vrot.slane %v3195, %v3244
  %v3246 = vlaneseq
  %v3247 = vshrl.u32 %v3246, 7
  %v3248 = vsub.s32 4, %v3247
  %v3249 = vrot.slane %v3195, %v3248
  %v3250 = vlaneseq
  %v3251 = vshrl.u32 %v3250, 7
  %v3252 = vsub.s32 5, %v3251
  %v3253 = vrot.slane %v3195, %v3252
  %v3254 = vlaneseq
  %v3255 = vshrl.u32 %v3254, 7
  %v3256 = vsub.s32 6, %v3255
  %v3257 = vrot.slane %v3195, %v3256
  %v3258 = vlaneseq
  %v3259 = vshrl.u32 %v3258, 7
  %v3260 = vsub.s32 7, %v3259
  %v3261 = vrot.slane %v3195, %v3260
  %3278 = vrot.lane.b32.xlu0 %v3201, 17
  %v3279 = vpop.permute.xlu0 %3278
  %3280 = vrot.lane.b32.xlu0 %v3205, 17
  %v3281 = vpop.permute.xlu0 %3280
  %3282 = vrot.lane.b32.xlu0 %v3209, 17
  %v3283 = vpop.permute.xlu0 %3282
  %3284 = vrot.lane.b32.xlu0 %v3213, 17
  %v3285 = vpop.permute.xlu0 %3284
  %3286 = vrot.lane.b32.xlu0 %v3217, 17
  %v3287 = vpop.permute.xlu0 %3286
  %3288 = vrot.lane.b32.xlu0 %v3221, 17
  %v3289 = vpop.permute.xlu0 %3288
  %3290 = vrot.lane.b32.xlu0 %v3225, 17
  %v3291 = vpop.permute.xlu0 %3290
  %3292 = vrot.lane.b32.xlu0 %v3229, 17
  %v3293 = vpop.permute.xlu0 %3292
  %3294 = vrot.lane.b32.xlu0 %v3233, 17
  %v3295 = vpop.permute.xlu0 %3294
  %3296 = vrot.lane.b32.xlu0 %v3237, 17
  %v3297 = vpop.permute.xlu0 %3296
  %3298 = vrot.lane.b32.xlu0 %v3241, 17
  %v3299 = vpop.permute.xlu0 %3298
  %3300 = vrot.lane.b32.xlu0 %v3245, 17
  %v3301 = vpop.permute.xlu0 %3300
  %3302 = vrot.lane.b32.xlu0 %v3249, 17
  %v3303 = vpop.permute.xlu0 %3302
  %3304 = vrot.lane.b32.xlu0 %v3253, 17
  %v3305 = vpop.permute.xlu0 %3304
  %3306 = vrot.lane.b32.xlu0 %v3257, 17
  %v3307 = vpop.permute.xlu0 %3306
  %3308 = vrot.lane.b32.xlu0 %v3261, 17
  %v3309 = vpop.permute.xlu0 %3308
  %v3310 = vsel %vm379, %v3307, %v3309
  %v3311 = vsel %vm379, %v3305, %v3307
  %v3312 = vsel %vm379, %v3303, %v3305
  %v3313 = vsel %vm379, %v3301, %v3303
  %v3314 = vsel %vm379, %v3299, %v3301
  %v3315 = vsel %vm379, %v3297, %v3299
  %v3316 = vsel %vm379, %v3295, %v3297
  %v3317 = vsel %vm379, %v3293, %v3295
  %v3318 = vsel %vm379, %v3291, %v3293
  %v3319 = vsel %vm379, %v3289, %v3291
  %v3320 = vsel %vm379, %v3287, %v3289
  %v3321 = vsel %vm379, %v3285, %v3287
  %v3322 = vsel %vm379, %v3283, %v3285
  %v3323 = vsel %vm379, %v3281, %v3283
  %v3324 = vsel %vm379, %v3279, %v3281
  %v3325 = vsel %vm379, %v3309, %v3279
  %v3326 = vsel %vm156, %v3325, 0.0
  %v3327 = vsel %vm157, %v3324, 0.0
  %v3328 = vsel %vm158, %v3323, 0.0
  %v3329 = vsel %vm159, %v3322, 0.0
  %v3330 = vsel %vm160, %v3321, 0.0
  %v3331 = vsel %vm161, %v3320, 0.0
  %v3332 = vsel %vm162, %v3319, 0.0
  %v3333 = vsel %vm163, %v3318, 0.0
  %v3334 = vsel %vm164, %v3317, 0.0
  %v3335 = vsel %vm165, %v3316, 0.0
  %v3336 = vsel %vm166, %v3315, 0.0
  %v3337 = vsel %vm167, %v3314, 0.0
  %v3338 = vsel %vm168, %v3313, 0.0
  %v3339 = vsel %vm169, %v3312, 0.0
  %v3340 = vsel %vm170, %v3311, 0.0
  %v3341 = vsel %vm171, %v3310, 0.0
  %s3342 = scalar_lea.vmem [#allocation3], 1
  %v3343 = vld [vmem:[%s3342] ss:$8 sm:$0xf]
  %v3344 = vld [vmem:[%s3342] ss:$8 sm:$0xf0]
  %v3345 = vor.u32 %v3343, %v3344
  %s3346 = scalar_lea.vmem [#allocation3], 65
  %v3347 = vld [vmem:[%s3346] ss:$8 sm:$0xf]
  %v3348 = vld [vmem:[%s3346] ss:$8 sm:$0xf0]
  %v3349 = vor.u32 %v3347, %v3348
  %v3352 = vlaneseq
  %v3353 = vshrl.u32 %v3352, 7
  %v3354 = vsub.s32 0, %v3353
  %v3355 = vrot.slane %v3345, %v3354
  %v3356 = vlaneseq
  %v3357 = vshrl.u32 %v3356, 7
  %v3358 = vsub.s32 1, %v3357
  %v3359 = vrot.slane %v3345, %v3358
  %v3360 = vlaneseq
  %v3361 = vshrl.u32 %v3360, 7
  %v3362 = vsub.s32 2, %v3361
  %v3363 = vrot.slane %v3345, %v3362
  %v3364 = vlaneseq
  %v3365 = vshrl.u32 %v3364, 7
  %v3366 = vsub.s32 3, %v3365
  %v3367 = vrot.slane %v3345, %v3366
  %v3368 = vlaneseq
  %v3369 = vshrl.u32 %v3368, 7
  %v3370 = vsub.s32 4, %v3369
  %v3371 = vrot.slane %v3345, %v3370
  %v3372 = vlaneseq
  %v3373 = vshrl.u32 %v3372, 7
  %v3374 = vsub.s32 5, %v3373
  %v3375 = vrot.slane %v3345, %v3374
  %v3376 = vlaneseq
  %v3377 = vshrl.u32 %v3376, 7
  %v3378 = vsub.s32 6, %v3377
  %v3379 = vrot.slane %v3345, %v3378
  %v3380 = vlaneseq
  %v3381 = vshrl.u32 %v3380, 7
  %v3382 = vsub.s32 7, %v3381
  %v3383 = vrot.slane %v3345, %v3382
  %v3384 = vlaneseq
  %v3385 = vshrl.u32 %v3384, 7
  %v3386 = vsub.s32 0, %v3385
  %v3387 = vrot.slane %v3349, %v3386
  %v3388 = vlaneseq
  %v3389 = vshrl.u32 %v3388, 7
  %v3390 = vsub.s32 1, %v3389
  %v3391 = vrot.slane %v3349, %v3390
  %v3392 = vlaneseq
  %v3393 = vshrl.u32 %v3392, 7
  %v3394 = vsub.s32 2, %v3393
  %v3395 = vrot.slane %v3349, %v3394
  %v3396 = vlaneseq
  %v3397 = vshrl.u32 %v3396, 7
  %v3398 = vsub.s32 3, %v3397
  %v3399 = vrot.slane %v3349, %v3398
  %v3400 = vlaneseq
  %v3401 = vshrl.u32 %v3400, 7
  %v3402 = vsub.s32 4, %v3401
  %v3403 = vrot.slane %v3349, %v3402
  %v3404 = vlaneseq
  %v3405 = vshrl.u32 %v3404, 7
  %v3406 = vsub.s32 5, %v3405
  %v3407 = vrot.slane %v3349, %v3406
  %v3408 = vlaneseq
  %v3409 = vshrl.u32 %v3408, 7
  %v3410 = vsub.s32 6, %v3409
  %v3411 = vrot.slane %v3349, %v3410
  %v3412 = vlaneseq
  %v3413 = vshrl.u32 %v3412, 7
  %v3414 = vsub.s32 7, %v3413
  %v3415 = vrot.slane %v3349, %v3414
  %3432 = vrot.lane.b32.xlu0 %v3355, 16
  %v3433 = vpop.permute.xlu0 %3432
  %3434 = vrot.lane.b32.xlu0 %v3359, 16
  %v3435 = vpop.permute.xlu0 %3434
  %3436 = vrot.lane.b32.xlu0 %v3363, 16
  %v3437 = vpop.permute.xlu0 %3436
  %3438 = vrot.lane.b32.xlu0 %v3367, 16
  %v3439 = vpop.permute.xlu0 %3438
  %3440 = vrot.lane.b32.xlu0 %v3371, 16
  %v3441 = vpop.permute.xlu0 %3440
  %3442 = vrot.lane.b32.xlu0 %v3375, 16
  %v3443 = vpop.permute.xlu0 %3442
  %3444 = vrot.lane.b32.xlu0 %v3379, 16
  %v3445 = vpop.permute.xlu0 %3444
  %3446 = vrot.lane.b32.xlu0 %v3383, 16
  %v3447 = vpop.permute.xlu0 %3446
  %3448 = vrot.lane.b32.xlu0 %v3387, 16
  %v3449 = vpop.permute.xlu0 %3448
  %3450 = vrot.lane.b32.xlu0 %v3391, 16
  %v3451 = vpop.permute.xlu0 %3450
  %3452 = vrot.lane.b32.xlu0 %v3395, 16
  %v3453 = vpop.permute.xlu0 %3452
  %3454 = vrot.lane.b32.xlu0 %v3399, 16
  %v3455 = vpop.permute.xlu0 %3454
  %3456 = vrot.lane.b32.xlu0 %v3403, 16
  %v3457 = vpop.permute.xlu0 %3456
  %3458 = vrot.lane.b32.xlu0 %v3407, 16
  %v3459 = vpop.permute.xlu0 %3458
  %3460 = vrot.lane.b32.xlu0 %v3411, 16
  %v3461 = vpop.permute.xlu0 %3460
  %3462 = vrot.lane.b32.xlu0 %v3415, 16
  %v3463 = vpop.permute.xlu0 %3462
  %v3464 = vsel %vm565, %v3461, %v3463
  %v3465 = vsel %vm565, %v3459, %v3461
  %v3466 = vsel %vm565, %v3457, %v3459
  %v3467 = vsel %vm565, %v3455, %v3457
  %v3468 = vsel %vm565, %v3453, %v3455
  %v3469 = vsel %vm565, %v3451, %v3453
  %v3470 = vsel %vm565, %v3449, %v3451
  %v3471 = vsel %vm565, %v3447, %v3449
  %v3472 = vsel %vm565, %v3445, %v3447
  %v3473 = vsel %vm565, %v3443, %v3445
  %v3474 = vsel %vm565, %v3441, %v3443
  %v3475 = vsel %vm565, %v3439, %v3441
  %v3476 = vsel %vm565, %v3437, %v3439
  %v3477 = vsel %vm565, %v3435, %v3437
  %v3478 = vsel %vm565, %v3433, %v3435
  %v3479 = vsel %vm565, %v3463, %v3433
  %v3480 = vsel %vm92, %v3479, 0.0
  %v3481 = vsel %vm93, %v3478, 0.0
  %v3482 = vsel %vm94, %v3477, 0.0
  %v3483 = vsel %vm95, %v3476, 0.0
  %v3484 = vsel %vm96, %v3475, 0.0
  %v3485 = vsel %vm97, %v3474, 0.0
  %v3486 = vsel %vm98, %v3473, 0.0
  %v3487 = vsel %vm99, %v3472, 0.0
  %v3488 = vsel %vm100, %v3471, 0.0
  %v3489 = vsel %vm101, %v3470, 0.0
  %v3490 = vsel %vm102, %v3469, 0.0
  %v3491 = vsel %vm103, %v3468, 0.0
  %v3492 = vsel %vm104, %v3467, 0.0
  %v3493 = vsel %vm105, %v3466, 0.0
  %v3494 = vsel %vm106, %v3465, 0.0
  %v3495 = vsel %vm107, %v3464, 0.0
  %v3496 = vadd.f32 %v3326, %v3480
  %v3497 = vadd.f32 %v3327, %v3481
  %v3498 = vadd.f32 %v3328, %v3482
  %v3499 = vadd.f32 %v3329, %v3483
  %v3500 = vadd.f32 %v3330, %v3484
  %v3501 = vadd.f32 %v3331, %v3485
  %v3502 = vadd.f32 %v3332, %v3486
  %v3503 = vadd.f32 %v3333, %v3487
  %v3504 = vadd.f32 %v3334, %v3488
  %v3505 = vadd.f32 %v3335, %v3489
  %v3506 = vadd.f32 %v3336, %v3490
  %v3507 = vadd.f32 %v3337, %v3491
  %v3508 = vadd.f32 %v3338, %v3492
  %v3509 = vadd.f32 %v3339, %v3493
  %v3510 = vadd.f32 %v3340, %v3494
  %v3511 = vadd.f32 %v3341, %v3495
  %s3512 = scalar_lea.vmem [#allocation3], 2
  %v3513 = vld [vmem:[%s3512] ss:$8 sm:$0xf]
  %v3514 = vld [vmem:[%s3512] ss:$8 sm:$0xf0]
  %v3515 = vor.u32 %v3513, %v3514
  %s3516 = scalar_lea.vmem [#allocation3], 66
  %v3517 = vld [vmem:[%s3516] ss:$8 sm:$0xf]
  %v3518 = vld [vmem:[%s3516] ss:$8 sm:$0xf0]
  %v3519 = vor.u32 %v3517, %v3518
  %v3522 = vlaneseq
  %v3523 = vshrl.u32 %v3522, 7
  %v3524 = vsub.s32 0, %v3523
  %v3525 = vrot.slane %v3515, %v3524
  %v3526 = vlaneseq
  %v3527 = vshrl.u32 %v3526, 7
  %v3528 = vsub.s32 1, %v3527
  %v3529 = vrot.slane %v3515, %v3528
  %v3530 = vlaneseq
  %v3531 = vshrl.u32 %v3530, 7
  %v3532 = vsub.s32 2, %v3531
  %v3533 = vrot.slane %v3515, %v3532
  %v3534 = vlaneseq
  %v3535 = vshrl.u32 %v3534, 7
  %v3536 = vsub.s32 3, %v3535
  %v3537 = vrot.slane %v3515, %v3536
  %v3538 = vlaneseq
  %v3539 = vshrl.u32 %v3538, 7
  %v3540 = vsub.s32 4, %v3539
  %v3541 = vrot.slane %v3515, %v3540
  %v3542 = vlaneseq
  %v3543 = vshrl.u32 %v3542, 7
  %v3544 = vsub.s32 5, %v3543
  %v3545 = vrot.slane %v3515, %v3544
  %v3546 = vlaneseq
  %v3547 = vshrl.u32 %v3546, 7
  %v3548 = vsub.s32 6, %v3547
  %v3549 = vrot.slane %v3515, %v3548
  %v3550 = vlaneseq
  %v3551 = vshrl.u32 %v3550, 7
  %v3552 = vsub.s32 7, %v3551
  %v3553 = vrot.slane %v3515, %v3552
  %v3554 = vlaneseq
  %v3555 = vshrl.u32 %v3554, 7
  %v3556 = vsub.s32 0, %v3555
  %v3557 = vrot.slane %v3519, %v3556
  %v3558 = vlaneseq
  %v3559 = vshrl.u32 %v3558, 7
  %v3560 = vsub.s32 1, %v3559
  %v3561 = vrot.slane %v3519, %v3560
  %v3562 = vlaneseq
  %v3563 = vshrl.u32 %v3562, 7
  %v3564 = vsub.s32 2, %v3563
  %v3565 = vrot.slane %v3519, %v3564
  %v3566 = vlaneseq
  %v3567 = vshrl.u32 %v3566, 7
  %v3568 = vsub.s32 3, %v3567
  %v3569 = vrot.slane %v3519, %v3568
  %v3570 = vlaneseq
  %v3571 = vshrl.u32 %v3570, 7
  %v3572 = vsub.s32 4, %v3571
  %v3573 = vrot.slane %v3519, %v3572
  %v3574 = vlaneseq
  %v3575 = vshrl.u32 %v3574, 7
  %v3576 = vsub.s32 5, %v3575
  %v3577 = vrot.slane %v3519, %v3576
  %v3578 = vlaneseq
  %v3579 = vshrl.u32 %v3578, 7
  %v3580 = vsub.s32 6, %v3579
  %v3581 = vrot.slane %v3519, %v3580
  %v3582 = vlaneseq
  %v3583 = vshrl.u32 %v3582, 7
  %v3584 = vsub.s32 7, %v3583
  %v3585 = vrot.slane %v3519, %v3584
  %3602 = vrot.lane.b32.xlu0 %v3525, 15
  %v3603 = vpop.permute.xlu0 %3602
  %3604 = vrot.lane.b32.xlu0 %v3529, 15
  %v3605 = vpop.permute.xlu0 %3604
  %3606 = vrot.lane.b32.xlu0 %v3533, 15
  %v3607 = vpop.permute.xlu0 %3606
  %3608 = vrot.lane.b32.xlu0 %v3537, 15
  %v3609 = vpop.permute.xlu0 %3608
  %3610 = vrot.lane.b32.xlu0 %v3541, 15
  %v3611 = vpop.permute.xlu0 %3610
  %3612 = vrot.lane.b32.xlu0 %v3545, 15
  %v3613 = vpop.permute.xlu0 %3612
  %3614 = vrot.lane.b32.xlu0 %v3549, 15
  %v3615 = vpop.permute.xlu0 %3614
  %3616 = vrot.lane.b32.xlu0 %v3553, 15
  %v3617 = vpop.permute.xlu0 %3616
  %3618 = vrot.lane.b32.xlu0 %v3557, 15
  %v3619 = vpop.permute.xlu0 %3618
  %3620 = vrot.lane.b32.xlu0 %v3561, 15
  %v3621 = vpop.permute.xlu0 %3620
  %3622 = vrot.lane.b32.xlu0 %v3565, 15
  %v3623 = vpop.permute.xlu0 %3622
  %3624 = vrot.lane.b32.xlu0 %v3569, 15
  %v3625 = vpop.permute.xlu0 %3624
  %3626 = vrot.lane.b32.xlu0 %v3573, 15
  %v3627 = vpop.permute.xlu0 %3626
  %3628 = vrot.lane.b32.xlu0 %v3577, 15
  %v3629 = vpop.permute.xlu0 %3628
  %3630 = vrot.lane.b32.xlu0 %v3581, 15
  %v3631 = vpop.permute.xlu0 %3630
  %3632 = vrot.lane.b32.xlu0 %v3585, 15
  %v3633 = vpop.permute.xlu0 %3632
  %v3634 = vsel %vm752, %v3631, %v3633
  %v3635 = vsel %vm752, %v3629, %v3631
  %v3636 = vsel %vm752, %v3627, %v3629
  %v3637 = vsel %vm752, %v3625, %v3627
  %v3638 = vsel %vm752, %v3623, %v3625
  %v3639 = vsel %vm752, %v3621, %v3623
  %v3640 = vsel %vm752, %v3619, %v3621
  %v3641 = vsel %vm752, %v3617, %v3619
  %v3642 = vsel %vm752, %v3615, %v3617
  %v3643 = vsel %vm752, %v3613, %v3615
  %v3644 = vsel %vm752, %v3611, %v3613
  %v3645 = vsel %vm752, %v3609, %v3611
  %v3646 = vsel %vm752, %v3607, %v3609
  %v3647 = vsel %vm752, %v3605, %v3607
  %v3648 = vsel %vm752, %v3603, %v3605
  %v3649 = vsel %vm752, %v3633, %v3603
  %v3650 = vsel %vm172, %v3649, 0.0
  %v3651 = vsel %vm173, %v3648, 0.0
  %v3652 = vsel %vm174, %v3647, 0.0
  %v3653 = vsel %vm175, %v3646, 0.0
  %v3654 = vsel %vm176, %v3645, 0.0
  %v3655 = vsel %vm177, %v3644, 0.0
  %v3656 = vsel %vm178, %v3643, 0.0
  %v3657 = vsel %vm179, %v3642, 0.0
  %v3658 = vsel %vm180, %v3641, 0.0
  %v3659 = vsel %vm181, %v3640, 0.0
  %v3660 = vsel %vm182, %v3639, 0.0
  %v3661 = vsel %vm183, %v3638, 0.0
  %v3662 = vsel %vm184, %v3637, 0.0
  %v3663 = vsel %vm185, %v3636, 0.0
  %v3664 = vsel %vm186, %v3635, 0.0
  %v3665 = vsel %vm187, %v3634, 0.0
  %v3666 = vadd.f32 %v3496, %v3650
  %v3667 = vadd.f32 %v3497, %v3651
  %v3668 = vadd.f32 %v3498, %v3652
  %v3669 = vadd.f32 %v3499, %v3653
  %v3670 = vadd.f32 %v3500, %v3654
  %v3671 = vadd.f32 %v3501, %v3655
  %v3672 = vadd.f32 %v3502, %v3656
  %v3673 = vadd.f32 %v3503, %v3657
  %v3674 = vadd.f32 %v3504, %v3658
  %v3675 = vadd.f32 %v3505, %v3659
  %v3676 = vadd.f32 %v3506, %v3660
  %v3677 = vadd.f32 %v3507, %v3661
  %v3678 = vadd.f32 %v3508, %v3662
  %v3679 = vadd.f32 %v3509, %v3663
  %v3680 = vadd.f32 %v3510, %v3664
  %v3681 = vadd.f32 %v3511, %v3665
  %s3682 = scalar_lea.vmem [#allocation3], 3
  %v3683 = vld [vmem:[%s3682] ss:$8 sm:$0xf]
  %v3684 = vld [vmem:[%s3682] ss:$8 sm:$0xf0]
  %v3685 = vor.u32 %v3683, %v3684
  %s3686 = scalar_lea.vmem [#allocation3], 67
  %v3687 = vld [vmem:[%s3686] ss:$8 sm:$0xf]
  %v3688 = vld [vmem:[%s3686] ss:$8 sm:$0xf0]
  %v3689 = vor.u32 %v3687, %v3688
  %v3692 = vlaneseq
  %v3693 = vshrl.u32 %v3692, 7
  %v3694 = vsub.s32 0, %v3693
  %v3695 = vrot.slane %v3685, %v3694
  %v3696 = vlaneseq
  %v3697 = vshrl.u32 %v3696, 7
  %v3698 = vsub.s32 1, %v3697
  %v3699 = vrot.slane %v3685, %v3698
  %v3700 = vlaneseq
  %v3701 = vshrl.u32 %v3700, 7
  %v3702 = vsub.s32 2, %v3701
  %v3703 = vrot.slane %v3685, %v3702
  %v3704 = vlaneseq
  %v3705 = vshrl.u32 %v3704, 7
  %v3706 = vsub.s32 3, %v3705
  %v3707 = vrot.slane %v3685, %v3706
  %v3708 = vlaneseq
  %v3709 = vshrl.u32 %v3708, 7
  %v3710 = vsub.s32 4, %v3709
  %v3711 = vrot.slane %v3685, %v3710
  %v3712 = vlaneseq
  %v3713 = vshrl.u32 %v3712, 7
  %v3714 = vsub.s32 5, %v3713
  %v3715 = vrot.slane %v3685, %v3714
  %v3716 = vlaneseq
  %v3717 = vshrl.u32 %v3716, 7
  %v3718 = vsub.s32 6, %v3717
  %v3719 = vrot.slane %v3685, %v3718
  %v3720 = vlaneseq
  %v3721 = vshrl.u32 %v3720, 7
  %v3722 = vsub.s32 7, %v3721
  %v3723 = vrot.slane %v3685, %v3722
  %v3724 = vlaneseq
  %v3725 = vshrl.u32 %v3724, 7
  %v3726 = vsub.s32 0, %v3725
  %v3727 = vrot.slane %v3689, %v3726
  %v3728 = vlaneseq
  %v3729 = vshrl.u32 %v3728, 7
  %v3730 = vsub.s32 1, %v3729
  %v3731 = vrot.slane %v3689, %v3730
  %v3732 = vlaneseq
  %v3733 = vshrl.u32 %v3732, 7
  %v3734 = vsub.s32 2, %v3733
  %v3735 = vrot.slane %v3689, %v3734
  %v3736 = vlaneseq
  %v3737 = vshrl.u32 %v3736, 7
  %v3738 = vsub.s32 3, %v3737
  %v3739 = vrot.slane %v3689, %v3738
  %v3740 = vlaneseq
  %v3741 = vshrl.u32 %v3740, 7
  %v3742 = vsub.s32 4, %v3741
  %v3743 = vrot.slane %v3689, %v3742
  %v3744 = vlaneseq
  %v3745 = vshrl.u32 %v3744, 7
  %v3746 = vsub.s32 5, %v3745
  %v3747 = vrot.slane %v3689, %v3746
  %v3748 = vlaneseq
  %v3749 = vshrl.u32 %v3748, 7
  %v3750 = vsub.s32 6, %v3749
  %v3751 = vrot.slane %v3689, %v3750
  %v3752 = vlaneseq
  %v3753 = vshrl.u32 %v3752, 7
  %v3754 = vsub.s32 7, %v3753
  %v3755 = vrot.slane %v3689, %v3754
  %3772 = vrot.lane.b32.xlu0 %v3695, 1
  %v3773 = vpop.permute.xlu0 %3772
  %3774 = vrot.lane.b32.xlu0 %v3699, 1
  %v3775 = vpop.permute.xlu0 %3774
  %3776 = vrot.lane.b32.xlu0 %v3703, 1
  %v3777 = vpop.permute.xlu0 %3776
  %3778 = vrot.lane.b32.xlu0 %v3707, 1
  %v3779 = vpop.permute.xlu0 %3778
  %3780 = vrot.lane.b32.xlu0 %v3711, 1
  %v3781 = vpop.permute.xlu0 %3780
  %3782 = vrot.lane.b32.xlu0 %v3715, 1
  %v3783 = vpop.permute.xlu0 %3782
  %3784 = vrot.lane.b32.xlu0 %v3719, 1
  %v3785 = vpop.permute.xlu0 %3784
  %3786 = vrot.lane.b32.xlu0 %v3723, 1
  %v3787 = vpop.permute.xlu0 %3786
  %3788 = vrot.lane.b32.xlu0 %v3727, 1
  %v3789 = vpop.permute.xlu0 %3788
  %3790 = vrot.lane.b32.xlu0 %v3731, 1
  %v3791 = vpop.permute.xlu0 %3790
  %3792 = vrot.lane.b32.xlu0 %v3735, 1
  %v3793 = vpop.permute.xlu0 %3792
  %3794 = vrot.lane.b32.xlu0 %v3739, 1
  %v3795 = vpop.permute.xlu0 %3794
  %3796 = vrot.lane.b32.xlu0 %v3743, 1
  %v3797 = vpop.permute.xlu0 %3796
  %3798 = vrot.lane.b32.xlu0 %v3747, 1
  %v3799 = vpop.permute.xlu0 %3798
  %3800 = vrot.lane.b32.xlu0 %v3751, 1
  %v3801 = vpop.permute.xlu0 %3800
  %3802 = vrot.lane.b32.xlu0 %v3755, 1
  %v3803 = vpop.permute.xlu0 %3802
  %v3804 = vsel %vm939, %v3801, %v3803
  %v3805 = vsel %vm939, %v3799, %v3801
  %v3806 = vsel %vm939, %v3797, %v3799
  %v3807 = vsel %vm939, %v3795, %v3797
  %v3808 = vsel %vm939, %v3793, %v3795
  %v3809 = vsel %vm939, %v3791, %v3793
  %v3810 = vsel %vm939, %v3789, %v3791
  %v3811 = vsel %vm939, %v3787, %v3789
  %v3812 = vsel %vm939, %v3785, %v3787
  %v3813 = vsel %vm939, %v3783, %v3785
  %v3814 = vsel %vm939, %v3781, %v3783
  %v3815 = vsel %vm939, %v3779, %v3781
  %v3816 = vsel %vm939, %v3777, %v3779
  %v3817 = vsel %vm939, %v3775, %v3777
  %v3818 = vsel %vm939, %v3773, %v3775
  %v3819 = vsel %vm939, %v3803, %v3773
  %v3820 = vsel %vm124, %v3819, 0.0
  %v3821 = vsel %vm125, %v3818, 0.0
  %v3822 = vsel %vm126, %v3817, 0.0
  %v3823 = vsel %vm127, %v3816, 0.0
  %v3824 = vsel %vm128, %v3815, 0.0
  %v3825 = vsel %vm129, %v3814, 0.0
  %v3826 = vsel %vm130, %v3813, 0.0
  %v3827 = vsel %vm131, %v3812, 0.0
  %v3828 = vsel %vm132, %v3811, 0.0
  %v3829 = vsel %vm133, %v3810, 0.0
  %v3830 = vsel %vm134, %v3809, 0.0
  %v3831 = vsel %vm135, %v3808, 0.0
  %v3832 = vsel %vm136, %v3807, 0.0
  %v3833 = vsel %vm137, %v3806, 0.0
  %v3834 = vsel %vm138, %v3805, 0.0
  %v3835 = vsel %vm139, %v3804, 0.0
  %v3836 = vadd.f32 %v3666, %v3820
  %v3837 = vadd.f32 %v3667, %v3821
  %v3838 = vadd.f32 %v3668, %v3822
  %v3839 = vadd.f32 %v3669, %v3823
  %v3840 = vadd.f32 %v3670, %v3824
  %v3841 = vadd.f32 %v3671, %v3825
  %v3842 = vadd.f32 %v3672, %v3826
  %v3843 = vadd.f32 %v3673, %v3827
  %v3844 = vadd.f32 %v3674, %v3828
  %v3845 = vadd.f32 %v3675, %v3829
  %v3846 = vadd.f32 %v3676, %v3830
  %v3847 = vadd.f32 %v3677, %v3831
  %v3848 = vadd.f32 %v3678, %v3832
  %v3849 = vadd.f32 %v3679, %v3833
  %v3850 = vadd.f32 %v3680, %v3834
  %v3851 = vadd.f32 %v3681, %v3835
  %s3852 = scalar_lea.vmem [#allocation3], 4
  %v3853 = vld [vmem:[%s3852] ss:$8 sm:$0xf]
  %v3854 = vld [vmem:[%s3852] ss:$8 sm:$0xf0]
  %v3855 = vor.u32 %v3853, %v3854
  %s3856 = scalar_lea.vmem [#allocation3], 68
  %v3857 = vld [vmem:[%s3856] ss:$8 sm:$0xf]
  %v3858 = vld [vmem:[%s3856] ss:$8 sm:$0xf0]
  %v3859 = vor.u32 %v3857, %v3858
  %v3862 = vlaneseq
  %v3863 = vshrl.u32 %v3862, 7
  %v3864 = vsub.s32 0, %v3863
  %v3865 = vrot.slane %v3855, %v3864
  %v3866 = vlaneseq
  %v3867 = vshrl.u32 %v3866, 7
  %v3868 = vsub.s32 1, %v3867
  %v3869 = vrot.slane %v3855, %v3868
  %v3870 = vlaneseq
  %v3871 = vshrl.u32 %v3870, 7
  %v3872 = vsub.s32 2, %v3871
  %v3873 = vrot.slane %v3855, %v3872
  %v3874 = vlaneseq
  %v3875 = vshrl.u32 %v3874, 7
  %v3876 = vsub.s32 3, %v3875
  %v3877 = vrot.slane %v3855, %v3876
  %v3878 = vlaneseq
  %v3879 = vshrl.u32 %v3878, 7
  %v3880 = vsub.s32 4, %v3879
  %v3881 = vrot.slane %v3855, %v3880
  %v3882 = vlaneseq
  %v3883 = vshrl.u32 %v3882, 7
  %v3884 = vsub.s32 5, %v3883
  %v3885 = vrot.slane %v3855, %v3884
  %v3886 = vlaneseq
  %v3887 = vshrl.u32 %v3886, 7
  %v3888 = vsub.s32 6, %v3887
  %v3889 = vrot.slane %v3855, %v3888
  %v3890 = vlaneseq
  %v3891 = vshrl.u32 %v3890, 7
  %v3892 = vsub.s32 7, %v3891
  %v3893 = vrot.slane %v3855, %v3892
  %v3894 = vlaneseq
  %v3895 = vshrl.u32 %v3894, 7
  %v3896 = vsub.s32 0, %v3895
  %v3897 = vrot.slane %v3859, %v3896
  %v3898 = vlaneseq
  %v3899 = vshrl.u32 %v3898, 7
  %v3900 = vsub.s32 1, %v3899
  %v3901 = vrot.slane %v3859, %v3900
  %v3902 = vlaneseq
  %v3903 = vshrl.u32 %v3902, 7
  %v3904 = vsub.s32 2, %v3903
  %v3905 = vrot.slane %v3859, %v3904
  %v3906 = vlaneseq
  %v3907 = vshrl.u32 %v3906, 7
  %v3908 = vsub.s32 3, %v3907
  %v3909 = vrot.slane %v3859, %v3908
  %v3910 = vlaneseq
  %v3911 = vshrl.u32 %v3910, 7
  %v3912 = vsub.s32 4, %v3911
  %v3913 = vrot.slane %v3859, %v3912
  %v3914 = vlaneseq
  %v3915 = vshrl.u32 %v3914, 7
  %v3916 = vsub.s32 5, %v3915
  %v3917 = vrot.slane %v3859, %v3916
  %v3918 = vlaneseq
  %v3919 = vshrl.u32 %v3918, 7
  %v3920 = vsub.s32 6, %v3919
  %v3921 = vrot.slane %v3859, %v3920
  %v3922 = vlaneseq
  %v3923 = vshrl.u32 %v3922, 7
  %v3924 = vsub.s32 7, %v3923
  %v3925 = vrot.slane %v3859, %v3924
  %v3942 = vadd.f32 %v3836, %v3865
  %v3943 = vadd.f32 %v3837, %v3869
  %v3944 = vadd.f32 %v3838, %v3873
  %v3945 = vadd.f32 %v3839, %v3877
  %v3946 = vadd.f32 %v3840, %v3881
  %v3947 = vadd.f32 %v3841, %v3885
  %v3948 = vadd.f32 %v3842, %v3889
  %v3949 = vadd.f32 %v3843, %v3893
  %v3950 = vadd.f32 %v3844, %v3897
  %v3951 = vadd.f32 %v3845, %v3901
  %v3952 = vadd.f32 %v3846, %v3905
  %v3953 = vadd.f32 %v3847, %v3909
  %v3954 = vadd.f32 %v3848, %v3913
  %v3955 = vadd.f32 %v3849, %v3917
  %v3956 = vadd.f32 %v3850, %v3921
  %v3957 = vadd.f32 %v3851, %v3925
  %s3958 = scalar_lea.vmem [#allocation3], 5
  %v3959 = vld [vmem:[%s3958] ss:$8 sm:$0xf]
  %v3960 = vld [vmem:[%s3958] ss:$8 sm:$0xf0]
  %v3961 = vor.u32 %v3959, %v3960
  %s3962 = scalar_lea.vmem [#allocation3], 69
  %v3963 = vld [vmem:[%s3962] ss:$8 sm:$0xf]
  %v3964 = vld [vmem:[%s3962] ss:$8 sm:$0xf0]
  %v3965 = vor.u32 %v3963, %v3964
  %v3968 = vlaneseq
  %v3969 = vshrl.u32 %v3968, 7
  %v3970 = vsub.s32 0, %v3969
  %v3971 = vrot.slane %v3961, %v3970
  %v3972 = vlaneseq
  %v3973 = vshrl.u32 %v3972, 7
  %v3974 = vsub.s32 1, %v3973
  %v3975 = vrot.slane %v3961, %v3974
  %v3976 = vlaneseq
  %v3977 = vshrl.u32 %v3976, 7
  %v3978 = vsub.s32 2, %v3977
  %v3979 = vrot.slane %v3961, %v3978
  %v3980 = vlaneseq
  %v3981 = vshrl.u32 %v3980, 7
  %v3982 = vsub.s32 3, %v3981
  %v3983 = vrot.slane %v3961, %v3982
  %v3984 = vlaneseq
  %v3985 = vshrl.u32 %v3984, 7
  %v3986 = vsub.s32 4, %v3985
  %v3987 = vrot.slane %v3961, %v3986
  %v3988 = vlaneseq
  %v3989 = vshrl.u32 %v3988, 7
  %v3990 = vsub.s32 5, %v3989
  %v3991 = vrot.slane %v3961, %v3990
  %v3992 = vlaneseq
  %v3993 = vshrl.u32 %v3992, 7
  %v3994 = vsub.s32 6, %v3993
  %v3995 = vrot.slane %v3961, %v3994
  %v3996 = vlaneseq
  %v3997 = vshrl.u32 %v3996, 7
  %v3998 = vsub.s32 7, %v3997
  %v3999 = vrot.slane %v3961, %v3998
  %v4000 = vlaneseq
  %v4001 = vshrl.u32 %v4000, 7
  %v4002 = vsub.s32 0, %v4001
  %v4003 = vrot.slane %v3965, %v4002
  %v4004 = vlaneseq
  %v4005 = vshrl.u32 %v4004, 7
  %v4006 = vsub.s32 1, %v4005
  %v4007 = vrot.slane %v3965, %v4006
  %v4008 = vlaneseq
  %v4009 = vshrl.u32 %v4008, 7
  %v4010 = vsub.s32 2, %v4009
  %v4011 = vrot.slane %v3965, %v4010
  %v4012 = vlaneseq
  %v4013 = vshrl.u32 %v4012, 7
  %v4014 = vsub.s32 3, %v4013
  %v4015 = vrot.slane %v3965, %v4014
  %v4016 = vlaneseq
  %v4017 = vshrl.u32 %v4016, 7
  %v4018 = vsub.s32 4, %v4017
  %v4019 = vrot.slane %v3965, %v4018
  %v4020 = vlaneseq
  %v4021 = vshrl.u32 %v4020, 7
  %v4022 = vsub.s32 5, %v4021
  %v4023 = vrot.slane %v3965, %v4022
  %v4024 = vlaneseq
  %v4025 = vshrl.u32 %v4024, 7
  %v4026 = vsub.s32 6, %v4025
  %v4027 = vrot.slane %v3965, %v4026
  %v4028 = vlaneseq
  %v4029 = vshrl.u32 %v4028, 7
  %v4030 = vsub.s32 7, %v4029
  %v4031 = vrot.slane %v3965, %v4030
  %4048 = vrot.lane.b32.xlu0 %v3971, 127
  %v4049 = vpop.permute.xlu0 %4048
  %4050 = vrot.lane.b32.xlu0 %v3975, 127
  %v4051 = vpop.permute.xlu0 %4050
  %4052 = vrot.lane.b32.xlu0 %v3979, 127
  %v4053 = vpop.permute.xlu0 %4052
  %4054 = vrot.lane.b32.xlu0 %v3983, 127
  %v4055 = vpop.permute.xlu0 %4054
  %4056 = vrot.lane.b32.xlu0 %v3987, 127
  %v4057 = vpop.permute.xlu0 %4056
  %4058 = vrot.lane.b32.xlu0 %v3991, 127
  %v4059 = vpop.permute.xlu0 %4058
  %4060 = vrot.lane.b32.xlu0 %v3995, 127
  %v4061 = vpop.permute.xlu0 %4060
  %4062 = vrot.lane.b32.xlu0 %v3999, 127
  %v4063 = vpop.permute.xlu0 %4062
  %4064 = vrot.lane.b32.xlu0 %v4003, 127
  %v4065 = vpop.permute.xlu0 %4064
  %4066 = vrot.lane.b32.xlu0 %v4007, 127
  %v4067 = vpop.permute.xlu0 %4066
  %4068 = vrot.lane.b32.xlu0 %v4011, 127
  %v4069 = vpop.permute.xlu0 %4068
  %4070 = vrot.lane.b32.xlu0 %v4015, 127
  %v4071 = vpop.permute.xlu0 %4070
  %4072 = vrot.lane.b32.xlu0 %v4019, 127
  %v4073 = vpop.permute.xlu0 %4072
  %4074 = vrot.lane.b32.xlu0 %v4023, 127
  %v4075 = vpop.permute.xlu0 %4074
  %4076 = vrot.lane.b32.xlu0 %v4027, 127
  %v4077 = vpop.permute.xlu0 %4076
  %4078 = vrot.lane.b32.xlu0 %v4031, 127
  %v4079 = vpop.permute.xlu0 %4078
  %v4080 = vsel %vm1132, %v4077, %v4079
  %v4081 = vsel %vm1132, %v4075, %v4077
  %v4082 = vsel %vm1132, %v4073, %v4075
  %v4083 = vsel %vm1132, %v4071, %v4073
  %v4084 = vsel %vm1132, %v4069, %v4071
  %v4085 = vsel %vm1132, %v4067, %v4069
  %v4086 = vsel %vm1132, %v4065, %v4067
  %v4087 = vsel %vm1132, %v4063, %v4065
  %v4088 = vsel %vm1132, %v4061, %v4063
  %v4089 = vsel %vm1132, %v4059, %v4061
  %v4090 = vsel %vm1132, %v4057, %v4059
  %v4091 = vsel %vm1132, %v4055, %v4057
  %v4092 = vsel %vm1132, %v4053, %v4055
  %v4093 = vsel %vm1132, %v4051, %v4053
  %v4094 = vsel %vm1132, %v4049, %v4051
  %v4095 = vsel %vm1132, %v4079, %v4049
  %v4096 = vsel %vm140, %v4094, 0.0
  %v4097 = vsel %vm141, %v4093, 0.0
  %v4098 = vsel %vm142, %v4092, 0.0
  %v4099 = vsel %vm143, %v4091, 0.0
  %v4100 = vsel %vm144, %v4090, 0.0
  %v4101 = vsel %vm145, %v4089, 0.0
  %v4102 = vsel %vm146, %v4088, 0.0
  %v4103 = vsel %vm147, %v4087, 0.0
  %v4104 = vsel %vm148, %v4086, 0.0
  %v4105 = vsel %vm149, %v4085, 0.0
  %v4106 = vsel %vm150, %v4084, 0.0
  %v4107 = vsel %vm151, %v4083, 0.0
  %v4108 = vsel %vm152, %v4082, 0.0
  %v4109 = vsel %vm153, %v4081, 0.0
  %v4110 = vsel %vm154, %v4080, 0.0
  %v4111 = vsel %vm155, %v4095, 0.0
  %v4112 = vadd.f32 %v3942, %v4096
  %v4113 = vadd.f32 %v3943, %v4097
  %v4114 = vadd.f32 %v3944, %v4098
  %v4115 = vadd.f32 %v3945, %v4099
  %v4116 = vadd.f32 %v3946, %v4100
  %v4117 = vadd.f32 %v3947, %v4101
  %v4118 = vadd.f32 %v3948, %v4102
  %v4119 = vadd.f32 %v3949, %v4103
  %v4120 = vadd.f32 %v3950, %v4104
  %v4121 = vadd.f32 %v3951, %v4105
  %v4122 = vadd.f32 %v3952, %v4106
  %v4123 = vadd.f32 %v3953, %v4107
  %v4124 = vadd.f32 %v3954, %v4108
  %v4125 = vadd.f32 %v3955, %v4109
  %v4126 = vadd.f32 %v3956, %v4110
  %v4127 = vadd.f32 %v3957, %v4111
  %s4128 = scalar_lea.vmem [#allocation3], 6
  %v4129 = vld [vmem:[%s4128] ss:$8 sm:$0xf]
  %v4130 = vld [vmem:[%s4128] ss:$8 sm:$0xf0]
  %v4131 = vor.u32 %v4129, %v4130
  %s4132 = scalar_lea.vmem [#allocation3], 70
  %v4133 = vld [vmem:[%s4132] ss:$8 sm:$0xf]
  %v4134 = vld [vmem:[%s4132] ss:$8 sm:$0xf0]
  %v4135 = vor.u32 %v4133, %v4134
  %v4138 = vlaneseq
  %v4139 = vshrl.u32 %v4138, 7
  %v4140 = vsub.s32 0, %v4139
  %v4141 = vrot.slane %v4131, %v4140
  %v4142 = vlaneseq
  %v4143 = vshrl.u32 %v4142, 7
  %v4144 = vsub.s32 1, %v4143
  %v4145 = vrot.slane %v4131, %v4144
  %v4146 = vlaneseq
  %v4147 = vshrl.u32 %v4146, 7
  %v4148 = vsub.s32 2, %v4147
  %v4149 = vrot.slane %v4131, %v4148
  %v4150 = vlaneseq
  %v4151 = vshrl.u32 %v4150, 7
  %v4152 = vsub.s32 3, %v4151
  %v4153 = vrot.slane %v4131, %v4152
  %v4154 = vlaneseq
  %v4155 = vshrl.u32 %v4154, 7
  %v4156 = vsub.s32 4, %v4155
  %v4157 = vrot.slane %v4131, %v4156
  %v4158 = vlaneseq
  %v4159 = vshrl.u32 %v4158, 7
  %v4160 = vsub.s32 5, %v4159
  %v4161 = vrot.slane %v4131, %v4160
  %v4162 = vlaneseq
  %v4163 = vshrl.u32 %v4162, 7
  %v4164 = vsub.s32 6, %v4163
  %v4165 = vrot.slane %v4131, %v4164
  %v4166 = vlaneseq
  %v4167 = vshrl.u32 %v4166, 7
  %v4168 = vsub.s32 7, %v4167
  %v4169 = vrot.slane %v4131, %v4168
  %v4170 = vlaneseq
  %v4171 = vshrl.u32 %v4170, 7
  %v4172 = vsub.s32 0, %v4171
  %v4173 = vrot.slane %v4135, %v4172
  %v4174 = vlaneseq
  %v4175 = vshrl.u32 %v4174, 7
  %v4176 = vsub.s32 1, %v4175
  %v4177 = vrot.slane %v4135, %v4176
  %v4178 = vlaneseq
  %v4179 = vshrl.u32 %v4178, 7
  %v4180 = vsub.s32 2, %v4179
  %v4181 = vrot.slane %v4135, %v4180
  %v4182 = vlaneseq
  %v4183 = vshrl.u32 %v4182, 7
  %v4184 = vsub.s32 3, %v4183
  %v4185 = vrot.slane %v4135, %v4184
  %v4186 = vlaneseq
  %v4187 = vshrl.u32 %v4186, 7
  %v4188 = vsub.s32 4, %v4187
  %v4189 = vrot.slane %v4135, %v4188
  %v4190 = vlaneseq
  %v4191 = vshrl.u32 %v4190, 7
  %v4192 = vsub.s32 5, %v4191
  %v4193 = vrot.slane %v4135, %v4192
  %v4194 = vlaneseq
  %v4195 = vshrl.u32 %v4194, 7
  %v4196 = vsub.s32 6, %v4195
  %v4197 = vrot.slane %v4135, %v4196
  %v4198 = vlaneseq
  %v4199 = vshrl.u32 %v4198, 7
  %v4200 = vsub.s32 7, %v4199
  %v4201 = vrot.slane %v4135, %v4200
  %4218 = vrot.lane.b32.xlu0 %v4141, 113
  %v4219 = vpop.permute.xlu0 %4218
  %4220 = vrot.lane.b32.xlu0 %v4145, 113
  %v4221 = vpop.permute.xlu0 %4220
  %4222 = vrot.lane.b32.xlu0 %v4149, 113
  %v4223 = vpop.permute.xlu0 %4222
  %4224 = vrot.lane.b32.xlu0 %v4153, 113
  %v4225 = vpop.permute.xlu0 %4224
  %4226 = vrot.lane.b32.xlu0 %v4157, 113
  %v4227 = vpop.permute.xlu0 %4226
  %4228 = vrot.lane.b32.xlu0 %v4161, 113
  %v4229 = vpop.permute.xlu0 %4228
  %4230 = vrot.lane.b32.xlu0 %v4165, 113
  %v4231 = vpop.permute.xlu0 %4230
  %4232 = vrot.lane.b32.xlu0 %v4169, 113
  %v4233 = vpop.permute.xlu0 %4232
  %4234 = vrot.lane.b32.xlu0 %v4173, 113
  %v4235 = vpop.permute.xlu0 %4234
  %4236 = vrot.lane.b32.xlu0 %v4177, 113
  %v4237 = vpop.permute.xlu0 %4236
  %4238 = vrot.lane.b32.xlu0 %v4181, 113
  %v4239 = vpop.permute.xlu0 %4238
  %4240 = vrot.lane.b32.xlu0 %v4185, 113
  %v4241 = vpop.permute.xlu0 %4240
  %4242 = vrot.lane.b32.xlu0 %v4189, 113
  %v4243 = vpop.permute.xlu0 %4242
  %4244 = vrot.lane.b32.xlu0 %v4193, 113
  %v4245 = vpop.permute.xlu0 %4244
  %4246 = vrot.lane.b32.xlu0 %v4197, 113
  %v4247 = vpop.permute.xlu0 %4246
  %4248 = vrot.lane.b32.xlu0 %v4201, 113
  %v4249 = vpop.permute.xlu0 %4248
  %v4250 = vsel %vm1319, %v4247, %v4249
  %v4251 = vsel %vm1319, %v4245, %v4247
  %v4252 = vsel %vm1319, %v4243, %v4245
  %v4253 = vsel %vm1319, %v4241, %v4243
  %v4254 = vsel %vm1319, %v4239, %v4241
  %v4255 = vsel %vm1319, %v4237, %v4239
  %v4256 = vsel %vm1319, %v4235, %v4237
  %v4257 = vsel %vm1319, %v4233, %v4235
  %v4258 = vsel %vm1319, %v4231, %v4233
  %v4259 = vsel %vm1319, %v4229, %v4231
  %v4260 = vsel %vm1319, %v4227, %v4229
  %v4261 = vsel %vm1319, %v4225, %v4227
  %v4262 = vsel %vm1319, %v4223, %v4225
  %v4263 = vsel %vm1319, %v4221, %v4223
  %v4264 = vsel %vm1319, %v4219, %v4221
  %v4265 = vsel %vm1319, %v4249, %v4219
  %v4266 = vsel %vm188, %v4264, 0.0
  %v4267 = vsel %vm189, %v4263, 0.0
  %v4268 = vsel %vm190, %v4262, 0.0
  %v4269 = vsel %vm191, %v4261, 0.0
  %v4270 = vsel %vm192, %v4260, 0.0
  %v4271 = vsel %vm193, %v4259, 0.0
  %v4272 = vsel %vm194, %v4258, 0.0
  %v4273 = vsel %vm195, %v4257, 0.0
  %v4274 = vsel %vm196, %v4256, 0.0
  %v4275 = vsel %vm197, %v4255, 0.0
  %v4276 = vsel %vm198, %v4254, 0.0
  %v4277 = vsel %vm199, %v4253, 0.0
  %v4278 = vsel %vm200, %v4252, 0.0
  %v4279 = vsel %vm201, %v4251, 0.0
  %v4280 = vsel %vm202, %v4250, 0.0
  %v4281 = vsel %vm203, %v4265, 0.0
  %v4282 = vadd.f32 %v4112, %v4266
  %v4283 = vadd.f32 %v4113, %v4267
  %v4284 = vadd.f32 %v4114, %v4268
  %v4285 = vadd.f32 %v4115, %v4269
  %v4286 = vadd.f32 %v4116, %v4270
  %v4287 = vadd.f32 %v4117, %v4271
  %v4288 = vadd.f32 %v4118, %v4272
  %v4289 = vadd.f32 %v4119, %v4273
  %v4290 = vadd.f32 %v4120, %v4274
  %v4291 = vadd.f32 %v4121, %v4275
  %v4292 = vadd.f32 %v4122, %v4276
  %v4293 = vadd.f32 %v4123, %v4277
  %v4294 = vadd.f32 %v4124, %v4278
  %v4295 = vadd.f32 %v4125, %v4279
  %v4296 = vadd.f32 %v4126, %v4280
  %v4297 = vadd.f32 %v4127, %v4281
  %s4298 = scalar_lea.vmem [#allocation3], 7
  %v4299 = vld [vmem:[%s4298] ss:$8 sm:$0xf]
  %v4300 = vld [vmem:[%s4298] ss:$8 sm:$0xf0]
  %v4301 = vor.u32 %v4299, %v4300
  %s4302 = scalar_lea.vmem [#allocation3], 71
  %v4303 = vld [vmem:[%s4302] ss:$8 sm:$0xf]
  %v4304 = vld [vmem:[%s4302] ss:$8 sm:$0xf0]
  %v4305 = vor.u32 %v4303, %v4304
  %v4308 = vlaneseq
  %v4309 = vshrl.u32 %v4308, 7
  %v4310 = vsub.s32 0, %v4309
  %v4311 = vrot.slane %v4301, %v4310
  %v4312 = vlaneseq
  %v4313 = vshrl.u32 %v4312, 7
  %v4314 = vsub.s32 1, %v4313
  %v4315 = vrot.slane %v4301, %v4314
  %v4316 = vlaneseq
  %v4317 = vshrl.u32 %v4316, 7
  %v4318 = vsub.s32 2, %v4317
  %v4319 = vrot.slane %v4301, %v4318
  %v4320 = vlaneseq
  %v4321 = vshrl.u32 %v4320, 7
  %v4322 = vsub.s32 3, %v4321
  %v4323 = vrot.slane %v4301, %v4322
  %v4324 = vlaneseq
  %v4325 = vshrl.u32 %v4324, 7
  %v4326 = vsub.s32 4, %v4325
  %v4327 = vrot.slane %v4301, %v4326
  %v4328 = vlaneseq
  %v4329 = vshrl.u32 %v4328, 7
  %v4330 = vsub.s32 5, %v4329
  %v4331 = vrot.slane %v4301, %v4330
  %v4332 = vlaneseq
  %v4333 = vshrl.u32 %v4332, 7
  %v4334 = vsub.s32 6, %v4333
  %v4335 = vrot.slane %v4301, %v4334
  %v4336 = vlaneseq
  %v4337 = vshrl.u32 %v4336, 7
  %v4338 = vsub.s32 7, %v4337
  %v4339 = vrot.slane %v4301, %v4338
  %v4340 = vlaneseq
  %v4341 = vshrl.u32 %v4340, 7
  %v4342 = vsub.s32 0, %v4341
  %v4343 = vrot.slane %v4305, %v4342
  %v4344 = vlaneseq
  %v4345 = vshrl.u32 %v4344, 7
  %v4346 = vsub.s32 1, %v4345
  %v4347 = vrot.slane %v4305, %v4346
  %v4348 = vlaneseq
  %v4349 = vshrl.u32 %v4348, 7
  %v4350 = vsub.s32 2, %v4349
  %v4351 = vrot.slane %v4305, %v4350
  %v4352 = vlaneseq
  %v4353 = vshrl.u32 %v4352, 7
  %v4354 = vsub.s32 3, %v4353
  %v4355 = vrot.slane %v4305, %v4354
  %v4356 = vlaneseq
  %v4357 = vshrl.u32 %v4356, 7
  %v4358 = vsub.s32 4, %v4357
  %v4359 = vrot.slane %v4305, %v4358
  %v4360 = vlaneseq
  %v4361 = vshrl.u32 %v4360, 7
  %v4362 = vsub.s32 5, %v4361
  %v4363 = vrot.slane %v4305, %v4362
  %v4364 = vlaneseq
  %v4365 = vshrl.u32 %v4364, 7
  %v4366 = vsub.s32 6, %v4365
  %v4367 = vrot.slane %v4305, %v4366
  %v4368 = vlaneseq
  %v4369 = vshrl.u32 %v4368, 7
  %v4370 = vsub.s32 7, %v4369
  %v4371 = vrot.slane %v4305, %v4370
  %4388 = vrot.lane.b32.xlu0 %v4311, 112
  %v4389 = vpop.permute.xlu0 %4388
  %4390 = vrot.lane.b32.xlu0 %v4315, 112
  %v4391 = vpop.permute.xlu0 %4390
  %4392 = vrot.lane.b32.xlu0 %v4319, 112
  %v4393 = vpop.permute.xlu0 %4392
  %4394 = vrot.lane.b32.xlu0 %v4323, 112
  %v4395 = vpop.permute.xlu0 %4394
  %4396 = vrot.lane.b32.xlu0 %v4327, 112
  %v4397 = vpop.permute.xlu0 %4396
  %4398 = vrot.lane.b32.xlu0 %v4331, 112
  %v4399 = vpop.permute.xlu0 %4398
  %4400 = vrot.lane.b32.xlu0 %v4335, 112
  %v4401 = vpop.permute.xlu0 %4400
  %4402 = vrot.lane.b32.xlu0 %v4339, 112
  %v4403 = vpop.permute.xlu0 %4402
  %4404 = vrot.lane.b32.xlu0 %v4343, 112
  %v4405 = vpop.permute.xlu0 %4404
  %4406 = vrot.lane.b32.xlu0 %v4347, 112
  %v4407 = vpop.permute.xlu0 %4406
  %4408 = vrot.lane.b32.xlu0 %v4351, 112
  %v4409 = vpop.permute.xlu0 %4408
  %4410 = vrot.lane.b32.xlu0 %v4355, 112
  %v4411 = vpop.permute.xlu0 %4410
  %4412 = vrot.lane.b32.xlu0 %v4359, 112
  %v4413 = vpop.permute.xlu0 %4412
  %4414 = vrot.lane.b32.xlu0 %v4363, 112
  %v4415 = vpop.permute.xlu0 %4414
  %4416 = vrot.lane.b32.xlu0 %v4367, 112
  %v4417 = vpop.permute.xlu0 %4416
  %4418 = vrot.lane.b32.xlu0 %v4371, 112
  %v4419 = vpop.permute.xlu0 %4418
  %v4420 = vsel %vm1506, %v4417, %v4419
  %v4421 = vsel %vm1506, %v4415, %v4417
  %v4422 = vsel %vm1506, %v4413, %v4415
  %v4423 = vsel %vm1506, %v4411, %v4413
  %v4424 = vsel %vm1506, %v4409, %v4411
  %v4425 = vsel %vm1506, %v4407, %v4409
  %v4426 = vsel %vm1506, %v4405, %v4407
  %v4427 = vsel %vm1506, %v4403, %v4405
  %v4428 = vsel %vm1506, %v4401, %v4403
  %v4429 = vsel %vm1506, %v4399, %v4401
  %v4430 = vsel %vm1506, %v4397, %v4399
  %v4431 = vsel %vm1506, %v4395, %v4397
  %v4432 = vsel %vm1506, %v4393, %v4395
  %v4433 = vsel %vm1506, %v4391, %v4393
  %v4434 = vsel %vm1506, %v4389, %v4391
  %v4435 = vsel %vm1506, %v4419, %v4389
  %v4436 = vsel %vm108, %v4434, 0.0
  %v4437 = vsel %vm109, %v4433, 0.0
  %v4438 = vsel %vm110, %v4432, 0.0
  %v4439 = vsel %vm111, %v4431, 0.0
  %v4440 = vsel %vm112, %v4430, 0.0
  %v4441 = vsel %vm113, %v4429, 0.0
  %v4442 = vsel %vm114, %v4428, 0.0
  %v4443 = vsel %vm115, %v4427, 0.0
  %v4444 = vsel %vm116, %v4426, 0.0
  %v4445 = vsel %vm117, %v4425, 0.0
  %v4446 = vsel %vm118, %v4424, 0.0
  %v4447 = vsel %vm119, %v4423, 0.0
  %v4448 = vsel %vm120, %v4422, 0.0
  %v4449 = vsel %vm121, %v4421, 0.0
  %v4450 = vsel %vm122, %v4420, 0.0
  %v4451 = vsel %vm123, %v4435, 0.0
  %v4452 = vadd.f32 %v4282, %v4436
  %v4453 = vadd.f32 %v4283, %v4437
  %v4454 = vadd.f32 %v4284, %v4438
  %v4455 = vadd.f32 %v4285, %v4439
  %v4456 = vadd.f32 %v4286, %v4440
  %v4457 = vadd.f32 %v4287, %v4441
  %v4458 = vadd.f32 %v4288, %v4442
  %v4459 = vadd.f32 %v4289, %v4443
  %v4460 = vadd.f32 %v4290, %v4444
  %v4461 = vadd.f32 %v4291, %v4445
  %v4462 = vadd.f32 %v4292, %v4446
  %v4463 = vadd.f32 %v4293, %v4447
  %v4464 = vadd.f32 %v4294, %v4448
  %v4465 = vadd.f32 %v4295, %v4449
  %v4466 = vadd.f32 %v4296, %v4450
  %v4467 = vadd.f32 %v4297, %v4451
  %s4468 = scalar_lea.vmem [#allocation3], 128
  %v4469 = vld [vmem:[%s4468] ss:$8 sm:$0xf]
  %v4470 = vld [vmem:[%s4468] ss:$8 sm:$0xf0]
  %v4471 = vor.u32 %v4469, %v4470
  %s4472 = scalar_lea.vmem [#allocation3], 192
  %v4473 = vld [vmem:[%s4472] ss:$8 sm:$0xf]
  %v4474 = vld [vmem:[%s4472] ss:$8 sm:$0xf0]
  %v4475 = vor.u32 %v4473, %v4474
  %v4478 = vlaneseq
  %v4479 = vshrl.u32 %v4478, 7
  %v4480 = vsub.s32 0, %v4479
  %v4481 = vrot.slane %v4471, %v4480
  %v4482 = vlaneseq
  %v4483 = vshrl.u32 %v4482, 7
  %v4484 = vsub.s32 1, %v4483
  %v4485 = vrot.slane %v4471, %v4484
  %v4486 = vlaneseq
  %v4487 = vshrl.u32 %v4486, 7
  %v4488 = vsub.s32 2, %v4487
  %v4489 = vrot.slane %v4471, %v4488
  %v4490 = vlaneseq
  %v4491 = vshrl.u32 %v4490, 7
  %v4492 = vsub.s32 3, %v4491
  %v4493 = vrot.slane %v4471, %v4492
  %v4494 = vlaneseq
  %v4495 = vshrl.u32 %v4494, 7
  %v4496 = vsub.s32 4, %v4495
  %v4497 = vrot.slane %v4471, %v4496
  %v4498 = vlaneseq
  %v4499 = vshrl.u32 %v4498, 7
  %v4500 = vsub.s32 5, %v4499
  %v4501 = vrot.slane %v4471, %v4500
  %v4502 = vlaneseq
  %v4503 = vshrl.u32 %v4502, 7
  %v4504 = vsub.s32 6, %v4503
  %v4505 = vrot.slane %v4471, %v4504
  %v4506 = vlaneseq
  %v4507 = vshrl.u32 %v4506, 7
  %v4508 = vsub.s32 7, %v4507
  %v4509 = vrot.slane %v4471, %v4508
  %v4510 = vlaneseq
  %v4511 = vshrl.u32 %v4510, 7
  %v4512 = vsub.s32 0, %v4511
  %v4513 = vrot.slane %v4475, %v4512
  %v4514 = vlaneseq
  %v4515 = vshrl.u32 %v4514, 7
  %v4516 = vsub.s32 1, %v4515
  %v4517 = vrot.slane %v4475, %v4516
  %v4518 = vlaneseq
  %v4519 = vshrl.u32 %v4518, 7
  %v4520 = vsub.s32 2, %v4519
  %v4521 = vrot.slane %v4475, %v4520
  %v4522 = vlaneseq
  %v4523 = vshrl.u32 %v4522, 7
  %v4524 = vsub.s32 3, %v4523
  %v4525 = vrot.slane %v4475, %v4524
  %v4526 = vlaneseq
  %v4527 = vshrl.u32 %v4526, 7
  %v4528 = vsub.s32 4, %v4527
  %v4529 = vrot.slane %v4475, %v4528
  %v4530 = vlaneseq
  %v4531 = vshrl.u32 %v4530, 7
  %v4532 = vsub.s32 5, %v4531
  %v4533 = vrot.slane %v4475, %v4532
  %v4534 = vlaneseq
  %v4535 = vshrl.u32 %v4534, 7
  %v4536 = vsub.s32 6, %v4535
  %v4537 = vrot.slane %v4475, %v4536
  %v4538 = vlaneseq
  %v4539 = vshrl.u32 %v4538, 7
  %v4540 = vsub.s32 7, %v4539
  %v4541 = vrot.slane %v4475, %v4540
  %4558 = vrot.lane.b32.xlu0 %v4481, 111
  %v4559 = vpop.permute.xlu0 %4558
  %4560 = vrot.lane.b32.xlu0 %v4485, 111
  %v4561 = vpop.permute.xlu0 %4560
  %4562 = vrot.lane.b32.xlu0 %v4489, 111
  %v4563 = vpop.permute.xlu0 %4562
  %4564 = vrot.lane.b32.xlu0 %v4493, 111
  %v4565 = vpop.permute.xlu0 %4564
  %4566 = vrot.lane.b32.xlu0 %v4497, 111
  %v4567 = vpop.permute.xlu0 %4566
  %4568 = vrot.lane.b32.xlu0 %v4501, 111
  %v4569 = vpop.permute.xlu0 %4568
  %4570 = vrot.lane.b32.xlu0 %v4505, 111
  %v4571 = vpop.permute.xlu0 %4570
  %4572 = vrot.lane.b32.xlu0 %v4509, 111
  %v4573 = vpop.permute.xlu0 %4572
  %4574 = vrot.lane.b32.xlu0 %v4513, 111
  %v4575 = vpop.permute.xlu0 %4574
  %4576 = vrot.lane.b32.xlu0 %v4517, 111
  %v4577 = vpop.permute.xlu0 %4576
  %4578 = vrot.lane.b32.xlu0 %v4521, 111
  %v4579 = vpop.permute.xlu0 %4578
  %4580 = vrot.lane.b32.xlu0 %v4525, 111
  %v4581 = vpop.permute.xlu0 %4580
  %4582 = vrot.lane.b32.xlu0 %v4529, 111
  %v4583 = vpop.permute.xlu0 %4582
  %4584 = vrot.lane.b32.xlu0 %v4533, 111
  %v4585 = vpop.permute.xlu0 %4584
  %4586 = vrot.lane.b32.xlu0 %v4537, 111
  %v4587 = vpop.permute.xlu0 %4586
  %4588 = vrot.lane.b32.xlu0 %v4541, 111
  %v4589 = vpop.permute.xlu0 %4588
  %v4590 = vsel %vm1693, %v4587, %v4589
  %v4591 = vsel %vm1693, %v4585, %v4587
  %v4592 = vsel %vm1693, %v4583, %v4585
  %v4593 = vsel %vm1693, %v4581, %v4583
  %v4594 = vsel %vm1693, %v4579, %v4581
  %v4595 = vsel %vm1693, %v4577, %v4579
  %v4596 = vsel %vm1693, %v4575, %v4577
  %v4597 = vsel %vm1693, %v4573, %v4575
  %v4598 = vsel %vm1693, %v4571, %v4573
  %v4599 = vsel %vm1693, %v4569, %v4571
  %v4600 = vsel %vm1693, %v4567, %v4569
  %v4601 = vsel %vm1693, %v4565, %v4567
  %v4602 = vsel %vm1693, %v4563, %v4565
  %v4603 = vsel %vm1693, %v4561, %v4563
  %v4604 = vsel %vm1693, %v4559, %v4561
  %v4605 = vsel %vm1693, %v4589, %v4559
  %v4606 = vsel %vm204, %v4604, 0.0
  %v4607 = vsel %vm205, %v4603, 0.0
  %v4608 = vsel %vm206, %v4602, 0.0
  %v4609 = vsel %vm207, %v4601, 0.0
  %v4610 = vsel %vm208, %v4600, 0.0
  %v4611 = vsel %vm209, %v4599, 0.0
  %v4612 = vsel %vm210, %v4598, 0.0
  %v4613 = vsel %vm211, %v4597, 0.0
  %v4614 = vsel %vm212, %v4596, 0.0
  %v4615 = vsel %vm213, %v4595, 0.0
  %v4616 = vsel %vm214, %v4594, 0.0
  %v4617 = vsel %vm215, %v4593, 0.0
  %v4618 = vsel %vm216, %v4592, 0.0
  %v4619 = vsel %vm217, %v4591, 0.0
  %v4620 = vsel %vm218, %v4590, 0.0
  %v4621 = vsel %vm219, %v4605, 0.0
  %v4622 = vadd.f32 %v4452, %v4606
  %v4623 = vadd.f32 %v4453, %v4607
  %v4624 = vadd.f32 %v4454, %v4608
  %v4625 = vadd.f32 %v4455, %v4609
  %v4626 = vadd.f32 %v4456, %v4610
  %v4627 = vadd.f32 %v4457, %v4611
  %v4628 = vadd.f32 %v4458, %v4612
  %v4629 = vadd.f32 %v4459, %v4613
  %v4630 = vadd.f32 %v4460, %v4614
  %v4631 = vadd.f32 %v4461, %v4615
  %v4632 = vadd.f32 %v4462, %v4616
  %v4633 = vadd.f32 %v4463, %v4617
  %v4634 = vadd.f32 %v4464, %v4618
  %v4635 = vadd.f32 %v4465, %v4619
  %v4636 = vadd.f32 %v4466, %v4620
  %v4637 = vadd.f32 %v4467, %v4621
  %v4638 = vstv %s262
  %v4639 = vadd.f32 %v4622, %v4638
  %v4640 = vadd.f32 %v4623, %v4638
  %v4641 = vadd.f32 %v4624, %v4638
  %v4642 = vadd.f32 %v4625, %v4638
  %v4643 = vadd.f32 %v4626, %v4638
  %v4644 = vadd.f32 %v4627, %v4638
  %v4645 = vadd.f32 %v4628, %v4638
  %v4646 = vadd.f32 %v4629, %v4638
  %v4647 = vadd.f32 %v4630, %v4638
  %v4648 = vadd.f32 %v4631, %v4638
  %v4649 = vadd.f32 %v4632, %v4638
  %v4650 = vadd.f32 %v4633, %v4638
  %v4651 = vadd.f32 %v4634, %v4638
  %v4652 = vadd.f32 %v4635, %v4638
  %v4653 = vadd.f32 %v4636, %v4638
  %v4654 = vadd.f32 %v4637, %v4638
  %v4657 = vlaneseq
  %v4658 = vshrl.u32 %v4657, 7
  %v4659 = vsub.s32 0, %v4658
  %v4660 = vrot.slane %v25, %v4659
  %v4661 = vlaneseq
  %v4662 = vshrl.u32 %v4661, 7
  %v4663 = vsub.s32 1, %v4662
  %v4664 = vrot.slane %v25, %v4663
  %v4665 = vlaneseq
  %v4666 = vshrl.u32 %v4665, 7
  %v4667 = vsub.s32 2, %v4666
  %v4668 = vrot.slane %v25, %v4667
  %v4669 = vlaneseq
  %v4670 = vshrl.u32 %v4669, 7
  %v4671 = vsub.s32 3, %v4670
  %v4672 = vrot.slane %v25, %v4671
  %v4673 = vlaneseq
  %v4674 = vshrl.u32 %v4673, 7
  %v4675 = vsub.s32 4, %v4674
  %v4676 = vrot.slane %v25, %v4675
  %v4677 = vlaneseq
  %v4678 = vshrl.u32 %v4677, 7
  %v4679 = vsub.s32 5, %v4678
  %v4680 = vrot.slane %v25, %v4679
  %v4681 = vlaneseq
  %v4682 = vshrl.u32 %v4681, 7
  %v4683 = vsub.s32 6, %v4682
  %v4684 = vrot.slane %v25, %v4683
  %v4685 = vlaneseq
  %v4686 = vshrl.u32 %v4685, 7
  %v4687 = vsub.s32 7, %v4686
  %v4688 = vrot.slane %v25, %v4687
  %v4689 = vlaneseq
  %v4690 = vshrl.u32 %v4689, 7
  %v4691 = vsub.s32 0, %v4690
  %v4692 = vrot.slane %v26, %v4691
  %v4693 = vlaneseq
  %v4694 = vshrl.u32 %v4693, 7
  %v4695 = vsub.s32 1, %v4694
  %v4696 = vrot.slane %v26, %v4695
  %v4697 = vlaneseq
  %v4698 = vshrl.u32 %v4697, 7
  %v4699 = vsub.s32 2, %v4698
  %v4700 = vrot.slane %v26, %v4699
  %v4701 = vlaneseq
  %v4702 = vshrl.u32 %v4701, 7
  %v4703 = vsub.s32 3, %v4702
  %v4704 = vrot.slane %v26, %v4703
  %v4705 = vlaneseq
  %v4706 = vshrl.u32 %v4705, 7
  %v4707 = vsub.s32 4, %v4706
  %v4708 = vrot.slane %v26, %v4707
  %v4709 = vlaneseq
  %v4710 = vshrl.u32 %v4709, 7
  %v4711 = vsub.s32 5, %v4710
  %v4712 = vrot.slane %v26, %v4711
  %v4713 = vlaneseq
  %v4714 = vshrl.u32 %v4713, 7
  %v4715 = vsub.s32 6, %v4714
  %v4716 = vrot.slane %v26, %v4715
  %v4717 = vlaneseq
  %v4718 = vshrl.u32 %v4717, 7
  %v4719 = vsub.s32 7, %v4718
  %v4720 = vrot.slane %v26, %v4719
  %v4737 = vadd.f32 %v4639, %v4660
  %v4738 = vadd.f32 %v4640, %v4664
  %v4739 = vadd.f32 %v4641, %v4668
  %v4740 = vadd.f32 %v4642, %v4672
  %v4741 = vadd.f32 %v4643, %v4676
  %v4742 = vadd.f32 %v4644, %v4680
  %v4743 = vadd.f32 %v4645, %v4684
  %v4744 = vadd.f32 %v4646, %v4688
  %v4745 = vadd.f32 %v4647, %v4692
  %v4746 = vadd.f32 %v4648, %v4696
  %v4747 = vadd.f32 %v4649, %v4700
  %v4748 = vadd.f32 %v4650, %v4704
  %v4749 = vadd.f32 %v4651, %v4708
  %v4750 = vadd.f32 %v4652, %v4712
  %v4751 = vadd.f32 %v4653, %v4716
  %v4752 = vadd.f32 %v4654, %v4720
  %v4753 = vmax.f32 %v4737, 0.0
  %v4754 = vmax.f32 %v4738, 0.0
  %v4755 = vmax.f32 %v4739, 0.0
  %v4756 = vmax.f32 %v4740, 0.0
  %v4757 = vmax.f32 %v4741, 0.0
  %v4758 = vmax.f32 %v4742, 0.0
  %v4759 = vmax.f32 %v4743, 0.0
  %v4760 = vmax.f32 %v4744, 0.0
  %v4761 = vmax.f32 %v4745, 0.0
  %v4762 = vmax.f32 %v4746, 0.0
  %v4763 = vmax.f32 %v4747, 0.0
  %v4764 = vmax.f32 %v4748, 0.0
  %v4765 = vmax.f32 %v4749, 0.0
  %v4766 = vmax.f32 %v4750, 0.0
  %v4767 = vmax.f32 %v4751, 0.0
  %v4768 = vmax.f32 %v4752, 0.0
  %4769 = vrot.lane.b32.xlu0 %v4753, 17
  %v4770 = vpop.permute.xlu0 %4769
  %4771 = vrot.lane.b32.xlu0 %v4754, 17
  %v4772 = vpop.permute.xlu0 %4771
  %4773 = vrot.lane.b32.xlu0 %v4755, 17
  %v4774 = vpop.permute.xlu0 %4773
  %4775 = vrot.lane.b32.xlu0 %v4756, 17
  %v4776 = vpop.permute.xlu0 %4775
  %4777 = vrot.lane.b32.xlu0 %v4757, 17
  %v4778 = vpop.permute.xlu0 %4777
  %4779 = vrot.lane.b32.xlu0 %v4758, 17
  %v4780 = vpop.permute.xlu0 %4779
  %4781 = vrot.lane.b32.xlu0 %v4759, 17
  %v4782 = vpop.permute.xlu0 %4781
  %4783 = vrot.lane.b32.xlu0 %v4760, 17
  %v4784 = vpop.permute.xlu0 %4783
  %4785 = vrot.lane.b32.xlu0 %v4761, 17
  %v4786 = vpop.permute.xlu0 %4785
  %4787 = vrot.lane.b32.xlu0 %v4762, 17
  %v4788 = vpop.permute.xlu0 %4787
  %4789 = vrot.lane.b32.xlu0 %v4763, 17
  %v4790 = vpop.permute.xlu0 %4789
  %4791 = vrot.lane.b32.xlu0 %v4764, 17
  %v4792 = vpop.permute.xlu0 %4791
  %4793 = vrot.lane.b32.xlu0 %v4765, 17
  %v4794 = vpop.permute.xlu0 %4793
  %4795 = vrot.lane.b32.xlu0 %v4766, 17
  %v4796 = vpop.permute.xlu0 %4795
  %4797 = vrot.lane.b32.xlu0 %v4767, 17
  %v4798 = vpop.permute.xlu0 %4797
  %4799 = vrot.lane.b32.xlu0 %v4768, 17
  %v4800 = vpop.permute.xlu0 %4799
  %v4801 = vsel %vm379, %v4798, %v4800
  %v4802 = vsel %vm379, %v4796, %v4798
  %v4803 = vsel %vm379, %v4794, %v4796
  %v4804 = vsel %vm379, %v4792, %v4794
  %v4805 = vsel %vm379, %v4790, %v4792
  %v4806 = vsel %vm379, %v4788, %v4790
  %v4807 = vsel %vm379, %v4786, %v4788
  %v4808 = vsel %vm379, %v4784, %v4786
  %v4809 = vsel %vm379, %v4782, %v4784
  %v4810 = vsel %vm379, %v4780, %v4782
  %v4811 = vsel %vm379, %v4778, %v4780
  %v4812 = vsel %vm379, %v4776, %v4778
  %v4813 = vsel %vm379, %v4774, %v4776
  %v4814 = vsel %vm379, %v4772, %v4774
  %v4815 = vsel %vm379, %v4770, %v4772
  %v4816 = vsel %vm379, %v4800, %v4770
  %v4817 = vsel %vm156, %v4816, 0.0
  %v4818 = vsel %vm157, %v4815, 0.0
  %v4819 = vsel %vm158, %v4814, 0.0
  %v4820 = vsel %vm159, %v4813, 0.0
  %v4821 = vsel %vm160, %v4812, 0.0
  %v4822 = vsel %vm161, %v4811, 0.0
  %v4823 = vsel %vm162, %v4810, 0.0
  %v4824 = vsel %vm163, %v4809, 0.0
  %v4825 = vsel %vm164, %v4808, 0.0
  %v4826 = vsel %vm165, %v4807, 0.0
  %v4827 = vsel %vm166, %v4806, 0.0
  %v4828 = vsel %vm167, %v4805, 0.0
  %v4829 = vsel %vm168, %v4804, 0.0
  %v4830 = vsel %vm169, %v4803, 0.0
  %v4831 = vsel %vm170, %v4802, 0.0
  %v4832 = vsel %vm171, %v4801, 0.0
  %v4849 = vcombine.low %v4817, %v4818
  %v4850 = vcombine.low %v4819, %v4820
  %v4851 = vcombine.low %v4821, %v4822
  %v4852 = vcombine.low %v4823, %v4824
  %v4854 = vunpack.c.l.s4 1966171168
  %v4855 = vunpack.c.0.s8 %v4854
  %v4856 = vlaneseq
  %v4857 = vshrl.u32 %v4856, 7
  %v4858 = vsub.s32 %v4855, %v4857
  %v4859 = vrot.slane %v4849, %v4858
  %v4861 = vunpack.c.l.s4 1966171168
  %v4862 = vunpack.c.0.s8 %v4861
  %v4863 = vlaneseq
  %v4864 = vshrl.u32 %v4863, 7
  %v4865 = vsub.s32 %v4862, %v4864
  %v4866 = vrot.slane %v4850, %v4865
  %v4868 = vunpack.c.l.s4 1966171168
  %v4869 = vunpack.c.0.s8 %v4868
  %v4870 = vlaneseq
  %v4871 = vshrl.u32 %v4870, 7
  %v4872 = vsub.s32 %v4869, %v4871
  %v4873 = vrot.slane %v4851, %v4872
  %v4875 = vunpack.c.l.s4 1966171168
  %v4876 = vunpack.c.0.s8 %v4875
  %v4877 = vlaneseq
  %v4878 = vshrl.u32 %v4877, 7
  %v4879 = vsub.s32 %v4876, %v4878
  %v4880 = vrot.slane %v4852, %v4879
  %v4881 = vcombine.low %v4859, %v4866
  %v4882 = vcombine.low %v4873, %v4880
  %v4884 = vunpack.c.l.s4 1966171168
  %v4885 = vunpack.c.0.s8 %v4884
  %v4886 = vlaneseq
  %v4887 = vshrl.u32 %v4886, 7
  %v4888 = vsub.s32 %v4885, %v4887
  %v4889 = vrot.slane %v4881, %v4888
  %v4891 = vunpack.c.l.s4 1966171168
  %v4892 = vunpack.c.0.s8 %v4891
  %v4893 = vlaneseq
  %v4894 = vshrl.u32 %v4893, 7
  %v4895 = vsub.s32 %v4892, %v4894
  %v4896 = vrot.slane %v4882, %v4895
  %v4897 = vcombine.low %v4889, %v4896
  %v4898 = vcombine.low %v4825, %v4826
  %v4899 = vcombine.low %v4827, %v4828
  %v4900 = vcombine.low %v4829, %v4830
  %v4901 = vcombine.low %v4831, %v4832
  %v4903 = vunpack.c.l.s4 1966171168
  %v4904 = vunpack.c.0.s8 %v4903
  %v4905 = vlaneseq
  %v4906 = vshrl.u32 %v4905, 7
  %v4907 = vsub.s32 %v4904, %v4906
  %v4908 = vrot.slane %v4898, %v4907
  %v4910 = vunpack.c.l.s4 1966171168
  %v4911 = vunpack.c.0.s8 %v4910
  %v4912 = vlaneseq
  %v4913 = vshrl.u32 %v4912, 7
  %v4914 = vsub.s32 %v4911, %v4913
  %v4915 = vrot.slane %v4899, %v4914
  %v4917 = vunpack.c.l.s4 1966171168
  %v4918 = vunpack.c.0.s8 %v4917
  %v4919 = vlaneseq
  %v4920 = vshrl.u32 %v4919, 7
  %v4921 = vsub.s32 %v4918, %v4920
  %v4922 = vrot.slane %v4900, %v4921
  %v4924 = vunpack.c.l.s4 1966171168
  %v4925 = vunpack.c.0.s8 %v4924
  %v4926 = vlaneseq
  %v4927 = vshrl.u32 %v4926, 7
  %v4928 = vsub.s32 %v4925, %v4927
  %v4929 = vrot.slane %v4901, %v4928
  %v4930 = vcombine.low %v4908, %v4915
  %v4931 = vcombine.low %v4922, %v4929
  %v4933 = vunpack.c.l.s4 1966171168
  %v4934 = vunpack.c.0.s8 %v4933
  %v4935 = vlaneseq
  %v4936 = vshrl.u32 %v4935, 7
  %v4937 = vsub.s32 %v4934, %v4936
  %v4938 = vrot.slane %v4930, %v4937
  %v4940 = vunpack.c.l.s4 1966171168
  %v4941 = vunpack.c.0.s8 %v4940
  %v4942 = vlaneseq
  %v4943 = vshrl.u32 %v4942, 7
  %v4944 = vsub.s32 %v4941, %v4943
  %v4945 = vrot.slane %v4931, %v4944
  %v4946 = vcombine.low %v4938, %v4945
  %4949 = vst [vmem:[#allocation2] ss:$8 sm:$0xf] %v4897
  %4950 = vst [vmem:[#allocation2] ss:$8 sm:$0xf0] %v4897
  %4951 = vst [vmem:[%s530] ss:$8 sm:$0xf] %v4946
  %4952 = vst [vmem:[%s530] ss:$8 sm:$0xf0] %v4946
  %4953 = vrot.lane.b32.xlu0 %v4753, 16
  %v4954 = vpop.permute.xlu0 %4953
  %4955 = vrot.lane.b32.xlu0 %v4754, 16
  %v4956 = vpop.permute.xlu0 %4955
  %4957 = vrot.lane.b32.xlu0 %v4755, 16
  %v4958 = vpop.permute.xlu0 %4957
  %4959 = vrot.lane.b32.xlu0 %v4756, 16
  %v4960 = vpop.permute.xlu0 %4959
  %4961 = vrot.lane.b32.xlu0 %v4757, 16
  %v4962 = vpop.permute.xlu0 %4961
  %4963 = vrot.lane.b32.xlu0 %v4758, 16
  %v4964 = vpop.permute.xlu0 %4963
  %4965 = vrot.lane.b32.xlu0 %v4759, 16
  %v4966 = vpop.permute.xlu0 %4965
  %4967 = vrot.lane.b32.xlu0 %v4760, 16
  %v4968 = vpop.permute.xlu0 %4967
  %4969 = vrot.lane.b32.xlu0 %v4761, 16
  %v4970 = vpop.permute.xlu0 %4969
  %4971 = vrot.lane.b32.xlu0 %v4762, 16
  %v4972 = vpop.permute.xlu0 %4971
  %4973 = vrot.lane.b32.xlu0 %v4763, 16
  %v4974 = vpop.permute.xlu0 %4973
  %4975 = vrot.lane.b32.xlu0 %v4764, 16
  %v4976 = vpop.permute.xlu0 %4975
  %4977 = vrot.lane.b32.xlu0 %v4765, 16
  %v4978 = vpop.permute.xlu0 %4977
  %4979 = vrot.lane.b32.xlu0 %v4766, 16
  %v4980 = vpop.permute.xlu0 %4979
  %4981 = vrot.lane.b32.xlu0 %v4767, 16
  %v4982 = vpop.permute.xlu0 %4981
  %4983 = vrot.lane.b32.xlu0 %v4768, 16
  %v4984 = vpop.permute.xlu0 %4983
  %v4985 = vsel %vm565, %v4982, %v4984
  %v4986 = vsel %vm565, %v4980, %v4982
  %v4987 = vsel %vm565, %v4978, %v4980
  %v4988 = vsel %vm565, %v4976, %v4978
  %v4989 = vsel %vm565, %v4974, %v4976
  %v4990 = vsel %vm565, %v4972, %v4974
  %v4991 = vsel %vm565, %v4970, %v4972
  %v4992 = vsel %vm565, %v4968, %v4970
  %v4993 = vsel %vm565, %v4966, %v4968
  %v4994 = vsel %vm565, %v4964, %v4966
  %v4995 = vsel %vm565, %v4962, %v4964
  %v4996 = vsel %vm565, %v4960, %v4962
  %v4997 = vsel %vm565, %v4958, %v4960
  %v4998 = vsel %vm565, %v4956, %v4958
  %v4999 = vsel %vm565, %v4954, %v4956
  %v5000 = vsel %vm565, %v4984, %v4954
  %v5001 = vsel %vm92, %v5000, 0.0
  %v5002 = vsel %vm93, %v4999, 0.0
  %v5003 = vsel %vm94, %v4998, 0.0
  %v5004 = vsel %vm95, %v4997, 0.0
  %v5005 = vsel %vm96, %v4996, 0.0
  %v5006 = vsel %vm97, %v4995, 0.0
  %v5007 = vsel %vm98, %v4994, 0.0
  %v5008 = vsel %vm99, %v4993, 0.0
  %v5009 = vsel %vm100, %v4992, 0.0
  %v5010 = vsel %vm101, %v4991, 0.0
  %v5011 = vsel %vm102, %v4990, 0.0
  %v5012 = vsel %vm103, %v4989, 0.0
  %v5013 = vsel %vm104, %v4988, 0.0
  %v5014 = vsel %vm105, %v4987, 0.0
  %v5015 = vsel %vm106, %v4986, 0.0
  %v5016 = vsel %vm107, %v4985, 0.0
  %v5033 = vcombine.low %v5001, %v5002
  %v5034 = vcombine.low %v5003, %v5004
  %v5035 = vcombine.low %v5005, %v5006
  %v5036 = vcombine.low %v5007, %v5008
  %v5038 = vunpack.c.l.s4 1966171168
  %v5039 = vunpack.c.0.s8 %v5038
  %v5040 = vlaneseq
  %v5041 = vshrl.u32 %v5040, 7
  %v5042 = vsub.s32 %v5039, %v5041
  %v5043 = vrot.slane %v5033, %v5042
  %v5045 = vunpack.c.l.s4 1966171168
  %v5046 = vunpack.c.0.s8 %v5045
  %v5047 = vlaneseq
  %v5048 = vshrl.u32 %v5047, 7
  %v5049 = vsub.s32 %v5046, %v5048
  %v5050 = vrot.slane %v5034, %v5049
  %v5052 = vunpack.c.l.s4 1966171168
  %v5053 = vunpack.c.0.s8 %v5052
  %v5054 = vlaneseq
  %v5055 = vshrl.u32 %v5054, 7
  %v5056 = vsub.s32 %v5053, %v5055
  %v5057 = vrot.slane %v5035, %v5056
  %v5059 = vunpack.c.l.s4 1966171168
  %v5060 = vunpack.c.0.s8 %v5059
  %v5061 = vlaneseq
  %v5062 = vshrl.u32 %v5061, 7
  %v5063 = vsub.s32 %v5060, %v5062
  %v5064 = vrot.slane %v5036, %v5063
  %v5065 = vcombine.low %v5043, %v5050
  %v5066 = vcombine.low %v5057, %v5064
  %v5068 = vunpack.c.l.s4 1966171168
  %v5069 = vunpack.c.0.s8 %v5068
  %v5070 = vlaneseq
  %v5071 = vshrl.u32 %v5070, 7
  %v5072 = vsub.s32 %v5069, %v5071
  %v5073 = vrot.slane %v5065, %v5072
  %v5075 = vunpack.c.l.s4 1966171168
  %v5076 = vunpack.c.0.s8 %v5075
  %v5077 = vlaneseq
  %v5078 = vshrl.u32 %v5077, 7
  %v5079 = vsub.s32 %v5076, %v5078
  %v5080 = vrot.slane %v5066, %v5079
  %v5081 = vcombine.low %v5073, %v5080
  %v5082 = vcombine.low %v5009, %v5010
  %v5083 = vcombine.low %v5011, %v5012
  %v5084 = vcombine.low %v5013, %v5014
  %v5085 = vcombine.low %v5015, %v5016
  %v5087 = vunpack.c.l.s4 1966171168
  %v5088 = vunpack.c.0.s8 %v5087
  %v5089 = vlaneseq
  %v5090 = vshrl.u32 %v5089, 7
  %v5091 = vsub.s32 %v5088, %v5090
  %v5092 = vrot.slane %v5082, %v5091
  %v5094 = vunpack.c.l.s4 1966171168
  %v5095 = vunpack.c.0.s8 %v5094
  %v5096 = vlaneseq
  %v5097 = vshrl.u32 %v5096, 7
  %v5098 = vsub.s32 %v5095, %v5097
  %v5099 = vrot.slane %v5083, %v5098
  %v5101 = vunpack.c.l.s4 1966171168
  %v5102 = vunpack.c.0.s8 %v5101
  %v5103 = vlaneseq
  %v5104 = vshrl.u32 %v5103, 7
  %v5105 = vsub.s32 %v5102, %v5104
  %v5106 = vrot.slane %v5084, %v5105
  %v5108 = vunpack.c.l.s4 1966171168
  %v5109 = vunpack.c.0.s8 %v5108
  %v5110 = vlaneseq
  %v5111 = vshrl.u32 %v5110, 7
  %v5112 = vsub.s32 %v5109, %v5111
  %v5113 = vrot.slane %v5085, %v5112
  %v5114 = vcombine.low %v5092, %v5099
  %v5115 = vcombine.low %v5106, %v5113
  %v5117 = vunpack.c.l.s4 1966171168
  %v5118 = vunpack.c.0.s8 %v5117
  %v5119 = vlaneseq
  %v5120 = vshrl.u32 %v5119, 7
  %v5121 = vsub.s32 %v5118, %v5120
  %v5122 = vrot.slane %v5114, %v5121
  %v5124 = vunpack.c.l.s4 1966171168
  %v5125 = vunpack.c.0.s8 %v5124
  %v5126 = vlaneseq
  %v5127 = vshrl.u32 %v5126, 7
  %v5128 = vsub.s32 %v5125, %v5127
  %v5129 = vrot.slane %v5115, %v5128
  %v5130 = vcombine.low %v5122, %v5129
  %5133 = vst [vmem:[%s714] ss:$8 sm:$0xf] %v5081
  %5134 = vst [vmem:[%s714] ss:$8 sm:$0xf0] %v5081
  %5135 = vst [vmem:[%s717] ss:$8 sm:$0xf] %v5130
  %5136 = vst [vmem:[%s717] ss:$8 sm:$0xf0] %v5130
  %5137 = vrot.lane.b32.xlu0 %v4753, 15
  %v5138 = vpop.permute.xlu0 %5137
  %5139 = vrot.lane.b32.xlu0 %v4754, 15
  %v5140 = vpop.permute.xlu0 %5139
  %5141 = vrot.lane.b32.xlu0 %v4755, 15
  %v5142 = vpop.permute.xlu0 %5141
  %5143 = vrot.lane.b32.xlu0 %v4756, 15
  %v5144 = vpop.permute.xlu0 %5143
  %5145 = vrot.lane.b32.xlu0 %v4757, 15
  %v5146 = vpop.permute.xlu0 %5145
  %5147 = vrot.lane.b32.xlu0 %v4758, 15
  %v5148 = vpop.permute.xlu0 %5147
  %5149 = vrot.lane.b32.xlu0 %v4759, 15
  %v5150 = vpop.permute.xlu0 %5149
  %5151 = vrot.lane.b32.xlu0 %v4760, 15
  %v5152 = vpop.permute.xlu0 %5151
  %5153 = vrot.lane.b32.xlu0 %v4761, 15
  %v5154 = vpop.permute.xlu0 %5153
  %5155 = vrot.lane.b32.xlu0 %v4762, 15
  %v5156 = vpop.permute.xlu0 %5155
  %5157 = vrot.lane.b32.xlu0 %v4763, 15
  %v5158 = vpop.permute.xlu0 %5157
  %5159 = vrot.lane.b32.xlu0 %v4764, 15
  %v5160 = vpop.permute.xlu0 %5159
  %5161 = vrot.lane.b32.xlu0 %v4765, 15
  %v5162 = vpop.permute.xlu0 %5161
  %5163 = vrot.lane.b32.xlu0 %v4766, 15
  %v5164 = vpop.permute.xlu0 %5163
  %5165 = vrot.lane.b32.xlu0 %v4767, 15
  %v5166 = vpop.permute.xlu0 %5165
  %5167 = vrot.lane.b32.xlu0 %v4768, 15
  %v5168 = vpop.permute.xlu0 %5167
  %v5169 = vsel %vm752, %v5166, %v5168
  %v5170 = vsel %vm752, %v5164, %v5166
  %v5171 = vsel %vm752, %v5162, %v5164
  %v5172 = vsel %vm752, %v5160, %v5162
  %v5173 = vsel %vm752, %v5158, %v5160
  %v5174 = vsel %vm752, %v5156, %v5158
  %v5175 = vsel %vm752, %v5154, %v5156
  %v5176 = vsel %vm752, %v5152, %v5154
  %v5177 = vsel %vm752, %v5150, %v5152
  %v5178 = vsel %vm752, %v5148, %v5150
  %v5179 = vsel %vm752, %v5146, %v5148
  %v5180 = vsel %vm752, %v5144, %v5146
  %v5181 = vsel %vm752, %v5142, %v5144
  %v5182 = vsel %vm752, %v5140, %v5142
  %v5183 = vsel %vm752, %v5138, %v5140
  %v5184 = vsel %vm752, %v5168, %v5138
  %v5185 = vsel %vm172, %v5184, 0.0
  %v5186 = vsel %vm173, %v5183, 0.0
  %v5187 = vsel %vm174, %v5182, 0.0
  %v5188 = vsel %vm175, %v5181, 0.0
  %v5189 = vsel %vm176, %v5180, 0.0
  %v5190 = vsel %vm177, %v5179, 0.0
  %v5191 = vsel %vm178, %v5178, 0.0
  %v5192 = vsel %vm179, %v5177, 0.0
  %v5193 = vsel %vm180, %v5176, 0.0
  %v5194 = vsel %vm181, %v5175, 0.0
  %v5195 = vsel %vm182, %v5174, 0.0
  %v5196 = vsel %vm183, %v5173, 0.0
  %v5197 = vsel %vm184, %v5172, 0.0
  %v5198 = vsel %vm185, %v5171, 0.0
  %v5199 = vsel %vm186, %v5170, 0.0
  %v5200 = vsel %vm187, %v5169, 0.0
  %v5217 = vcombine.low %v5185, %v5186
  %v5218 = vcombine.low %v5187, %v5188
  %v5219 = vcombine.low %v5189, %v5190
  %v5220 = vcombine.low %v5191, %v5192
  %v5222 = vunpack.c.l.s4 1966171168
  %v5223 = vunpack.c.0.s8 %v5222
  %v5224 = vlaneseq
  %v5225 = vshrl.u32 %v5224, 7
  %v5226 = vsub.s32 %v5223, %v5225
  %v5227 = vrot.slane %v5217, %v5226
  %v5229 = vunpack.c.l.s4 1966171168
  %v5230 = vunpack.c.0.s8 %v5229
  %v5231 = vlaneseq
  %v5232 = vshrl.u32 %v5231, 7
  %v5233 = vsub.s32 %v5230, %v5232
  %v5234 = vrot.slane %v5218, %v5233
  %v5236 = vunpack.c.l.s4 1966171168
  %v5237 = vunpack.c.0.s8 %v5236
  %v5238 = vlaneseq
  %v5239 = vshrl.u32 %v5238, 7
  %v5240 = vsub.s32 %v5237, %v5239
  %v5241 = vrot.slane %v5219, %v5240
  %v5243 = vunpack.c.l.s4 1966171168
  %v5244 = vunpack.c.0.s8 %v5243
  %v5245 = vlaneseq
  %v5246 = vshrl.u32 %v5245, 7
  %v5247 = vsub.s32 %v5244, %v5246
  %v5248 = vrot.slane %v5220, %v5247
  %v5249 = vcombine.low %v5227, %v5234
  %v5250 = vcombine.low %v5241, %v5248
  %v5252 = vunpack.c.l.s4 1966171168
  %v5253 = vunpack.c.0.s8 %v5252
  %v5254 = vlaneseq
  %v5255 = vshrl.u32 %v5254, 7
  %v5256 = vsub.s32 %v5253, %v5255
  %v5257 = vrot.slane %v5249, %v5256
  %v5259 = vunpack.c.l.s4 1966171168
  %v5260 = vunpack.c.0.s8 %v5259
  %v5261 = vlaneseq
  %v5262 = vshrl.u32 %v5261, 7
  %v5263 = vsub.s32 %v5260, %v5262
  %v5264 = vrot.slane %v5250, %v5263
  %v5265 = vcombine.low %v5257, %v5264
  %v5266 = vcombine.low %v5193, %v5194
  %v5267 = vcombine.low %v5195, %v5196
  %v5268 = vcombine.low %v5197, %v5198
  %v5269 = vcombine.low %v5199, %v5200
  %v5271 = vunpack.c.l.s4 1966171168
  %v5272 = vunpack.c.0.s8 %v5271
  %v5273 = vlaneseq
  %v5274 = vshrl.u32 %v5273, 7
  %v5275 = vsub.s32 %v5272, %v5274
  %v5276 = vrot.slane %v5266, %v5275
  %v5278 = vunpack.c.l.s4 1966171168
  %v5279 = vunpack.c.0.s8 %v5278
  %v5280 = vlaneseq
  %v5281 = vshrl.u32 %v5280, 7
  %v5282 = vsub.s32 %v5279, %v5281
  %v5283 = vrot.slane %v5267, %v5282
  %v5285 = vunpack.c.l.s4 1966171168
  %v5286 = vunpack.c.0.s8 %v5285
  %v5287 = vlaneseq
  %v5288 = vshrl.u32 %v5287, 7
  %v5289 = vsub.s32 %v5286, %v5288
  %v5290 = vrot.slane %v5268, %v5289
  %v5292 = vunpack.c.l.s4 1966171168
  %v5293 = vunpack.c.0.s8 %v5292
  %v5294 = vlaneseq
  %v5295 = vshrl.u32 %v5294, 7
  %v5296 = vsub.s32 %v5293, %v5295
  %v5297 = vrot.slane %v5269, %v5296
  %v5298 = vcombine.low %v5276, %v5283
  %v5299 = vcombine.low %v5290, %v5297
  %v5301 = vunpack.c.l.s4 1966171168
  %v5302 = vunpack.c.0.s8 %v5301
  %v5303 = vlaneseq
  %v5304 = vshrl.u32 %v5303, 7
  %v5305 = vsub.s32 %v5302, %v5304
  %v5306 = vrot.slane %v5298, %v5305
  %v5308 = vunpack.c.l.s4 1966171168
  %v5309 = vunpack.c.0.s8 %v5308
  %v5310 = vlaneseq
  %v5311 = vshrl.u32 %v5310, 7
  %v5312 = vsub.s32 %v5309, %v5311
  %v5313 = vrot.slane %v5299, %v5312
  %v5314 = vcombine.low %v5306, %v5313
  %5317 = vst [vmem:[%s901] ss:$8 sm:$0xf] %v5265
  %5318 = vst [vmem:[%s901] ss:$8 sm:$0xf0] %v5265
  %5319 = vst [vmem:[%s904] ss:$8 sm:$0xf] %v5314
  %5320 = vst [vmem:[%s904] ss:$8 sm:$0xf0] %v5314
  %5321 = vrot.lane.b32.xlu0 %v4753, 1
  %v5322 = vpop.permute.xlu0 %5321
  %5323 = vrot.lane.b32.xlu0 %v4754, 1
  %v5324 = vpop.permute.xlu0 %5323
  %5325 = vrot.lane.b32.xlu0 %v4755, 1
  %v5326 = vpop.permute.xlu0 %5325
  %5327 = vrot.lane.b32.xlu0 %v4756, 1
  %v5328 = vpop.permute.xlu0 %5327
  %5329 = vrot.lane.b32.xlu0 %v4757, 1
  %v5330 = vpop.permute.xlu0 %5329
  %5331 = vrot.lane.b32.xlu0 %v4758, 1
  %v5332 = vpop.permute.xlu0 %5331
  %5333 = vrot.lane.b32.xlu0 %v4759, 1
  %v5334 = vpop.permute.xlu0 %5333
  %5335 = vrot.lane.b32.xlu0 %v4760, 1
  %v5336 = vpop.permute.xlu0 %5335
  %5337 = vrot.lane.b32.xlu0 %v4761, 1
  %v5338 = vpop.permute.xlu0 %5337
  %5339 = vrot.lane.b32.xlu0 %v4762, 1
  %v5340 = vpop.permute.xlu0 %5339
  %5341 = vrot.lane.b32.xlu0 %v4763, 1
  %v5342 = vpop.permute.xlu0 %5341
  %5343 = vrot.lane.b32.xlu0 %v4764, 1
  %v5344 = vpop.permute.xlu0 %5343
  %5345 = vrot.lane.b32.xlu0 %v4765, 1
  %v5346 = vpop.permute.xlu0 %5345
  %5347 = vrot.lane.b32.xlu0 %v4766, 1
  %v5348 = vpop.permute.xlu0 %5347
  %5349 = vrot.lane.b32.xlu0 %v4767, 1
  %v5350 = vpop.permute.xlu0 %5349
  %5351 = vrot.lane.b32.xlu0 %v4768, 1
  %v5352 = vpop.permute.xlu0 %5351
  %v5353 = vsel %vm939, %v5350, %v5352
  %v5354 = vsel %vm939, %v5348, %v5350
  %v5355 = vsel %vm939, %v5346, %v5348
  %v5356 = vsel %vm939, %v5344, %v5346
  %v5357 = vsel %vm939, %v5342, %v5344
  %v5358 = vsel %vm939, %v5340, %v5342
  %v5359 = vsel %vm939, %v5338, %v5340
  %v5360 = vsel %vm939, %v5336, %v5338
  %v5361 = vsel %vm939, %v5334, %v5336
  %v5362 = vsel %vm939, %v5332, %v5334
  %v5363 = vsel %vm939, %v5330, %v5332
  %v5364 = vsel %vm939, %v5328, %v5330
  %v5365 = vsel %vm939, %v5326, %v5328
  %v5366 = vsel %vm939, %v5324, %v5326
  %v5367 = vsel %vm939, %v5322, %v5324
  %v5368 = vsel %vm939, %v5352, %v5322
  %v5369 = vsel %vm124, %v5368, 0.0
  %v5370 = vsel %vm125, %v5367, 0.0
  %v5371 = vsel %vm126, %v5366, 0.0
  %v5372 = vsel %vm127, %v5365, 0.0
  %v5373 = vsel %vm128, %v5364, 0.0
  %v5374 = vsel %vm129, %v5363, 0.0
  %v5375 = vsel %vm130, %v5362, 0.0
  %v5376 = vsel %vm131, %v5361, 0.0
  %v5377 = vsel %vm132, %v5360, 0.0
  %v5378 = vsel %vm133, %v5359, 0.0
  %v5379 = vsel %vm134, %v5358, 0.0
  %v5380 = vsel %vm135, %v5357, 0.0
  %v5381 = vsel %vm136, %v5356, 0.0
  %v5382 = vsel %vm137, %v5355, 0.0
  %v5383 = vsel %vm138, %v5354, 0.0
  %v5384 = vsel %vm139, %v5353, 0.0
  %v5401 = vcombine.low %v5369, %v5370
  %v5402 = vcombine.low %v5371, %v5372
  %v5403 = vcombine.low %v5373, %v5374
  %v5404 = vcombine.low %v5375, %v5376
  %v5406 = vunpack.c.l.s4 1966171168
  %v5407 = vunpack.c.0.s8 %v5406
  %v5408 = vlaneseq
  %v5409 = vshrl.u32 %v5408, 7
  %v5410 = vsub.s32 %v5407, %v5409
  %v5411 = vrot.slane %v5401, %v5410
  %v5413 = vunpack.c.l.s4 1966171168
  %v5414 = vunpack.c.0.s8 %v5413
  %v5415 = vlaneseq
  %v5416 = vshrl.u32 %v5415, 7
  %v5417 = vsub.s32 %v5414, %v5416
  %v5418 = vrot.slane %v5402, %v5417
  %v5420 = vunpack.c.l.s4 1966171168
  %v5421 = vunpack.c.0.s8 %v5420
  %v5422 = vlaneseq
  %v5423 = vshrl.u32 %v5422, 7
  %v5424 = vsub.s32 %v5421, %v5423
  %v5425 = vrot.slane %v5403, %v5424
  %v5427 = vunpack.c.l.s4 1966171168
  %v5428 = vunpack.c.0.s8 %v5427
  %v5429 = vlaneseq
  %v5430 = vshrl.u32 %v5429, 7
  %v5431 = vsub.s32 %v5428, %v5430
  %v5432 = vrot.slane %v5404, %v5431
  %v5433 = vcombine.low %v5411, %v5418
  %v5434 = vcombine.low %v5425, %v5432
  %v5436 = vunpack.c.l.s4 1966171168
  %v5437 = vunpack.c.0.s8 %v5436
  %v5438 = vlaneseq
  %v5439 = vshrl.u32 %v5438, 7
  %v5440 = vsub.s32 %v5437, %v5439
  %v5441 = vrot.slane %v5433, %v5440
  %v5443 = vunpack.c.l.s4 1966171168
  %v5444 = vunpack.c.0.s8 %v5443
  %v5445 = vlaneseq
  %v5446 = vshrl.u32 %v5445, 7
  %v5447 = vsub.s32 %v5444, %v5446
  %v5448 = vrot.slane %v5434, %v5447
  %v5449 = vcombine.low %v5441, %v5448
  %v5450 = vcombine.low %v5377, %v5378
  %v5451 = vcombine.low %v5379, %v5380
  %v5452 = vcombine.low %v5381, %v5382
  %v5453 = vcombine.low %v5383, %v5384
  %v5455 = vunpack.c.l.s4 1966171168
  %v5456 = vunpack.c.0.s8 %v5455
  %v5457 = vlaneseq
  %v5458 = vshrl.u32 %v5457, 7
  %v5459 = vsub.s32 %v5456, %v5458
  %v5460 = vrot.slane %v5450, %v5459
  %v5462 = vunpack.c.l.s4 1966171168
  %v5463 = vunpack.c.0.s8 %v5462
  %v5464 = vlaneseq
  %v5465 = vshrl.u32 %v5464, 7
  %v5466 = vsub.s32 %v5463, %v5465
  %v5467 = vrot.slane %v5451, %v5466
  %v5469 = vunpack.c.l.s4 1966171168
  %v5470 = vunpack.c.0.s8 %v5469
  %v5471 = vlaneseq
  %v5472 = vshrl.u32 %v5471, 7
  %v5473 = vsub.s32 %v5470, %v5472
  %v5474 = vrot.slane %v5452, %v5473
  %v5476 = vunpack.c.l.s4 1966171168
  %v5477 = vunpack.c.0.s8 %v5476
  %v5478 = vlaneseq
  %v5479 = vshrl.u32 %v5478, 7
  %v5480 = vsub.s32 %v5477, %v5479
  %v5481 = vrot.slane %v5453, %v5480
  %v5482 = vcombine.low %v5460, %v5467
  %v5483 = vcombine.low %v5474, %v5481
  %v5485 = vunpack.c.l.s4 1966171168
  %v5486 = vunpack.c.0.s8 %v5485
  %v5487 = vlaneseq
  %v5488 = vshrl.u32 %v5487, 7
  %v5489 = vsub.s32 %v5486, %v5488
  %v5490 = vrot.slane %v5482, %v5489
  %v5492 = vunpack.c.l.s4 1966171168
  %v5493 = vunpack.c.0.s8 %v5492
  %v5494 = vlaneseq
  %v5495 = vshrl.u32 %v5494, 7
  %v5496 = vsub.s32 %v5493, %v5495
  %v5497 = vrot.slane %v5483, %v5496
  %v5498 = vcombine.low %v5490, %v5497
  %5501 = vst [vmem:[%s1088] ss:$8 sm:$0xf] %v5449
  %5502 = vst [vmem:[%s1088] ss:$8 sm:$0xf0] %v5449
  %5503 = vst [vmem:[%s1091] ss:$8 sm:$0xf] %v5498
  %5504 = vst [vmem:[%s1091] ss:$8 sm:$0xf0] %v5498
  %v5521 = vcombine.low %v4753, %v4754
  %v5522 = vcombine.low %v4755, %v4756
  %v5523 = vcombine.low %v4757, %v4758
  %v5524 = vcombine.low %v4759, %v4760
  %v5526 = vunpack.c.l.s4 1966171168
  %v5527 = vunpack.c.0.s8 %v5526
  %v5528 = vlaneseq
  %v5529 = vshrl.u32 %v5528, 7
  %v5530 = vsub.s32 %v5527, %v5529
  %v5531 = vrot.slane %v5521, %v5530
  %v5533 = vunpack.c.l.s4 1966171168
  %v5534 = vunpack.c.0.s8 %v5533
  %v5535 = vlaneseq
  %v5536 = vshrl.u32 %v5535, 7
  %v5537 = vsub.s32 %v5534, %v5536
  %v5538 = vrot.slane %v5522, %v5537
  %v5540 = vunpack.c.l.s4 1966171168
  %v5541 = vunpack.c.0.s8 %v5540
  %v5542 = vlaneseq
  %v5543 = vshrl.u32 %v5542, 7
  %v5544 = vsub.s32 %v5541, %v5543
  %v5545 = vrot.slane %v5523, %v5544
  %v5547 = vunpack.c.l.s4 1966171168
  %v5548 = vunpack.c.0.s8 %v5547
  %v5549 = vlaneseq
  %v5550 = vshrl.u32 %v5549, 7
  %v5551 = vsub.s32 %v5548, %v5550
  %v5552 = vrot.slane %v5524, %v5551
  %v5553 = vcombine.low %v5531, %v5538
  %v5554 = vcombine.low %v5545, %v5552
  %v5556 = vunpack.c.l.s4 1966171168
  %v5557 = vunpack.c.0.s8 %v5556
  %v5558 = vlaneseq
  %v5559 = vshrl.u32 %v5558, 7
  %v5560 = vsub.s32 %v5557, %v5559
  %v5561 = vrot.slane %v5553, %v5560
  %v5563 = vunpack.c.l.s4 1966171168
  %v5564 = vunpack.c.0.s8 %v5563
  %v5565 = vlaneseq
  %v5566 = vshrl.u32 %v5565, 7
  %v5567 = vsub.s32 %v5564, %v5566
  %v5568 = vrot.slane %v5554, %v5567
  %v5569 = vcombine.low %v5561, %v5568
  %v5570 = vcombine.low %v4761, %v4762
  %v5571 = vcombine.low %v4763, %v4764
  %v5572 = vcombine.low %v4765, %v4766
  %v5573 = vcombine.low %v4767, %v4768
  %v5575 = vunpack.c.l.s4 1966171168
  %v5576 = vunpack.c.0.s8 %v5575
  %v5577 = vlaneseq
  %v5578 = vshrl.u32 %v5577, 7
  %v5579 = vsub.s32 %v5576, %v5578
  %v5580 = vrot.slane %v5570, %v5579
  %v5582 = vunpack.c.l.s4 1966171168
  %v5583 = vunpack.c.0.s8 %v5582
  %v5584 = vlaneseq
  %v5585 = vshrl.u32 %v5584, 7
  %v5586 = vsub.s32 %v5583, %v5585
  %v5587 = vrot.slane %v5571, %v5586
  %v5589 = vunpack.c.l.s4 1966171168
  %v5590 = vunpack.c.0.s8 %v5589
  %v5591 = vlaneseq
  %v5592 = vshrl.u32 %v5591, 7
  %v5593 = vsub.s32 %v5590, %v5592
  %v5594 = vrot.slane %v5572, %v5593
  %v5596 = vunpack.c.l.s4 1966171168
  %v5597 = vunpack.c.0.s8 %v5596
  %v5598 = vlaneseq
  %v5599 = vshrl.u32 %v5598, 7
  %v5600 = vsub.s32 %v5597, %v5599
  %v5601 = vrot.slane %v5573, %v5600
  %v5602 = vcombine.low %v5580, %v5587
  %v5603 = vcombine.low %v5594, %v5601
  %v5605 = vunpack.c.l.s4 1966171168
  %v5606 = vunpack.c.0.s8 %v5605
  %v5607 = vlaneseq
  %v5608 = vshrl.u32 %v5607, 7
  %v5609 = vsub.s32 %v5606, %v5608
  %v5610 = vrot.slane %v5602, %v5609
  %v5612 = vunpack.c.l.s4 1966171168
  %v5613 = vunpack.c.0.s8 %v5612
  %v5614 = vlaneseq
  %v5615 = vshrl.u32 %v5614, 7
  %v5616 = vsub.s32 %v5613, %v5615
  %v5617 = vrot.slane %v5603, %v5616
  %v5618 = vcombine.low %v5610, %v5617
  %5621 = vst [vmem:[%s1094] ss:$8 sm:$0xf] %v5569
  %5622 = vst [vmem:[%s1094] ss:$8 sm:$0xf0] %v5569
  %5623 = vst [vmem:[%s1097] ss:$8 sm:$0xf] %v5618
  %5624 = vst [vmem:[%s1097] ss:$8 sm:$0xf0] %v5618
  %5625 = vrot.lane.b32.xlu0 %v4753, 127
  %v5626 = vpop.permute.xlu0 %5625
  %5627 = vrot.lane.b32.xlu0 %v4754, 127
  %v5628 = vpop.permute.xlu0 %5627
  %5629 = vrot.lane.b32.xlu0 %v4755, 127
  %v5630 = vpop.permute.xlu0 %5629
  %5631 = vrot.lane.b32.xlu0 %v4756, 127
  %v5632 = vpop.permute.xlu0 %5631
  %5633 = vrot.lane.b32.xlu0 %v4757, 127
  %v5634 = vpop.permute.xlu0 %5633
  %5635 = vrot.lane.b32.xlu0 %v4758, 127
  %v5636 = vpop.permute.xlu0 %5635
  %5637 = vrot.lane.b32.xlu0 %v4759, 127
  %v5638 = vpop.permute.xlu0 %5637
  %5639 = vrot.lane.b32.xlu0 %v4760, 127
  %v5640 = vpop.permute.xlu0 %5639
  %5641 = vrot.lane.b32.xlu0 %v4761, 127
  %v5642 = vpop.permute.xlu0 %5641
  %5643 = vrot.lane.b32.xlu0 %v4762, 127
  %v5644 = vpop.permute.xlu0 %5643
  %5645 = vrot.lane.b32.xlu0 %v4763, 127
  %v5646 = vpop.permute.xlu0 %5645
  %5647 = vrot.lane.b32.xlu0 %v4764, 127
  %v5648 = vpop.permute.xlu0 %5647
  %5649 = vrot.lane.b32.xlu0 %v4765, 127
  %v5650 = vpop.permute.xlu0 %5649
  %5651 = vrot.lane.b32.xlu0 %v4766, 127
  %v5652 = vpop.permute.xlu0 %5651
  %5653 = vrot.lane.b32.xlu0 %v4767, 127
  %v5654 = vpop.permute.xlu0 %5653
  %5655 = vrot.lane.b32.xlu0 %v4768, 127
  %v5656 = vpop.permute.xlu0 %5655
  %v5657 = vsel %vm1132, %v5654, %v5656
  %v5658 = vsel %vm1132, %v5652, %v5654
  %v5659 = vsel %vm1132, %v5650, %v5652
  %v5660 = vsel %vm1132, %v5648, %v5650
  %v5661 = vsel %vm1132, %v5646, %v5648
  %v5662 = vsel %vm1132, %v5644, %v5646
  %v5663 = vsel %vm1132, %v5642, %v5644
  %v5664 = vsel %vm1132, %v5640, %v5642
  %v5665 = vsel %vm1132, %v5638, %v5640
  %v5666 = vsel %vm1132, %v5636, %v5638
  %v5667 = vsel %vm1132, %v5634, %v5636
  %v5668 = vsel %vm1132, %v5632, %v5634
  %v5669 = vsel %vm1132, %v5630, %v5632
  %v5670 = vsel %vm1132, %v5628, %v5630
  %v5671 = vsel %vm1132, %v5626, %v5628
  %v5672 = vsel %vm1132, %v5656, %v5626
  %v5673 = vsel %vm140, %v5671, 0.0
  %v5674 = vsel %vm141, %v5670, 0.0
  %v5675 = vsel %vm142, %v5669, 0.0
  %v5676 = vsel %vm143, %v5668, 0.0
  %v5677 = vsel %vm144, %v5667, 0.0
  %v5678 = vsel %vm145, %v5666, 0.0
  %v5679 = vsel %vm146, %v5665, 0.0
  %v5680 = vsel %vm147, %v5664, 0.0
  %v5681 = vsel %vm148, %v5663, 0.0
  %v5682 = vsel %vm149, %v5662, 0.0
  %v5683 = vsel %vm150, %v5661, 0.0
  %v5684 = vsel %vm151, %v5660, 0.0
  %v5685 = vsel %vm152, %v5659, 0.0
  %v5686 = vsel %vm153, %v5658, 0.0
  %v5687 = vsel %vm154, %v5657, 0.0
  %v5688 = vsel %vm155, %v5672, 0.0
  %v5705 = vcombine.low %v5673, %v5674
  %v5706 = vcombine.low %v5675, %v5676
  %v5707 = vcombine.low %v5677, %v5678
  %v5708 = vcombine.low %v5679, %v5680
  %v5710 = vunpack.c.l.s4 1966171168
  %v5711 = vunpack.c.0.s8 %v5710
  %v5712 = vlaneseq
  %v5713 = vshrl.u32 %v5712, 7
  %v5714 = vsub.s32 %v5711, %v5713
  %v5715 = vrot.slane %v5705, %v5714
  %v5717 = vunpack.c.l.s4 1966171168
  %v5718 = vunpack.c.0.s8 %v5717
  %v5719 = vlaneseq
  %v5720 = vshrl.u32 %v5719, 7
  %v5721 = vsub.s32 %v5718, %v5720
  %v5722 = vrot.slane %v5706, %v5721
  %v5724 = vunpack.c.l.s4 1966171168
  %v5725 = vunpack.c.0.s8 %v5724
  %v5726 = vlaneseq
  %v5727 = vshrl.u32 %v5726, 7
  %v5728 = vsub.s32 %v5725, %v5727
  %v5729 = vrot.slane %v5707, %v5728
  %v5731 = vunpack.c.l.s4 1966171168
  %v5732 = vunpack.c.0.s8 %v5731
  %v5733 = vlaneseq
  %v5734 = vshrl.u32 %v5733, 7
  %v5735 = vsub.s32 %v5732, %v5734
  %v5736 = vrot.slane %v5708, %v5735
  %v5737 = vcombine.low %v5715, %v5722
  %v5738 = vcombine.low %v5729, %v5736
  %v5740 = vunpack.c.l.s4 1966171168
  %v5741 = vunpack.c.0.s8 %v5740
  %v5742 = vlaneseq
  %v5743 = vshrl.u32 %v5742, 7
  %v5744 = vsub.s32 %v5741, %v5743
  %v5745 = vrot.slane %v5737, %v5744
  %v5747 = vunpack.c.l.s4 1966171168
  %v5748 = vunpack.c.0.s8 %v5747
  %v5749 = vlaneseq
  %v5750 = vshrl.u32 %v5749, 7
  %v5751 = vsub.s32 %v5748, %v5750
  %v5752 = vrot.slane %v5738, %v5751
  %v5753 = vcombine.low %v5745, %v5752
  %v5754 = vcombine.low %v5681, %v5682
  %v5755 = vcombine.low %v5683, %v5684
  %v5756 = vcombine.low %v5685, %v5686
  %v5757 = vcombine.low %v5687, %v5688
  %v5759 = vunpack.c.l.s4 1966171168
  %v5760 = vunpack.c.0.s8 %v5759
  %v5761 = vlaneseq
  %v5762 = vshrl.u32 %v5761, 7
  %v5763 = vsub.s32 %v5760, %v5762
  %v5764 = vrot.slane %v5754, %v5763
  %v5766 = vunpack.c.l.s4 1966171168
  %v5767 = vunpack.c.0.s8 %v5766
  %v5768 = vlaneseq
  %v5769 = vshrl.u32 %v5768, 7
  %v5770 = vsub.s32 %v5767, %v5769
  %v5771 = vrot.slane %v5755, %v5770
  %v5773 = vunpack.c.l.s4 1966171168
  %v5774 = vunpack.c.0.s8 %v5773
  %v5775 = vlaneseq
  %v5776 = vshrl.u32 %v5775, 7
  %v5777 = vsub.s32 %v5774, %v5776
  %v5778 = vrot.slane %v5756, %v5777
  %v5780 = vunpack.c.l.s4 1966171168
  %v5781 = vunpack.c.0.s8 %v5780
  %v5782 = vlaneseq
  %v5783 = vshrl.u32 %v5782, 7
  %v5784 = vsub.s32 %v5781, %v5783
  %v5785 = vrot.slane %v5757, %v5784
  %v5786 = vcombine.low %v5764, %v5771
  %v5787 = vcombine.low %v5778, %v5785
  %v5789 = vunpack.c.l.s4 1966171168
  %v5790 = vunpack.c.0.s8 %v5789
  %v5791 = vlaneseq
  %v5792 = vshrl.u32 %v5791, 7
  %v5793 = vsub.s32 %v5790, %v5792
  %v5794 = vrot.slane %v5786, %v5793
  %v5796 = vunpack.c.l.s4 1966171168
  %v5797 = vunpack.c.0.s8 %v5796
  %v5798 = vlaneseq
  %v5799 = vshrl.u32 %v5798, 7
  %v5800 = vsub.s32 %v5797, %v5799
  %v5801 = vrot.slane %v5787, %v5800
  %v5802 = vcombine.low %v5794, %v5801
  %5805 = vst [vmem:[%s1281] ss:$8 sm:$0xf] %v5753
  %5806 = vst [vmem:[%s1281] ss:$8 sm:$0xf0] %v5753
  %5807 = vst [vmem:[%s1284] ss:$8 sm:$0xf] %v5802
  %5808 = vst [vmem:[%s1284] ss:$8 sm:$0xf0] %v5802
  %5809 = vrot.lane.b32.xlu0 %v4753, 113
  %v5810 = vpop.permute.xlu0 %5809
  %5811 = vrot.lane.b32.xlu0 %v4754, 113
  %v5812 = vpop.permute.xlu0 %5811
  %5813 = vrot.lane.b32.xlu0 %v4755, 113
  %v5814 = vpop.permute.xlu0 %5813
  %5815 = vrot.lane.b32.xlu0 %v4756, 113
  %v5816 = vpop.permute.xlu0 %5815
  %5817 = vrot.lane.b32.xlu0 %v4757, 113
  %v5818 = vpop.permute.xlu0 %5817
  %5819 = vrot.lane.b32.xlu0 %v4758, 113
  %v5820 = vpop.permute.xlu0 %5819
  %5821 = vrot.lane.b32.xlu0 %v4759, 113
  %v5822 = vpop.permute.xlu0 %5821
  %5823 = vrot.lane.b32.xlu0 %v4760, 113
  %v5824 = vpop.permute.xlu0 %5823
  %5825 = vrot.lane.b32.xlu0 %v4761, 113
  %v5826 = vpop.permute.xlu0 %5825
  %5827 = vrot.lane.b32.xlu0 %v4762, 113
  %v5828 = vpop.permute.xlu0 %5827
  %5829 = vrot.lane.b32.xlu0 %v4763, 113
  %v5830 = vpop.permute.xlu0 %5829
  %5831 = vrot.lane.b32.xlu0 %v4764, 113
  %v5832 = vpop.permute.xlu0 %5831
  %5833 = vrot.lane.b32.xlu0 %v4765, 113
  %v5834 = vpop.permute.xlu0 %5833
  %5835 = vrot.lane.b32.xlu0 %v4766, 113
  %v5836 = vpop.permute.xlu0 %5835
  %5837 = vrot.lane.b32.xlu0 %v4767, 113
  %v5838 = vpop.permute.xlu0 %5837
  %5839 = vrot.lane.b32.xlu0 %v4768, 113
  %v5840 = vpop.permute.xlu0 %5839
  %v5841 = vsel %vm1319, %v5838, %v5840
  %v5842 = vsel %vm1319, %v5836, %v5838
  %v5843 = vsel %vm1319, %v5834, %v5836
  %v5844 = vsel %vm1319, %v5832, %v5834
  %v5845 = vsel %vm1319, %v5830, %v5832
  %v5846 = vsel %vm1319, %v5828, %v5830
  %v5847 = vsel %vm1319, %v5826, %v5828
  %v5848 = vsel %vm1319, %v5824, %v5826
  %v5849 = vsel %vm1319, %v5822, %v5824
  %v5850 = vsel %vm1319, %v5820, %v5822
  %v5851 = vsel %vm1319, %v5818, %v5820
  %v5852 = vsel %vm1319, %v5816, %v5818
  %v5853 = vsel %vm1319, %v5814, %v5816
  %v5854 = vsel %vm1319, %v5812, %v5814
  %v5855 = vsel %vm1319, %v5810, %v5812
  %v5856 = vsel %vm1319, %v5840, %v5810
  %v5857 = vsel %vm188, %v5855, 0.0
  %v5858 = vsel %vm189, %v5854, 0.0
  %v5859 = vsel %vm190, %v5853, 0.0
  %v5860 = vsel %vm191, %v5852, 0.0
  %v5861 = vsel %vm192, %v5851, 0.0
  %v5862 = vsel %vm193, %v5850, 0.0
  %v5863 = vsel %vm194, %v5849, 0.0
  %v5864 = vsel %vm195, %v5848, 0.0
  %v5865 = vsel %vm196, %v5847, 0.0
  %v5866 = vsel %vm197, %v5846, 0.0
  %v5867 = vsel %vm198, %v5845, 0.0
  %v5868 = vsel %vm199, %v5844, 0.0
  %v5869 = vsel %vm200, %v5843, 0.0
  %v5870 = vsel %vm201, %v5842, 0.0
  %v5871 = vsel %vm202, %v5841, 0.0
  %v5872 = vsel %vm203, %v5856, 0.0
  %v5889 = vcombine.low %v5857, %v5858
  %v5890 = vcombine.low %v5859, %v5860
  %v5891 = vcombine.low %v5861, %v5862
  %v5892 = vcombine.low %v5863, %v5864
  %v5894 = vunpack.c.l.s4 1966171168
  %v5895 = vunpack.c.0.s8 %v5894
  %v5896 = vlaneseq
  %v5897 = vshrl.u32 %v5896, 7
  %v5898 = vsub.s32 %v5895, %v5897
  %v5899 = vrot.slane %v5889, %v5898
  %v5901 = vunpack.c.l.s4 1966171168
  %v5902 = vunpack.c.0.s8 %v5901
  %v5903 = vlaneseq
  %v5904 = vshrl.u32 %v5903, 7
  %v5905 = vsub.s32 %v5902, %v5904
  %v5906 = vrot.slane %v5890, %v5905
  %v5908 = vunpack.c.l.s4 1966171168
  %v5909 = vunpack.c.0.s8 %v5908
  %v5910 = vlaneseq
  %v5911 = vshrl.u32 %v5910, 7
  %v5912 = vsub.s32 %v5909, %v5911
  %v5913 = vrot.slane %v5891, %v5912
  %v5915 = vunpack.c.l.s4 1966171168
  %v5916 = vunpack.c.0.s8 %v5915
  %v5917 = vlaneseq
  %v5918 = vshrl.u32 %v5917, 7
  %v5919 = vsub.s32 %v5916, %v5918
  %v5920 = vrot.slane %v5892, %v5919
  %v5921 = vcombine.low %v5899, %v5906
  %v5922 = vcombine.low %v5913, %v5920
  %v5924 = vunpack.c.l.s4 1966171168
  %v5925 = vunpack.c.0.s8 %v5924
  %v5926 = vlaneseq
  %v5927 = vshrl.u32 %v5926, 7
  %v5928 = vsub.s32 %v5925, %v5927
  %v5929 = vrot.slane %v5921, %v5928
  %v5931 = vunpack.c.l.s4 1966171168
  %v5932 = vunpack.c.0.s8 %v5931
  %v5933 = vlaneseq
  %v5934 = vshrl.u32 %v5933, 7
  %v5935 = vsub.s32 %v5932, %v5934
  %v5936 = vrot.slane %v5922, %v5935
  %v5937 = vcombine.low %v5929, %v5936
  %v5938 = vcombine.low %v5865, %v5866
  %v5939 = vcombine.low %v5867, %v5868
  %v5940 = vcombine.low %v5869, %v5870
  %v5941 = vcombine.low %v5871, %v5872
  %v5943 = vunpack.c.l.s4 1966171168
  %v5944 = vunpack.c.0.s8 %v5943
  %v5945 = vlaneseq
  %v5946 = vshrl.u32 %v5945, 7
  %v5947 = vsub.s32 %v5944, %v5946
  %v5948 = vrot.slane %v5938, %v5947
  %v5950 = vunpack.c.l.s4 1966171168
  %v5951 = vunpack.c.0.s8 %v5950
  %v5952 = vlaneseq
  %v5953 = vshrl.u32 %v5952, 7
  %v5954 = vsub.s32 %v5951, %v5953
  %v5955 = vrot.slane %v5939, %v5954
  %v5957 = vunpack.c.l.s4 1966171168
  %v5958 = vunpack.c.0.s8 %v5957
  %v5959 = vlaneseq
  %v5960 = vshrl.u32 %v5959, 7
  %v5961 = vsub.s32 %v5958, %v5960
  %v5962 = vrot.slane %v5940, %v5961
  %v5964 = vunpack.c.l.s4 1966171168
  %v5965 = vunpack.c.0.s8 %v5964
  %v5966 = vlaneseq
  %v5967 = vshrl.u32 %v5966, 7
  %v5968 = vsub.s32 %v5965, %v5967
  %v5969 = vrot.slane %v5941, %v5968
  %v5970 = vcombine.low %v5948, %v5955
  %v5971 = vcombine.low %v5962, %v5969
  %v5973 = vunpack.c.l.s4 1966171168
  %v5974 = vunpack.c.0.s8 %v5973
  %v5975 = vlaneseq
  %v5976 = vshrl.u32 %v5975, 7
  %v5977 = vsub.s32 %v5974, %v5976
  %v5978 = vrot.slane %v5970, %v5977
  %v5980 = vunpack.c.l.s4 1966171168
  %v5981 = vunpack.c.0.s8 %v5980
  %v5982 = vlaneseq
  %v5983 = vshrl.u32 %v5982, 7
  %v5984 = vsub.s32 %v5981, %v5983
  %v5985 = vrot.slane %v5971, %v5984
  %v5986 = vcombine.low %v5978, %v5985
  %5989 = vst [vmem:[%s1468] ss:$8 sm:$0xf] %v5937
  %5990 = vst [vmem:[%s1468] ss:$8 sm:$0xf0] %v5937
  %5991 = vst [vmem:[%s1471] ss:$8 sm:$0xf] %v5986
  %5992 = vst [vmem:[%s1471] ss:$8 sm:$0xf0] %v5986
  %5993 = vrot.lane.b32.xlu0 %v4753, 112
  %v5994 = vpop.permute.xlu0 %5993
  %5995 = vrot.lane.b32.xlu0 %v4754, 112
  %v5996 = vpop.permute.xlu0 %5995
  %5997 = vrot.lane.b32.xlu0 %v4755, 112
  %v5998 = vpop.permute.xlu0 %5997
  %5999 = vrot.lane.b32.xlu0 %v4756, 112
  %v6000 = vpop.permute.xlu0 %5999
  %6001 = vrot.lane.b32.xlu0 %v4757, 112
  %v6002 = vpop.permute.xlu0 %6001
  %6003 = vrot.lane.b32.xlu0 %v4758, 112
  %v6004 = vpop.permute.xlu0 %6003
  %6005 = vrot.lane.b32.xlu0 %v4759, 112
  %v6006 = vpop.permute.xlu0 %6005
  %6007 = vrot.lane.b32.xlu0 %v4760, 112
  %v6008 = vpop.permute.xlu0 %6007
  %6009 = vrot.lane.b32.xlu0 %v4761, 112
  %v6010 = vpop.permute.xlu0 %6009
  %6011 = vrot.lane.b32.xlu0 %v4762, 112
  %v6012 = vpop.permute.xlu0 %6011
  %6013 = vrot.lane.b32.xlu0 %v4763, 112
  %v6014 = vpop.permute.xlu0 %6013
  %6015 = vrot.lane.b32.xlu0 %v4764, 112
  %v6016 = vpop.permute.xlu0 %6015
  %6017 = vrot.lane.b32.xlu0 %v4765, 112
  %v6018 = vpop.permute.xlu0 %6017
  %6019 = vrot.lane.b32.xlu0 %v4766, 112
  %v6020 = vpop.permute.xlu0 %6019
  %6021 = vrot.lane.b32.xlu0 %v4767, 112
  %v6022 = vpop.permute.xlu0 %6021
  %6023 = vrot.lane.b32.xlu0 %v4768, 112
  %v6024 = vpop.permute.xlu0 %6023
  %v6025 = vsel %vm1506, %v6022, %v6024
  %v6026 = vsel %vm1506, %v6020, %v6022
  %v6027 = vsel %vm1506, %v6018, %v6020
  %v6028 = vsel %vm1506, %v6016, %v6018
  %v6029 = vsel %vm1506, %v6014, %v6016
  %v6030 = vsel %vm1506, %v6012, %v6014
  %v6031 = vsel %vm1506, %v6010, %v6012
  %v6032 = vsel %vm1506, %v6008, %v6010
  %v6033 = vsel %vm1506, %v6006, %v6008
  %v6034 = vsel %vm1506, %v6004, %v6006
  %v6035 = vsel %vm1506, %v6002, %v6004
  %v6036 = vsel %vm1506, %v6000, %v6002
  %v6037 = vsel %vm1506, %v5998, %v6000
  %v6038 = vsel %vm1506, %v5996, %v5998
  %v6039 = vsel %vm1506, %v5994, %v5996
  %v6040 = vsel %vm1506, %v6024, %v5994
  %v6041 = vsel %vm108, %v6039, 0.0
  %v6042 = vsel %vm109, %v6038, 0.0
  %v6043 = vsel %vm110, %v6037, 0.0
  %v6044 = vsel %vm111, %v6036, 0.0
  %v6045 = vsel %vm112, %v6035, 0.0
  %v6046 = vsel %vm113, %v6034, 0.0
  %v6047 = vsel %vm114, %v6033, 0.0
  %v6048 = vsel %vm115, %v6032, 0.0
  %v6049 = vsel %vm116, %v6031, 0.0
  %v6050 = vsel %vm117, %v6030, 0.0
  %v6051 = vsel %vm118, %v6029, 0.0
  %v6052 = vsel %vm119, %v6028, 0.0
  %v6053 = vsel %vm120, %v6027, 0.0
  %v6054 = vsel %vm121, %v6026, 0.0
  %v6055 = vsel %vm122, %v6025, 0.0
  %v6056 = vsel %vm123, %v6040, 0.0
  %v6073 = vcombine.low %v6041, %v6042
  %v6074 = vcombine.low %v6043, %v6044
  %v6075 = vcombine.low %v6045, %v6046
  %v6076 = vcombine.low %v6047, %v6048
  %v6078 = vunpack.c.l.s4 1966171168
  %v6079 = vunpack.c.0.s8 %v6078
  %v6080 = vlaneseq
  %v6081 = vshrl.u32 %v6080, 7
  %v6082 = vsub.s32 %v6079, %v6081
  %v6083 = vrot.slane %v6073, %v6082
  %v6085 = vunpack.c.l.s4 1966171168
  %v6086 = vunpack.c.0.s8 %v6085
  %v6087 = vlaneseq
  %v6088 = vshrl.u32 %v6087, 7
  %v6089 = vsub.s32 %v6086, %v6088
  %v6090 = vrot.slane %v6074, %v6089
  %v6092 = vunpack.c.l.s4 1966171168
  %v6093 = vunpack.c.0.s8 %v6092
  %v6094 = vlaneseq
  %v6095 = vshrl.u32 %v6094, 7
  %v6096 = vsub.s32 %v6093, %v6095
  %v6097 = vrot.slane %v6075, %v6096
  %v6099 = vunpack.c.l.s4 1966171168
  %v6100 = vunpack.c.0.s8 %v6099
  %v6101 = vlaneseq
  %v6102 = vshrl.u32 %v6101, 7
  %v6103 = vsub.s32 %v6100, %v6102
  %v6104 = vrot.slane %v6076, %v6103
  %v6105 = vcombine.low %v6083, %v6090
  %v6106 = vcombine.low %v6097, %v6104
  %v6108 = vunpack.c.l.s4 1966171168
  %v6109 = vunpack.c.0.s8 %v6108
  %v6110 = vlaneseq
  %v6111 = vshrl.u32 %v6110, 7
  %v6112 = vsub.s32 %v6109, %v6111
  %v6113 = vrot.slane %v6105, %v6112
  %v6115 = vunpack.c.l.s4 1966171168
  %v6116 = vunpack.c.0.s8 %v6115
  %v6117 = vlaneseq
  %v6118 = vshrl.u32 %v6117, 7
  %v6119 = vsub.s32 %v6116, %v6118
  %v6120 = vrot.slane %v6106, %v6119
  %v6121 = vcombine.low %v6113, %v6120
  %v6122 = vcombine.low %v6049, %v6050
  %v6123 = vcombine.low %v6051, %v6052
  %v6124 = vcombine.low %v6053, %v6054
  %v6125 = vcombine.low %v6055, %v6056
  %v6127 = vunpack.c.l.s4 1966171168
  %v6128 = vunpack.c.0.s8 %v6127
  %v6129 = vlaneseq
  %v6130 = vshrl.u32 %v6129, 7
  %v6131 = vsub.s32 %v6128, %v6130
  %v6132 = vrot.slane %v6122, %v6131
  %v6134 = vunpack.c.l.s4 1966171168
  %v6135 = vunpack.c.0.s8 %v6134
  %v6136 = vlaneseq
  %v6137 = vshrl.u32 %v6136, 7
  %v6138 = vsub.s32 %v6135, %v6137
  %v6139 = vrot.slane %v6123, %v6138
  %v6141 = vunpack.c.l.s4 1966171168
  %v6142 = vunpack.c.0.s8 %v6141
  %v6143 = vlaneseq
  %v6144 = vshrl.u32 %v6143, 7
  %v6145 = vsub.s32 %v6142, %v6144
  %v6146 = vrot.slane %v6124, %v6145
  %v6148 = vunpack.c.l.s4 1966171168
  %v6149 = vunpack.c.0.s8 %v6148
  %v6150 = vlaneseq
  %v6151 = vshrl.u32 %v6150, 7
  %v6152 = vsub.s32 %v6149, %v6151
  %v6153 = vrot.slane %v6125, %v6152
  %v6154 = vcombine.low %v6132, %v6139
  %v6155 = vcombine.low %v6146, %v6153
  %v6157 = vunpack.c.l.s4 1966171168
  %v6158 = vunpack.c.0.s8 %v6157
  %v6159 = vlaneseq
  %v6160 = vshrl.u32 %v6159, 7
  %v6161 = vsub.s32 %v6158, %v6160
  %v6162 = vrot.slane %v6154, %v6161
  %v6164 = vunpack.c.l.s4 1966171168
  %v6165 = vunpack.c.0.s8 %v6164
  %v6166 = vlaneseq
  %v6167 = vshrl.u32 %v6166, 7
  %v6168 = vsub.s32 %v6165, %v6167
  %v6169 = vrot.slane %v6155, %v6168
  %v6170 = vcombine.low %v6162, %v6169
  %6173 = vst [vmem:[%s1655] ss:$8 sm:$0xf] %v6121
  %6174 = vst [vmem:[%s1655] ss:$8 sm:$0xf0] %v6121
  %6175 = vst [vmem:[%s1658] ss:$8 sm:$0xf] %v6170
  %6176 = vst [vmem:[%s1658] ss:$8 sm:$0xf0] %v6170
  %6177 = vrot.lane.b32.xlu0 %v4753, 111
  %v6178 = vpop.permute.xlu0 %6177
  %6179 = vrot.lane.b32.xlu0 %v4754, 111
  %v6180 = vpop.permute.xlu0 %6179
  %6181 = vrot.lane.b32.xlu0 %v4755, 111
  %v6182 = vpop.permute.xlu0 %6181
  %6183 = vrot.lane.b32.xlu0 %v4756, 111
  %v6184 = vpop.permute.xlu0 %6183
  %6185 = vrot.lane.b32.xlu0 %v4757, 111
  %v6186 = vpop.permute.xlu0 %6185
  %6187 = vrot.lane.b32.xlu0 %v4758, 111
  %v6188 = vpop.permute.xlu0 %6187
  %6189 = vrot.lane.b32.xlu0 %v4759, 111
  %v6190 = vpop.permute.xlu0 %6189
  %6191 = vrot.lane.b32.xlu0 %v4760, 111
  %v6192 = vpop.permute.xlu0 %6191
  %6193 = vrot.lane.b32.xlu0 %v4761, 111
  %v6194 = vpop.permute.xlu0 %6193
  %6195 = vrot.lane.b32.xlu0 %v4762, 111
  %v6196 = vpop.permute.xlu0 %6195
  %6197 = vrot.lane.b32.xlu0 %v4763, 111
  %v6198 = vpop.permute.xlu0 %6197
  %6199 = vrot.lane.b32.xlu0 %v4764, 111
  %v6200 = vpop.permute.xlu0 %6199
  %6201 = vrot.lane.b32.xlu0 %v4765, 111
  %v6202 = vpop.permute.xlu0 %6201
  %6203 = vrot.lane.b32.xlu0 %v4766, 111
  %v6204 = vpop.permute.xlu0 %6203
  %6205 = vrot.lane.b32.xlu0 %v4767, 111
  %v6206 = vpop.permute.xlu0 %6205
  %6207 = vrot.lane.b32.xlu0 %v4768, 111
  %v6208 = vpop.permute.xlu0 %6207
  %v6209 = vsel %vm1693, %v6206, %v6208
  %v6210 = vsel %vm1693, %v6204, %v6206
  %v6211 = vsel %vm1693, %v6202, %v6204
  %v6212 = vsel %vm1693, %v6200, %v6202
  %v6213 = vsel %vm1693, %v6198, %v6200
  %v6214 = vsel %vm1693, %v6196, %v6198
  %v6215 = vsel %vm1693, %v6194, %v6196
  %v6216 = vsel %vm1693, %v6192, %v6194
  %v6217 = vsel %vm1693, %v6190, %v6192
  %v6218 = vsel %vm1693, %v6188, %v6190
  %v6219 = vsel %vm1693, %v6186, %v6188
  %v6220 = vsel %vm1693, %v6184, %v6186
  %v6221 = vsel %vm1693, %v6182, %v6184
  %v6222 = vsel %vm1693, %v6180, %v6182
  %v6223 = vsel %vm1693, %v6178, %v6180
  %v6224 = vsel %vm1693, %v6208, %v6178
  %v6225 = vsel %vm204, %v6223, 0.0
  %v6226 = vsel %vm205, %v6222, 0.0
  %v6227 = vsel %vm206, %v6221, 0.0
  %v6228 = vsel %vm207, %v6220, 0.0
  %v6229 = vsel %vm208, %v6219, 0.0
  %v6230 = vsel %vm209, %v6218, 0.0
  %v6231 = vsel %vm210, %v6217, 0.0
  %v6232 = vsel %vm211, %v6216, 0.0
  %v6233 = vsel %vm212, %v6215, 0.0
  %v6234 = vsel %vm213, %v6214, 0.0
  %v6235 = vsel %vm214, %v6213, 0.0
  %v6236 = vsel %vm215, %v6212, 0.0
  %v6237 = vsel %vm216, %v6211, 0.0
  %v6238 = vsel %vm217, %v6210, 0.0
  %v6239 = vsel %vm218, %v6209, 0.0
  %v6240 = vsel %vm219, %v6224, 0.0
  %v6257 = vcombine.low %v6225, %v6226
  %v6258 = vcombine.low %v6227, %v6228
  %v6259 = vcombine.low %v6229, %v6230
  %v6260 = vcombine.low %v6231, %v6232
  %v6262 = vunpack.c.l.s4 1966171168
  %v6263 = vunpack.c.0.s8 %v6262
  %v6264 = vlaneseq
  %v6265 = vshrl.u32 %v6264, 7
  %v6266 = vsub.s32 %v6263, %v6265
  %v6267 = vrot.slane %v6257, %v6266
  %v6269 = vunpack.c.l.s4 1966171168
  %v6270 = vunpack.c.0.s8 %v6269
  %v6271 = vlaneseq
  %v6272 = vshrl.u32 %v6271, 7
  %v6273 = vsub.s32 %v6270, %v6272
  %v6274 = vrot.slane %v6258, %v6273
  %v6276 = vunpack.c.l.s4 1966171168
  %v6277 = vunpack.c.0.s8 %v6276
  %v6278 = vlaneseq
  %v6279 = vshrl.u32 %v6278, 7
  %v6280 = vsub.s32 %v6277, %v6279
  %v6281 = vrot.slane %v6259, %v6280
  %v6283 = vunpack.c.l.s4 1966171168
  %v6284 = vunpack.c.0.s8 %v6283
  %v6285 = vlaneseq
  %v6286 = vshrl.u32 %v6285, 7
  %v6287 = vsub.s32 %v6284, %v6286
  %v6288 = vrot.slane %v6260, %v6287
  %v6289 = vcombine.low %v6267, %v6274
  %v6290 = vcombine.low %v6281, %v6288
  %v6292 = vunpack.c.l.s4 1966171168
  %v6293 = vunpack.c.0.s8 %v6292
  %v6294 = vlaneseq
  %v6295 = vshrl.u32 %v6294, 7
  %v6296 = vsub.s32 %v6293, %v6295
  %v6297 = vrot.slane %v6289, %v6296
  %v6299 = vunpack.c.l.s4 1966171168
  %v6300 = vunpack.c.0.s8 %v6299
  %v6301 = vlaneseq
  %v6302 = vshrl.u32 %v6301, 7
  %v6303 = vsub.s32 %v6300, %v6302
  %v6304 = vrot.slane %v6290, %v6303
  %v6305 = vcombine.low %v6297, %v6304
  %v6306 = vcombine.low %v6233, %v6234
  %v6307 = vcombine.low %v6235, %v6236
  %v6308 = vcombine.low %v6237, %v6238
  %v6309 = vcombine.low %v6239, %v6240
  %v6311 = vunpack.c.l.s4 1966171168
  %v6312 = vunpack.c.0.s8 %v6311
  %v6313 = vlaneseq
  %v6314 = vshrl.u32 %v6313, 7
  %v6315 = vsub.s32 %v6312, %v6314
  %v6316 = vrot.slane %v6306, %v6315
  %v6318 = vunpack.c.l.s4 1966171168
  %v6319 = vunpack.c.0.s8 %v6318
  %v6320 = vlaneseq
  %v6321 = vshrl.u32 %v6320, 7
  %v6322 = vsub.s32 %v6319, %v6321
  %v6323 = vrot.slane %v6307, %v6322
  %v6325 = vunpack.c.l.s4 1966171168
  %v6326 = vunpack.c.0.s8 %v6325
  %v6327 = vlaneseq
  %v6328 = vshrl.u32 %v6327, 7
  %v6329 = vsub.s32 %v6326, %v6328
  %v6330 = vrot.slane %v6308, %v6329
  %v6332 = vunpack.c.l.s4 1966171168
  %v6333 = vunpack.c.0.s8 %v6332
  %v6334 = vlaneseq
  %v6335 = vshrl.u32 %v6334, 7
  %v6336 = vsub.s32 %v6333, %v6335
  %v6337 = vrot.slane %v6309, %v6336
  %v6338 = vcombine.low %v6316, %v6323
  %v6339 = vcombine.low %v6330, %v6337
  %v6341 = vunpack.c.l.s4 1966171168
  %v6342 = vunpack.c.0.s8 %v6341
  %v6343 = vlaneseq
  %v6344 = vshrl.u32 %v6343, 7
  %v6345 = vsub.s32 %v6342, %v6344
  %v6346 = vrot.slane %v6338, %v6345
  %v6348 = vunpack.c.l.s4 1966171168
  %v6349 = vunpack.c.0.s8 %v6348
  %v6350 = vlaneseq
  %v6351 = vshrl.u32 %v6350, 7
  %v6352 = vsub.s32 %v6349, %v6351
  %v6353 = vrot.slane %v6339, %v6352
  %v6354 = vcombine.low %v6346, %v6353
  %6357 = vst [vmem:[%s1842] ss:$8 sm:$0xf] %v6305
  %6358 = vst [vmem:[%s1842] ss:$8 sm:$0xf0] %v6305
  %6359 = vst [vmem:[%s1845] ss:$8 sm:$0xf] %v6354
  %6360 = vst [vmem:[%s1845] ss:$8 sm:$0xf0] %v6354
  %v6361 = vld [vmem:[#allocation2] sm:$0xff]
  %v6362 = vld [vmem:[#allocation2 + $0x8] sm:$0xff]
  %v6363 = vld [vmem:[#allocation2 + $0x10] sm:$0xff]
  %v6364 = vld [vmem:[#allocation2 + $0x18] sm:$0xff]
  %v6365 = vld [vmem:[#allocation2 + $0x20] sm:$0xff]
  %v6366 = vld [vmem:[#allocation2 + $0x28] sm:$0xff]
  %v6367 = vld [vmem:[#allocation2 + $0x30] sm:$0xff]
  %v6368 = vld [vmem:[#allocation2 + $0x38] sm:$0xff]
  %v6369 = vld [vmem:[#allocation2 + $0x40] sm:$0xff]
  %v6370 = vld [vmem:[#allocation2 + $0x48] sm:$0xff]
  %v6371 = vld [vmem:[#allocation2 + $0x50] sm:$0xff]
  %v6372 = vld [vmem:[#allocation2 + $0x58] sm:$0xff]
  %v6373 = vld [vmem:[#allocation2 + $0x60] sm:$0xff]
  %v6374 = vld [vmem:[#allocation2 + $0x68] sm:$0xff]
  %v6375 = vld [vmem:[#allocation2 + $0x70] sm:$0xff]
  %v6376 = vld [vmem:[#allocation2 + $0x78] sm:$0xff]
  %v6377 = vld [vmem:[#allocation2 + $0x80] sm:$0xff]
  %v6378 = vld [vmem:[#allocation2 + $0x88] sm:$0xff]
  %v6379 = vld [vmem:[#allocation2 + $0x90] sm:$0xff]
  %v6380 = vld [vmem:[#allocation2 + $0x98] sm:$0xff]
  %v6381 = vld [vmem:[#allocation2 + $0xa0] sm:$0xff]
  %v6382 = vld [vmem:[#allocation2 + $0xa8] sm:$0xff]
  %v6383 = vld [vmem:[#allocation2 + $0xb0] sm:$0xff]
  %v6384 = vld [vmem:[#allocation2 + $0xb8] sm:$0xff]
  %v6385 = vld [vmem:[#allocation2 + $0xc0] sm:$0xff]
  %v6386 = vld [vmem:[#allocation2 + $0xc8] sm:$0xff]
  %v6387 = vld [vmem:[#allocation2 + $0xd0] sm:$0xff]
  %v6388 = vld [vmem:[#allocation2 + $0xd8] sm:$0xff]
  %v6389 = vld [vmem:[#allocation2 + $0xe0] sm:$0xff]
  %v6390 = vld [vmem:[#allocation2 + $0xe8] sm:$0xff]
  %v6391 = vld [vmem:[#allocation2 + $0xf0] sm:$0xff]
  %v6392 = vld [vmem:[#allocation2 + $0xf8] sm:$0xff]
  %6393 = vmatprep.subr.mxu0 0.0
  %6394 = vmatpush1.msra.mxu0 0.0
  %6395 = vmatprep.subr.mxu0 0.0
  %6396 = vmatpush1.msra.mxu0 0.0
  %6397 = vmatprep.subr.mxu0 0.0
  %6398 = vmatpush1.msra.mxu0 0.0
  %6399 = vmatprep.subr.mxu0 0.0
  %6400 = vmatpush1.msra.mxu0 0.0
  %6401 = vmatprep.subr.mxu0 0.0
  %6402 = vmatpush1.msra.mxu0 0.0
  %6403 = vmatprep.subr.mxu0 0.0
  %6404 = vmatpush1.msra.mxu0 0.0
  %6405 = vmatprep.subr.mxu0 0.0
  %6406 = vmatpush1.msra.mxu0 0.0
  %6407 = vmatprep.subr.mxu0 0.0
  %6408 = vmatpush1.msra.mxu0 0.0
  %6409 = vmatprep.subr.mxu0 0.0
  %6410 = vmatpush1.msra.mxu0 0.0
  %6411 = vmatprep.subr.mxu0 0.0
  %6412 = vmatpush1.msra.mxu0 0.0
  %6413 = vmatprep.subr.mxu0 0.0
  %6414 = vmatpush1.msra.mxu0 0.0
  %6415 = vmatprep.subr.mxu0 0.0
  %6416 = vmatpush1.msra.mxu0 0.0
  %6417 = vmatprep.subr.mxu0 0.0
  %6418 = vmatpush1.msra.mxu0 0.0
  %6419 = vmatprep.subr.mxu0 0.0
  %6420 = vmatpush1.msra.mxu0 0.0
  %6421 = vmatprep.subr.mxu0 %v6378
  %6422 = vmatpush1.msra.mxu0 %v6377
  %6423 = vmatprep.subr.mxu0 %v6362
  %6424 = vmatpush1.msra.mxu0 %v6361
  %6425 = vmatprep.subr.mxu0 0.0
  %6426 = vmatpush2.msra.mxu0 0.0
  %6427 = vmatprep.subr.mxu0 0.0
  %6428 = vmatpush2.msra.mxu0 0.0
  %6429 = vmatprep.subr.mxu0 0.0
  %6430 = vmatpush2.msra.mxu0 0.0
  %6431 = vmatprep.subr.mxu0 0.0
  %6432 = vmatpush2.msra.mxu0 0.0
  %6433 = vmatprep.subr.mxu0 0.0
  %6434 = vmatpush2.msra.mxu0 0.0
  %6435 = vmatprep.subr.mxu0 0.0
  %6436 = vmatpush2.msra.mxu0 0.0
  %6437 = vmatprep.subr.mxu0 0.0
  %6438 = vmatpush2.msra.mxu0 0.0
  %6439 = vmatprep.subr.mxu0 0.0
  %6440 = vmatpush2.msra.mxu0 0.0
  %6441 = vmatprep.subr.mxu0 0.0
  %6442 = vmatpush2.msra.mxu0 0.0
  %6443 = vmatprep.subr.mxu0 0.0
  %6444 = vmatpush2.msra.mxu0 0.0
  %6445 = vmatprep.subr.mxu0 0.0
  %6446 = vmatpush2.msra.mxu0 0.0
  %6447 = vmatprep.subr.mxu0 0.0
  %6448 = vmatpush2.msra.mxu0 0.0
  %6449 = vmatprep.subr.mxu0 0.0
  %6450 = vmatpush2.msra.mxu0 0.0
  %6451 = vmatprep.subr.mxu0 0.0
  %6452 = vmatpush2.msra.mxu0 0.0
  %6453 = vmatprep.subr.mxu0 0.0
  %6454 = vmatpush2.msra.mxu0 0.0
  %6455 = vmatprep.subr.mxu0 0.0
  %6456 = vmatpush2.msra.mxu0 0.0
  %6457 = vmatprep.mubr.f32.mxu0 0.0
  %6458 = vmatmul.mubr.f32.gmra.mxu0 %v1882
  %v6459 = vpop.f32.mrf.mxu0
  %v6460 = vadd.f32 0.0, %v6459
  %v6461 = vpop.f32.mrf.mxu0
  %v6462 = vadd.f32 0.0, %v6461
  %6463 = vmatprep.mubr.f32.mxu0 0.0
  %6464 = vmatmul.mubr.f32.gmra.mxu0 %v1885
  %v6465 = vpop.f32.mrf.mxu0
  %v6466 = vadd.f32 0.0, %v6465
  %v6467 = vpop.f32.mrf.mxu0
  %v6468 = vadd.f32 0.0, %v6467
  %6469 = vdwg.mxu0
  %6470 = vmatprep.subr.mxu0 0.0
  %6471 = vmatpush1.msra.mxu0 0.0
  %6472 = vmatprep.subr.mxu0 0.0
  %6473 = vmatpush1.msra.mxu0 0.0
  %6474 = vmatprep.subr.mxu0 0.0
  %6475 = vmatpush1.msra.mxu0 0.0
  %6476 = vmatprep.subr.mxu0 0.0
  %6477 = vmatpush1.msra.mxu0 0.0
  %6478 = vmatprep.subr.mxu0 0.0
  %6479 = vmatpush1.msra.mxu0 0.0
  %6480 = vmatprep.subr.mxu0 0.0
  %6481 = vmatpush1.msra.mxu0 0.0
  %6482 = vmatprep.subr.mxu0 0.0
  %6483 = vmatpush1.msra.mxu0 0.0
  %6484 = vmatprep.subr.mxu0 0.0
  %6485 = vmatpush1.msra.mxu0 0.0
  %6486 = vmatprep.subr.mxu0 0.0
  %6487 = vmatpush1.msra.mxu0 0.0
  %6488 = vmatprep.subr.mxu0 0.0
  %6489 = vmatpush1.msra.mxu0 0.0
  %6490 = vmatprep.subr.mxu0 0.0
  %6491 = vmatpush1.msra.mxu0 0.0
  %6492 = vmatprep.subr.mxu0 0.0
  %6493 = vmatpush1.msra.mxu0 0.0
  %6494 = vmatprep.subr.mxu0 0.0
  %6495 = vmatpush1.msra.mxu0 0.0
  %6496 = vmatprep.subr.mxu0 0.0
  %6497 = vmatpush1.msra.mxu0 0.0
  %6498 = vmatprep.subr.mxu0 %v6380
  %6499 = vmatpush1.msra.mxu0 %v6379
  %6500 = vmatprep.subr.mxu0 %v6364
  %6501 = vmatpush1.msra.mxu0 %v6363
  %6502 = vmatprep.subr.mxu0 0.0
  %6503 = vmatpush2.msra.mxu0 0.0
  %6504 = vmatprep.subr.mxu0 0.0
  %6505 = vmatpush2.msra.mxu0 0.0
  %6506 = vmatprep.subr.mxu0 0.0
  %6507 = vmatpush2.msra.mxu0 0.0
  %6508 = vmatprep.subr.mxu0 0.0
  %6509 = vmatpush2.msra.mxu0 0.0
  %6510 = vmatprep.subr.mxu0 0.0
  %6511 = vmatpush2.msra.mxu0 0.0
  %6512 = vmatprep.subr.mxu0 0.0
  %6513 = vmatpush2.msra.mxu0 0.0
  %6514 = vmatprep.subr.mxu0 0.0
  %6515 = vmatpush2.msra.mxu0 0.0
  %6516 = vmatprep.subr.mxu0 0.0
  %6517 = vmatpush2.msra.mxu0 0.0
  %6518 = vmatprep.subr.mxu0 0.0
  %6519 = vmatpush2.msra.mxu0 0.0
  %6520 = vmatprep.subr.mxu0 0.0
  %6521 = vmatpush2.msra.mxu0 0.0
  %6522 = vmatprep.subr.mxu0 0.0
  %6523 = vmatpush2.msra.mxu0 0.0
  %6524 = vmatprep.subr.mxu0 0.0
  %6525 = vmatpush2.msra.mxu0 0.0
  %6526 = vmatprep.subr.mxu0 0.0
  %6527 = vmatpush2.msra.mxu0 0.0
  %6528 = vmatprep.subr.mxu0 0.0
  %6529 = vmatpush2.msra.mxu0 0.0
  %6530 = vmatprep.subr.mxu0 0.0
  %6531 = vmatpush2.msra.mxu0 0.0
  %6532 = vmatprep.subr.mxu0 0.0
  %6533 = vmatpush2.msra.mxu0 0.0
  %6534 = vmatprep.mubr.f32.mxu0 0.0
  %6535 = vmatmul.mubr.f32.gmra.mxu0 %v1882
  %v6536 = vpop.f32.mrf.mxu0
  %v6537 = vadd.f32 0.0, %v6536
  %v6538 = vpop.f32.mrf.mxu0
  %v6539 = vadd.f32 0.0, %v6538
  %6540 = vmatprep.mubr.f32.mxu0 0.0
  %6541 = vmatmul.mubr.f32.gmra.mxu0 %v1885
  %v6542 = vpop.f32.mrf.mxu0
  %v6543 = vadd.f32 0.0, %v6542
  %v6544 = vpop.f32.mrf.mxu0
  %v6545 = vadd.f32 0.0, %v6544
  %6546 = vdwg.mxu0
  %6547 = vmatprep.subr.mxu0 0.0
  %6548 = vmatpush1.msra.mxu0 0.0
  %6549 = vmatprep.subr.mxu0 0.0
  %6550 = vmatpush1.msra.mxu0 0.0
  %6551 = vmatprep.subr.mxu0 0.0
  %6552 = vmatpush1.msra.mxu0 0.0
  %6553 = vmatprep.subr.mxu0 0.0
  %6554 = vmatpush1.msra.mxu0 0.0
  %6555 = vmatprep.subr.mxu0 0.0
  %6556 = vmatpush1.msra.mxu0 0.0
  %6557 = vmatprep.subr.mxu0 0.0
  %6558 = vmatpush1.msra.mxu0 0.0
  %6559 = vmatprep.subr.mxu0 0.0
  %6560 = vmatpush1.msra.mxu0 0.0
  %6561 = vmatprep.subr.mxu0 0.0
  %6562 = vmatpush1.msra.mxu0 0.0
  %6563 = vmatprep.subr.mxu0 0.0
  %6564 = vmatpush1.msra.mxu0 0.0
  %6565 = vmatprep.subr.mxu0 0.0
  %6566 = vmatpush1.msra.mxu0 0.0
  %6567 = vmatprep.subr.mxu0 0.0
  %6568 = vmatpush1.msra.mxu0 0.0
  %6569 = vmatprep.subr.mxu0 0.0
  %6570 = vmatpush1.msra.mxu0 0.0
  %6571 = vmatprep.subr.mxu0 0.0
  %6572 = vmatpush1.msra.mxu0 0.0
  %6573 = vmatprep.subr.mxu0 0.0
  %6574 = vmatpush1.msra.mxu0 0.0
  %6575 = vmatprep.subr.mxu0 %v6382
  %6576 = vmatpush1.msra.mxu0 %v6381
  %6577 = vmatprep.subr.mxu0 %v6366
  %6578 = vmatpush1.msra.mxu0 %v6365
  %6579 = vmatprep.subr.mxu0 0.0
  %6580 = vmatpush2.msra.mxu0 0.0
  %6581 = vmatprep.subr.mxu0 0.0
  %6582 = vmatpush2.msra.mxu0 0.0
  %6583 = vmatprep.subr.mxu0 0.0
  %6584 = vmatpush2.msra.mxu0 0.0
  %6585 = vmatprep.subr.mxu0 0.0
  %6586 = vmatpush2.msra.mxu0 0.0
  %6587 = vmatprep.subr.mxu0 0.0
  %6588 = vmatpush2.msra.mxu0 0.0
  %6589 = vmatprep.subr.mxu0 0.0
  %6590 = vmatpush2.msra.mxu0 0.0
  %6591 = vmatprep.subr.mxu0 0.0
  %6592 = vmatpush2.msra.mxu0 0.0
  %6593 = vmatprep.subr.mxu0 0.0
  %6594 = vmatpush2.msra.mxu0 0.0
  %6595 = vmatprep.subr.mxu0 0.0
  %6596 = vmatpush2.msra.mxu0 0.0
  %6597 = vmatprep.subr.mxu0 0.0
  %6598 = vmatpush2.msra.mxu0 0.0
  %6599 = vmatprep.subr.mxu0 0.0
  %6600 = vmatpush2.msra.mxu0 0.0
  %6601 = vmatprep.subr.mxu0 0.0
  %6602 = vmatpush2.msra.mxu0 0.0
  %6603 = vmatprep.subr.mxu0 0.0
  %6604 = vmatpush2.msra.mxu0 0.0
  %6605 = vmatprep.subr.mxu0 0.0
  %6606 = vmatpush2.msra.mxu0 0.0
  %6607 = vmatprep.subr.mxu0 0.0
  %6608 = vmatpush2.msra.mxu0 0.0
  %6609 = vmatprep.subr.mxu0 0.0
  %6610 = vmatpush2.msra.mxu0 0.0
  %6611 = vmatprep.mubr.f32.mxu0 0.0
  %6612 = vmatmul.mubr.f32.gmra.mxu0 %v1882
  %v6613 = vpop.f32.mrf.mxu0
  %v6614 = vadd.f32 0.0, %v6613
  %v6615 = vpop.f32.mrf.mxu0
  %v6616 = vadd.f32 0.0, %v6615
  %6617 = vmatprep.mubr.f32.mxu0 0.0
  %6618 = vmatmul.mubr.f32.gmra.mxu0 %v1885
  %v6619 = vpop.f32.mrf.mxu0
  %v6620 = vadd.f32 0.0, %v6619
  %v6621 = vpop.f32.mrf.mxu0
  %v6622 = vadd.f32 0.0, %v6621
  %6623 = vdwg.mxu0
  %6624 = vmatprep.subr.mxu0 0.0
  %6625 = vmatpush1.msra.mxu0 0.0
  %6626 = vmatprep.subr.mxu0 0.0
  %6627 = vmatpush1.msra.mxu0 0.0
  %6628 = vmatprep.subr.mxu0 0.0
  %6629 = vmatpush1.msra.mxu0 0.0
  %6630 = vmatprep.subr.mxu0 0.0
  %6631 = vmatpush1.msra.mxu0 0.0
  %6632 = vmatprep.subr.mxu0 0.0
  %6633 = vmatpush1.msra.mxu0 0.0
  %6634 = vmatprep.subr.mxu0 0.0
  %6635 = vmatpush1.msra.mxu0 0.0
  %6636 = vmatprep.subr.mxu0 0.0
  %6637 = vmatpush1.msra.mxu0 0.0
  %6638 = vmatprep.subr.mxu0 0.0
  %6639 = vmatpush1.msra.mxu0 0.0
  %6640 = vmatprep.subr.mxu0 0.0
  %6641 = vmatpush1.msra.mxu0 0.0
  %6642 = vmatprep.subr.mxu0 0.0
  %6643 = vmatpush1.msra.mxu0 0.0
  %6644 = vmatprep.subr.mxu0 0.0
  %6645 = vmatpush1.msra.mxu0 0.0
  %6646 = vmatprep.subr.mxu0 0.0
  %6647 = vmatpush1.msra.mxu0 0.0
  %6648 = vmatprep.subr.mxu0 0.0
  %6649 = vmatpush1.msra.mxu0 0.0
  %6650 = vmatprep.subr.mxu0 0.0
  %6651 = vmatpush1.msra.mxu0 0.0
  %6652 = vmatprep.subr.mxu0 %v6384
  %6653 = vmatpush1.msra.mxu0 %v6383
  %6654 = vmatprep.subr.mxu0 %v6368
  %6655 = vmatpush1.msra.mxu0 %v6367
  %6656 = vmatprep.subr.mxu0 0.0
  %6657 = vmatpush2.msra.mxu0 0.0
  %6658 = vmatprep.subr.mxu0 0.0
  %6659 = vmatpush2.msra.mxu0 0.0
  %6660 = vmatprep.subr.mxu0 0.0
  %6661 = vmatpush2.msra.mxu0 0.0
  %6662 = vmatprep.subr.mxu0 0.0
  %6663 = vmatpush2.msra.mxu0 0.0
  %6664 = vmatprep.subr.mxu0 0.0
  %6665 = vmatpush2.msra.mxu0 0.0
  %6666 = vmatprep.subr.mxu0 0.0
  %6667 = vmatpush2.msra.mxu0 0.0
  %6668 = vmatprep.subr.mxu0 0.0
  %6669 = vmatpush2.msra.mxu0 0.0
  %6670 = vmatprep.subr.mxu0 0.0
  %6671 = vmatpush2.msra.mxu0 0.0
  %6672 = vmatprep.subr.mxu0 0.0
  %6673 = vmatpush2.msra.mxu0 0.0
  %6674 = vmatprep.subr.mxu0 0.0
  %6675 = vmatpush2.msra.mxu0 0.0
  %6676 = vmatprep.subr.mxu0 0.0
  %6677 = vmatpush2.msra.mxu0 0.0
  %6678 = vmatprep.subr.mxu0 0.0
  %6679 = vmatpush2.msra.mxu0 0.0
  %6680 = vmatprep.subr.mxu0 0.0
  %6681 = vmatpush2.msra.mxu0 0.0
  %6682 = vmatprep.subr.mxu0 0.0
  %6683 = vmatpush2.msra.mxu0 0.0
  %6684 = vmatprep.subr.mxu0 0.0
  %6685 = vmatpush2.msra.mxu0 0.0
  %6686 = vmatprep.subr.mxu0 0.0
  %6687 = vmatpush2.msra.mxu0 0.0
  %6688 = vmatprep.mubr.f32.mxu0 0.0
  %6689 = vmatmul.mubr.f32.gmra.mxu0 %v1882
  %v6690 = vpop.f32.mrf.mxu0
  %v6691 = vadd.f32 0.0, %v6690
  %v6692 = vpop.f32.mrf.mxu0
  %v6693 = vadd.f32 0.0, %v6692
  %6694 = vmatprep.mubr.f32.mxu0 0.0
  %6695 = vmatmul.mubr.f32.gmra.mxu0 %v1885
  %v6696 = vpop.f32.mrf.mxu0
  %v6697 = vadd.f32 0.0, %v6696
  %v6698 = vpop.f32.mrf.mxu0
  %v6699 = vadd.f32 0.0, %v6698
  %6700 = vdwg.mxu0
  %6701 = vmatprep.subr.mxu0 0.0
  %6702 = vmatpush1.msra.mxu0 0.0
  %6703 = vmatprep.subr.mxu0 0.0
  %6704 = vmatpush1.msra.mxu0 0.0
  %6705 = vmatprep.subr.mxu0 0.0
  %6706 = vmatpush1.msra.mxu0 0.0
  %6707 = vmatprep.subr.mxu0 0.0
  %6708 = vmatpush1.msra.mxu0 0.0
  %6709 = vmatprep.subr.mxu0 0.0
  %6710 = vmatpush1.msra.mxu0 0.0
  %6711 = vmatprep.subr.mxu0 0.0
  %6712 = vmatpush1.msra.mxu0 0.0
  %6713 = vmatprep.subr.mxu0 0.0
  %6714 = vmatpush1.msra.mxu0 0.0
  %6715 = vmatprep.subr.mxu0 0.0
  %6716 = vmatpush1.msra.mxu0 0.0
  %6717 = vmatprep.subr.mxu0 0.0
  %6718 = vmatpush1.msra.mxu0 0.0
  %6719 = vmatprep.subr.mxu0 0.0
  %6720 = vmatpush1.msra.mxu0 0.0
  %6721 = vmatprep.subr.mxu0 0.0
  %6722 = vmatpush1.msra.mxu0 0.0
  %6723 = vmatprep.subr.mxu0 0.0
  %6724 = vmatpush1.msra.mxu0 0.0
  %6725 = vmatprep.subr.mxu0 0.0
  %6726 = vmatpush1.msra.mxu0 0.0
  %6727 = vmatprep.subr.mxu0 0.0
  %6728 = vmatpush1.msra.mxu0 0.0
  %6729 = vmatprep.subr.mxu0 %v6386
  %6730 = vmatpush1.msra.mxu0 %v6385
  %6731 = vmatprep.subr.mxu0 %v6370
  %6732 = vmatpush1.msra.mxu0 %v6369
  %6733 = vmatprep.subr.mxu0 0.0
  %6734 = vmatpush2.msra.mxu0 0.0
  %6735 = vmatprep.subr.mxu0 0.0
  %6736 = vmatpush2.msra.mxu0 0.0
  %6737 = vmatprep.subr.mxu0 0.0
  %6738 = vmatpush2.msra.mxu0 0.0
  %6739 = vmatprep.subr.mxu0 0.0
  %6740 = vmatpush2.msra.mxu0 0.0
  %6741 = vmatprep.subr.mxu0 0.0
  %6742 = vmatpush2.msra.mxu0 0.0
  %6743 = vmatprep.subr.mxu0 0.0
  %6744 = vmatpush2.msra.mxu0 0.0
  %6745 = vmatprep.subr.mxu0 0.0
  %6746 = vmatpush2.msra.mxu0 0.0
  %6747 = vmatprep.subr.mxu0 0.0
  %6748 = vmatpush2.msra.mxu0 0.0
  %6749 = vmatprep.subr.mxu0 0.0
  %6750 = vmatpush2.msra.mxu0 0.0
  %6751 = vmatprep.subr.mxu0 0.0
  %6752 = vmatpush2.msra.mxu0 0.0
  %6753 = vmatprep.subr.mxu0 0.0
  %6754 = vmatpush2.msra.mxu0 0.0
  %6755 = vmatprep.subr.mxu0 0.0
  %6756 = vmatpush2.msra.mxu0 0.0
  %6757 = vmatprep.subr.mxu0 0.0
  %6758 = vmatpush2.msra.mxu0 0.0
  %6759 = vmatprep.subr.mxu0 0.0
  %6760 = vmatpush2.msra.mxu0 0.0
  %6761 = vmatprep.subr.mxu0 0.0
  %6762 = vmatpush2.msra.mxu0 0.0
  %6763 = vmatprep.subr.mxu0 0.0
  %6764 = vmatpush2.msra.mxu0 0.0
  %6765 = vmatprep.mubr.f32.mxu0 0.0
  %6766 = vmatmul.mubr.f32.gmra.mxu0 %v1882
  %v6767 = vpop.f32.mrf.mxu0
  %v6768 = vadd.f32 0.0, %v6767
  %v6769 = vpop.f32.mrf.mxu0
  %v6770 = vadd.f32 0.0, %v6769
  %6771 = vmatprep.mubr.f32.mxu0 0.0
  %6772 = vmatmul.mubr.f32.gmra.mxu0 %v1885
  %v6773 = vpop.f32.mrf.mxu0
  %v6774 = vadd.f32 0.0, %v6773
  %v6775 = vpop.f32.mrf.mxu0
  %v6776 = vadd.f32 0.0, %v6775
  %6777 = vdwg.mxu0
  %6778 = vmatprep.subr.mxu0 0.0
  %6779 = vmatpush1.msra.mxu0 0.0
  %6780 = vmatprep.subr.mxu0 0.0
  %6781 = vmatpush1.msra.mxu0 0.0
  %6782 = vmatprep.subr.mxu0 0.0
  %6783 = vmatpush1.msra.mxu0 0.0
  %6784 = vmatprep.subr.mxu0 0.0
  %6785 = vmatpush1.msra.mxu0 0.0
  %6786 = vmatprep.subr.mxu0 0.0
  %6787 = vmatpush1.msra.mxu0 0.0
  %6788 = vmatprep.subr.mxu0 0.0
  %6789 = vmatpush1.msra.mxu0 0.0
  %6790 = vmatprep.subr.mxu0 0.0
  %6791 = vmatpush1.msra.mxu0 0.0
  %6792 = vmatprep.subr.mxu0 0.0
  %6793 = vmatpush1.msra.mxu0 0.0
  %6794 = vmatprep.subr.mxu0 0.0
  %6795 = vmatpush1.msra.mxu0 0.0
  %6796 = vmatprep.subr.mxu0 0.0
  %6797 = vmatpush1.msra.mxu0 0.0
  %6798 = vmatprep.subr.mxu0 0.0
  %6799 = vmatpush1.msra.mxu0 0.0
  %6800 = vmatprep.subr.mxu0 0.0
  %6801 = vmatpush1.msra.mxu0 0.0
  %6802 = vmatprep.subr.mxu0 0.0
  %6803 = vmatpush1.msra.mxu0 0.0
  %6804 = vmatprep.subr.mxu0 0.0
  %6805 = vmatpush1.msra.mxu0 0.0
  %6806 = vmatprep.subr.mxu0 %v6388
  %6807 = vmatpush1.msra.mxu0 %v6387
  %6808 = vmatprep.subr.mxu0 %v6372
  %6809 = vmatpush1.msra.mxu0 %v6371
  %6810 = vmatprep.subr.mxu0 0.0
  %6811 = vmatpush2.msra.mxu0 0.0
  %6812 = vmatprep.subr.mxu0 0.0
  %6813 = vmatpush2.msra.mxu0 0.0
  %6814 = vmatprep.subr.mxu0 0.0
  %6815 = vmatpush2.msra.mxu0 0.0
  %6816 = vmatprep.subr.mxu0 0.0
  %6817 = vmatpush2.msra.mxu0 0.0
  %6818 = vmatprep.subr.mxu0 0.0
  %6819 = vmatpush2.msra.mxu0 0.0
  %6820 = vmatprep.subr.mxu0 0.0
  %6821 = vmatpush2.msra.mxu0 0.0
  %6822 = vmatprep.subr.mxu0 0.0
  %6823 = vmatpush2.msra.mxu0 0.0
  %6824 = vmatprep.subr.mxu0 0.0
  %6825 = vmatpush2.msra.mxu0 0.0
  %6826 = vmatprep.subr.mxu0 0.0
  %6827 = vmatpush2.msra.mxu0 0.0
  %6828 = vmatprep.subr.mxu0 0.0
  %6829 = vmatpush2.msra.mxu0 0.0
  %6830 = vmatprep.subr.mxu0 0.0
  %6831 = vmatpush2.msra.mxu0 0.0
  %6832 = vmatprep.subr.mxu0 0.0
  %6833 = vmatpush2.msra.mxu0 0.0
  %6834 = vmatprep.subr.mxu0 0.0
  %6835 = vmatpush2.msra.mxu0 0.0
  %6836 = vmatprep.subr.mxu0 0.0
  %6837 = vmatpush2.msra.mxu0 0.0
  %6838 = vmatprep.subr.mxu0 0.0
  %6839 = vmatpush2.msra.mxu0 0.0
  %6840 = vmatprep.subr.mxu0 0.0
  %6841 = vmatpush2.msra.mxu0 0.0
  %6842 = vmatprep.mubr.f32.mxu0 0.0
  %6843 = vmatmul.mubr.f32.gmra.mxu0 %v1882
  %v6844 = vpop.f32.mrf.mxu0
  %v6845 = vadd.f32 0.0, %v6844
  %v6846 = vpop.f32.mrf.mxu0
  %v6847 = vadd.f32 0.0, %v6846
  %6848 = vmatprep.mubr.f32.mxu0 0.0
  %6849 = vmatmul.mubr.f32.gmra.mxu0 %v1885
  %v6850 = vpop.f32.mrf.mxu0
  %v6851 = vadd.f32 0.0, %v6850
  %v6852 = vpop.f32.mrf.mxu0
  %v6853 = vadd.f32 0.0, %v6852
  %6854 = vdwg.mxu0
  %6855 = vmatprep.subr.mxu0 0.0
  %6856 = vmatpush1.msra.mxu0 0.0
  %6857 = vmatprep.subr.mxu0 0.0
  %6858 = vmatpush1.msra.mxu0 0.0
  %6859 = vmatprep.subr.mxu0 0.0
  %6860 = vmatpush1.msra.mxu0 0.0
  %6861 = vmatprep.subr.mxu0 0.0
  %6862 = vmatpush1.msra.mxu0 0.0
  %6863 = vmatprep.subr.mxu0 0.0
  %6864 = vmatpush1.msra.mxu0 0.0
  %6865 = vmatprep.subr.mxu0 0.0
  %6866 = vmatpush1.msra.mxu0 0.0
  %6867 = vmatprep.subr.mxu0 0.0
  %6868 = vmatpush1.msra.mxu0 0.0
  %6869 = vmatprep.subr.mxu0 0.0
  %6870 = vmatpush1.msra.mxu0 0.0
  %6871 = vmatprep.subr.mxu0 0.0
  %6872 = vmatpush1.msra.mxu0 0.0
  %6873 = vmatprep.subr.mxu0 0.0
  %6874 = vmatpush1.msra.mxu0 0.0
  %6875 = vmatprep.subr.mxu0 0.0
  %6876 = vmatpush1.msra.mxu0 0.0
  %6877 = vmatprep.subr.mxu0 0.0
  %6878 = vmatpush1.msra.mxu0 0.0
  %6879 = vmatprep.subr.mxu0 0.0
  %6880 = vmatpush1.msra.mxu0 0.0
  %6881 = vmatprep.subr.mxu0 0.0
  %6882 = vmatpush1.msra.mxu0 0.0
  %6883 = vmatprep.subr.mxu0 %v6390
  %6884 = vmatpush1.msra.mxu0 %v6389
  %6885 = vmatprep.subr.mxu0 %v6374
  %6886 = vmatpush1.msra.mxu0 %v6373
  %6887 = vmatprep.subr.mxu0 0.0
  %6888 = vmatpush2.msra.mxu0 0.0
  %6889 = vmatprep.subr.mxu0 0.0
  %6890 = vmatpush2.msra.mxu0 0.0
  %6891 = vmatprep.subr.mxu0 0.0
  %6892 = vmatpush2.msra.mxu0 0.0
  %6893 = vmatprep.subr.mxu0 0.0
  %6894 = vmatpush2.msra.mxu0 0.0
  %6895 = vmatprep.subr.mxu0 0.0
  %6896 = vmatpush2.msra.mxu0 0.0
  %6897 = vmatprep.subr.mxu0 0.0
  %6898 = vmatpush2.msra.mxu0 0.0
  %6899 = vmatprep.subr.mxu0 0.0
  %6900 = vmatpush2.msra.mxu0 0.0
  %6901 = vmatprep.subr.mxu0 0.0
  %6902 = vmatpush2.msra.mxu0 0.0
  %6903 = vmatprep.subr.mxu0 0.0
  %6904 = vmatpush2.msra.mxu0 0.0
  %6905 = vmatprep.subr.mxu0 0.0
  %6906 = vmatpush2.msra.mxu0 0.0
  %6907 = vmatprep.subr.mxu0 0.0
  %6908 = vmatpush2.msra.mxu0 0.0
  %6909 = vmatprep.subr.mxu0 0.0
  %6910 = vmatpush2.msra.mxu0 0.0
  %6911 = vmatprep.subr.mxu0 0.0
  %6912 = vmatpush2.msra.mxu0 0.0
  %6913 = vmatprep.subr.mxu0 0.0
  %6914 = vmatpush2.msra.mxu0 0.0
  %6915 = vmatprep.subr.mxu0 0.0
  %6916 = vmatpush2.msra.mxu0 0.0
  %6917 = vmatprep.subr.mxu0 0.0
  %6918 = vmatpush2.msra.mxu0 0.0
  %6919 = vmatprep.mubr.f32.mxu0 0.0
  %6920 = vmatmul.mubr.f32.gmra.mxu0 %v1882
  %v6921 = vpop.f32.mrf.mxu0
  %v6922 = vadd.f32 0.0, %v6921
  %v6923 = vpop.f32.mrf.mxu0
  %v6924 = vadd.f32 0.0, %v6923
  %6925 = vmatprep.mubr.f32.mxu0 0.0
  %6926 = vmatmul.mubr.f32.gmra.mxu0 %v1885
  %v6927 = vpop.f32.mrf.mxu0
  %v6928 = vadd.f32 0.0, %v6927
  %v6929 = vpop.f32.mrf.mxu0
  %v6930 = vadd.f32 0.0, %v6929
  %6931 = vdwg.mxu0
  %6932 = vmatprep.subr.mxu0 0.0
  %6933 = vmatpush1.msra.mxu0 0.0
  %6934 = vmatprep.subr.mxu0 0.0
  %6935 = vmatpush1.msra.mxu0 0.0
  %6936 = vmatprep.subr.mxu0 0.0
  %6937 = vmatpush1.msra.mxu0 0.0
  %6938 = vmatprep.subr.mxu0 0.0
  %6939 = vmatpush1.msra.mxu0 0.0
  %6940 = vmatprep.subr.mxu0 0.0
  %6941 = vmatpush1.msra.mxu0 0.0
  %6942 = vmatprep.subr.mxu0 0.0
  %6943 = vmatpush1.msra.mxu0 0.0
  %6944 = vmatprep.subr.mxu0 0.0
  %6945 = vmatpush1.msra.mxu0 0.0
  %6946 = vmatprep.subr.mxu0 0.0
  %6947 = vmatpush1.msra.mxu0 0.0
  %6948 = vmatprep.subr.mxu0 0.0
  %6949 = vmatpush1.msra.mxu0 0.0
  %6950 = vmatprep.subr.mxu0 0.0
  %6951 = vmatpush1.msra.mxu0 0.0
  %6952 = vmatprep.subr.mxu0 0.0
  %6953 = vmatpush1.msra.mxu0 0.0
  %6954 = vmatprep.subr.mxu0 0.0
  %6955 = vmatpush1.msra.mxu0 0.0
  %6956 = vmatprep.subr.mxu0 0.0
  %6957 = vmatpush1.msra.mxu0 0.0
  %6958 = vmatprep.subr.mxu0 0.0
  %6959 = vmatpush1.msra.mxu0 0.0
  %6960 = vmatprep.subr.mxu0 %v6392
  %6961 = vmatpush1.msra.mxu0 %v6391
  %6962 = vmatprep.subr.mxu0 %v6376
  %6963 = vmatpush1.msra.mxu0 %v6375
  %6964 = vmatprep.subr.mxu0 0.0
  %6965 = vmatpush2.msra.mxu0 0.0
  %6966 = vmatprep.subr.mxu0 0.0
  %6967 = vmatpush2.msra.mxu0 0.0
  %6968 = vmatprep.subr.mxu0 0.0
  %6969 = vmatpush2.msra.mxu0 0.0
  %6970 = vmatprep.subr.mxu0 0.0
  %6971 = vmatpush2.msra.mxu0 0.0
  %6972 = vmatprep.subr.mxu0 0.0
  %6973 = vmatpush2.msra.mxu0 0.0
  %6974 = vmatprep.subr.mxu0 0.0
  %6975 = vmatpush2.msra.mxu0 0.0
  %6976 = vmatprep.subr.mxu0 0.0
  %6977 = vmatpush2.msra.mxu0 0.0
  %6978 = vmatprep.subr.mxu0 0.0
  %6979 = vmatpush2.msra.mxu0 0.0
  %6980 = vmatprep.subr.mxu0 0.0
  %6981 = vmatpush2.msra.mxu0 0.0
  %6982 = vmatprep.subr.mxu0 0.0
  %6983 = vmatpush2.msra.mxu0 0.0
  %6984 = vmatprep.subr.mxu0 0.0
  %6985 = vmatpush2.msra.mxu0 0.0
  %6986 = vmatprep.subr.mxu0 0.0
  %6987 = vmatpush2.msra.mxu0 0.0
  %6988 = vmatprep.subr.mxu0 0.0
  %6989 = vmatpush2.msra.mxu0 0.0
  %6990 = vmatprep.subr.mxu0 0.0
  %6991 = vmatpush2.msra.mxu0 0.0
  %6992 = vmatprep.subr.mxu0 0.0
  %6993 = vmatpush2.msra.mxu0 0.0
  %6994 = vmatprep.subr.mxu0 0.0
  %6995 = vmatpush2.msra.mxu0 0.0
  %6996 = vmatprep.mubr.f32.mxu0 0.0
  %6997 = vmatmul.mubr.f32.gmra.mxu0 %v1882
  %v6998 = vpop.f32.mrf.mxu0
  %v6999 = vadd.f32 0.0, %v6998
  %v7000 = vpop.f32.mrf.mxu0
  %v7001 = vadd.f32 0.0, %v7000
  %7002 = vmatprep.mubr.f32.mxu0 0.0
  %7003 = vmatmul.mubr.f32.gmra.mxu0 %v1885
  %v7004 = vpop.f32.mrf.mxu0
  %v7005 = vadd.f32 0.0, %v7004
  %v7006 = vpop.f32.mrf.mxu0
  %v7007 = vadd.f32 0.0, %v7006
  %7008 = vdwg.mxu0
  %v7009 = vmax.f32 %v6460, 0.0
  %v7010 = vmax.f32 %v6462, 0.0
  %v7011 = vmax.f32 %v6537, 0.0
  %v7012 = vmax.f32 %v6539, 0.0
  %v7013 = vmax.f32 %v6614, 0.0
  %v7014 = vmax.f32 %v6616, 0.0
  %v7015 = vmax.f32 %v6691, 0.0
  %v7016 = vmax.f32 %v6693, 0.0
  %v7017 = vmax.f32 %v6768, 0.0
  %v7018 = vmax.f32 %v6770, 0.0
  %v7019 = vmax.f32 %v6845, 0.0
  %v7020 = vmax.f32 %v6847, 0.0
  %v7021 = vmax.f32 %v6922, 0.0
  %v7022 = vmax.f32 %v6924, 0.0
  %v7023 = vmax.f32 %v6999, 0.0
  %v7024 = vmax.f32 %v7001, 0.0
  %v7025 = vmax.f32 %v6466, 0.0
  %v7026 = vmax.f32 %v6468, 0.0
  %v7027 = vmax.f32 %v6543, 0.0
  %v7028 = vmax.f32 %v6545, 0.0
  %v7029 = vmax.f32 %v6620, 0.0
  %v7030 = vmax.f32 %v6622, 0.0
  %v7031 = vmax.f32 %v6697, 0.0
  %v7032 = vmax.f32 %v6699, 0.0
  %v7033 = vmax.f32 %v6774, 0.0
  %v7034 = vmax.f32 %v6776, 0.0
  %v7035 = vmax.f32 %v6851, 0.0
  %v7036 = vmax.f32 %v6853, 0.0
  %v7037 = vmax.f32 %v6928, 0.0
  %v7038 = vmax.f32 %v6930, 0.0
  %v7039 = vmax.f32 %v7005, 0.0
  %v7040 = vmax.f32 %v7007, 0.0
  %7041 = vmatprep.subr.mxu0 0.0
  %7042 = vmatpush1.msra.mxu0 0.0
  %7043 = vmatprep.subr.mxu0 0.0
  %7044 = vmatpush1.msra.mxu0 0.0
  %7045 = vmatprep.subr.mxu0 0.0
  %7046 = vmatpush1.msra.mxu0 0.0
  %7047 = vmatprep.subr.mxu0 0.0
  %7048 = vmatpush1.msra.mxu0 0.0
  %7049 = vmatprep.subr.mxu0 0.0
  %7050 = vmatpush1.msra.mxu0 0.0
  %7051 = vmatprep.subr.mxu0 0.0
  %7052 = vmatpush1.msra.mxu0 0.0
  %7053 = vmatprep.subr.mxu0 0.0
  %7054 = vmatpush1.msra.mxu0 0.0
  %7055 = vmatprep.subr.mxu0 0.0
  %7056 = vmatpush1.msra.mxu0 0.0
  %7057 = vmatprep.subr.mxu0 0.0
  %7058 = vmatpush1.msra.mxu0 0.0
  %7059 = vmatprep.subr.mxu0 0.0
  %7060 = vmatpush1.msra.mxu0 0.0
  %7061 = vmatprep.subr.mxu0 0.0
  %7062 = vmatpush1.msra.mxu0 0.0
  %7063 = vmatprep.subr.mxu0 0.0
  %7064 = vmatpush1.msra.mxu0 0.0
  %7065 = vmatprep.subr.mxu0 0.0
  %7066 = vmatpush1.msra.mxu0 0.0
  %7067 = vmatprep.subr.mxu0 0.0
  %7068 = vmatpush1.msra.mxu0 0.0
  %7069 = vmatprep.subr.mxu0 %v7026
  %7070 = vmatpush1.msra.mxu0 %v7025
  %7071 = vmatprep.subr.mxu0 %v7010
  %7072 = vmatpush1.msra.mxu0 %v7009
  %7073 = vmatprep.subr.mxu0 0.0
  %7074 = vmatpush2.msra.mxu0 0.0
  %7075 = vmatprep.subr.mxu0 0.0
  %7076 = vmatpush2.msra.mxu0 0.0
  %7077 = vmatprep.subr.mxu0 0.0
  %7078 = vmatpush2.msra.mxu0 0.0
  %7079 = vmatprep.subr.mxu0 0.0
  %7080 = vmatpush2.msra.mxu0 0.0
  %7081 = vmatprep.subr.mxu0 0.0
  %7082 = vmatpush2.msra.mxu0 0.0
  %7083 = vmatprep.subr.mxu0 0.0
  %7084 = vmatpush2.msra.mxu0 0.0
  %7085 = vmatprep.subr.mxu0 0.0
  %7086 = vmatpush2.msra.mxu0 0.0
  %7087 = vmatprep.subr.mxu0 0.0
  %7088 = vmatpush2.msra.mxu0 0.0
  %7089 = vmatprep.subr.mxu0 0.0
  %7090 = vmatpush2.msra.mxu0 0.0
  %7091 = vmatprep.subr.mxu0 0.0
  %7092 = vmatpush2.msra.mxu0 0.0
  %7093 = vmatprep.subr.mxu0 0.0
  %7094 = vmatpush2.msra.mxu0 0.0
  %7095 = vmatprep.subr.mxu0 0.0
  %7096 = vmatpush2.msra.mxu0 0.0
  %7097 = vmatprep.subr.mxu0 0.0
  %7098 = vmatpush2.msra.mxu0 0.0
  %7099 = vmatprep.subr.mxu0 0.0
  %7100 = vmatpush2.msra.mxu0 0.0
  %7101 = vmatprep.subr.mxu0 0.0
  %7102 = vmatpush2.msra.mxu0 0.0
  %7103 = vmatprep.subr.mxu0 0.0
  %7104 = vmatpush2.msra.mxu0 0.0
  %7105 = vmatprep.mubr.f32.mxu0 0.0
  %7106 = vmatmul.mubr.f32.gmra.mxu0 %v2536
  %v7107 = vpop.f32.mrf.mxu0
  %v7108 = vadd.f32 0.0, %v7107
  %v7109 = vpop.f32.mrf.mxu0
  %v7110 = vadd.f32 0.0, %v7109
  %7111 = vmatprep.mubr.f32.mxu0 0.0
  %7112 = vmatmul.mubr.f32.gmra.mxu0 %v2539
  %v7113 = vpop.f32.mrf.mxu0
  %v7114 = vadd.f32 0.0, %v7113
  %v7115 = vpop.f32.mrf.mxu0
  %v7116 = vadd.f32 0.0, %v7115
  %7117 = vdwg.mxu0
  %7118 = vmatprep.subr.mxu0 0.0
  %7119 = vmatpush1.msra.mxu0 0.0
  %7120 = vmatprep.subr.mxu0 0.0
  %7121 = vmatpush1.msra.mxu0 0.0
  %7122 = vmatprep.subr.mxu0 0.0
  %7123 = vmatpush1.msra.mxu0 0.0
  %7124 = vmatprep.subr.mxu0 0.0
  %7125 = vmatpush1.msra.mxu0 0.0
  %7126 = vmatprep.subr.mxu0 0.0
  %7127 = vmatpush1.msra.mxu0 0.0
  %7128 = vmatprep.subr.mxu0 0.0
  %7129 = vmatpush1.msra.mxu0 0.0
  %7130 = vmatprep.subr.mxu0 0.0
  %7131 = vmatpush1.msra.mxu0 0.0
  %7132 = vmatprep.subr.mxu0 0.0
  %7133 = vmatpush1.msra.mxu0 0.0
  %7134 = vmatprep.subr.mxu0 0.0
  %7135 = vmatpush1.msra.mxu0 0.0
  %7136 = vmatprep.subr.mxu0 0.0
  %7137 = vmatpush1.msra.mxu0 0.0
  %7138 = vmatprep.subr.mxu0 0.0
  %7139 = vmatpush1.msra.mxu0 0.0
  %7140 = vmatprep.subr.mxu0 0.0
  %7141 = vmatpush1.msra.mxu0 0.0
  %7142 = vmatprep.subr.mxu0 0.0
  %7143 = vmatpush1.msra.mxu0 0.0
  %7144 = vmatprep.subr.mxu0 0.0
  %7145 = vmatpush1.msra.mxu0 0.0
  %7146 = vmatprep.subr.mxu0 %v7028
  %7147 = vmatpush1.msra.mxu0 %v7027
  %7148 = vmatprep.subr.mxu0 %v7012
  %7149 = vmatpush1.msra.mxu0 %v7011
  %7150 = vmatprep.subr.mxu0 0.0
  %7151 = vmatpush2.msra.mxu0 0.0
  %7152 = vmatprep.subr.mxu0 0.0
  %7153 = vmatpush2.msra.mxu0 0.0
  %7154 = vmatprep.subr.mxu0 0.0
  %7155 = vmatpush2.msra.mxu0 0.0
  %7156 = vmatprep.subr.mxu0 0.0
  %7157 = vmatpush2.msra.mxu0 0.0
  %7158 = vmatprep.subr.mxu0 0.0
  %7159 = vmatpush2.msra.mxu0 0.0
  %7160 = vmatprep.subr.mxu0 0.0
  %7161 = vmatpush2.msra.mxu0 0.0
  %7162 = vmatprep.subr.mxu0 0.0
  %7163 = vmatpush2.msra.mxu0 0.0
  %7164 = vmatprep.subr.mxu0 0.0
  %7165 = vmatpush2.msra.mxu0 0.0
  %7166 = vmatprep.subr.mxu0 0.0
  %7167 = vmatpush2.msra.mxu0 0.0
  %7168 = vmatprep.subr.mxu0 0.0
  %7169 = vmatpush2.msra.mxu0 0.0
  %7170 = vmatprep.subr.mxu0 0.0
  %7171 = vmatpush2.msra.mxu0 0.0
  %7172 = vmatprep.subr.mxu0 0.0
  %7173 = vmatpush2.msra.mxu0 0.0
  %7174 = vmatprep.subr.mxu0 0.0
  %7175 = vmatpush2.msra.mxu0 0.0
  %7176 = vmatprep.subr.mxu0 0.0
  %7177 = vmatpush2.msra.mxu0 0.0
  %7178 = vmatprep.subr.mxu0 0.0
  %7179 = vmatpush2.msra.mxu0 0.0
  %7180 = vmatprep.subr.mxu0 0.0
  %7181 = vmatpush2.msra.mxu0 0.0
  %7182 = vmatprep.mubr.f32.mxu0 0.0
  %7183 = vmatmul.mubr.f32.gmra.mxu0 %v2536
  %v7184 = vpop.f32.mrf.mxu0
  %v7185 = vadd.f32 0.0, %v7184
  %v7186 = vpop.f32.mrf.mxu0
  %v7187 = vadd.f32 0.0, %v7186
  %7188 = vmatprep.mubr.f32.mxu0 0.0
  %7189 = vmatmul.mubr.f32.gmra.mxu0 %v2539
  %v7190 = vpop.f32.mrf.mxu0
  %v7191 = vadd.f32 0.0, %v7190
  %v7192 = vpop.f32.mrf.mxu0
  %v7193 = vadd.f32 0.0, %v7192
  %7194 = vdwg.mxu0
  %7195 = vmatprep.subr.mxu0 0.0
  %7196 = vmatpush1.msra.mxu0 0.0
  %7197 = vmatprep.subr.mxu0 0.0
  %7198 = vmatpush1.msra.mxu0 0.0
  %7199 = vmatprep.subr.mxu0 0.0
  %7200 = vmatpush1.msra.mxu0 0.0
  %7201 = vmatprep.subr.mxu0 0.0
  %7202 = vmatpush1.msra.mxu0 0.0
  %7203 = vmatprep.subr.mxu0 0.0
  %7204 = vmatpush1.msra.mxu0 0.0
  %7205 = vmatprep.subr.mxu0 0.0
  %7206 = vmatpush1.msra.mxu0 0.0
  %7207 = vmatprep.subr.mxu0 0.0
  %7208 = vmatpush1.msra.mxu0 0.0
  %7209 = vmatprep.subr.mxu0 0.0
  %7210 = vmatpush1.msra.mxu0 0.0
  %7211 = vmatprep.subr.mxu0 0.0
  %7212 = vmatpush1.msra.mxu0 0.0
  %7213 = vmatprep.subr.mxu0 0.0
  %7214 = vmatpush1.msra.mxu0 0.0
  %7215 = vmatprep.subr.mxu0 0.0
  %7216 = vmatpush1.msra.mxu0 0.0
  %7217 = vmatprep.subr.mxu0 0.0
  %7218 = vmatpush1.msra.mxu0 0.0
  %7219 = vmatprep.subr.mxu0 0.0
  %7220 = vmatpush1.msra.mxu0 0.0
  %7221 = vmatprep.subr.mxu0 0.0
  %7222 = vmatpush1.msra.mxu0 0.0
  %7223 = vmatprep.subr.mxu0 %v7030
  %7224 = vmatpush1.msra.mxu0 %v7029
  %7225 = vmatprep.subr.mxu0 %v7014
  %7226 = vmatpush1.msra.mxu0 %v7013
  %7227 = vmatprep.subr.mxu0 0.0
  %7228 = vmatpush2.msra.mxu0 0.0
  %7229 = vmatprep.subr.mxu0 0.0
  %7230 = vmatpush2.msra.mxu0 0.0
  %7231 = vmatprep.subr.mxu0 0.0
  %7232 = vmatpush2.msra.mxu0 0.0
  %7233 = vmatprep.subr.mxu0 0.0
  %7234 = vmatpush2.msra.mxu0 0.0
  %7235 = vmatprep.subr.mxu0 0.0
  %7236 = vmatpush2.msra.mxu0 0.0
  %7237 = vmatprep.subr.mxu0 0.0
  %7238 = vmatpush2.msra.mxu0 0.0
  %7239 = vmatprep.subr.mxu0 0.0
  %7240 = vmatpush2.msra.mxu0 0.0
  %7241 = vmatprep.subr.mxu0 0.0
  %7242 = vmatpush2.msra.mxu0 0.0
  %7243 = vmatprep.subr.mxu0 0.0
  %7244 = vmatpush2.msra.mxu0 0.0
  %7245 = vmatprep.subr.mxu0 0.0
  %7246 = vmatpush2.msra.mxu0 0.0
  %7247 = vmatprep.subr.mxu0 0.0
  %7248 = vmatpush2.msra.mxu0 0.0
  %7249 = vmatprep.subr.mxu0 0.0
  %7250 = vmatpush2.msra.mxu0 0.0
  %7251 = vmatprep.subr.mxu0 0.0
  %7252 = vmatpush2.msra.mxu0 0.0
  %7253 = vmatprep.subr.mxu0 0.0
  %7254 = vmatpush2.msra.mxu0 0.0
  %7255 = vmatprep.subr.mxu0 0.0
  %7256 = vmatpush2.msra.mxu0 0.0
  %7257 = vmatprep.subr.mxu0 0.0
  %7258 = vmatpush2.msra.mxu0 0.0
  %7259 = vmatprep.mubr.f32.mxu0 0.0
  %7260 = vmatmul.mubr.f32.gmra.mxu0 %v2536
  %v7261 = vpop.f32.mrf.mxu0
  %v7262 = vadd.f32 0.0, %v7261
  %v7263 = vpop.f32.mrf.mxu0
  %v7264 = vadd.f32 0.0, %v7263
  %7265 = vmatprep.mubr.f32.mxu0 0.0
  %7266 = vmatmul.mubr.f32.gmra.mxu0 %v2539
  %v7267 = vpop.f32.mrf.mxu0
  %v7268 = vadd.f32 0.0, %v7267
  %v7269 = vpop.f32.mrf.mxu0
  %v7270 = vadd.f32 0.0, %v7269
  %7271 = vdwg.mxu0
  %7272 = vmatprep.subr.mxu0 0.0
  %7273 = vmatpush1.msra.mxu0 0.0
  %7274 = vmatprep.subr.mxu0 0.0
  %7275 = vmatpush1.msra.mxu0 0.0
  %7276 = vmatprep.subr.mxu0 0.0
  %7277 = vmatpush1.msra.mxu0 0.0
  %7278 = vmatprep.subr.mxu0 0.0
  %7279 = vmatpush1.msra.mxu0 0.0
  %7280 = vmatprep.subr.mxu0 0.0
  %7281 = vmatpush1.msra.mxu0 0.0
  %7282 = vmatprep.subr.mxu0 0.0
  %7283 = vmatpush1.msra.mxu0 0.0
  %7284 = vmatprep.subr.mxu0 0.0
  %7285 = vmatpush1.msra.mxu0 0.0
  %7286 = vmatprep.subr.mxu0 0.0
  %7287 = vmatpush1.msra.mxu0 0.0
  %7288 = vmatprep.subr.mxu0 0.0
  %7289 = vmatpush1.msra.mxu0 0.0
  %7290 = vmatprep.subr.mxu0 0.0
  %7291 = vmatpush1.msra.mxu0 0.0
  %7292 = vmatprep.subr.mxu0 0.0
  %7293 = vmatpush1.msra.mxu0 0.0
  %7294 = vmatprep.subr.mxu0 0.0
  %7295 = vmatpush1.msra.mxu0 0.0
  %7296 = vmatprep.subr.mxu0 0.0
  %7297 = vmatpush1.msra.mxu0 0.0
  %7298 = vmatprep.subr.mxu0 0.0
  %7299 = vmatpush1.msra.mxu0 0.0
  %7300 = vmatprep.subr.mxu0 %v7032
  %7301 = vmatpush1.msra.mxu0 %v7031
  %7302 = vmatprep.subr.mxu0 %v7016
  %7303 = vmatpush1.msra.mxu0 %v7015
  %7304 = vmatprep.subr.mxu0 0.0
  %7305 = vmatpush2.msra.mxu0 0.0
  %7306 = vmatprep.subr.mxu0 0.0
  %7307 = vmatpush2.msra.mxu0 0.0
  %7308 = vmatprep.subr.mxu0 0.0
  %7309 = vmatpush2.msra.mxu0 0.0
  %7310 = vmatprep.subr.mxu0 0.0
  %7311 = vmatpush2.msra.mxu0 0.0
  %7312 = vmatprep.subr.mxu0 0.0
  %7313 = vmatpush2.msra.mxu0 0.0
  %7314 = vmatprep.subr.mxu0 0.0
  %7315 = vmatpush2.msra.mxu0 0.0
  %7316 = vmatprep.subr.mxu0 0.0
  %7317 = vmatpush2.msra.mxu0 0.0
  %7318 = vmatprep.subr.mxu0 0.0
  %7319 = vmatpush2.msra.mxu0 0.0
  %7320 = vmatprep.subr.mxu0 0.0
  %7321 = vmatpush2.msra.mxu0 0.0
  %7322 = vmatprep.subr.mxu0 0.0
  %7323 = vmatpush2.msra.mxu0 0.0
  %7324 = vmatprep.subr.mxu0 0.0
  %7325 = vmatpush2.msra.mxu0 0.0
  %7326 = vmatprep.subr.mxu0 0.0
  %7327 = vmatpush2.msra.mxu0 0.0
  %7328 = vmatprep.subr.mxu0 0.0
  %7329 = vmatpush2.msra.mxu0 0.0
  %7330 = vmatprep.subr.mxu0 0.0
  %7331 = vmatpush2.msra.mxu0 0.0
  %7332 = vmatprep.subr.mxu0 0.0
  %7333 = vmatpush2.msra.mxu0 0.0
  %7334 = vmatprep.subr.mxu0 0.0
  %7335 = vmatpush2.msra.mxu0 0.0
  %7336 = vmatprep.mubr.f32.mxu0 0.0
  %7337 = vmatmul.mubr.f32.gmra.mxu0 %v2536
  %v7338 = vpop.f32.mrf.mxu0
  %v7339 = vadd.f32 0.0, %v7338
  %v7340 = vpop.f32.mrf.mxu0
  %v7341 = vadd.f32 0.0, %v7340
  %7342 = vmatprep.mubr.f32.mxu0 0.0
  %7343 = vmatmul.mubr.f32.gmra.mxu0 %v2539
  %v7344 = vpop.f32.mrf.mxu0
  %v7345 = vadd.f32 0.0, %v7344
  %v7346 = vpop.f32.mrf.mxu0
  %v7347 = vadd.f32 0.0, %v7346
  %7348 = vdwg.mxu0
  %7349 = vmatprep.subr.mxu0 0.0
  %7350 = vmatpush1.msra.mxu0 0.0
  %7351 = vmatprep.subr.mxu0 0.0
  %7352 = vmatpush1.msra.mxu0 0.0
  %7353 = vmatprep.subr.mxu0 0.0
  %7354 = vmatpush1.msra.mxu0 0.0
  %7355 = vmatprep.subr.mxu0 0.0
  %7356 = vmatpush1.msra.mxu0 0.0
  %7357 = vmatprep.subr.mxu0 0.0
  %7358 = vmatpush1.msra.mxu0 0.0
  %7359 = vmatprep.subr.mxu0 0.0
  %7360 = vmatpush1.msra.mxu0 0.0
  %7361 = vmatprep.subr.mxu0 0.0
  %7362 = vmatpush1.msra.mxu0 0.0
  %7363 = vmatprep.subr.mxu0 0.0
  %7364 = vmatpush1.msra.mxu0 0.0
  %7365 = vmatprep.subr.mxu0 0.0
  %7366 = vmatpush1.msra.mxu0 0.0
  %7367 = vmatprep.subr.mxu0 0.0
  %7368 = vmatpush1.msra.mxu0 0.0
  %7369 = vmatprep.subr.mxu0 0.0
  %7370 = vmatpush1.msra.mxu0 0.0
  %7371 = vmatprep.subr.mxu0 0.0
  %7372 = vmatpush1.msra.mxu0 0.0
  %7373 = vmatprep.subr.mxu0 0.0
  %7374 = vmatpush1.msra.mxu0 0.0
  %7375 = vmatprep.subr.mxu0 0.0
  %7376 = vmatpush1.msra.mxu0 0.0
  %7377 = vmatprep.subr.mxu0 %v7034
  %7378 = vmatpush1.msra.mxu0 %v7033
  %7379 = vmatprep.subr.mxu0 %v7018
  %7380 = vmatpush1.msra.mxu0 %v7017
  %7381 = vmatprep.subr.mxu0 0.0
  %7382 = vmatpush2.msra.mxu0 0.0
  %7383 = vmatprep.subr.mxu0 0.0
  %7384 = vmatpush2.msra.mxu0 0.0
  %7385 = vmatprep.subr.mxu0 0.0
  %7386 = vmatpush2.msra.mxu0 0.0
  %7387 = vmatprep.subr.mxu0 0.0
  %7388 = vmatpush2.msra.mxu0 0.0
  %7389 = vmatprep.subr.mxu0 0.0
  %7390 = vmatpush2.msra.mxu0 0.0
  %7391 = vmatprep.subr.mxu0 0.0
  %7392 = vmatpush2.msra.mxu0 0.0
  %7393 = vmatprep.subr.mxu0 0.0
  %7394 = vmatpush2.msra.mxu0 0.0
  %7395 = vmatprep.subr.mxu0 0.0
  %7396 = vmatpush2.msra.mxu0 0.0
  %7397 = vmatprep.subr.mxu0 0.0
  %7398 = vmatpush2.msra.mxu0 0.0
  %7399 = vmatprep.subr.mxu0 0.0
  %7400 = vmatpush2.msra.mxu0 0.0
  %7401 = vmatprep.subr.mxu0 0.0
  %7402 = vmatpush2.msra.mxu0 0.0
  %7403 = vmatprep.subr.mxu0 0.0
  %7404 = vmatpush2.msra.mxu0 0.0
  %7405 = vmatprep.subr.mxu0 0.0
  %7406 = vmatpush2.msra.mxu0 0.0
  %7407 = vmatprep.subr.mxu0 0.0
  %7408 = vmatpush2.msra.mxu0 0.0
  %7409 = vmatprep.subr.mxu0 0.0
  %7410 = vmatpush2.msra.mxu0 0.0
  %7411 = vmatprep.subr.mxu0 0.0
  %7412 = vmatpush2.msra.mxu0 0.0
  %7413 = vmatprep.mubr.f32.mxu0 0.0
  %7414 = vmatmul.mubr.f32.gmra.mxu0 %v2536
  %v7415 = vpop.f32.mrf.mxu0
  %v7416 = vadd.f32 0.0, %v7415
  %v7417 = vpop.f32.mrf.mxu0
  %v7418 = vadd.f32 0.0, %v7417
  %7419 = vmatprep.mubr.f32.mxu0 0.0
  %7420 = vmatmul.mubr.f32.gmra.mxu0 %v2539
  %v7421 = vpop.f32.mrf.mxu0
  %v7422 = vadd.f32 0.0, %v7421
  %v7423 = vpop.f32.mrf.mxu0
  %v7424 = vadd.f32 0.0, %v7423
  %7425 = vdwg.mxu0
  %7426 = vmatprep.subr.mxu0 0.0
  %7427 = vmatpush1.msra.mxu0 0.0
  %7428 = vmatprep.subr.mxu0 0.0
  %7429 = vmatpush1.msra.mxu0 0.0
  %7430 = vmatprep.subr.mxu0 0.0
  %7431 = vmatpush1.msra.mxu0 0.0
  %7432 = vmatprep.subr.mxu0 0.0
  %7433 = vmatpush1.msra.mxu0 0.0
  %7434 = vmatprep.subr.mxu0 0.0
  %7435 = vmatpush1.msra.mxu0 0.0
  %7436 = vmatprep.subr.mxu0 0.0
  %7437 = vmatpush1.msra.mxu0 0.0
  %7438 = vmatprep.subr.mxu0 0.0
  %7439 = vmatpush1.msra.mxu0 0.0
  %7440 = vmatprep.subr.mxu0 0.0
  %7441 = vmatpush1.msra.mxu0 0.0
  %7442 = vmatprep.subr.mxu0 0.0
  %7443 = vmatpush1.msra.mxu0 0.0
  %7444 = vmatprep.subr.mxu0 0.0
  %7445 = vmatpush1.msra.mxu0 0.0
  %7446 = vmatprep.subr.mxu0 0.0
  %7447 = vmatpush1.msra.mxu0 0.0
  %7448 = vmatprep.subr.mxu0 0.0
  %7449 = vmatpush1.msra.mxu0 0.0
  %7450 = vmatprep.subr.mxu0 0.0
  %7451 = vmatpush1.msra.mxu0 0.0
  %7452 = vmatprep.subr.mxu0 0.0
  %7453 = vmatpush1.msra.mxu0 0.0
  %7454 = vmatprep.subr.mxu0 %v7036
  %7455 = vmatpush1.msra.mxu0 %v7035
  %7456 = vmatprep.subr.mxu0 %v7020
  %7457 = vmatpush1.msra.mxu0 %v7019
  %7458 = vmatprep.subr.mxu0 0.0
  %7459 = vmatpush2.msra.mxu0 0.0
  %7460 = vmatprep.subr.mxu0 0.0
  %7461 = vmatpush2.msra.mxu0 0.0
  %7462 = vmatprep.subr.mxu0 0.0
  %7463 = vmatpush2.msra.mxu0 0.0
  %7464 = vmatprep.subr.mxu0 0.0
  %7465 = vmatpush2.msra.mxu0 0.0
  %7466 = vmatprep.subr.mxu0 0.0
  %7467 = vmatpush2.msra.mxu0 0.0
  %7468 = vmatprep.subr.mxu0 0.0
  %7469 = vmatpush2.msra.mxu0 0.0
  %7470 = vmatprep.subr.mxu0 0.0
  %7471 = vmatpush2.msra.mxu0 0.0
  %7472 = vmatprep.subr.mxu0 0.0
  %7473 = vmatpush2.msra.mxu0 0.0
  %7474 = vmatprep.subr.mxu0 0.0
  %7475 = vmatpush2.msra.mxu0 0.0
  %7476 = vmatprep.subr.mxu0 0.0
  %7477 = vmatpush2.msra.mxu0 0.0
  %7478 = vmatprep.subr.mxu0 0.0
  %7479 = vmatpush2.msra.mxu0 0.0
  %7480 = vmatprep.subr.mxu0 0.0
  %7481 = vmatpush2.msra.mxu0 0.0
  %7482 = vmatprep.subr.mxu0 0.0
  %7483 = vmatpush2.msra.mxu0 0.0
  %7484 = vmatprep.subr.mxu0 0.0
  %7485 = vmatpush2.msra.mxu0 0.0
  %7486 = vmatprep.subr.mxu0 0.0
  %7487 = vmatpush2.msra.mxu0 0.0
  %7488 = vmatprep.subr.mxu0 0.0
  %7489 = vmatpush2.msra.mxu0 0.0
  %7490 = vmatprep.mubr.f32.mxu0 0.0
  %7491 = vmatmul.mubr.f32.gmra.mxu0 %v2536
  %v7492 = vpop.f32.mrf.mxu0
  %v7493 = vadd.f32 0.0, %v7492
  %v7494 = vpop.f32.mrf.mxu0
  %v7495 = vadd.f32 0.0, %v7494
  %7496 = vmatprep.mubr.f32.mxu0 0.0
  %7497 = vmatmul.mubr.f32.gmra.mxu0 %v2539
  %v7498 = vpop.f32.mrf.mxu0
  %v7499 = vadd.f32 0.0, %v7498
  %v7500 = vpop.f32.mrf.mxu0
  %v7501 = vadd.f32 0.0, %v7500
  %7502 = vdwg.mxu0
  %7503 = vmatprep.subr.mxu0 0.0
  %7504 = vmatpush1.msra.mxu0 0.0
  %7505 = vmatprep.subr.mxu0 0.0
  %7506 = vmatpush1.msra.mxu0 0.0
  %7507 = vmatprep.subr.mxu0 0.0
  %7508 = vmatpush1.msra.mxu0 0.0
  %7509 = vmatprep.subr.mxu0 0.0
  %7510 = vmatpush1.msra.mxu0 0.0
  %7511 = vmatprep.subr.mxu0 0.0
  %7512 = vmatpush1.msra.mxu0 0.0
  %7513 = vmatprep.subr.mxu0 0.0
  %7514 = vmatpush1.msra.mxu0 0.0
  %7515 = vmatprep.subr.mxu0 0.0
  %7516 = vmatpush1.msra.mxu0 0.0
  %7517 = vmatprep.subr.mxu0 0.0
  %7518 = vmatpush1.msra.mxu0 0.0
  %7519 = vmatprep.subr.mxu0 0.0
  %7520 = vmatpush1.msra.mxu0 0.0
  %7521 = vmatprep.subr.mxu0 0.0
  %7522 = vmatpush1.msra.mxu0 0.0
  %7523 = vmatprep.subr.mxu0 0.0
  %7524 = vmatpush1.msra.mxu0 0.0
  %7525 = vmatprep.subr.mxu0 0.0
  %7526 = vmatpush1.msra.mxu0 0.0
  %7527 = vmatprep.subr.mxu0 0.0
  %7528 = vmatpush1.msra.mxu0 0.0
  %7529 = vmatprep.subr.mxu0 0.0
  %7530 = vmatpush1.msra.mxu0 0.0
  %7531 = vmatprep.subr.mxu0 %v7038
  %7532 = vmatpush1.msra.mxu0 %v7037
  %7533 = vmatprep.subr.mxu0 %v7022
  %7534 = vmatpush1.msra.mxu0 %v7021
  %7535 = vmatprep.subr.mxu0 0.0
  %7536 = vmatpush2.msra.mxu0 0.0
  %7537 = vmatprep.subr.mxu0 0.0
  %7538 = vmatpush2.msra.mxu0 0.0
  %7539 = vmatprep.subr.mxu0 0.0
  %7540 = vmatpush2.msra.mxu0 0.0
  %7541 = vmatprep.subr.mxu0 0.0
  %7542 = vmatpush2.msra.mxu0 0.0
  %7543 = vmatprep.subr.mxu0 0.0
  %7544 = vmatpush2.msra.mxu0 0.0
  %7545 = vmatprep.subr.mxu0 0.0
  %7546 = vmatpush2.msra.mxu0 0.0
  %7547 = vmatprep.subr.mxu0 0.0
  %7548 = vmatpush2.msra.mxu0 0.0
  %7549 = vmatprep.subr.mxu0 0.0
  %7550 = vmatpush2.msra.mxu0 0.0
  %7551 = vmatprep.subr.mxu0 0.0
  %7552 = vmatpush2.msra.mxu0 0.0
  %7553 = vmatprep.subr.mxu0 0.0
  %7554 = vmatpush2.msra.mxu0 0.0
  %7555 = vmatprep.subr.mxu0 0.0
  %7556 = vmatpush2.msra.mxu0 0.0
  %7557 = vmatprep.subr.mxu0 0.0
  %7558 = vmatpush2.msra.mxu0 0.0
  %7559 = vmatprep.subr.mxu0 0.0
  %7560 = vmatpush2.msra.mxu0 0.0
  %7561 = vmatprep.subr.mxu0 0.0
  %7562 = vmatpush2.msra.mxu0 0.0
  %7563 = vmatprep.subr.mxu0 0.0
  %7564 = vmatpush2.msra.mxu0 0.0
  %7565 = vmatprep.subr.mxu0 0.0
  %7566 = vmatpush2.msra.mxu0 0.0
  %7567 = vmatprep.mubr.f32.mxu0 0.0
  %7568 = vmatmul.mubr.f32.gmra.mxu0 %v2536
  %v7569 = vpop.f32.mrf.mxu0
  %v7570 = vadd.f32 0.0, %v7569
  %v7571 = vpop.f32.mrf.mxu0
  %v7572 = vadd.f32 0.0, %v7571
  %7573 = vmatprep.mubr.f32.mxu0 0.0
  %7574 = vmatmul.mubr.f32.gmra.mxu0 %v2539
  %v7575 = vpop.f32.mrf.mxu0
  %v7576 = vadd.f32 0.0, %v7575
  %v7577 = vpop.f32.mrf.mxu0
  %v7578 = vadd.f32 0.0, %v7577
  %7579 = vdwg.mxu0
  %7580 = vmatprep.subr.mxu0 0.0
  %7581 = vmatpush1.msra.mxu0 0.0
  %7582 = vmatprep.subr.mxu0 0.0
  %7583 = vmatpush1.msra.mxu0 0.0
  %7584 = vmatprep.subr.mxu0 0.0
  %7585 = vmatpush1.msra.mxu0 0.0
  %7586 = vmatprep.subr.mxu0 0.0
  %7587 = vmatpush1.msra.mxu0 0.0
  %7588 = vmatprep.subr.mxu0 0.0
  %7589 = vmatpush1.msra.mxu0 0.0
  %7590 = vmatprep.subr.mxu0 0.0
  %7591 = vmatpush1.msra.mxu0 0.0
  %7592 = vmatprep.subr.mxu0 0.0
  %7593 = vmatpush1.msra.mxu0 0.0
  %7594 = vmatprep.subr.mxu0 0.0
  %7595 = vmatpush1.msra.mxu0 0.0
  %7596 = vmatprep.subr.mxu0 0.0
  %7597 = vmatpush1.msra.mxu0 0.0
  %7598 = vmatprep.subr.mxu0 0.0
  %7599 = vmatpush1.msra.mxu0 0.0
  %7600 = vmatprep.subr.mxu0 0.0
  %7601 = vmatpush1.msra.mxu0 0.0
  %7602 = vmatprep.subr.mxu0 0.0
  %7603 = vmatpush1.msra.mxu0 0.0
  %7604 = vmatprep.subr.mxu0 0.0
  %7605 = vmatpush1.msra.mxu0 0.0
  %7606 = vmatprep.subr.mxu0 0.0
  %7607 = vmatpush1.msra.mxu0 0.0
  %7608 = vmatprep.subr.mxu0 %v7040
  %7609 = vmatpush1.msra.mxu0 %v7039
  %7610 = vmatprep.subr.mxu0 %v7024
  %7611 = vmatpush1.msra.mxu0 %v7023
  %7612 = vmatprep.subr.mxu0 0.0
  %7613 = vmatpush2.msra.mxu0 0.0
  %7614 = vmatprep.subr.mxu0 0.0
  %7615 = vmatpush2.msra.mxu0 0.0
  %7616 = vmatprep.subr.mxu0 0.0
  %7617 = vmatpush2.msra.mxu0 0.0
  %7618 = vmatprep.subr.mxu0 0.0
  %7619 = vmatpush2.msra.mxu0 0.0
  %7620 = vmatprep.subr.mxu0 0.0
  %7621 = vmatpush2.msra.mxu0 0.0
  %7622 = vmatprep.subr.mxu0 0.0
  %7623 = vmatpush2.msra.mxu0 0.0
  %7624 = vmatprep.subr.mxu0 0.0
  %7625 = vmatpush2.msra.mxu0 0.0
  %7626 = vmatprep.subr.mxu0 0.0
  %7627 = vmatpush2.msra.mxu0 0.0
  %7628 = vmatprep.subr.mxu0 0.0
  %7629 = vmatpush2.msra.mxu0 0.0
  %7630 = vmatprep.subr.mxu0 0.0
  %7631 = vmatpush2.msra.mxu0 0.0
  %7632 = vmatprep.subr.mxu0 0.0
  %7633 = vmatpush2.msra.mxu0 0.0
  %7634 = vmatprep.subr.mxu0 0.0
  %7635 = vmatpush2.msra.mxu0 0.0
  %7636 = vmatprep.subr.mxu0 0.0
  %7637 = vmatpush2.msra.mxu0 0.0
  %7638 = vmatprep.subr.mxu0 0.0
  %7639 = vmatpush2.msra.mxu0 0.0
  %7640 = vmatprep.subr.mxu0 0.0
  %7641 = vmatpush2.msra.mxu0 0.0
  %7642 = vmatprep.subr.mxu0 0.0
  %7643 = vmatpush2.msra.mxu0 0.0
  %7644 = vmatprep.mubr.f32.mxu0 0.0
  %7645 = vmatmul.mubr.f32.gmra.mxu0 %v2536
  %v7646 = vpop.f32.mrf.mxu0
  %v7647 = vadd.f32 0.0, %v7646
  %v7648 = vpop.f32.mrf.mxu0
  %v7649 = vadd.f32 0.0, %v7648
  %7650 = vmatprep.mubr.f32.mxu0 0.0
  %7651 = vmatmul.mubr.f32.gmra.mxu0 %v2539
  %v7652 = vpop.f32.mrf.mxu0
  %v7653 = vadd.f32 0.0, %v7652
  %v7654 = vpop.f32.mrf.mxu0
  %v7655 = vadd.f32 0.0, %v7654
  %7656 = vdwg.mxu0
  %7657 = vst [vmem:[#allocation3] sm:$0xff] %v7108
  %7658 = vst [vmem:[#allocation3 + $0x8] sm:$0xff] %v7110
  %7659 = vst [vmem:[#allocation3 + $0x10] sm:$0xff] %v7185
  %7660 = vst [vmem:[#allocation3 + $0x18] sm:$0xff] %v7187
  %7661 = vst [vmem:[#allocation3 + $0x20] sm:$0xff] %v7262
  %7662 = vst [vmem:[#allocation3 + $0x28] sm:$0xff] %v7264
  %7663 = vst [vmem:[#allocation3 + $0x30] sm:$0xff] %v7339
  %7664 = vst [vmem:[#allocation3 + $0x38] sm:$0xff] %v7341
  %7665 = vst [vmem:[#allocation3 + $0x40] sm:$0xff] %v7416
  %7666 = vst [vmem:[#allocation3 + $0x48] sm:$0xff] %v7418
  %7667 = vst [vmem:[#allocation3 + $0x50] sm:$0xff] %v7493
  %7668 = vst [vmem:[#allocation3 + $0x58] sm:$0xff] %v7495
  %7669 = vst [vmem:[#allocation3 + $0x60] sm:$0xff] %v7570
  %7670 = vst [vmem:[#allocation3 + $0x68] sm:$0xff] %v7572
  %7671 = vst [vmem:[#allocation3 + $0x70] sm:$0xff] %v7647
  %7672 = vst [vmem:[#allocation3 + $0x78] sm:$0xff] %v7649
  %7673 = vst [vmem:[#allocation3 + $0x80] sm:$0xff] %v7114
  %7674 = vst [vmem:[#allocation3 + $0x88] sm:$0xff] %v7116
  %7675 = vst [vmem:[#allocation3 + $0x90] sm:$0xff] %v7191
  %7676 = vst [vmem:[#allocation3 + $0x98] sm:$0xff] %v7193
  %7677 = vst [vmem:[#allocation3 + $0xa0] sm:$0xff] %v7268
  %7678 = vst [vmem:[#allocation3 + $0xa8] sm:$0xff] %v7270
  %7679 = vst [vmem:[#allocation3 + $0xb0] sm:$0xff] %v7345
  %7680 = vst [vmem:[#allocation3 + $0xb8] sm:$0xff] %v7347
  %7681 = vst [vmem:[#allocation3 + $0xc0] sm:$0xff] %v7422
  %7682 = vst [vmem:[#allocation3 + $0xc8] sm:$0xff] %v7424
  %7683 = vst [vmem:[#allocation3 + $0xd0] sm:$0xff] %v7499
  %7684 = vst [vmem:[#allocation3 + $0xd8] sm:$0xff] %v7501
  %7685 = vst [vmem:[#allocation3 + $0xe0] sm:$0xff] %v7576
  %7686 = vst [vmem:[#allocation3 + $0xe8] sm:$0xff] %v7578
  %7687 = vst [vmem:[#allocation3 + $0xf0] sm:$0xff] %v7653
  %7688 = vst [vmem:[#allocation3 + $0xf8] sm:$0xff] %v7655
  %v7689 = vld [vmem:[#allocation3] ss:$8 sm:$0xf]
  %v7690 = vld [vmem:[#allocation3] ss:$8 sm:$0xf0]
  %v7691 = vor.u32 %v7689, %v7690
  %v7692 = vld [vmem:[%s3192] ss:$8 sm:$0xf]
  %v7693 = vld [vmem:[%s3192] ss:$8 sm:$0xf0]
  %v7694 = vor.u32 %v7692, %v7693
  %v7697 = vlaneseq
  %v7698 = vshrl.u32 %v7697, 7
  %v7699 = vsub.s32 0, %v7698
  %v7700 = vrot.slane %v7691, %v7699
  %v7701 = vlaneseq
  %v7702 = vshrl.u32 %v7701, 7
  %v7703 = vsub.s32 1, %v7702
  %v7704 = vrot.slane %v7691, %v7703
  %v7705 = vlaneseq
  %v7706 = vshrl.u32 %v7705, 7
  %v7707 = vsub.s32 2, %v7706
  %v7708 = vrot.slane %v7691, %v7707
  %v7709 = vlaneseq
  %v7710 = vshrl.u32 %v7709, 7
  %v7711 = vsub.s32 3, %v7710
  %v7712 = vrot.slane %v7691, %v7711
  %v7713 = vlaneseq
  %v7714 = vshrl.u32 %v7713, 7
  %v7715 = vsub.s32 4, %v7714
  %v7716 = vrot.slane %v7691, %v7715
  %v7717 = vlaneseq
  %v7718 = vshrl.u32 %v7717, 7
  %v7719 = vsub.s32 5, %v7718
  %v7720 = vrot.slane %v7691, %v7719
  %v7721 = vlaneseq
  %v7722 = vshrl.u32 %v7721, 7
  %v7723 = vsub.s32 6, %v7722
  %v7724 = vrot.slane %v7691, %v7723
  %v7725 = vlaneseq
  %v7726 = vshrl.u32 %v7725, 7
  %v7727 = vsub.s32 7, %v7726
  %v7728 = vrot.slane %v7691, %v7727
  %v7729 = vlaneseq
  %v7730 = vshrl.u32 %v7729, 7
  %v7731 = vsub.s32 0, %v7730
  %v7732 = vrot.slane %v7694, %v7731
  %v7733 = vlaneseq
  %v7734 = vshrl.u32 %v7733, 7
  %v7735 = vsub.s32 1, %v7734
  %v7736 = vrot.slane %v7694, %v7735
  %v7737 = vlaneseq
  %v7738 = vshrl.u32 %v7737, 7
  %v7739 = vsub.s32 2, %v7738
  %v7740 = vrot.slane %v7694, %v7739
  %v7741 = vlaneseq
  %v7742 = vshrl.u32 %v7741, 7
  %v7743 = vsub.s32 3, %v7742
  %v7744 = vrot.slane %v7694, %v7743
  %v7745 = vlaneseq
  %v7746 = vshrl.u32 %v7745, 7
  %v7747 = vsub.s32 4, %v7746
  %v7748 = vrot.slane %v7694, %v7747
  %v7749 = vlaneseq
  %v7750 = vshrl.u32 %v7749, 7
  %v7751 = vsub.s32 5, %v7750
  %v7752 = vrot.slane %v7694, %v7751
  %v7753 = vlaneseq
  %v7754 = vshrl.u32 %v7753, 7
  %v7755 = vsub.s32 6, %v7754
  %v7756 = vrot.slane %v7694, %v7755
  %v7757 = vlaneseq
  %v7758 = vshrl.u32 %v7757, 7
  %v7759 = vsub.s32 7, %v7758
  %v7760 = vrot.slane %v7694, %v7759
  %7777 = vrot.lane.b32.xlu0 %v7700, 17
  %v7778 = vpop.permute.xlu0 %7777
  %7779 = vrot.lane.b32.xlu0 %v7704, 17
  %v7780 = vpop.permute.xlu0 %7779
  %7781 = vrot.lane.b32.xlu0 %v7708, 17
  %v7782 = vpop.permute.xlu0 %7781
  %7783 = vrot.lane.b32.xlu0 %v7712, 17
  %v7784 = vpop.permute.xlu0 %7783
  %7785 = vrot.lane.b32.xlu0 %v7716, 17
  %v7786 = vpop.permute.xlu0 %7785
  %7787 = vrot.lane.b32.xlu0 %v7720, 17
  %v7788 = vpop.permute.xlu0 %7787
  %7789 = vrot.lane.b32.xlu0 %v7724, 17
  %v7790 = vpop.permute.xlu0 %7789
  %7791 = vrot.lane.b32.xlu0 %v7728, 17
  %v7792 = vpop.permute.xlu0 %7791
  %7793 = vrot.lane.b32.xlu0 %v7732, 17
  %v7794 = vpop.permute.xlu0 %7793
  %7795 = vrot.lane.b32.xlu0 %v7736, 17
  %v7796 = vpop.permute.xlu0 %7795
  %7797 = vrot.lane.b32.xlu0 %v7740, 17
  %v7798 = vpop.permute.xlu0 %7797
  %7799 = vrot.lane.b32.xlu0 %v7744, 17
  %v7800 = vpop.permute.xlu0 %7799
  %7801 = vrot.lane.b32.xlu0 %v7748, 17
  %v7802 = vpop.permute.xlu0 %7801
  %7803 = vrot.lane.b32.xlu0 %v7752, 17
  %v7804 = vpop.permute.xlu0 %7803
  %7805 = vrot.lane.b32.xlu0 %v7756, 17
  %v7806 = vpop.permute.xlu0 %7805
  %7807 = vrot.lane.b32.xlu0 %v7760, 17
  %v7808 = vpop.permute.xlu0 %7807
  %v7809 = vsel %vm379, %v7806, %v7808
  %v7810 = vsel %vm379, %v7804, %v7806
  %v7811 = vsel %vm379, %v7802, %v7804
  %v7812 = vsel %vm379, %v7800, %v7802
  %v7813 = vsel %vm379, %v7798, %v7800
  %v7814 = vsel %vm379, %v7796, %v7798
  %v7815 = vsel %vm379, %v7794, %v7796
  %v7816 = vsel %vm379, %v7792, %v7794
  %v7817 = vsel %vm379, %v7790, %v7792
  %v7818 = vsel %vm379, %v7788, %v7790
  %v7819 = vsel %vm379, %v7786, %v7788
  %v7820 = vsel %vm379, %v7784, %v7786
  %v7821 = vsel %vm379, %v7782, %v7784
  %v7822 = vsel %vm379, %v7780, %v7782
  %v7823 = vsel %vm379, %v7778, %v7780
  %v7824 = vsel %vm379, %v7808, %v7778
  %v7825 = vsel %vm156, %v7824, 0.0
  %v7826 = vsel %vm157, %v7823, 0.0
  %v7827 = vsel %vm158, %v7822, 0.0
  %v7828 = vsel %vm159, %v7821, 0.0
  %v7829 = vsel %vm160, %v7820, 0.0
  %v7830 = vsel %vm161, %v7819, 0.0
  %v7831 = vsel %vm162, %v7818, 0.0
  %v7832 = vsel %vm163, %v7817, 0.0
  %v7833 = vsel %vm164, %v7816, 0.0
  %v7834 = vsel %vm165, %v7815, 0.0
  %v7835 = vsel %vm166, %v7814, 0.0
  %v7836 = vsel %vm167, %v7813, 0.0
  %v7837 = vsel %vm168, %v7812, 0.0
  %v7838 = vsel %vm169, %v7811, 0.0
  %v7839 = vsel %vm170, %v7810, 0.0
  %v7840 = vsel %vm171, %v7809, 0.0
  %v7841 = vld [vmem:[%s3342] ss:$8 sm:$0xf]
  %v7842 = vld [vmem:[%s3342] ss:$8 sm:$0xf0]
  %v7843 = vor.u32 %v7841, %v7842
  %v7844 = vld [vmem:[%s3346] ss:$8 sm:$0xf]
  %v7845 = vld [vmem:[%s3346] ss:$8 sm:$0xf0]
  %v7846 = vor.u32 %v7844, %v7845
  %v7849 = vlaneseq
  %v7850 = vshrl.u32 %v7849, 7
  %v7851 = vsub.s32 0, %v7850
  %v7852 = vrot.slane %v7843, %v7851
  %v7853 = vlaneseq
  %v7854 = vshrl.u32 %v7853, 7
  %v7855 = vsub.s32 1, %v7854
  %v7856 = vrot.slane %v7843, %v7855
  %v7857 = vlaneseq
  %v7858 = vshrl.u32 %v7857, 7
  %v7859 = vsub.s32 2, %v7858
  %v7860 = vrot.slane %v7843, %v7859
  %v7861 = vlaneseq
  %v7862 = vshrl.u32 %v7861, 7
  %v7863 = vsub.s32 3, %v7862
  %v7864 = vrot.slane %v7843, %v7863
  %v7865 = vlaneseq
  %v7866 = vshrl.u32 %v7865, 7
  %v7867 = vsub.s32 4, %v7866
  %v7868 = vrot.slane %v7843, %v7867
  %v7869 = vlaneseq
  %v7870 = vshrl.u32 %v7869, 7
  %v7871 = vsub.s32 5, %v7870
  %v7872 = vrot.slane %v7843, %v7871
  %v7873 = vlaneseq
  %v7874 = vshrl.u32 %v7873, 7
  %v7875 = vsub.s32 6, %v7874
  %v7876 = vrot.slane %v7843, %v7875
  %v7877 = vlaneseq
  %v7878 = vshrl.u32 %v7877, 7
  %v7879 = vsub.s32 7, %v7878
  %v7880 = vrot.slane %v7843, %v7879
  %v7881 = vlaneseq
  %v7882 = vshrl.u32 %v7881, 7
  %v7883 = vsub.s32 0, %v7882
  %v7884 = vrot.slane %v7846, %v7883
  %v7885 = vlaneseq
  %v7886 = vshrl.u32 %v7885, 7
  %v7887 = vsub.s32 1, %v7886
  %v7888 = vrot.slane %v7846, %v7887
  %v7889 = vlaneseq
  %v7890 = vshrl.u32 %v7889, 7
  %v7891 = vsub.s32 2, %v7890
  %v7892 = vrot.slane %v7846, %v7891
  %v7893 = vlaneseq
  %v7894 = vshrl.u32 %v7893, 7
  %v7895 = vsub.s32 3, %v7894
  %v7896 = vrot.slane %v7846, %v7895
  %v7897 = vlaneseq
  %v7898 = vshrl.u32 %v7897, 7
  %v7899 = vsub.s32 4, %v7898
  %v7900 = vrot.slane %v7846, %v7899
  %v7901 = vlaneseq
  %v7902 = vshrl.u32 %v7901, 7
  %v7903 = vsub.s32 5, %v7902
  %v7904 = vrot.slane %v7846, %v7903
  %v7905 = vlaneseq
  %v7906 = vshrl.u32 %v7905, 7
  %v7907 = vsub.s32 6, %v7906
  %v7908 = vrot.slane %v7846, %v7907
  %v7909 = vlaneseq
  %v7910 = vshrl.u32 %v7909, 7
  %v7911 = vsub.s32 7, %v7910
  %v7912 = vrot.slane %v7846, %v7911
  %7929 = vrot.lane.b32.xlu0 %v7852, 16
  %v7930 = vpop.permute.xlu0 %7929
  %7931 = vrot.lane.b32.xlu0 %v7856, 16
  %v7932 = vpop.permute.xlu0 %7931
  %7933 = vrot.lane.b32.xlu0 %v7860, 16
  %v7934 = vpop.permute.xlu0 %7933
  %7935 = vrot.lane.b32.xlu0 %v7864, 16
  %v7936 = vpop.permute.xlu0 %7935
  %7937 = vrot.lane.b32.xlu0 %v7868, 16
  %v7938 = vpop.permute.xlu0 %7937
  %7939 = vrot.lane.b32.xlu0 %v7872, 16
  %v7940 = vpop.permute.xlu0 %7939
  %7941 = vrot.lane.b32.xlu0 %v7876, 16
  %v7942 = vpop.permute.xlu0 %7941
  %7943 = vrot.lane.b32.xlu0 %v7880, 16
  %v7944 = vpop.permute.xlu0 %7943
  %7945 = vrot.lane.b32.xlu0 %v7884, 16
  %v7946 = vpop.permute.xlu0 %7945
  %7947 = vrot.lane.b32.xlu0 %v7888, 16
  %v7948 = vpop.permute.xlu0 %7947
  %7949 = vrot.lane.b32.xlu0 %v7892, 16
  %v7950 = vpop.permute.xlu0 %7949
  %7951 = vrot.lane.b32.xlu0 %v7896, 16
  %v7952 = vpop.permute.xlu0 %7951
  %7953 = vrot.lane.b32.xlu0 %v7900, 16
  %v7954 = vpop.permute.xlu0 %7953
  %7955 = vrot.lane.b32.xlu0 %v7904, 16
  %v7956 = vpop.permute.xlu0 %7955
  %7957 = vrot.lane.b32.xlu0 %v7908, 16
  %v7958 = vpop.permute.xlu0 %7957
  %7959 = vrot.lane.b32.xlu0 %v7912, 16
  %v7960 = vpop.permute.xlu0 %7959
  %v7961 = vsel %vm565, %v7958, %v7960
  %v7962 = vsel %vm565, %v7956, %v7958
  %v7963 = vsel %vm565, %v7954, %v7956
  %v7964 = vsel %vm565, %v7952, %v7954
  %v7965 = vsel %vm565, %v7950, %v7952
  %v7966 = vsel %vm565, %v7948, %v7950
  %v7967 = vsel %vm565, %v7946, %v7948
  %v7968 = vsel %vm565, %v7944, %v7946
  %v7969 = vsel %vm565, %v7942, %v7944
  %v7970 = vsel %vm565, %v7940, %v7942
  %v7971 = vsel %vm565, %v7938, %v7940
  %v7972 = vsel %vm565, %v7936, %v7938
  %v7973 = vsel %vm565, %v7934, %v7936
  %v7974 = vsel %vm565, %v7932, %v7934
  %v7975 = vsel %vm565, %v7930, %v7932
  %v7976 = vsel %vm565, %v7960, %v7930
  %v7977 = vsel %vm92, %v7976, 0.0
  %v7978 = vsel %vm93, %v7975, 0.0
  %v7979 = vsel %vm94, %v7974, 0.0
  %v7980 = vsel %vm95, %v7973, 0.0
  %v7981 = vsel %vm96, %v7972, 0.0
  %v7982 = vsel %vm97, %v7971, 0.0
  %v7983 = vsel %vm98, %v7970, 0.0
  %v7984 = vsel %vm99, %v7969, 0.0
  %v7985 = vsel %vm100, %v7968, 0.0
  %v7986 = vsel %vm101, %v7967, 0.0
  %v7987 = vsel %vm102, %v7966, 0.0
  %v7988 = vsel %vm103, %v7965, 0.0
  %v7989 = vsel %vm104, %v7964, 0.0
  %v7990 = vsel %vm105, %v7963, 0.0
  %v7991 = vsel %vm106, %v7962, 0.0
  %v7992 = vsel %vm107, %v7961, 0.0
  %v7993 = vadd.f32 %v7825, %v7977
  %v7994 = vadd.f32 %v7826, %v7978
  %v7995 = vadd.f32 %v7827, %v7979
  %v7996 = vadd.f32 %v7828, %v7980
  %v7997 = vadd.f32 %v7829, %v7981
  %v7998 = vadd.f32 %v7830, %v7982
  %v7999 = vadd.f32 %v7831, %v7983
  %v8000 = vadd.f32 %v7832, %v7984
  %v8001 = vadd.f32 %v7833, %v7985
  %v8002 = vadd.f32 %v7834, %v7986
  %v8003 = vadd.f32 %v7835, %v7987
  %v8004 = vadd.f32 %v7836, %v7988
  %v8005 = vadd.f32 %v7837, %v7989
  %v8006 = vadd.f32 %v7838, %v7990
  %v8007 = vadd.f32 %v7839, %v7991
  %v8008 = vadd.f32 %v7840, %v7992
  %v8009 = vld [vmem:[%s3512] ss:$8 sm:$0xf]
  %v8010 = vld [vmem:[%s3512] ss:$8 sm:$0xf0]
  %v8011 = vor.u32 %v8009, %v8010
  %v8012 = vld [vmem:[%s3516] ss:$8 sm:$0xf]
  %v8013 = vld [vmem:[%s3516] ss:$8 sm:$0xf0]
  %v8014 = vor.u32 %v8012, %v8013
  %v8017 = vlaneseq
  %v8018 = vshrl.u32 %v8017, 7
  %v8019 = vsub.s32 0, %v8018
  %v8020 = vrot.slane %v8011, %v8019
  %v8021 = vlaneseq
  %v8022 = vshrl.u32 %v8021, 7
  %v8023 = vsub.s32 1, %v8022
  %v8024 = vrot.slane %v8011, %v8023
  %v8025 = vlaneseq
  %v8026 = vshrl.u32 %v8025, 7
  %v8027 = vsub.s32 2, %v8026
  %v8028 = vrot.slane %v8011, %v8027
  %v8029 = vlaneseq
  %v8030 = vshrl.u32 %v8029, 7
  %v8031 = vsub.s32 3, %v8030
  %v8032 = vrot.slane %v8011, %v8031
  %v8033 = vlaneseq
  %v8034 = vshrl.u32 %v8033, 7
  %v8035 = vsub.s32 4, %v8034
  %v8036 = vrot.slane %v8011, %v8035
  %v8037 = vlaneseq
  %v8038 = vshrl.u32 %v8037, 7
  %v8039 = vsub.s32 5, %v8038
  %v8040 = vrot.slane %v8011, %v8039
  %v8041 = vlaneseq
  %v8042 = vshrl.u32 %v8041, 7
  %v8043 = vsub.s32 6, %v8042
  %v8044 = vrot.slane %v8011, %v8043
  %v8045 = vlaneseq
  %v8046 = vshrl.u32 %v8045, 7
  %v8047 = vsub.s32 7, %v8046
  %v8048 = vrot.slane %v8011, %v8047
  %v8049 = vlaneseq
  %v8050 = vshrl.u32 %v8049, 7
  %v8051 = vsub.s32 0, %v8050
  %v8052 = vrot.slane %v8014, %v8051
  %v8053 = vlaneseq
  %v8054 = vshrl.u32 %v8053, 7
  %v8055 = vsub.s32 1, %v8054
  %v8056 = vrot.slane %v8014, %v8055
  %v8057 = vlaneseq
  %v8058 = vshrl.u32 %v8057, 7
  %v8059 = vsub.s32 2, %v8058
  %v8060 = vrot.slane %v8014, %v8059
  %v8061 = vlaneseq
  %v8062 = vshrl.u32 %v8061, 7
  %v8063 = vsub.s32 3, %v8062
  %v8064 = vrot.slane %v8014, %v8063
  %v8065 = vlaneseq
  %v8066 = vshrl.u32 %v8065, 7
  %v8067 = vsub.s32 4, %v8066
  %v8068 = vrot.slane %v8014, %v8067
  %v8069 = vlaneseq
  %v8070 = vshrl.u32 %v8069, 7
  %v8071 = vsub.s32 5, %v8070
  %v8072 = vrot.slane %v8014, %v8071
  %v8073 = vlaneseq
  %v8074 = vshrl.u32 %v8073, 7
  %v8075 = vsub.s32 6, %v8074
  %v8076 = vrot.slane %v8014, %v8075
  %v8077 = vlaneseq
  %v8078 = vshrl.u32 %v8077, 7
  %v8079 = vsub.s32 7, %v8078
  %v8080 = vrot.slane %v8014, %v8079
  %8097 = vrot.lane.b32.xlu0 %v8020, 15
  %v8098 = vpop.permute.xlu0 %8097
  %8099 = vrot.lane.b32.xlu0 %v8024, 15
  %v8100 = vpop.permute.xlu0 %8099
  %8101 = vrot.lane.b32.xlu0 %v8028, 15
  %v8102 = vpop.permute.xlu0 %8101
  %8103 = vrot.lane.b32.xlu0 %v8032, 15
  %v8104 = vpop.permute.xlu0 %8103
  %8105 = vrot.lane.b32.xlu0 %v8036, 15
  %v8106 = vpop.permute.xlu0 %8105
  %8107 = vrot.lane.b32.xlu0 %v8040, 15
  %v8108 = vpop.permute.xlu0 %8107
  %8109 = vrot.lane.b32.xlu0 %v8044, 15
  %v8110 = vpop.permute.xlu0 %8109
  %8111 = vrot.lane.b32.xlu0 %v8048, 15
  %v8112 = vpop.permute.xlu0 %8111
  %8113 = vrot.lane.b32.xlu0 %v8052, 15
  %v8114 = vpop.permute.xlu0 %8113
  %8115 = vrot.lane.b32.xlu0 %v8056, 15
  %v8116 = vpop.permute.xlu0 %8115
  %8117 = vrot.lane.b32.xlu0 %v8060, 15
  %v8118 = vpop.permute.xlu0 %8117
  %8119 = vrot.lane.b32.xlu0 %v8064, 15
  %v8120 = vpop.permute.xlu0 %8119
  %8121 = vrot.lane.b32.xlu0 %v8068, 15
  %v8122 = vpop.permute.xlu0 %8121
  %8123 = vrot.lane.b32.xlu0 %v8072, 15
  %v8124 = vpop.permute.xlu0 %8123
  %8125 = vrot.lane.b32.xlu0 %v8076, 15
  %v8126 = vpop.permute.xlu0 %8125
  %8127 = vrot.lane.b32.xlu0 %v8080, 15
  %v8128 = vpop.permute.xlu0 %8127
  %v8129 = vsel %vm752, %v8126, %v8128
  %v8130 = vsel %vm752, %v8124, %v8126
  %v8131 = vsel %vm752, %v8122, %v8124
  %v8132 = vsel %vm752, %v8120, %v8122
  %v8133 = vsel %vm752, %v8118, %v8120
  %v8134 = vsel %vm752, %v8116, %v8118
  %v8135 = vsel %vm752, %v8114, %v8116
  %v8136 = vsel %vm752, %v8112, %v8114
  %v8137 = vsel %vm752, %v8110, %v8112
  %v8138 = vsel %vm752, %v8108, %v8110
  %v8139 = vsel %vm752, %v8106, %v8108
  %v8140 = vsel %vm752, %v8104, %v8106
  %v8141 = vsel %vm752, %v8102, %v8104
  %v8142 = vsel %vm752, %v8100, %v8102
  %v8143 = vsel %vm752, %v8098, %v8100
  %v8144 = vsel %vm752, %v8128, %v8098
  %v8145 = vsel %vm172, %v8144, 0.0
  %v8146 = vsel %vm173, %v8143, 0.0
  %v8147 = vsel %vm174, %v8142, 0.0
  %v8148 = vsel %vm175, %v8141, 0.0
  %v8149 = vsel %vm176, %v8140, 0.0
  %v8150 = vsel %vm177, %v8139, 0.0
  %v8151 = vsel %vm178, %v8138, 0.0
  %v8152 = vsel %vm179, %v8137, 0.0
  %v8153 = vsel %vm180, %v8136, 0.0
  %v8154 = vsel %vm181, %v8135, 0.0
  %v8155 = vsel %vm182, %v8134, 0.0
  %v8156 = vsel %vm183, %v8133, 0.0
  %v8157 = vsel %vm184, %v8132, 0.0
  %v8158 = vsel %vm185, %v8131, 0.0
  %v8159 = vsel %vm186, %v8130, 0.0
  %v8160 = vsel %vm187, %v8129, 0.0
  %v8161 = vadd.f32 %v7993, %v8145
  %v8162 = vadd.f32 %v7994, %v8146
  %v8163 = vadd.f32 %v7995, %v8147
  %v8164 = vadd.f32 %v7996, %v8148
  %v8165 = vadd.f32 %v7997, %v8149
  %v8166 = vadd.f32 %v7998, %v8150
  %v8167 = vadd.f32 %v7999, %v8151
  %v8168 = vadd.f32 %v8000, %v8152
  %v8169 = vadd.f32 %v8001, %v8153
  %v8170 = vadd.f32 %v8002, %v8154
  %v8171 = vadd.f32 %v8003, %v8155
  %v8172 = vadd.f32 %v8004, %v8156
  %v8173 = vadd.f32 %v8005, %v8157
  %v8174 = vadd.f32 %v8006, %v8158
  %v8175 = vadd.f32 %v8007, %v8159
  %v8176 = vadd.f32 %v8008, %v8160
  %v8177 = vld [vmem:[%s3682] ss:$8 sm:$0xf]
  %v8178 = vld [vmem:[%s3682] ss:$8 sm:$0xf0]
  %v8179 = vor.u32 %v8177, %v8178
  %v8180 = vld [vmem:[%s3686] ss:$8 sm:$0xf]
  %v8181 = vld [vmem:[%s3686] ss:$8 sm:$0xf0]
  %v8182 = vor.u32 %v8180, %v8181
  %v8185 = vlaneseq
  %v8186 = vshrl.u32 %v8185, 7
  %v8187 = vsub.s32 0, %v8186
  %v8188 = vrot.slane %v8179, %v8187
  %v8189 = vlaneseq
  %v8190 = vshrl.u32 %v8189, 7
  %v8191 = vsub.s32 1, %v8190
  %v8192 = vrot.slane %v8179, %v8191
  %v8193 = vlaneseq
  %v8194 = vshrl.u32 %v8193, 7
  %v8195 = vsub.s32 2, %v8194
  %v8196 = vrot.slane %v8179, %v8195
  %v8197 = vlaneseq
  %v8198 = vshrl.u32 %v8197, 7
  %v8199 = vsub.s32 3, %v8198
  %v8200 = vrot.slane %v8179, %v8199
  %v8201 = vlaneseq
  %v8202 = vshrl.u32 %v8201, 7
  %v8203 = vsub.s32 4, %v8202
  %v8204 = vrot.slane %v8179, %v8203
  %v8205 = vlaneseq
  %v8206 = vshrl.u32 %v8205, 7
  %v8207 = vsub.s32 5, %v8206
  %v8208 = vrot.slane %v8179, %v8207
  %v8209 = vlaneseq
  %v8210 = vshrl.u32 %v8209, 7
  %v8211 = vsub.s32 6, %v8210
  %v8212 = vrot.slane %v8179, %v8211
  %v8213 = vlaneseq
  %v8214 = vshrl.u32 %v8213, 7
  %v8215 = vsub.s32 7, %v8214
  %v8216 = vrot.slane %v8179, %v8215
  %v8217 = vlaneseq
  %v8218 = vshrl.u32 %v8217, 7
  %v8219 = vsub.s32 0, %v8218
  %v8220 = vrot.slane %v8182, %v8219
  %v8221 = vlaneseq
  %v8222 = vshrl.u32 %v8221, 7
  %v8223 = vsub.s32 1, %v8222
  %v8224 = vrot.slane %v8182, %v8223
  %v8225 = vlaneseq
  %v8226 = vshrl.u32 %v8225, 7
  %v8227 = vsub.s32 2, %v8226
  %v8228 = vrot.slane %v8182, %v8227
  %v8229 = vlaneseq
  %v8230 = vshrl.u32 %v8229, 7
  %v8231 = vsub.s32 3, %v8230
  %v8232 = vrot.slane %v8182, %v8231
  %v8233 = vlaneseq
  %v8234 = vshrl.u32 %v8233, 7
  %v8235 = vsub.s32 4, %v8234
  %v8236 = vrot.slane %v8182, %v8235
  %v8237 = vlaneseq
  %v8238 = vshrl.u32 %v8237, 7
  %v8239 = vsub.s32 5, %v8238
  %v8240 = vrot.slane %v8182, %v8239
  %v8241 = vlaneseq
  %v8242 = vshrl.u32 %v8241, 7
  %v8243 = vsub.s32 6, %v8242
  %v8244 = vrot.slane %v8182, %v8243
  %v8245 = vlaneseq
  %v8246 = vshrl.u32 %v8245, 7
  %v8247 = vsub.s32 7, %v8246
  %v8248 = vrot.slane %v8182, %v8247
  %8265 = vrot.lane.b32.xlu0 %v8188, 1
  %v8266 = vpop.permute.xlu0 %8265
  %8267 = vrot.lane.b32.xlu0 %v8192, 1
  %v8268 = vpop.permute.xlu0 %8267
  %8269 = vrot.lane.b32.xlu0 %v8196, 1
  %v8270 = vpop.permute.xlu0 %8269
  %8271 = vrot.lane.b32.xlu0 %v8200, 1
  %v8272 = vpop.permute.xlu0 %8271
  %8273 = vrot.lane.b32.xlu0 %v8204, 1
  %v8274 = vpop.permute.xlu0 %8273
  %8275 = vrot.lane.b32.xlu0 %v8208, 1
  %v8276 = vpop.permute.xlu0 %8275
  %8277 = vrot.lane.b32.xlu0 %v8212, 1
  %v8278 = vpop.permute.xlu0 %8277
  %8279 = vrot.lane.b32.xlu0 %v8216, 1
  %v8280 = vpop.permute.xlu0 %8279
  %8281 = vrot.lane.b32.xlu0 %v8220, 1
  %v8282 = vpop.permute.xlu0 %8281
  %8283 = vrot.lane.b32.xlu0 %v8224, 1
  %v8284 = vpop.permute.xlu0 %8283
  %8285 = vrot.lane.b32.xlu0 %v8228, 1
  %v8286 = vpop.permute.xlu0 %8285
  %8287 = vrot.lane.b32.xlu0 %v8232, 1
  %v8288 = vpop.permute.xlu0 %8287
  %8289 = vrot.lane.b32.xlu0 %v8236, 1
  %v8290 = vpop.permute.xlu0 %8289
  %8291 = vrot.lane.b32.xlu0 %v8240, 1
  %v8292 = vpop.permute.xlu0 %8291
  %8293 = vrot.lane.b32.xlu0 %v8244, 1
  %v8294 = vpop.permute.xlu0 %8293
  %8295 = vrot.lane.b32.xlu0 %v8248, 1
  %v8296 = vpop.permute.xlu0 %8295
  %v8297 = vsel %vm939, %v8294, %v8296
  %v8298 = vsel %vm939, %v8292, %v8294
  %v8299 = vsel %vm939, %v8290, %v8292
  %v8300 = vsel %vm939, %v8288, %v8290
  %v8301 = vsel %vm939, %v8286, %v8288
  %v8302 = vsel %vm939, %v8284, %v8286
  %v8303 = vsel %vm939, %v8282, %v8284
  %v8304 = vsel %vm939, %v8280, %v8282
  %v8305 = vsel %vm939, %v8278, %v8280
  %v8306 = vsel %vm939, %v8276, %v8278
  %v8307 = vsel %vm939, %v8274, %v8276
  %v8308 = vsel %vm939, %v8272, %v8274
  %v8309 = vsel %vm939, %v8270, %v8272
  %v8310 = vsel %vm939, %v8268, %v8270
  %v8311 = vsel %vm939, %v8266, %v8268
  %v8312 = vsel %vm939, %v8296, %v8266
  %v8313 = vsel %vm124, %v8312, 0.0
  %v8314 = vsel %vm125, %v8311, 0.0
  %v8315 = vsel %vm126, %v8310, 0.0
  %v8316 = vsel %vm127, %v8309, 0.0
  %v8317 = vsel %vm128, %v8308, 0.0
  %v8318 = vsel %vm129, %v8307, 0.0
  %v8319 = vsel %vm130, %v8306, 0.0
  %v8320 = vsel %vm131, %v8305, 0.0
  %v8321 = vsel %vm132, %v8304, 0.0
  %v8322 = vsel %vm133, %v8303, 0.0
  %v8323 = vsel %vm134, %v8302, 0.0
  %v8324 = vsel %vm135, %v8301, 0.0
  %v8325 = vsel %vm136, %v8300, 0.0
  %v8326 = vsel %vm137, %v8299, 0.0
  %v8327 = vsel %vm138, %v8298, 0.0
  %v8328 = vsel %vm139, %v8297, 0.0
  %v8329 = vadd.f32 %v8161, %v8313
  %v8330 = vadd.f32 %v8162, %v8314
  %v8331 = vadd.f32 %v8163, %v8315
  %v8332 = vadd.f32 %v8164, %v8316
  %v8333 = vadd.f32 %v8165, %v8317
  %v8334 = vadd.f32 %v8166, %v8318
  %v8335 = vadd.f32 %v8167, %v8319
  %v8336 = vadd.f32 %v8168, %v8320
  %v8337 = vadd.f32 %v8169, %v8321
  %v8338 = vadd.f32 %v8170, %v8322
  %v8339 = vadd.f32 %v8171, %v8323
  %v8340 = vadd.f32 %v8172, %v8324
  %v8341 = vadd.f32 %v8173, %v8325
  %v8342 = vadd.f32 %v8174, %v8326
  %v8343 = vadd.f32 %v8175, %v8327
  %v8344 = vadd.f32 %v8176, %v8328
  %v8345 = vld [vmem:[%s3852] ss:$8 sm:$0xf]
  %v8346 = vld [vmem:[%s3852] ss:$8 sm:$0xf0]
  %v8347 = vor.u32 %v8345, %v8346
  %v8348 = vld [vmem:[%s3856] ss:$8 sm:$0xf]
  %v8349 = vld [vmem:[%s3856] ss:$8 sm:$0xf0]
  %v8350 = vor.u32 %v8348, %v8349
  %v8353 = vlaneseq
  %v8354 = vshrl.u32 %v8353, 7
  %v8355 = vsub.s32 0, %v8354
  %v8356 = vrot.slane %v8347, %v8355
  %v8357 = vlaneseq
  %v8358 = vshrl.u32 %v8357, 7
  %v8359 = vsub.s32 1, %v8358
  %v8360 = vrot.slane %v8347, %v8359
  %v8361 = vlaneseq
  %v8362 = vshrl.u32 %v8361, 7
  %v8363 = vsub.s32 2, %v8362
  %v8364 = vrot.slane %v8347, %v8363
  %v8365 = vlaneseq
  %v8366 = vshrl.u32 %v8365, 7
  %v8367 = vsub.s32 3, %v8366
  %v8368 = vrot.slane %v8347, %v8367
  %v8369 = vlaneseq
  %v8370 = vshrl.u32 %v8369, 7
  %v8371 = vsub.s32 4, %v8370
  %v8372 = vrot.slane %v8347, %v8371
  %v8373 = vlaneseq
  %v8374 = vshrl.u32 %v8373, 7
  %v8375 = vsub.s32 5, %v8374
  %v8376 = vrot.slane %v8347, %v8375
  %v8377 = vlaneseq
  %v8378 = vshrl.u32 %v8377, 7
  %v8379 = vsub.s32 6, %v8378
  %v8380 = vrot.slane %v8347, %v8379
  %v8381 = vlaneseq
  %v8382 = vshrl.u32 %v8381, 7
  %v8383 = vsub.s32 7, %v8382
  %v8384 = vrot.slane %v8347, %v8383
  %v8385 = vlaneseq
  %v8386 = vshrl.u32 %v8385, 7
  %v8387 = vsub.s32 0, %v8386
  %v8388 = vrot.slane %v8350, %v8387
  %v8389 = vlaneseq
  %v8390 = vshrl.u32 %v8389, 7
  %v8391 = vsub.s32 1, %v8390
  %v8392 = vrot.slane %v8350, %v8391
  %v8393 = vlaneseq
  %v8394 = vshrl.u32 %v8393, 7
  %v8395 = vsub.s32 2, %v8394
  %v8396 = vrot.slane %v8350, %v8395
  %v8397 = vlaneseq
  %v8398 = vshrl.u32 %v8397, 7
  %v8399 = vsub.s32 3, %v8398
  %v8400 = vrot.slane %v8350, %v8399
  %v8401 = vlaneseq
  %v8402 = vshrl.u32 %v8401, 7
  %v8403 = vsub.s32 4, %v8402
  %v8404 = vrot.slane %v8350, %v8403
  %v8405 = vlaneseq
  %v8406 = vshrl.u32 %v8405, 7
  %v8407 = vsub.s32 5, %v8406
  %v8408 = vrot.slane %v8350, %v8407
  %v8409 = vlaneseq
  %v8410 = vshrl.u32 %v8409, 7
  %v8411 = vsub.s32 6, %v8410
  %v8412 = vrot.slane %v8350, %v8411
  %v8413 = vlaneseq
  %v8414 = vshrl.u32 %v8413, 7
  %v8415 = vsub.s32 7, %v8414
  %v8416 = vrot.slane %v8350, %v8415
  %v8433 = vadd.f32 %v8329, %v8356
  %v8434 = vadd.f32 %v8330, %v8360
  %v8435 = vadd.f32 %v8331, %v8364
  %v8436 = vadd.f32 %v8332, %v8368
  %v8437 = vadd.f32 %v8333, %v8372
  %v8438 = vadd.f32 %v8334, %v8376
  %v8439 = vadd.f32 %v8335, %v8380
  %v8440 = vadd.f32 %v8336, %v8384
  %v8441 = vadd.f32 %v8337, %v8388
  %v8442 = vadd.f32 %v8338, %v8392
  %v8443 = vadd.f32 %v8339, %v8396
  %v8444 = vadd.f32 %v8340, %v8400
  %v8445 = vadd.f32 %v8341, %v8404
  %v8446 = vadd.f32 %v8342, %v8408
  %v8447 = vadd.f32 %v8343, %v8412
  %v8448 = vadd.f32 %v8344, %v8416
  %v8449 = vld [vmem:[%s3958] ss:$8 sm:$0xf]
  %v8450 = vld [vmem:[%s3958] ss:$8 sm:$0xf0]
  %v8451 = vor.u32 %v8449, %v8450
  %v8452 = vld [vmem:[%s3962] ss:$8 sm:$0xf]
  %v8453 = vld [vmem:[%s3962] ss:$8 sm:$0xf0]
  %v8454 = vor.u32 %v8452, %v8453
  %v8457 = vlaneseq
  %v8458 = vshrl.u32 %v8457, 7
  %v8459 = vsub.s32 0, %v8458
  %v8460 = vrot.slane %v8451, %v8459
  %v8461 = vlaneseq
  %v8462 = vshrl.u32 %v8461, 7
  %v8463 = vsub.s32 1, %v8462
  %v8464 = vrot.slane %v8451, %v8463
  %v8465 = vlaneseq
  %v8466 = vshrl.u32 %v8465, 7
  %v8467 = vsub.s32 2, %v8466
  %v8468 = vrot.slane %v8451, %v8467
  %v8469 = vlaneseq
  %v8470 = vshrl.u32 %v8469, 7
  %v8471 = vsub.s32 3, %v8470
  %v8472 = vrot.slane %v8451, %v8471
  %v8473 = vlaneseq
  %v8474 = vshrl.u32 %v8473, 7
  %v8475 = vsub.s32 4, %v8474
  %v8476 = vrot.slane %v8451, %v8475
  %v8477 = vlaneseq
  %v8478 = vshrl.u32 %v8477, 7
  %v8479 = vsub.s32 5, %v8478
  %v8480 = vrot.slane %v8451, %v8479
  %v8481 = vlaneseq
  %v8482 = vshrl.u32 %v8481, 7
  %v8483 = vsub.s32 6, %v8482
  %v8484 = vrot.slane %v8451, %v8483
  %v8485 = vlaneseq
  %v8486 = vshrl.u32 %v8485, 7
  %v8487 = vsub.s32 7, %v8486
  %v8488 = vrot.slane %v8451, %v8487
  %v8489 = vlaneseq
  %v8490 = vshrl.u32 %v8489, 7
  %v8491 = vsub.s32 0, %v8490
  %v8492 = vrot.slane %v8454, %v8491
  %v8493 = vlaneseq
  %v8494 = vshrl.u32 %v8493, 7
  %v8495 = vsub.s32 1, %v8494
  %v8496 = vrot.slane %v8454, %v8495
  %v8497 = vlaneseq
  %v8498 = vshrl.u32 %v8497, 7
  %v8499 = vsub.s32 2, %v8498
  %v8500 = vrot.slane %v8454, %v8499
  %v8501 = vlaneseq
  %v8502 = vshrl.u32 %v8501, 7
  %v8503 = vsub.s32 3, %v8502
  %v8504 = vrot.slane %v8454, %v8503
  %v8505 = vlaneseq
  %v8506 = vshrl.u32 %v8505, 7
  %v8507 = vsub.s32 4, %v8506
  %v8508 = vrot.slane %v8454, %v8507
  %v8509 = vlaneseq
  %v8510 = vshrl.u32 %v8509, 7
  %v8511 = vsub.s32 5, %v8510
  %v8512 = vrot.slane %v8454, %v8511
  %v8513 = vlaneseq
  %v8514 = vshrl.u32 %v8513, 7
  %v8515 = vsub.s32 6, %v8514
  %v8516 = vrot.slane %v8454, %v8515
  %v8517 = vlaneseq
  %v8518 = vshrl.u32 %v8517, 7
  %v8519 = vsub.s32 7, %v8518
  %v8520 = vrot.slane %v8454, %v8519
  %8537 = vrot.lane.b32.xlu0 %v8460, 127
  %v8538 = vpop.permute.xlu0 %8537
  %8539 = vrot.lane.b32.xlu0 %v8464, 127
  %v8540 = vpop.permute.xlu0 %8539
  %8541 = vrot.lane.b32.xlu0 %v8468, 127
  %v8542 = vpop.permute.xlu0 %8541
  %8543 = vrot.lane.b32.xlu0 %v8472, 127
  %v8544 = vpop.permute.xlu0 %8543
  %8545 = vrot.lane.b32.xlu0 %v8476, 127
  %v8546 = vpop.permute.xlu0 %8545
  %8547 = vrot.lane.b32.xlu0 %v8480, 127
  %v8548 = vpop.permute.xlu0 %8547
  %8549 = vrot.lane.b32.xlu0 %v8484, 127
  %v8550 = vpop.permute.xlu0 %8549
  %8551 = vrot.lane.b32.xlu0 %v8488, 127
  %v8552 = vpop.permute.xlu0 %8551
  %8553 = vrot.lane.b32.xlu0 %v8492, 127
  %v8554 = vpop.permute.xlu0 %8553
  %8555 = vrot.lane.b32.xlu0 %v8496, 127
  %v8556 = vpop.permute.xlu0 %8555
  %8557 = vrot.lane.b32.xlu0 %v8500, 127
  %v8558 = vpop.permute.xlu0 %8557
  %8559 = vrot.lane.b32.xlu0 %v8504, 127
  %v8560 = vpop.permute.xlu0 %8559
  %8561 = vrot.lane.b32.xlu0 %v8508, 127
  %v8562 = vpop.permute.xlu0 %8561
  %8563 = vrot.lane.b32.xlu0 %v8512, 127
  %v8564 = vpop.permute.xlu0 %8563
  %8565 = vrot.lane.b32.xlu0 %v8516, 127
  %v8566 = vpop.permute.xlu0 %8565
  %8567 = vrot.lane.b32.xlu0 %v8520, 127
  %v8568 = vpop.permute.xlu0 %8567
  %v8569 = vsel %vm1132, %v8566, %v8568
  %v8570 = vsel %vm1132, %v8564, %v8566
  %v8571 = vsel %vm1132, %v8562, %v8564
  %v8572 = vsel %vm1132, %v8560, %v8562
  %v8573 = vsel %vm1132, %v8558, %v8560
  %v8574 = vsel %vm1132, %v8556, %v8558
  %v8575 = vsel %vm1132, %v8554, %v8556
  %v8576 = vsel %vm1132, %v8552, %v8554
  %v8577 = vsel %vm1132, %v8550, %v8552
  %v8578 = vsel %vm1132, %v8548, %v8550
  %v8579 = vsel %vm1132, %v8546, %v8548
  %v8580 = vsel %vm1132, %v8544, %v8546
  %v8581 = vsel %vm1132, %v8542, %v8544
  %v8582 = vsel %vm1132, %v8540, %v8542
  %v8583 = vsel %vm1132, %v8538, %v8540
  %v8584 = vsel %vm1132, %v8568, %v8538
  %v8585 = vsel %vm140, %v8583, 0.0
  %v8586 = vsel %vm141, %v8582, 0.0
  %v8587 = vsel %vm142, %v8581, 0.0
  %v8588 = vsel %vm143, %v8580, 0.0
  %v8589 = vsel %vm144, %v8579, 0.0
  %v8590 = vsel %vm145, %v8578, 0.0
  %v8591 = vsel %vm146, %v8577, 0.0
  %v8592 = vsel %vm147, %v8576, 0.0
  %v8593 = vsel %vm148, %v8575, 0.0
  %v8594 = vsel %vm149, %v8574, 0.0
  %v8595 = vsel %vm150, %v8573, 0.0
  %v8596 = vsel %vm151, %v8572, 0.0
  %v8597 = vsel %vm152, %v8571, 0.0
  %v8598 = vsel %vm153, %v8570, 0.0
  %v8599 = vsel %vm154, %v8569, 0.0
  %v8600 = vsel %vm155, %v8584, 0.0
  %v8601 = vadd.f32 %v8433, %v8585
  %v8602 = vadd.f32 %v8434, %v8586
  %v8603 = vadd.f32 %v8435, %v8587
  %v8604 = vadd.f32 %v8436, %v8588
  %v8605 = vadd.f32 %v8437, %v8589
  %v8606 = vadd.f32 %v8438, %v8590
  %v8607 = vadd.f32 %v8439, %v8591
  %v8608 = vadd.f32 %v8440, %v8592
  %v8609 = vadd.f32 %v8441, %v8593
  %v8610 = vadd.f32 %v8442, %v8594
  %v8611 = vadd.f32 %v8443, %v8595
  %v8612 = vadd.f32 %v8444, %v8596
  %v8613 = vadd.f32 %v8445, %v8597
  %v8614 = vadd.f32 %v8446, %v8598
  %v8615 = vadd.f32 %v8447, %v8599
  %v8616 = vadd.f32 %v8448, %v8600
  %v8617 = vld [vmem:[%s4128] ss:$8 sm:$0xf]
  %v8618 = vld [vmem:[%s4128] ss:$8 sm:$0xf0]
  %v8619 = vor.u32 %v8617, %v8618
  %v8620 = vld [vmem:[%s4132] ss:$8 sm:$0xf]
  %v8621 = vld [vmem:[%s4132] ss:$8 sm:$0xf0]
  %v8622 = vor.u32 %v8620, %v8621
  %v8625 = vlaneseq
  %v8626 = vshrl.u32 %v8625, 7
  %v8627 = vsub.s32 0, %v8626
  %v8628 = vrot.slane %v8619, %v8627
  %v8629 = vlaneseq
  %v8630 = vshrl.u32 %v8629, 7
  %v8631 = vsub.s32 1, %v8630
  %v8632 = vrot.slane %v8619, %v8631
  %v8633 = vlaneseq
  %v8634 = vshrl.u32 %v8633, 7
  %v8635 = vsub.s32 2, %v8634
  %v8636 = vrot.slane %v8619, %v8635
  %v8637 = vlaneseq
  %v8638 = vshrl.u32 %v8637, 7
  %v8639 = vsub.s32 3, %v8638
  %v8640 = vrot.slane %v8619, %v8639
  %v8641 = vlaneseq
  %v8642 = vshrl.u32 %v8641, 7
  %v8643 = vsub.s32 4, %v8642
  %v8644 = vrot.slane %v8619, %v8643
  %v8645 = vlaneseq
  %v8646 = vshrl.u32 %v8645, 7
  %v8647 = vsub.s32 5, %v8646
  %v8648 = vrot.slane %v8619, %v8647
  %v8649 = vlaneseq
  %v8650 = vshrl.u32 %v8649, 7
  %v8651 = vsub.s32 6, %v8650
  %v8652 = vrot.slane %v8619, %v8651
  %v8653 = vlaneseq
  %v8654 = vshrl.u32 %v8653, 7
  %v8655 = vsub.s32 7, %v8654
  %v8656 = vrot.slane %v8619, %v8655
  %v8657 = vlaneseq
  %v8658 = vshrl.u32 %v8657, 7
  %v8659 = vsub.s32 0, %v8658
  %v8660 = vrot.slane %v8622, %v8659
  %v8661 = vlaneseq
  %v8662 = vshrl.u32 %v8661, 7
  %v8663 = vsub.s32 1, %v8662
  %v8664 = vrot.slane %v8622, %v8663
  %v8665 = vlaneseq
  %v8666 = vshrl.u32 %v8665, 7
  %v8667 = vsub.s32 2, %v8666
  %v8668 = vrot.slane %v8622, %v8667
  %v8669 = vlaneseq
  %v8670 = vshrl.u32 %v8669, 7
  %v8671 = vsub.s32 3, %v8670
  %v8672 = vrot.slane %v8622, %v8671
  %v8673 = vlaneseq
  %v8674 = vshrl.u32 %v8673, 7
  %v8675 = vsub.s32 4, %v8674
  %v8676 = vrot.slane %v8622, %v8675
  %v8677 = vlaneseq
  %v8678 = vshrl.u32 %v8677, 7
  %v8679 = vsub.s32 5, %v8678
  %v8680 = vrot.slane %v8622, %v8679
  %v8681 = vlaneseq
  %v8682 = vshrl.u32 %v8681, 7
  %v8683 = vsub.s32 6, %v8682
  %v8684 = vrot.slane %v8622, %v8683
  %v8685 = vlaneseq
  %v8686 = vshrl.u32 %v8685, 7
  %v8687 = vsub.s32 7, %v8686
  %v8688 = vrot.slane %v8622, %v8687
  %8705 = vrot.lane.b32.xlu0 %v8628, 113
  %v8706 = vpop.permute.xlu0 %8705
  %8707 = vrot.lane.b32.xlu0 %v8632, 113
  %v8708 = vpop.permute.xlu0 %8707
  %8709 = vrot.lane.b32.xlu0 %v8636, 113
  %v8710 = vpop.permute.xlu0 %8709
  %8711 = vrot.lane.b32.xlu0 %v8640, 113
  %v8712 = vpop.permute.xlu0 %8711
  %8713 = vrot.lane.b32.xlu0 %v8644, 113
  %v8714 = vpop.permute.xlu0 %8713
  %8715 = vrot.lane.b32.xlu0 %v8648, 113
  %v8716 = vpop.permute.xlu0 %8715
  %8717 = vrot.lane.b32.xlu0 %v8652, 113
  %v8718 = vpop.permute.xlu0 %8717
  %8719 = vrot.lane.b32.xlu0 %v8656, 113
  %v8720 = vpop.permute.xlu0 %8719
  %8721 = vrot.lane.b32.xlu0 %v8660, 113
  %v8722 = vpop.permute.xlu0 %8721
  %8723 = vrot.lane.b32.xlu0 %v8664, 113
  %v8724 = vpop.permute.xlu0 %8723
  %8725 = vrot.lane.b32.xlu0 %v8668, 113
  %v8726 = vpop.permute.xlu0 %8725
  %8727 = vrot.lane.b32.xlu0 %v8672, 113
  %v8728 = vpop.permute.xlu0 %8727
  %8729 = vrot.lane.b32.xlu0 %v8676, 113
  %v8730 = vpop.permute.xlu0 %8729
  %8731 = vrot.lane.b32.xlu0 %v8680, 113
  %v8732 = vpop.permute.xlu0 %8731
  %8733 = vrot.lane.b32.xlu0 %v8684, 113
  %v8734 = vpop.permute.xlu0 %8733
  %8735 = vrot.lane.b32.xlu0 %v8688, 113
  %v8736 = vpop.permute.xlu0 %8735
  %v8737 = vsel %vm1319, %v8734, %v8736
  %v8738 = vsel %vm1319, %v8732, %v8734
  %v8739 = vsel %vm1319, %v8730, %v8732
  %v8740 = vsel %vm1319, %v8728, %v8730
  %v8741 = vsel %vm1319, %v8726, %v8728
  %v8742 = vsel %vm1319, %v8724, %v8726
  %v8743 = vsel %vm1319, %v8722, %v8724
  %v8744 = vsel %vm1319, %v8720, %v8722
  %v8745 = vsel %vm1319, %v8718, %v8720
  %v8746 = vsel %vm1319, %v8716, %v8718
  %v8747 = vsel %vm1319, %v8714, %v8716
  %v8748 = vsel %vm1319, %v8712, %v8714
  %v8749 = vsel %vm1319, %v8710, %v8712
  %v8750 = vsel %vm1319, %v8708, %v8710
  %v8751 = vsel %vm1319, %v8706, %v8708
  %v8752 = vsel %vm1319, %v8736, %v8706
  %v8753 = vsel %vm188, %v8751, 0.0
  %v8754 = vsel %vm189, %v8750, 0.0
  %v8755 = vsel %vm190, %v8749, 0.0
  %v8756 = vsel %vm191, %v8748, 0.0
  %v8757 = vsel %vm192, %v8747, 0.0
  %v8758 = vsel %vm193, %v8746, 0.0
  %v8759 = vsel %vm194, %v8745, 0.0
  %v8760 = vsel %vm195, %v8744, 0.0
  %v8761 = vsel %vm196, %v8743, 0.0
  %v8762 = vsel %vm197, %v8742, 0.0
  %v8763 = vsel %vm198, %v8741, 0.0
  %v8764 = vsel %vm199, %v8740, 0.0
  %v8765 = vsel %vm200, %v8739, 0.0
  %v8766 = vsel %vm201, %v8738, 0.0
  %v8767 = vsel %vm202, %v8737, 0.0
  %v8768 = vsel %vm203, %v8752, 0.0
  %v8769 = vadd.f32 %v8601, %v8753
  %v8770 = vadd.f32 %v8602, %v8754
  %v8771 = vadd.f32 %v8603, %v8755
  %v8772 = vadd.f32 %v8604, %v8756
  %v8773 = vadd.f32 %v8605, %v8757
  %v8774 = vadd.f32 %v8606, %v8758
  %v8775 = vadd.f32 %v8607, %v8759
  %v8776 = vadd.f32 %v8608, %v8760
  %v8777 = vadd.f32 %v8609, %v8761
  %v8778 = vadd.f32 %v8610, %v8762
  %v8779 = vadd.f32 %v8611, %v8763
  %v8780 = vadd.f32 %v8612, %v8764
  %v8781 = vadd.f32 %v8613, %v8765
  %v8782 = vadd.f32 %v8614, %v8766
  %v8783 = vadd.f32 %v8615, %v8767
  %v8784 = vadd.f32 %v8616, %v8768
  %v8785 = vld [vmem:[%s4298] ss:$8 sm:$0xf]
  %v8786 = vld [vmem:[%s4298] ss:$8 sm:$0xf0]
  %v8787 = vor.u32 %v8785, %v8786
  %v8788 = vld [vmem:[%s4302] ss:$8 sm:$0xf]
  %v8789 = vld [vmem:[%s4302] ss:$8 sm:$0xf0]
  %v8790 = vor.u32 %v8788, %v8789
  %v8793 = vlaneseq
  %v8794 = vshrl.u32 %v8793, 7
  %v8795 = vsub.s32 0, %v8794
  %v8796 = vrot.slane %v8787, %v8795
  %v8797 = vlaneseq
  %v8798 = vshrl.u32 %v8797, 7
  %v8799 = vsub.s32 1, %v8798
  %v8800 = vrot.slane %v8787, %v8799
  %v8801 = vlaneseq
  %v8802 = vshrl.u32 %v8801, 7
  %v8803 = vsub.s32 2, %v8802
  %v8804 = vrot.slane %v8787, %v8803
  %v8805 = vlaneseq
  %v8806 = vshrl.u32 %v8805, 7
  %v8807 = vsub.s32 3, %v8806
  %v8808 = vrot.slane %v8787, %v8807
  %v8809 = vlaneseq
  %v8810 = vshrl.u32 %v8809, 7
  %v8811 = vsub.s32 4, %v8810
  %v8812 = vrot.slane %v8787, %v8811
  %v8813 = vlaneseq
  %v8814 = vshrl.u32 %v8813, 7
  %v8815 = vsub.s32 5, %v8814
  %v8816 = vrot.slane %v8787, %v8815
  %v8817 = vlaneseq
  %v8818 = vshrl.u32 %v8817, 7
  %v8819 = vsub.s32 6, %v8818
  %v8820 = vrot.slane %v8787, %v8819
  %v8821 = vlaneseq
  %v8822 = vshrl.u32 %v8821, 7
  %v8823 = vsub.s32 7, %v8822
  %v8824 = vrot.slane %v8787, %v8823
  %v8825 = vlaneseq
  %v8826 = vshrl.u32 %v8825, 7
  %v8827 = vsub.s32 0, %v8826
  %v8828 = vrot.slane %v8790, %v8827
  %v8829 = vlaneseq
  %v8830 = vshrl.u32 %v8829, 7
  %v8831 = vsub.s32 1, %v8830
  %v8832 = vrot.slane %v8790, %v8831
  %v8833 = vlaneseq
  %v8834 = vshrl.u32 %v8833, 7
  %v8835 = vsub.s32 2, %v8834
  %v8836 = vrot.slane %v8790, %v8835
  %v8837 = vlaneseq
  %v8838 = vshrl.u32 %v8837, 7
  %v8839 = vsub.s32 3, %v8838
  %v8840 = vrot.slane %v8790, %v8839
  %v8841 = vlaneseq
  %v8842 = vshrl.u32 %v8841, 7
  %v8843 = vsub.s32 4, %v8842
  %v8844 = vrot.slane %v8790, %v8843
  %v8845 = vlaneseq
  %v8846 = vshrl.u32 %v8845, 7
  %v8847 = vsub.s32 5, %v8846
  %v8848 = vrot.slane %v8790, %v8847
  %v8849 = vlaneseq
  %v8850 = vshrl.u32 %v8849, 7
  %v8851 = vsub.s32 6, %v8850
  %v8852 = vrot.slane %v8790, %v8851
  %v8853 = vlaneseq
  %v8854 = vshrl.u32 %v8853, 7
  %v8855 = vsub.s32 7, %v8854
  %v8856 = vrot.slane %v8790, %v8855
  %8873 = vrot.lane.b32.xlu0 %v8796, 112
  %v8874 = vpop.permute.xlu0 %8873
  %8875 = vrot.lane.b32.xlu0 %v8800, 112
  %v8876 = vpop.permute.xlu0 %8875
  %8877 = vrot.lane.b32.xlu0 %v8804, 112
  %v8878 = vpop.permute.xlu0 %8877
  %8879 = vrot.lane.b32.xlu0 %v8808, 112
  %v8880 = vpop.permute.xlu0 %8879
  %8881 = vrot.lane.b32.xlu0 %v8812, 112
  %v8882 = vpop.permute.xlu0 %8881
  %8883 = vrot.lane.b32.xlu0 %v8816, 112
  %v8884 = vpop.permute.xlu0 %8883
  %8885 = vrot.lane.b32.xlu0 %v8820, 112
  %v8886 = vpop.permute.xlu0 %8885
  %8887 = vrot.lane.b32.xlu0 %v8824, 112
  %v8888 = vpop.permute.xlu0 %8887
  %8889 = vrot.lane.b32.xlu0 %v8828, 112
  %v8890 = vpop.permute.xlu0 %8889
  %8891 = vrot.lane.b32.xlu0 %v8832, 112
  %v8892 = vpop.permute.xlu0 %8891
  %8893 = vrot.lane.b32.xlu0 %v8836, 112
  %v8894 = vpop.permute.xlu0 %8893
  %8895 = vrot.lane.b32.xlu0 %v8840, 112
  %v8896 = vpop.permute.xlu0 %8895
  %8897 = vrot.lane.b32.xlu0 %v8844, 112
  %v8898 = vpop.permute.xlu0 %8897
  %8899 = vrot.lane.b32.xlu0 %v8848, 112
  %v8900 = vpop.permute.xlu0 %8899
  %8901 = vrot.lane.b32.xlu0 %v8852, 112
  %v8902 = vpop.permute.xlu0 %8901
  %8903 = vrot.lane.b32.xlu0 %v8856, 112
  %v8904 = vpop.permute.xlu0 %8903
  %v8905 = vsel %vm1506, %v8902, %v8904
  %v8906 = vsel %vm1506, %v8900, %v8902
  %v8907 = vsel %vm1506, %v8898, %v8900
  %v8908 = vsel %vm1506, %v8896, %v8898
  %v8909 = vsel %vm1506, %v8894, %v8896
  %v8910 = vsel %vm1506, %v8892, %v8894
  %v8911 = vsel %vm1506, %v8890, %v8892
  %v8912 = vsel %vm1506, %v8888, %v8890
  %v8913 = vsel %vm1506, %v8886, %v8888
  %v8914 = vsel %vm1506, %v8884, %v8886
  %v8915 = vsel %vm1506, %v8882, %v8884
  %v8916 = vsel %vm1506, %v8880, %v8882
  %v8917 = vsel %vm1506, %v8878, %v8880
  %v8918 = vsel %vm1506, %v8876, %v8878
  %v8919 = vsel %vm1506, %v8874, %v8876
  %v8920 = vsel %vm1506, %v8904, %v8874
  %v8921 = vsel %vm108, %v8919, 0.0
  %v8922 = vsel %vm109, %v8918, 0.0
  %v8923 = vsel %vm110, %v8917, 0.0
  %v8924 = vsel %vm111, %v8916, 0.0
  %v8925 = vsel %vm112, %v8915, 0.0
  %v8926 = vsel %vm113, %v8914, 0.0
  %v8927 = vsel %vm114, %v8913, 0.0
  %v8928 = vsel %vm115, %v8912, 0.0
  %v8929 = vsel %vm116, %v8911, 0.0
  %v8930 = vsel %vm117, %v8910, 0.0
  %v8931 = vsel %vm118, %v8909, 0.0
  %v8932 = vsel %vm119, %v8908, 0.0
  %v8933 = vsel %vm120, %v8907, 0.0
  %v8934 = vsel %vm121, %v8906, 0.0
  %v8935 = vsel %vm122, %v8905, 0.0
  %v8936 = vsel %vm123, %v8920, 0.0
  %v8937 = vadd.f32 %v8769, %v8921
  %v8938 = vadd.f32 %v8770, %v8922
  %v8939 = vadd.f32 %v8771, %v8923
  %v8940 = vadd.f32 %v8772, %v8924
  %v8941 = vadd.f32 %v8773, %v8925
  %v8942 = vadd.f32 %v8774, %v8926
  %v8943 = vadd.f32 %v8775, %v8927
  %v8944 = vadd.f32 %v8776, %v8928
  %v8945 = vadd.f32 %v8777, %v8929
  %v8946 = vadd.f32 %v8778, %v8930
  %v8947 = vadd.f32 %v8779, %v8931
  %v8948 = vadd.f32 %v8780, %v8932
  %v8949 = vadd.f32 %v8781, %v8933
  %v8950 = vadd.f32 %v8782, %v8934
  %v8951 = vadd.f32 %v8783, %v8935
  %v8952 = vadd.f32 %v8784, %v8936
  %v8953 = vld [vmem:[%s4468] ss:$8 sm:$0xf]
  %v8954 = vld [vmem:[%s4468] ss:$8 sm:$0xf0]
  %v8955 = vor.u32 %v8953, %v8954
  %v8956 = vld [vmem:[%s4472] ss:$8 sm:$0xf]
  %v8957 = vld [vmem:[%s4472] ss:$8 sm:$0xf0]
  %v8958 = vor.u32 %v8956, %v8957
  %v8961 = vlaneseq
  %v8962 = vshrl.u32 %v8961, 7
  %v8963 = vsub.s32 0, %v8962
  %v8964 = vrot.slane %v8955, %v8963
  %v8965 = vlaneseq
  %v8966 = vshrl.u32 %v8965, 7
  %v8967 = vsub.s32 1, %v8966
  %v8968 = vrot.slane %v8955, %v8967
  %v8969 = vlaneseq
  %v8970 = vshrl.u32 %v8969, 7
  %v8971 = vsub.s32 2, %v8970
  %v8972 = vrot.slane %v8955, %v8971
  %v8973 = vlaneseq
  %v8974 = vshrl.u32 %v8973, 7
  %v8975 = vsub.s32 3, %v8974
  %v8976 = vrot.slane %v8955, %v8975
  %v8977 = vlaneseq
  %v8978 = vshrl.u32 %v8977, 7
  %v8979 = vsub.s32 4, %v8978
  %v8980 = vrot.slane %v8955, %v8979
  %v8981 = vlaneseq
  %v8982 = vshrl.u32 %v8981, 7
  %v8983 = vsub.s32 5, %v8982
  %v8984 = vrot.slane %v8955, %v8983
  %v8985 = vlaneseq
  %v8986 = vshrl.u32 %v8985, 7
  %v8987 = vsub.s32 6, %v8986
  %v8988 = vrot.slane %v8955, %v8987
  %v8989 = vlaneseq
  %v8990 = vshrl.u32 %v8989, 7
  %v8991 = vsub.s32 7, %v8990
  %v8992 = vrot.slane %v8955, %v8991
  %v8993 = vlaneseq
  %v8994 = vshrl.u32 %v8993, 7
  %v8995 = vsub.s32 0, %v8994
  %v8996 = vrot.slane %v8958, %v8995
  %v8997 = vlaneseq
  %v8998 = vshrl.u32 %v8997, 7
  %v8999 = vsub.s32 1, %v8998
  %v9000 = vrot.slane %v8958, %v8999
  %v9001 = vlaneseq
  %v9002 = vshrl.u32 %v9001, 7
  %v9003 = vsub.s32 2, %v9002
  %v9004 = vrot.slane %v8958, %v9003
  %v9005 = vlaneseq
  %v9006 = vshrl.u32 %v9005, 7
  %v9007 = vsub.s32 3, %v9006
  %v9008 = vrot.slane %v8958, %v9007
  %v9009 = vlaneseq
  %v9010 = vshrl.u32 %v9009, 7
  %v9011 = vsub.s32 4, %v9010
  %v9012 = vrot.slane %v8958, %v9011
  %v9013 = vlaneseq
  %v9014 = vshrl.u32 %v9013, 7
  %v9015 = vsub.s32 5, %v9014
  %v9016 = vrot.slane %v8958, %v9015
  %v9017 = vlaneseq
  %v9018 = vshrl.u32 %v9017, 7
  %v9019 = vsub.s32 6, %v9018
  %v9020 = vrot.slane %v8958, %v9019
  %v9021 = vlaneseq
  %v9022 = vshrl.u32 %v9021, 7
  %v9023 = vsub.s32 7, %v9022
  %v9024 = vrot.slane %v8958, %v9023
  %9041 = vrot.lane.b32.xlu0 %v8964, 111
  %v9042 = vpop.permute.xlu0 %9041
  %9043 = vrot.lane.b32.xlu0 %v8968, 111
  %v9044 = vpop.permute.xlu0 %9043
  %9045 = vrot.lane.b32.xlu0 %v8972, 111
  %v9046 = vpop.permute.xlu0 %9045
  %9047 = vrot.lane.b32.xlu0 %v8976, 111
  %v9048 = vpop.permute.xlu0 %9047
  %9049 = vrot.lane.b32.xlu0 %v8980, 111
  %v9050 = vpop.permute.xlu0 %9049
  %9051 = vrot.lane.b32.xlu0 %v8984, 111
  %v9052 = vpop.permute.xlu0 %9051
  %9053 = vrot.lane.b32.xlu0 %v8988, 111
  %v9054 = vpop.permute.xlu0 %9053
  %9055 = vrot.lane.b32.xlu0 %v8992, 111
  %v9056 = vpop.permute.xlu0 %9055
  %9057 = vrot.lane.b32.xlu0 %v8996, 111
  %v9058 = vpop.permute.xlu0 %9057
  %9059 = vrot.lane.b32.xlu0 %v9000, 111
  %v9060 = vpop.permute.xlu0 %9059
  %9061 = vrot.lane.b32.xlu0 %v9004, 111
  %v9062 = vpop.permute.xlu0 %9061
  %9063 = vrot.lane.b32.xlu0 %v9008, 111
  %v9064 = vpop.permute.xlu0 %9063
  %9065 = vrot.lane.b32.xlu0 %v9012, 111
  %v9066 = vpop.permute.xlu0 %9065
  %9067 = vrot.lane.b32.xlu0 %v9016, 111
  %v9068 = vpop.permute.xlu0 %9067
  %9069 = vrot.lane.b32.xlu0 %v9020, 111
  %v9070 = vpop.permute.xlu0 %9069
  %9071 = vrot.lane.b32.xlu0 %v9024, 111
  %v9072 = vpop.permute.xlu0 %9071
  %v9073 = vsel %vm1693, %v9070, %v9072
  %v9074 = vsel %vm1693, %v9068, %v9070
  %v9075 = vsel %vm1693, %v9066, %v9068
  %v9076 = vsel %vm1693, %v9064, %v9066
  %v9077 = vsel %vm1693, %v9062, %v9064
  %v9078 = vsel %vm1693, %v9060, %v9062
  %v9079 = vsel %vm1693, %v9058, %v9060
  %v9080 = vsel %vm1693, %v9056, %v9058
  %v9081 = vsel %vm1693, %v9054, %v9056
  %v9082 = vsel %vm1693, %v9052, %v9054
  %v9083 = vsel %vm1693, %v9050, %v9052
  %v9084 = vsel %vm1693, %v9048, %v9050
  %v9085 = vsel %vm1693, %v9046, %v9048
  %v9086 = vsel %vm1693, %v9044, %v9046
  %v9087 = vsel %vm1693, %v9042, %v9044
  %v9088 = vsel %vm1693, %v9072, %v9042
  %v9089 = vsel %vm204, %v9087, 0.0
  %v9090 = vsel %vm205, %v9086, 0.0
  %v9091 = vsel %vm206, %v9085, 0.0
  %v9092 = vsel %vm207, %v9084, 0.0
  %v9093 = vsel %vm208, %v9083, 0.0
  %v9094 = vsel %vm209, %v9082, 0.0
  %v9095 = vsel %vm210, %v9081, 0.0
  %v9096 = vsel %vm211, %v9080, 0.0
  %v9097 = vsel %vm212, %v9079, 0.0
  %v9098 = vsel %vm213, %v9078, 0.0
  %v9099 = vsel %vm214, %v9077, 0.0
  %v9100 = vsel %vm215, %v9076, 0.0
  %v9101 = vsel %vm216, %v9075, 0.0
  %v9102 = vsel %vm217, %v9074, 0.0
  %v9103 = vsel %vm218, %v9073, 0.0
  %v9104 = vsel %vm219, %v9088, 0.0
  %v9105 = vadd.f32 %v8937, %v9089
  %v9106 = vadd.f32 %v8938, %v9090
  %v9107 = vadd.f32 %v8939, %v9091
  %v9108 = vadd.f32 %v8940, %v9092
  %v9109 = vadd.f32 %v8941, %v9093
  %v9110 = vadd.f32 %v8942, %v9094
  %v9111 = vadd.f32 %v8943, %v9095
  %v9112 = vadd.f32 %v8944, %v9096
  %v9113 = vadd.f32 %v8945, %v9097
  %v9114 = vadd.f32 %v8946, %v9098
  %v9115 = vadd.f32 %v8947, %v9099
  %v9116 = vadd.f32 %v8948, %v9100
  %v9117 = vadd.f32 %v8949, %v9101
  %v9118 = vadd.f32 %v8950, %v9102
  %v9119 = vadd.f32 %v8951, %v9103
  %v9120 = vadd.f32 %v8952, %v9104
  %v9121 = vadd.f32 %v9105, %v4638
  %v9122 = vadd.f32 %v9106, %v4638
  %v9123 = vadd.f32 %v9107, %v4638
  %v9124 = vadd.f32 %v9108, %v4638
  %v9125 = vadd.f32 %v9109, %v4638
  %v9126 = vadd.f32 %v9110, %v4638
  %v9127 = vadd.f32 %v9111, %v4638
  %v9128 = vadd.f32 %v9112, %v4638
  %v9129 = vadd.f32 %v9113, %v4638
  %v9130 = vadd.f32 %v9114, %v4638
  %v9131 = vadd.f32 %v9115, %v4638
  %v9132 = vadd.f32 %v9116, %v4638
  %v9133 = vadd.f32 %v9117, %v4638
  %v9134 = vadd.f32 %v9118, %v4638
  %v9135 = vadd.f32 %v9119, %v4638
  %v9136 = vadd.f32 %v9120, %v4638
  %v9137 = vadd.f32 %v9121, %v4660
  %v9138 = vadd.f32 %v9122, %v4664
  %v9139 = vadd.f32 %v9123, %v4668
  %v9140 = vadd.f32 %v9124, %v4672
  %v9141 = vadd.f32 %v9125, %v4676
  %v9142 = vadd.f32 %v9126, %v4680
  %v9143 = vadd.f32 %v9127, %v4684
  %v9144 = vadd.f32 %v9128, %v4688
  %v9145 = vadd.f32 %v9129, %v4692
  %v9146 = vadd.f32 %v9130, %v4696
  %v9147 = vadd.f32 %v9131, %v4700
  %v9148 = vadd.f32 %v9132, %v4704
  %v9149 = vadd.f32 %v9133, %v4708
  %v9150 = vadd.f32 %v9134, %v4712
  %v9151 = vadd.f32 %v9135, %v4716
  %v9152 = vadd.f32 %v9136, %v4720
  %v9153 = vmax.f32 %v9137, 0.0
  %v9154 = vmax.f32 %v9138, 0.0
  %v9155 = vmax.f32 %v9139, 0.0
  %v9156 = vmax.f32 %v9140, 0.0
  %v9157 = vmax.f32 %v9141, 0.0
  %v9158 = vmax.f32 %v9142, 0.0
  %v9159 = vmax.f32 %v9143, 0.0
  %v9160 = vmax.f32 %v9144, 0.0
  %v9161 = vmax.f32 %v9145, 0.0
  %v9162 = vmax.f32 %v9146, 0.0
  %v9163 = vmax.f32 %v9147, 0.0
  %v9164 = vmax.f32 %v9148, 0.0
  %v9165 = vmax.f32 %v9149, 0.0
  %v9166 = vmax.f32 %v9150, 0.0
  %v9167 = vmax.f32 %v9151, 0.0
  %v9168 = vmax.f32 %v9152, 0.0
  %9169 = vrot.lane.b32.xlu0 %v9153, 17
  %v9170 = vpop.permute.xlu0 %9169
  %9171 = vrot.lane.b32.xlu0 %v9154, 17
  %v9172 = vpop.permute.xlu0 %9171
  %9173 = vrot.lane.b32.xlu0 %v9155, 17
  %v9174 = vpop.permute.xlu0 %9173
  %9175 = vrot.lane.b32.xlu0 %v9156, 17
  %v9176 = vpop.permute.xlu0 %9175
  %9177 = vrot.lane.b32.xlu0 %v9157, 17
  %v9178 = vpop.permute.xlu0 %9177
  %9179 = vrot.lane.b32.xlu0 %v9158, 17
  %v9180 = vpop.permute.xlu0 %9179
  %9181 = vrot.lane.b32.xlu0 %v9159, 17
  %v9182 = vpop.permute.xlu0 %9181
  %9183 = vrot.lane.b32.xlu0 %v9160, 17
  %v9184 = vpop.permute.xlu0 %9183
  %9185 = vrot.lane.b32.xlu0 %v9161, 17
  %v9186 = vpop.permute.xlu0 %9185
  %9187 = vrot.lane.b32.xlu0 %v9162, 17
  %v9188 = vpop.permute.xlu0 %9187
  %9189 = vrot.lane.b32.xlu0 %v9163, 17
  %v9190 = vpop.permute.xlu0 %9189
  %9191 = vrot.lane.b32.xlu0 %v9164, 17
  %v9192 = vpop.permute.xlu0 %9191
  %9193 = vrot.lane.b32.xlu0 %v9165, 17
  %v9194 = vpop.permute.xlu0 %9193
  %9195 = vrot.lane.b32.xlu0 %v9166, 17
  %v9196 = vpop.permute.xlu0 %9195
  %9197 = vrot.lane.b32.xlu0 %v9167, 17
  %v9198 = vpop.permute.xlu0 %9197
  %9199 = vrot.lane.b32.xlu0 %v9168, 17
  %v9200 = vpop.permute.xlu0 %9199
  %v9201 = vsel %vm379, %v9198, %v9200
  %v9202 = vsel %vm379, %v9196, %v9198
  %v9203 = vsel %vm379, %v9194, %v9196
  %v9204 = vsel %vm379, %v9192, %v9194
  %v9205 = vsel %vm379, %v9190, %v9192
  %v9206 = vsel %vm379, %v9188, %v9190
  %v9207 = vsel %vm379, %v9186, %v9188
  %v9208 = vsel %vm379, %v9184, %v9186
  %v9209 = vsel %vm379, %v9182, %v9184
  %v9210 = vsel %vm379, %v9180, %v9182
  %v9211 = vsel %vm379, %v9178, %v9180
  %v9212 = vsel %vm379, %v9176, %v9178
  %v9213 = vsel %vm379, %v9174, %v9176
  %v9214 = vsel %vm379, %v9172, %v9174
  %v9215 = vsel %vm379, %v9170, %v9172
  %v9216 = vsel %vm379, %v9200, %v9170
  %v9217 = vsel %vm156, %v9216, 0.0
  %v9218 = vsel %vm157, %v9215, 0.0
  %v9219 = vsel %vm158, %v9214, 0.0
  %v9220 = vsel %vm159, %v9213, 0.0
  %v9221 = vsel %vm160, %v9212, 0.0
  %v9222 = vsel %vm161, %v9211, 0.0
  %v9223 = vsel %vm162, %v9210, 0.0
  %v9224 = vsel %vm163, %v9209, 0.0
  %v9225 = vsel %vm164, %v9208, 0.0
  %v9226 = vsel %vm165, %v9207, 0.0
  %v9227 = vsel %vm166, %v9206, 0.0
  %v9228 = vsel %vm167, %v9205, 0.0
  %v9229 = vsel %vm168, %v9204, 0.0
  %v9230 = vsel %vm169, %v9203, 0.0
  %v9231 = vsel %vm170, %v9202, 0.0
  %v9232 = vsel %vm171, %v9201, 0.0
  %v9249 = vcombine.low %v9217, %v9218
  %v9250 = vcombine.low %v9219, %v9220
  %v9251 = vcombine.low %v9221, %v9222
  %v9252 = vcombine.low %v9223, %v9224
  %v9254 = vunpack.c.l.s4 1966171168
  %v9255 = vunpack.c.0.s8 %v9254
  %v9256 = vlaneseq
  %v9257 = vshrl.u32 %v9256, 7
  %v9258 = vsub.s32 %v9255, %v9257
  %v9259 = vrot.slane %v9249, %v9258
  %v9261 = vunpack.c.l.s4 1966171168
  %v9262 = vunpack.c.0.s8 %v9261
  %v9263 = vlaneseq
  %v9264 = vshrl.u32 %v9263, 7
  %v9265 = vsub.s32 %v9262, %v9264
  %v9266 = vrot.slane %v9250, %v9265
  %v9268 = vunpack.c.l.s4 1966171168
  %v9269 = vunpack.c.0.s8 %v9268
  %v9270 = vlaneseq
  %v9271 = vshrl.u32 %v9270, 7
  %v9272 = vsub.s32 %v9269, %v9271
  %v9273 = vrot.slane %v9251, %v9272
  %v9275 = vunpack.c.l.s4 1966171168
  %v9276 = vunpack.c.0.s8 %v9275
  %v9277 = vlaneseq
  %v9278 = vshrl.u32 %v9277, 7
  %v9279 = vsub.s32 %v9276, %v9278
  %v9280 = vrot.slane %v9252, %v9279
  %v9281 = vcombine.low %v9259, %v9266
  %v9282 = vcombine.low %v9273, %v9280
  %v9284 = vunpack.c.l.s4 1966171168
  %v9285 = vunpack.c.0.s8 %v9284
  %v9286 = vlaneseq
  %v9287 = vshrl.u32 %v9286, 7
  %v9288 = vsub.s32 %v9285, %v9287
  %v9289 = vrot.slane %v9281, %v9288
  %v9291 = vunpack.c.l.s4 1966171168
  %v9292 = vunpack.c.0.s8 %v9291
  %v9293 = vlaneseq
  %v9294 = vshrl.u32 %v9293, 7
  %v9295 = vsub.s32 %v9292, %v9294
  %v9296 = vrot.slane %v9282, %v9295
  %v9297 = vcombine.low %v9289, %v9296
  %v9298 = vcombine.low %v9225, %v9226
  %v9299 = vcombine.low %v9227, %v9228
  %v9300 = vcombine.low %v9229, %v9230
  %v9301 = vcombine.low %v9231, %v9232
  %v9303 = vunpack.c.l.s4 1966171168
  %v9304 = vunpack.c.0.s8 %v9303
  %v9305 = vlaneseq
  %v9306 = vshrl.u32 %v9305, 7
  %v9307 = vsub.s32 %v9304, %v9306
  %v9308 = vrot.slane %v9298, %v9307
  %v9310 = vunpack.c.l.s4 1966171168
  %v9311 = vunpack.c.0.s8 %v9310
  %v9312 = vlaneseq
  %v9313 = vshrl.u32 %v9312, 7
  %v9314 = vsub.s32 %v9311, %v9313
  %v9315 = vrot.slane %v9299, %v9314
  %v9317 = vunpack.c.l.s4 1966171168
  %v9318 = vunpack.c.0.s8 %v9317
  %v9319 = vlaneseq
  %v9320 = vshrl.u32 %v9319, 7
  %v9321 = vsub.s32 %v9318, %v9320
  %v9322 = vrot.slane %v9300, %v9321
  %v9324 = vunpack.c.l.s4 1966171168
  %v9325 = vunpack.c.0.s8 %v9324
  %v9326 = vlaneseq
  %v9327 = vshrl.u32 %v9326, 7
  %v9328 = vsub.s32 %v9325, %v9327
  %v9329 = vrot.slane %v9301, %v9328
  %v9330 = vcombine.low %v9308, %v9315
  %v9331 = vcombine.low %v9322, %v9329
  %v9333 = vunpack.c.l.s4 1966171168
  %v9334 = vunpack.c.0.s8 %v9333
  %v9335 = vlaneseq
  %v9336 = vshrl.u32 %v9335, 7
  %v9337 = vsub.s32 %v9334, %v9336
  %v9338 = vrot.slane %v9330, %v9337
  %v9340 = vunpack.c.l.s4 1966171168
  %v9341 = vunpack.c.0.s8 %v9340
  %v9342 = vlaneseq
  %v9343 = vshrl.u32 %v9342, 7
  %v9344 = vsub.s32 %v9341, %v9343
  %v9345 = vrot.slane %v9331, %v9344
  %v9346 = vcombine.low %v9338, %v9345
  %9349 = vst [vmem:[#allocation2] ss:$8 sm:$0xf] %v9297
  %9350 = vst [vmem:[#allocation2] ss:$8 sm:$0xf0] %v9297
  %9351 = vst [vmem:[%s530] ss:$8 sm:$0xf] %v9346
  %9352 = vst [vmem:[%s530] ss:$8 sm:$0xf0] %v9346
  %9353 = vrot.lane.b32.xlu0 %v9153, 16
  %v9354 = vpop.permute.xlu0 %9353
  %9355 = vrot.lane.b32.xlu0 %v9154, 16
  %v9356 = vpop.permute.xlu0 %9355
  %9357 = vrot.lane.b32.xlu0 %v9155, 16
  %v9358 = vpop.permute.xlu0 %9357
  %9359 = vrot.lane.b32.xlu0 %v9156, 16
  %v9360 = vpop.permute.xlu0 %9359
  %9361 = vrot.lane.b32.xlu0 %v9157, 16
  %v9362 = vpop.permute.xlu0 %9361
  %9363 = vrot.lane.b32.xlu0 %v9158, 16
  %v9364 = vpop.permute.xlu0 %9363
  %9365 = vrot.lane.b32.xlu0 %v9159, 16
  %v9366 = vpop.permute.xlu0 %9365
  %9367 = vrot.lane.b32.xlu0 %v9160, 16
  %v9368 = vpop.permute.xlu0 %9367
  %9369 = vrot.lane.b32.xlu0 %v9161, 16
  %v9370 = vpop.permute.xlu0 %9369
  %9371 = vrot.lane.b32.xlu0 %v9162, 16
  %v9372 = vpop.permute.xlu0 %9371
  %9373 = vrot.lane.b32.xlu0 %v9163, 16
  %v9374 = vpop.permute.xlu0 %9373
  %9375 = vrot.lane.b32.xlu0 %v9164, 16
  %v9376 = vpop.permute.xlu0 %9375
  %9377 = vrot.lane.b32.xlu0 %v9165, 16
  %v9378 = vpop.permute.xlu0 %9377
  %9379 = vrot.lane.b32.xlu0 %v9166, 16
  %v9380 = vpop.permute.xlu0 %9379
  %9381 = vrot.lane.b32.xlu0 %v9167, 16
  %v9382 = vpop.permute.xlu0 %9381
  %9383 = vrot.lane.b32.xlu0 %v9168, 16
  %v9384 = vpop.permute.xlu0 %9383
  %v9385 = vsel %vm565, %v9382, %v9384
  %v9386 = vsel %vm565, %v9380, %v9382
  %v9387 = vsel %vm565, %v9378, %v9380
  %v9388 = vsel %vm565, %v9376, %v9378
  %v9389 = vsel %vm565, %v9374, %v9376
  %v9390 = vsel %vm565, %v9372, %v9374
  %v9391 = vsel %vm565, %v9370, %v9372
  %v9392 = vsel %vm565, %v9368, %v9370
  %v9393 = vsel %vm565, %v9366, %v9368
  %v9394 = vsel %vm565, %v9364, %v9366
  %v9395 = vsel %vm565, %v9362, %v9364
  %v9396 = vsel %vm565, %v9360, %v9362
  %v9397 = vsel %vm565, %v9358, %v9360
  %v9398 = vsel %vm565, %v9356, %v9358
  %v9399 = vsel %vm565, %v9354, %v9356
  %v9400 = vsel %vm565, %v9384, %v9354
  %v9401 = vsel %vm92, %v9400, 0.0
  %v9402 = vsel %vm93, %v9399, 0.0
  %v9403 = vsel %vm94, %v9398, 0.0
  %v9404 = vsel %vm95, %v9397, 0.0
  %v9405 = vsel %vm96, %v9396, 0.0
  %v9406 = vsel %vm97, %v9395, 0.0
  %v9407 = vsel %vm98, %v9394, 0.0
  %v9408 = vsel %vm99, %v9393, 0.0
  %v9409 = vsel %vm100, %v9392, 0.0
  %v9410 = vsel %vm101, %v9391, 0.0
  %v9411 = vsel %vm102, %v9390, 0.0
  %v9412 = vsel %vm103, %v9389, 0.0
  %v9413 = vsel %vm104, %v9388, 0.0
  %v9414 = vsel %vm105, %v9387, 0.0
  %v9415 = vsel %vm106, %v9386, 0.0
  %v9416 = vsel %vm107, %v9385, 0.0
  %v9433 = vcombine.low %v9401, %v9402
  %v9434 = vcombine.low %v9403, %v9404
  %v9435 = vcombine.low %v9405, %v9406
  %v9436 = vcombine.low %v9407, %v9408
  %v9438 = vunpack.c.l.s4 1966171168
  %v9439 = vunpack.c.0.s8 %v9438
  %v9440 = vlaneseq
  %v9441 = vshrl.u32 %v9440, 7
  %v9442 = vsub.s32 %v9439, %v9441
  %v9443 = vrot.slane %v9433, %v9442
  %v9445 = vunpack.c.l.s4 1966171168
  %v9446 = vunpack.c.0.s8 %v9445
  %v9447 = vlaneseq
  %v9448 = vshrl.u32 %v9447, 7
  %v9449 = vsub.s32 %v9446, %v9448
  %v9450 = vrot.slane %v9434, %v9449
  %v9452 = vunpack.c.l.s4 1966171168
  %v9453 = vunpack.c.0.s8 %v9452
  %v9454 = vlaneseq
  %v9455 = vshrl.u32 %v9454, 7
  %v9456 = vsub.s32 %v9453, %v9455
  %v9457 = vrot.slane %v9435, %v9456
  %v9459 = vunpack.c.l.s4 1966171168
  %v9460 = vunpack.c.0.s8 %v9459
  %v9461 = vlaneseq
  %v9462 = vshrl.u32 %v9461, 7
  %v9463 = vsub.s32 %v9460, %v9462
  %v9464 = vrot.slane %v9436, %v9463
  %v9465 = vcombine.low %v9443, %v9450
  %v9466 = vcombine.low %v9457, %v9464
  %v9468 = vunpack.c.l.s4 1966171168
  %v9469 = vunpack.c.0.s8 %v9468
  %v9470 = vlaneseq
  %v9471 = vshrl.u32 %v9470, 7
  %v9472 = vsub.s32 %v9469, %v9471
  %v9473 = vrot.slane %v9465, %v9472
  %v9475 = vunpack.c.l.s4 1966171168
  %v9476 = vunpack.c.0.s8 %v9475
  %v9477 = vlaneseq
  %v9478 = vshrl.u32 %v9477, 7
  %v9479 = vsub.s32 %v9476, %v9478
  %v9480 = vrot.slane %v9466, %v9479
  %v9481 = vcombine.low %v9473, %v9480
  %v9482 = vcombine.low %v9409, %v9410
  %v9483 = vcombine.low %v9411, %v9412
  %v9484 = vcombine.low %v9413, %v9414
  %v9485 = vcombine.low %v9415, %v9416
  %v9487 = vunpack.c.l.s4 1966171168
  %v9488 = vunpack.c.0.s8 %v9487
  %v9489 = vlaneseq
  %v9490 = vshrl.u32 %v9489, 7
  %v9491 = vsub.s32 %v9488, %v9490
  %v9492 = vrot.slane %v9482, %v9491
  %v9494 = vunpack.c.l.s4 1966171168
  %v9495 = vunpack.c.0.s8 %v9494
  %v9496 = vlaneseq
  %v9497 = vshrl.u32 %v9496, 7
  %v9498 = vsub.s32 %v9495, %v9497
  %v9499 = vrot.slane %v9483, %v9498
  %v9501 = vunpack.c.l.s4 1966171168
  %v9502 = vunpack.c.0.s8 %v9501
  %v9503 = vlaneseq
  %v9504 = vshrl.u32 %v9503, 7
  %v9505 = vsub.s32 %v9502, %v9504
  %v9506 = vrot.slane %v9484, %v9505
  %v9508 = vunpack.c.l.s4 1966171168
  %v9509 = vunpack.c.0.s8 %v9508
  %v9510 = vlaneseq
  %v9511 = vshrl.u32 %v9510, 7
  %v9512 = vsub.s32 %v9509, %v9511
  %v9513 = vrot.slane %v9485, %v9512
  %v9514 = vcombine.low %v9492, %v9499
  %v9515 = vcombine.low %v9506, %v9513
  %v9517 = vunpack.c.l.s4 1966171168
  %v9518 = vunpack.c.0.s8 %v9517
  %v9519 = vlaneseq
  %v9520 = vshrl.u32 %v9519, 7
  %v9521 = vsub.s32 %v9518, %v9520
  %v9522 = vrot.slane %v9514, %v9521
  %v9524 = vunpack.c.l.s4 1966171168
  %v9525 = vunpack.c.0.s8 %v9524
  %v9526 = vlaneseq
  %v9527 = vshrl.u32 %v9526, 7
  %v9528 = vsub.s32 %v9525, %v9527
  %v9529 = vrot.slane %v9515, %v9528
  %v9530 = vcombine.low %v9522, %v9529
  %9533 = vst [vmem:[%s714] ss:$8 sm:$0xf] %v9481
  %9534 = vst [vmem:[%s714] ss:$8 sm:$0xf0] %v9481
  %9535 = vst [vmem:[%s717] ss:$8 sm:$0xf] %v9530
  %9536 = vst [vmem:[%s717] ss:$8 sm:$0xf0] %v9530
  %9537 = vrot.lane.b32.xlu0 %v9153, 15
  %v9538 = vpop.permute.xlu0 %9537
  %9539 = vrot.lane.b32.xlu0 %v9154, 15
  %v9540 = vpop.permute.xlu0 %9539
  %9541 = vrot.lane.b32.xlu0 %v9155, 15
  %v9542 = vpop.permute.xlu0 %9541
  %9543 = vrot.lane.b32.xlu0 %v9156, 15
  %v9544 = vpop.permute.xlu0 %9543
  %9545 = vrot.lane.b32.xlu0 %v9157, 15
  %v9546 = vpop.permute.xlu0 %9545
  %9547 = vrot.lane.b32.xlu0 %v9158, 15
  %v9548 = vpop.permute.xlu0 %9547
  %9549 = vrot.lane.b32.xlu0 %v9159, 15
  %v9550 = vpop.permute.xlu0 %9549
  %9551 = vrot.lane.b32.xlu0 %v9160, 15
  %v9552 = vpop.permute.xlu0 %9551
  %9553 = vrot.lane.b32.xlu0 %v9161, 15
  %v9554 = vpop.permute.xlu0 %9553
  %9555 = vrot.lane.b32.xlu0 %v9162, 15
  %v9556 = vpop.permute.xlu0 %9555
  %9557 = vrot.lane.b32.xlu0 %v9163, 15
  %v9558 = vpop.permute.xlu0 %9557
  %9559 = vrot.lane.b32.xlu0 %v9164, 15
  %v9560 = vpop.permute.xlu0 %9559
  %9561 = vrot.lane.b32.xlu0 %v9165, 15
  %v9562 = vpop.permute.xlu0 %9561
  %9563 = vrot.lane.b32.xlu0 %v9166, 15
  %v9564 = vpop.permute.xlu0 %9563
  %9565 = vrot.lane.b32.xlu0 %v9167, 15
  %v9566 = vpop.permute.xlu0 %9565
  %9567 = vrot.lane.b32.xlu0 %v9168, 15
  %v9568 = vpop.permute.xlu0 %9567
  %v9569 = vsel %vm752, %v9566, %v9568
  %v9570 = vsel %vm752, %v9564, %v9566
  %v9571 = vsel %vm752, %v9562, %v9564
  %v9572 = vsel %vm752, %v9560, %v9562
  %v9573 = vsel %vm752, %v9558, %v9560
  %v9574 = vsel %vm752, %v9556, %v9558
  %v9575 = vsel %vm752, %v9554, %v9556
  %v9576 = vsel %vm752, %v9552, %v9554
  %v9577 = vsel %vm752, %v9550, %v9552
  %v9578 = vsel %vm752, %v9548, %v9550
  %v9579 = vsel %vm752, %v9546, %v9548
  %v9580 = vsel %vm752, %v9544, %v9546
  %v9581 = vsel %vm752, %v9542, %v9544
  %v9582 = vsel %vm752, %v9540, %v9542
  %v9583 = vsel %vm752, %v9538, %v9540
  %v9584 = vsel %vm752, %v9568, %v9538
  %v9585 = vsel %vm172, %v9584, 0.0
  %v9586 = vsel %vm173, %v9583, 0.0
  %v9587 = vsel %vm174, %v9582, 0.0
  %v9588 = vsel %vm175, %v9581, 0.0
  %v9589 = vsel %vm176, %v9580, 0.0
  %v9590 = vsel %vm177, %v9579, 0.0
  %v9591 = vsel %vm178, %v9578, 0.0
  %v9592 = vsel %vm179, %v9577, 0.0
  %v9593 = vsel %vm180, %v9576, 0.0
  %v9594 = vsel %vm181, %v9575, 0.0
  %v9595 = vsel %vm182, %v9574, 0.0
  %v9596 = vsel %vm183, %v9573, 0.0
  %v9597 = vsel %vm184, %v9572, 0.0
  %v9598 = vsel %vm185, %v9571, 0.0
  %v9599 = vsel %vm186, %v9570, 0.0
  %v9600 = vsel %vm187, %v9569, 0.0
  %v9617 = vcombine.low %v9585, %v9586
  %v9618 = vcombine.low %v9587, %v9588
  %v9619 = vcombine.low %v9589, %v9590
  %v9620 = vcombine.low %v9591, %v9592
  %v9622 = vunpack.c.l.s4 1966171168
  %v9623 = vunpack.c.0.s8 %v9622
  %v9624 = vlaneseq
  %v9625 = vshrl.u32 %v9624, 7
  %v9626 = vsub.s32 %v9623, %v9625
  %v9627 = vrot.slane %v9617, %v9626
  %v9629 = vunpack.c.l.s4 1966171168
  %v9630 = vunpack.c.0.s8 %v9629
  %v9631 = vlaneseq
  %v9632 = vshrl.u32 %v9631, 7
  %v9633 = vsub.s32 %v9630, %v9632
  %v9634 = vrot.slane %v9618, %v9633
  %v9636 = vunpack.c.l.s4 1966171168
  %v9637 = vunpack.c.0.s8 %v9636
  %v9638 = vlaneseq
  %v9639 = vshrl.u32 %v9638, 7
  %v9640 = vsub.s32 %v9637, %v9639
  %v9641 = vrot.slane %v9619, %v9640
  %v9643 = vunpack.c.l.s4 1966171168
  %v9644 = vunpack.c.0.s8 %v9643
  %v9645 = vlaneseq
  %v9646 = vshrl.u32 %v9645, 7
  %v9647 = vsub.s32 %v9644, %v9646
  %v9648 = vrot.slane %v9620, %v9647
  %v9649 = vcombine.low %v9627, %v9634
  %v9650 = vcombine.low %v9641, %v9648
  %v9652 = vunpack.c.l.s4 1966171168
  %v9653 = vunpack.c.0.s8 %v9652
  %v9654 = vlaneseq
  %v9655 = vshrl.u32 %v9654, 7
  %v9656 = vsub.s32 %v9653, %v9655
  %v9657 = vrot.slane %v9649, %v9656
  %v9659 = vunpack.c.l.s4 1966171168
  %v9660 = vunpack.c.0.s8 %v9659
  %v9661 = vlaneseq
  %v9662 = vshrl.u32 %v9661, 7
  %v9663 = vsub.s32 %v9660, %v9662
  %v9664 = vrot.slane %v9650, %v9663
  %v9665 = vcombine.low %v9657, %v9664
  %v9666 = vcombine.low %v9593, %v9594
  %v9667 = vcombine.low %v9595, %v9596
  %v9668 = vcombine.low %v9597, %v9598
  %v9669 = vcombine.low %v9599, %v9600
  %v9671 = vunpack.c.l.s4 1966171168
  %v9672 = vunpack.c.0.s8 %v9671
  %v9673 = vlaneseq
  %v9674 = vshrl.u32 %v9673, 7
  %v9675 = vsub.s32 %v9672, %v9674
  %v9676 = vrot.slane %v9666, %v9675
  %v9678 = vunpack.c.l.s4 1966171168
  %v9679 = vunpack.c.0.s8 %v9678
  %v9680 = vlaneseq
  %v9681 = vshrl.u32 %v9680, 7
  %v9682 = vsub.s32 %v9679, %v9681
  %v9683 = vrot.slane %v9667, %v9682
  %v9685 = vunpack.c.l.s4 1966171168
  %v9686 = vunpack.c.0.s8 %v9685
  %v9687 = vlaneseq
  %v9688 = vshrl.u32 %v9687, 7
  %v9689 = vsub.s32 %v9686, %v9688
  %v9690 = vrot.slane %v9668, %v9689
  %v9692 = vunpack.c.l.s4 1966171168
  %v9693 = vunpack.c.0.s8 %v9692
  %v9694 = vlaneseq
  %v9695 = vshrl.u32 %v9694, 7
  %v9696 = vsub.s32 %v9693, %v9695
  %v9697 = vrot.slane %v9669, %v9696
  %v9698 = vcombine.low %v9676, %v9683
  %v9699 = vcombine.low %v9690, %v9697
  %v9701 = vunpack.c.l.s4 1966171168
  %v9702 = vunpack.c.0.s8 %v9701
  %v9703 = vlaneseq
  %v9704 = vshrl.u32 %v9703, 7
  %v9705 = vsub.s32 %v9702, %v9704
  %v9706 = vrot.slane %v9698, %v9705
  %v9708 = vunpack.c.l.s4 1966171168
  %v9709 = vunpack.c.0.s8 %v9708
  %v9710 = vlaneseq
  %v9711 = vshrl.u32 %v9710, 7
  %v9712 = vsub.s32 %v9709, %v9711
  %v9713 = vrot.slane %v9699, %v9712
  %v9714 = vcombine.low %v9706, %v9713
  %9717 = vst [vmem:[%s901] ss:$8 sm:$0xf] %v9665
  %9718 = vst [vmem:[%s901] ss:$8 sm:$0xf0] %v9665
  %9719 = vst [vmem:[%s904] ss:$8 sm:$0xf] %v9714
  %9720 = vst [vmem:[%s904] ss:$8 sm:$0xf0] %v9714
  %9721 = vrot.lane.b32.xlu0 %v9153, 1
  %v9722 = vpop.permute.xlu0 %9721
  %9723 = vrot.lane.b32.xlu0 %v9154, 1
  %v9724 = vpop.permute.xlu0 %9723
  %9725 = vrot.lane.b32.xlu0 %v9155, 1
  %v9726 = vpop.permute.xlu0 %9725
  %9727 = vrot.lane.b32.xlu0 %v9156, 1
  %v9728 = vpop.permute.xlu0 %9727
  %9729 = vrot.lane.b32.xlu0 %v9157, 1
  %v9730 = vpop.permute.xlu0 %9729
  %9731 = vrot.lane.b32.xlu0 %v9158, 1
  %v9732 = vpop.permute.xlu0 %9731
  %9733 = vrot.lane.b32.xlu0 %v9159, 1
  %v9734 = vpop.permute.xlu0 %9733
  %9735 = vrot.lane.b32.xlu0 %v9160, 1
  %v9736 = vpop.permute.xlu0 %9735
  %9737 = vrot.lane.b32.xlu0 %v9161, 1
  %v9738 = vpop.permute.xlu0 %9737
  %9739 = vrot.lane.b32.xlu0 %v9162, 1
  %v9740 = vpop.permute.xlu0 %9739
  %9741 = vrot.lane.b32.xlu0 %v9163, 1
  %v9742 = vpop.permute.xlu0 %9741
  %9743 = vrot.lane.b32.xlu0 %v9164, 1
  %v9744 = vpop.permute.xlu0 %9743
  %9745 = vrot.lane.b32.xlu0 %v9165, 1
  %v9746 = vpop.permute.xlu0 %9745
  %9747 = vrot.lane.b32.xlu0 %v9166, 1
  %v9748 = vpop.permute.xlu0 %9747
  %9749 = vrot.lane.b32.xlu0 %v9167, 1
  %v9750 = vpop.permute.xlu0 %9749
  %9751 = vrot.lane.b32.xlu0 %v9168, 1
  %v9752 = vpop.permute.xlu0 %9751
  %v9753 = vsel %vm939, %v9750, %v9752
  %v9754 = vsel %vm939, %v9748, %v9750
  %v9755 = vsel %vm939, %v9746, %v9748
  %v9756 = vsel %vm939, %v9744, %v9746
  %v9757 = vsel %vm939, %v9742, %v9744
  %v9758 = vsel %vm939, %v9740, %v9742
  %v9759 = vsel %vm939, %v9738, %v9740
  %v9760 = vsel %vm939, %v9736, %v9738
  %v9761 = vsel %vm939, %v9734, %v9736
  %v9762 = vsel %vm939, %v9732, %v9734
  %v9763 = vsel %vm939, %v9730, %v9732
  %v9764 = vsel %vm939, %v9728, %v9730
  %v9765 = vsel %vm939, %v9726, %v9728
  %v9766 = vsel %vm939, %v9724, %v9726
  %v9767 = vsel %vm939, %v9722, %v9724
  %v9768 = vsel %vm939, %v9752, %v9722
  %v9769 = vsel %vm124, %v9768, 0.0
  %v9770 = vsel %vm125, %v9767, 0.0
  %v9771 = vsel %vm126, %v9766, 0.0
  %v9772 = vsel %vm127, %v9765, 0.0
  %v9773 = vsel %vm128, %v9764, 0.0
  %v9774 = vsel %vm129, %v9763, 0.0
  %v9775 = vsel %vm130, %v9762, 0.0
  %v9776 = vsel %vm131, %v9761, 0.0
  %v9777 = vsel %vm132, %v9760, 0.0
  %v9778 = vsel %vm133, %v9759, 0.0
  %v9779 = vsel %vm134, %v9758, 0.0
  %v9780 = vsel %vm135, %v9757, 0.0
  %v9781 = vsel %vm136, %v9756, 0.0
  %v9782 = vsel %vm137, %v9755, 0.0
  %v9783 = vsel %vm138, %v9754, 0.0
  %v9784 = vsel %vm139, %v9753, 0.0
  %v9801 = vcombine.low %v9769, %v9770
  %v9802 = vcombine.low %v9771, %v9772
  %v9803 = vcombine.low %v9773, %v9774
  %v9804 = vcombine.low %v9775, %v9776
  %v9806 = vunpack.c.l.s4 1966171168
  %v9807 = vunpack.c.0.s8 %v9806
  %v9808 = vlaneseq
  %v9809 = vshrl.u32 %v9808, 7
  %v9810 = vsub.s32 %v9807, %v9809
  %v9811 = vrot.slane %v9801, %v9810
  %v9813 = vunpack.c.l.s4 1966171168
  %v9814 = vunpack.c.0.s8 %v9813
  %v9815 = vlaneseq
  %v9816 = vshrl.u32 %v9815, 7
  %v9817 = vsub.s32 %v9814, %v9816
  %v9818 = vrot.slane %v9802, %v9817
  %v9820 = vunpack.c.l.s4 1966171168
  %v9821 = vunpack.c.0.s8 %v9820
  %v9822 = vlaneseq
  %v9823 = vshrl.u32 %v9822, 7
  %v9824 = vsub.s32 %v9821, %v9823
  %v9825 = vrot.slane %v9803, %v9824
  %v9827 = vunpack.c.l.s4 1966171168
  %v9828 = vunpack.c.0.s8 %v9827
  %v9829 = vlaneseq
  %v9830 = vshrl.u32 %v9829, 7
  %v9831 = vsub.s32 %v9828, %v9830
  %v9832 = vrot.slane %v9804, %v9831
  %v9833 = vcombine.low %v9811, %v9818
  %v9834 = vcombine.low %v9825, %v9832
  %v9836 = vunpack.c.l.s4 1966171168
  %v9837 = vunpack.c.0.s8 %v9836
  %v9838 = vlaneseq
  %v9839 = vshrl.u32 %v9838, 7
  %v9840 = vsub.s32 %v9837, %v9839
  %v9841 = vrot.slane %v9833, %v9840
  %v9843 = vunpack.c.l.s4 1966171168
  %v9844 = vunpack.c.0.s8 %v9843
  %v9845 = vlaneseq
  %v9846 = vshrl.u32 %v9845, 7
  %v9847 = vsub.s32 %v9844, %v9846
  %v9848 = vrot.slane %v9834, %v9847
  %v9849 = vcombine.low %v9841, %v9848
  %v9850 = vcombine.low %v9777, %v9778
  %v9851 = vcombine.low %v9779, %v9780
  %v9852 = vcombine.low %v9781, %v9782
  %v9853 = vcombine.low %v9783, %v9784
  %v9855 = vunpack.c.l.s4 1966171168
  %v9856 = vunpack.c.0.s8 %v9855
  %v9857 = vlaneseq
  %v9858 = vshrl.u32 %v9857, 7
  %v9859 = vsub.s32 %v9856, %v9858
  %v9860 = vrot.slane %v9850, %v9859
  %v9862 = vunpack.c.l.s4 1966171168
  %v9863 = vunpack.c.0.s8 %v9862
  %v9864 = vlaneseq
  %v9865 = vshrl.u32 %v9864, 7
  %v9866 = vsub.s32 %v9863, %v9865
  %v9867 = vrot.slane %v9851, %v9866
  %v9869 = vunpack.c.l.s4 1966171168
  %v9870 = vunpack.c.0.s8 %v9869
  %v9871 = vlaneseq
  %v9872 = vshrl.u32 %v9871, 7
  %v9873 = vsub.s32 %v9870, %v9872
  %v9874 = vrot.slane %v9852, %v9873
  %v9876 = vunpack.c.l.s4 1966171168
  %v9877 = vunpack.c.0.s8 %v9876
  %v9878 = vlaneseq
  %v9879 = vshrl.u32 %v9878, 7
  %v9880 = vsub.s32 %v9877, %v9879
  %v9881 = vrot.slane %v9853, %v9880
  %v9882 = vcombine.low %v9860, %v9867
  %v9883 = vcombine.low %v9874, %v9881
  %v9885 = vunpack.c.l.s4 1966171168
  %v9886 = vunpack.c.0.s8 %v9885
  %v9887 = vlaneseq
  %v9888 = vshrl.u32 %v9887, 7
  %v9889 = vsub.s32 %v9886, %v9888
  %v9890 = vrot.slane %v9882, %v9889
  %v9892 = vunpack.c.l.s4 1966171168
  %v9893 = vunpack.c.0.s8 %v9892
  %v9894 = vlaneseq
  %v9895 = vshrl.u32 %v9894, 7
  %v9896 = vsub.s32 %v9893, %v9895
  %v9897 = vrot.slane %v9883, %v9896
  %v9898 = vcombine.low %v9890, %v9897
  %9901 = vst [vmem:[%s1088] ss:$8 sm:$0xf] %v9849
  %9902 = vst [vmem:[%s1088] ss:$8 sm:$0xf0] %v9849
  %9903 = vst [vmem:[%s1091] ss:$8 sm:$0xf] %v9898
  %9904 = vst [vmem:[%s1091] ss:$8 sm:$0xf0] %v9898
  %v9921 = vcombine.low %v9153, %v9154
  %v9922 = vcombine.low %v9155, %v9156
  %v9923 = vcombine.low %v9157, %v9158
  %v9924 = vcombine.low %v9159, %v9160
  %v9926 = vunpack.c.l.s4 1966171168
  %v9927 = vunpack.c.0.s8 %v9926
  %v9928 = vlaneseq
  %v9929 = vshrl.u32 %v9928, 7
  %v9930 = vsub.s32 %v9927, %v9929
  %v9931 = vrot.slane %v9921, %v9930
  %v9933 = vunpack.c.l.s4 1966171168
  %v9934 = vunpack.c.0.s8 %v9933
  %v9935 = vlaneseq
  %v9936 = vshrl.u32 %v9935, 7
  %v9937 = vsub.s32 %v9934, %v9936
  %v9938 = vrot.slane %v9922, %v9937
  %v9940 = vunpack.c.l.s4 1966171168
  %v9941 = vunpack.c.0.s8 %v9940
  %v9942 = vlaneseq
  %v9943 = vshrl.u32 %v9942, 7
  %v9944 = vsub.s32 %v9941, %v9943
  %v9945 = vrot.slane %v9923, %v9944
  %v9947 = vunpack.c.l.s4 1966171168
  %v9948 = vunpack.c.0.s8 %v9947
  %v9949 = vlaneseq
  %v9950 = vshrl.u32 %v9949, 7
  %v9951 = vsub.s32 %v9948, %v9950
  %v9952 = vrot.slane %v9924, %v9951
  %v9953 = vcombine.low %v9931, %v9938
  %v9954 = vcombine.low %v9945, %v9952
  %v9956 = vunpack.c.l.s4 1966171168
  %v9957 = vunpack.c.0.s8 %v9956
  %v9958 = vlaneseq
  %v9959 = vshrl.u32 %v9958, 7
  %v9960 = vsub.s32 %v9957, %v9959
  %v9961 = vrot.slane %v9953, %v9960
  %v9963 = vunpack.c.l.s4 1966171168
  %v9964 = vunpack.c.0.s8 %v9963
  %v9965 = vlaneseq
  %v9966 = vshrl.u32 %v9965, 7
  %v9967 = vsub.s32 %v9964, %v9966
  %v9968 = vrot.slane %v9954, %v9967
  %v9969 = vcombine.low %v9961, %v9968
  %v9970 = vcombine.low %v9161, %v9162
  %v9971 = vcombine.low %v9163, %v9164
  %v9972 = vcombine.low %v9165, %v9166
  %v9973 = vcombine.low %v9167, %v9168
  %v9975 = vunpack.c.l.s4 1966171168
  %v9976 = vunpack.c.0.s8 %v9975
  %v9977 = vlaneseq
  %v9978 = vshrl.u32 %v9977, 7
  %v9979 = vsub.s32 %v9976, %v9978
  %v9980 = vrot.slane %v9970, %v9979
  %v9982 = vunpack.c.l.s4 1966171168
  %v9983 = vunpack.c.0.s8 %v9982
  %v9984 = vlaneseq
  %v9985 = vshrl.u32 %v9984, 7
  %v9986 = vsub.s32 %v9983, %v9985
  %v9987 = vrot.slane %v9971, %v9986
  %v9989 = vunpack.c.l.s4 1966171168
  %v9990 = vunpack.c.0.s8 %v9989
  %v9991 = vlaneseq
  %v9992 = vshrl.u32 %v9991, 7
  %v9993 = vsub.s32 %v9990, %v9992
  %v9994 = vrot.slane %v9972, %v9993
  %v9996 = vunpack.c.l.s4 1966171168
  %v9997 = vunpack.c.0.s8 %v9996
  %v9998 = vlaneseq
  %v9999 = vshrl.u32 %v9998, 7
  %v10000 = vsub.s32 %v9997, %v9999
  %v10001 = vrot.slane %v9973, %v10000
  %v10002 = vcombine.low %v9980, %v9987
  %v10003 = vcombine.low %v9994, %v10001
  %v10005 = vunpack.c.l.s4 1966171168
  %v10006 = vunpack.c.0.s8 %v10005
  %v10007 = vlaneseq
  %v10008 = vshrl.u32 %v10007, 7
  %v10009 = vsub.s32 %v10006, %v10008
  %v10010 = vrot.slane %v10002, %v10009
  %v10012 = vunpack.c.l.s4 1966171168
  %v10013 = vunpack.c.0.s8 %v10012
  %v10014 = vlaneseq
  %v10015 = vshrl.u32 %v10014, 7
  %v10016 = vsub.s32 %v10013, %v10015
  %v10017 = vrot.slane %v10003, %v10016
  %v10018 = vcombine.low %v10010, %v10017
  %10021 = vst [vmem:[%s1094] ss:$8 sm:$0xf] %v9969
  %10022 = vst [vmem:[%s1094] ss:$8 sm:$0xf0] %v9969
  %10023 = vst [vmem:[%s1097] ss:$8 sm:$0xf] %v10018
  %10024 = vst [vmem:[%s1097] ss:$8 sm:$0xf0] %v10018
  %10025 = vrot.lane.b32.xlu0 %v9153, 127
  %v10026 = vpop.permute.xlu0 %10025
  %10027 = vrot.lane.b32.xlu0 %v9154, 127
  %v10028 = vpop.permute.xlu0 %10027
  %10029 = vrot.lane.b32.xlu0 %v9155, 127
  %v10030 = vpop.permute.xlu0 %10029
  %10031 = vrot.lane.b32.xlu0 %v9156, 127
  %v10032 = vpop.permute.xlu0 %10031
  %10033 = vrot.lane.b32.xlu0 %v9157, 127
  %v10034 = vpop.permute.xlu0 %10033
  %10035 = vrot.lane.b32.xlu0 %v9158, 127
  %v10036 = vpop.permute.xlu0 %10035
  %10037 = vrot.lane.b32.xlu0 %v9159, 127
  %v10038 = vpop.permute.xlu0 %10037
  %10039 = vrot.lane.b32.xlu0 %v9160, 127
  %v10040 = vpop.permute.xlu0 %10039
  %10041 = vrot.lane.b32.xlu0 %v9161, 127
  %v10042 = vpop.permute.xlu0 %10041
  %10043 = vrot.lane.b32.xlu0 %v9162, 127
  %v10044 = vpop.permute.xlu0 %10043
  %10045 = vrot.lane.b32.xlu0 %v9163, 127
  %v10046 = vpop.permute.xlu0 %10045
  %10047 = vrot.lane.b32.xlu0 %v9164, 127
  %v10048 = vpop.permute.xlu0 %10047
  %10049 = vrot.lane.b32.xlu0 %v9165, 127
  %v10050 = vpop.permute.xlu0 %10049
  %10051 = vrot.lane.b32.xlu0 %v9166, 127
  %v10052 = vpop.permute.xlu0 %10051
  %10053 = vrot.lane.b32.xlu0 %v9167, 127
  %v10054 = vpop.permute.xlu0 %10053
  %10055 = vrot.lane.b32.xlu0 %v9168, 127
  %v10056 = vpop.permute.xlu0 %10055
  %v10057 = vsel %vm1132, %v10054, %v10056
  %v10058 = vsel %vm1132, %v10052, %v10054
  %v10059 = vsel %vm1132, %v10050, %v10052
  %v10060 = vsel %vm1132, %v10048, %v10050
  %v10061 = vsel %vm1132, %v10046, %v10048
  %v10062 = vsel %vm1132, %v10044, %v10046
  %v10063 = vsel %vm1132, %v10042, %v10044
  %v10064 = vsel %vm1132, %v10040, %v10042
  %v10065 = vsel %vm1132, %v10038, %v10040
  %v10066 = vsel %vm1132, %v10036, %v10038
  %v10067 = vsel %vm1132, %v10034, %v10036
  %v10068 = vsel %vm1132, %v10032, %v10034
  %v10069 = vsel %vm1132, %v10030, %v10032
  %v10070 = vsel %vm1132, %v10028, %v10030
  %v10071 = vsel %vm1132, %v10026, %v10028
  %v10072 = vsel %vm1132, %v10056, %v10026
  %v10073 = vsel %vm140, %v10071, 0.0
  %v10074 = vsel %vm141, %v10070, 0.0
  %v10075 = vsel %vm142, %v10069, 0.0
  %v10076 = vsel %vm143, %v10068, 0.0
  %v10077 = vsel %vm144, %v10067, 0.0
  %v10078 = vsel %vm145, %v10066, 0.0
  %v10079 = vsel %vm146, %v10065, 0.0
  %v10080 = vsel %vm147, %v10064, 0.0
  %v10081 = vsel %vm148, %v10063, 0.0
  %v10082 = vsel %vm149, %v10062, 0.0
  %v10083 = vsel %vm150, %v10061, 0.0
  %v10084 = vsel %vm151, %v10060, 0.0
  %v10085 = vsel %vm152, %v10059, 0.0
  %v10086 = vsel %vm153, %v10058, 0.0
  %v10087 = vsel %vm154, %v10057, 0.0
  %v10088 = vsel %vm155, %v10072, 0.0
  %v10105 = vcombine.low %v10073, %v10074
  %v10106 = vcombine.low %v10075, %v10076
  %v10107 = vcombine.low %v10077, %v10078
  %v10108 = vcombine.low %v10079, %v10080
  %v10110 = vunpack.c.l.s4 1966171168
  %v10111 = vunpack.c.0.s8 %v10110
  %v10112 = vlaneseq
  %v10113 = vshrl.u32 %v10112, 7
  %v10114 = vsub.s32 %v10111, %v10113
  %v10115 = vrot.slane %v10105, %v10114
  %v10117 = vunpack.c.l.s4 1966171168
  %v10118 = vunpack.c.0.s8 %v10117
  %v10119 = vlaneseq
  %v10120 = vshrl.u32 %v10119, 7
  %v10121 = vsub.s32 %v10118, %v10120
  %v10122 = vrot.slane %v10106, %v10121
  %v10124 = vunpack.c.l.s4 1966171168
  %v10125 = vunpack.c.0.s8 %v10124
  %v10126 = vlaneseq
  %v10127 = vshrl.u32 %v10126, 7
  %v10128 = vsub.s32 %v10125, %v10127
  %v10129 = vrot.slane %v10107, %v10128
  %v10131 = vunpack.c.l.s4 1966171168
  %v10132 = vunpack.c.0.s8 %v10131
  %v10133 = vlaneseq
  %v10134 = vshrl.u32 %v10133, 7
  %v10135 = vsub.s32 %v10132, %v10134
  %v10136 = vrot.slane %v10108, %v10135
  %v10137 = vcombine.low %v10115, %v10122
  %v10138 = vcombine.low %v10129, %v10136
  %v10140 = vunpack.c.l.s4 1966171168
  %v10141 = vunpack.c.0.s8 %v10140
  %v10142 = vlaneseq
  %v10143 = vshrl.u32 %v10142, 7
  %v10144 = vsub.s32 %v10141, %v10143
  %v10145 = vrot.slane %v10137, %v10144
  %v10147 = vunpack.c.l.s4 1966171168
  %v10148 = vunpack.c.0.s8 %v10147
  %v10149 = vlaneseq
  %v10150 = vshrl.u32 %v10149, 7
  %v10151 = vsub.s32 %v10148, %v10150
  %v10152 = vrot.slane %v10138, %v10151
  %v10153 = vcombine.low %v10145, %v10152
  %v10154 = vcombine.low %v10081, %v10082
  %v10155 = vcombine.low %v10083, %v10084
  %v10156 = vcombine.low %v10085, %v10086
  %v10157 = vcombine.low %v10087, %v10088
  %v10159 = vunpack.c.l.s4 1966171168
  %v10160 = vunpack.c.0.s8 %v10159
  %v10161 = vlaneseq
  %v10162 = vshrl.u32 %v10161, 7
  %v10163 = vsub.s32 %v10160, %v10162
  %v10164 = vrot.slane %v10154, %v10163
  %v10166 = vunpack.c.l.s4 1966171168
  %v10167 = vunpack.c.0.s8 %v10166
  %v10168 = vlaneseq
  %v10169 = vshrl.u32 %v10168, 7
  %v10170 = vsub.s32 %v10167, %v10169
  %v10171 = vrot.slane %v10155, %v10170
  %v10173 = vunpack.c.l.s4 1966171168
  %v10174 = vunpack.c.0.s8 %v10173
  %v10175 = vlaneseq
  %v10176 = vshrl.u32 %v10175, 7
  %v10177 = vsub.s32 %v10174, %v10176
  %v10178 = vrot.slane %v10156, %v10177
  %v10180 = vunpack.c.l.s4 1966171168
  %v10181 = vunpack.c.0.s8 %v10180
  %v10182 = vlaneseq
  %v10183 = vshrl.u32 %v10182, 7
  %v10184 = vsub.s32 %v10181, %v10183
  %v10185 = vrot.slane %v10157, %v10184
  %v10186 = vcombine.low %v10164, %v10171
  %v10187 = vcombine.low %v10178, %v10185
  %v10189 = vunpack.c.l.s4 1966171168
  %v10190 = vunpack.c.0.s8 %v10189
  %v10191 = vlaneseq
  %v10192 = vshrl.u32 %v10191, 7
  %v10193 = vsub.s32 %v10190, %v10192
  %v10194 = vrot.slane %v10186, %v10193
  %v10196 = vunpack.c.l.s4 1966171168
  %v10197 = vunpack.c.0.s8 %v10196
  %v10198 = vlaneseq
  %v10199 = vshrl.u32 %v10198, 7
  %v10200 = vsub.s32 %v10197, %v10199
  %v10201 = vrot.slane %v10187, %v10200
  %v10202 = vcombine.low %v10194, %v10201
  %10205 = vst [vmem:[%s1281] ss:$8 sm:$0xf] %v10153
  %10206 = vst [vmem:[%s1281] ss:$8 sm:$0xf0] %v10153
  %10207 = vst [vmem:[%s1284] ss:$8 sm:$0xf] %v10202
  %10208 = vst [vmem:[%s1284] ss:$8 sm:$0xf0] %v10202
  %10209 = vrot.lane.b32.xlu0 %v9153, 113
  %v10210 = vpop.permute.xlu0 %10209
  %10211 = vrot.lane.b32.xlu0 %v9154, 113
  %v10212 = vpop.permute.xlu0 %10211
  %10213 = vrot.lane.b32.xlu0 %v9155, 113
  %v10214 = vpop.permute.xlu0 %10213
  %10215 = vrot.lane.b32.xlu0 %v9156, 113
  %v10216 = vpop.permute.xlu0 %10215
  %10217 = vrot.lane.b32.xlu0 %v9157, 113
  %v10218 = vpop.permute.xlu0 %10217
  %10219 = vrot.lane.b32.xlu0 %v9158, 113
  %v10220 = vpop.permute.xlu0 %10219
  %10221 = vrot.lane.b32.xlu0 %v9159, 113
  %v10222 = vpop.permute.xlu0 %10221
  %10223 = vrot.lane.b32.xlu0 %v9160, 113
  %v10224 = vpop.permute.xlu0 %10223
  %10225 = vrot.lane.b32.xlu0 %v9161, 113
  %v10226 = vpop.permute.xlu0 %10225
  %10227 = vrot.lane.b32.xlu0 %v9162, 113
  %v10228 = vpop.permute.xlu0 %10227
  %10229 = vrot.lane.b32.xlu0 %v9163, 113
  %v10230 = vpop.permute.xlu0 %10229
  %10231 = vrot.lane.b32.xlu0 %v9164, 113
  %v10232 = vpop.permute.xlu0 %10231
  %10233 = vrot.lane.b32.xlu0 %v9165, 113
  %v10234 = vpop.permute.xlu0 %10233
  %10235 = vrot.lane.b32.xlu0 %v9166, 113
  %v10236 = vpop.permute.xlu0 %10235
  %10237 = vrot.lane.b32.xlu0 %v9167, 113
  %v10238 = vpop.permute.xlu0 %10237
  %10239 = vrot.lane.b32.xlu0 %v9168, 113
  %v10240 = vpop.permute.xlu0 %10239
  %v10241 = vsel %vm1319, %v10238, %v10240
  %v10242 = vsel %vm1319, %v10236, %v10238
  %v10243 = vsel %vm1319, %v10234, %v10236
  %v10244 = vsel %vm1319, %v10232, %v10234
  %v10245 = vsel %vm1319, %v10230, %v10232
  %v10246 = vsel %vm1319, %v10228, %v10230
  %v10247 = vsel %vm1319, %v10226, %v10228
  %v10248 = vsel %vm1319, %v10224, %v10226
  %v10249 = vsel %vm1319, %v10222, %v10224
  %v10250 = vsel %vm1319, %v10220, %v10222
  %v10251 = vsel %vm1319, %v10218, %v10220
  %v10252 = vsel %vm1319, %v10216, %v10218
  %v10253 = vsel %vm1319, %v10214, %v10216
  %v10254 = vsel %vm1319, %v10212, %v10214
  %v10255 = vsel %vm1319, %v10210, %v10212
  %v10256 = vsel %vm1319, %v10240, %v10210
  %v10257 = vsel %vm188, %v10255, 0.0
  %v10258 = vsel %vm189, %v10254, 0.0
  %v10259 = vsel %vm190, %v10253, 0.0
  %v10260 = vsel %vm191, %v10252, 0.0
  %v10261 = vsel %vm192, %v10251, 0.0
  %v10262 = vsel %vm193, %v10250, 0.0
  %v10263 = vsel %vm194, %v10249, 0.0
  %v10264 = vsel %vm195, %v10248, 0.0
  %v10265 = vsel %vm196, %v10247, 0.0
  %v10266 = vsel %vm197, %v10246, 0.0
  %v10267 = vsel %vm198, %v10245, 0.0
  %v10268 = vsel %vm199, %v10244, 0.0
  %v10269 = vsel %vm200, %v10243, 0.0
  %v10270 = vsel %vm201, %v10242, 0.0
  %v10271 = vsel %vm202, %v10241, 0.0
  %v10272 = vsel %vm203, %v10256, 0.0
  %v10289 = vcombine.low %v10257, %v10258
  %v10290 = vcombine.low %v10259, %v10260
  %v10291 = vcombine.low %v10261, %v10262
  %v10292 = vcombine.low %v10263, %v10264
  %v10294 = vunpack.c.l.s4 1966171168
  %v10295 = vunpack.c.0.s8 %v10294
  %v10296 = vlaneseq
  %v10297 = vshrl.u32 %v10296, 7
  %v10298 = vsub.s32 %v10295, %v10297
  %v10299 = vrot.slane %v10289, %v10298
  %v10301 = vunpack.c.l.s4 1966171168
  %v10302 = vunpack.c.0.s8 %v10301
  %v10303 = vlaneseq
  %v10304 = vshrl.u32 %v10303, 7
  %v10305 = vsub.s32 %v10302, %v10304
  %v10306 = vrot.slane %v10290, %v10305
  %v10308 = vunpack.c.l.s4 1966171168
  %v10309 = vunpack.c.0.s8 %v10308
  %v10310 = vlaneseq
  %v10311 = vshrl.u32 %v10310, 7
  %v10312 = vsub.s32 %v10309, %v10311
  %v10313 = vrot.slane %v10291, %v10312
  %v10315 = vunpack.c.l.s4 1966171168
  %v10316 = vunpack.c.0.s8 %v10315
  %v10317 = vlaneseq
  %v10318 = vshrl.u32 %v10317, 7
  %v10319 = vsub.s32 %v10316, %v10318
  %v10320 = vrot.slane %v10292, %v10319
  %v10321 = vcombine.low %v10299, %v10306
  %v10322 = vcombine.low %v10313, %v10320
  %v10324 = vunpack.c.l.s4 1966171168
  %v10325 = vunpack.c.0.s8 %v10324
  %v10326 = vlaneseq
  %v10327 = vshrl.u32 %v10326, 7
  %v10328 = vsub.s32 %v10325, %v10327
  %v10329 = vrot.slane %v10321, %v10328
  %v10331 = vunpack.c.l.s4 1966171168
  %v10332 = vunpack.c.0.s8 %v10331
  %v10333 = vlaneseq
  %v10334 = vshrl.u32 %v10333, 7
  %v10335 = vsub.s32 %v10332, %v10334
  %v10336 = vrot.slane %v10322, %v10335
  %v10337 = vcombine.low %v10329, %v10336
  %v10338 = vcombine.low %v10265, %v10266
  %v10339 = vcombine.low %v10267, %v10268
  %v10340 = vcombine.low %v10269, %v10270
  %v10341 = vcombine.low %v10271, %v10272
  %v10343 = vunpack.c.l.s4 1966171168
  %v10344 = vunpack.c.0.s8 %v10343
  %v10345 = vlaneseq
  %v10346 = vshrl.u32 %v10345, 7
  %v10347 = vsub.s32 %v10344, %v10346
  %v10348 = vrot.slane %v10338, %v10347
  %v10350 = vunpack.c.l.s4 1966171168
  %v10351 = vunpack.c.0.s8 %v10350
  %v10352 = vlaneseq
  %v10353 = vshrl.u32 %v10352, 7
  %v10354 = vsub.s32 %v10351, %v10353
  %v10355 = vrot.slane %v10339, %v10354
  %v10357 = vunpack.c.l.s4 1966171168
  %v10358 = vunpack.c.0.s8 %v10357
  %v10359 = vlaneseq
  %v10360 = vshrl.u32 %v10359, 7
  %v10361 = vsub.s32 %v10358, %v10360
  %v10362 = vrot.slane %v10340, %v10361
  %v10364 = vunpack.c.l.s4 1966171168
  %v10365 = vunpack.c.0.s8 %v10364
  %v10366 = vlaneseq
  %v10367 = vshrl.u32 %v10366, 7
  %v10368 = vsub.s32 %v10365, %v10367
  %v10369 = vrot.slane %v10341, %v10368
  %v10370 = vcombine.low %v10348, %v10355
  %v10371 = vcombine.low %v10362, %v10369
  %v10373 = vunpack.c.l.s4 1966171168
  %v10374 = vunpack.c.0.s8 %v10373
  %v10375 = vlaneseq
  %v10376 = vshrl.u32 %v10375, 7
  %v10377 = vsub.s32 %v10374, %v10376
  %v10378 = vrot.slane %v10370, %v10377
  %v10380 = vunpack.c.l.s4 1966171168
  %v10381 = vunpack.c.0.s8 %v10380
  %v10382 = vlaneseq
  %v10383 = vshrl.u32 %v10382, 7
  %v10384 = vsub.s32 %v10381, %v10383
  %v10385 = vrot.slane %v10371, %v10384
  %v10386 = vcombine.low %v10378, %v10385
  %10389 = vst [vmem:[%s1468] ss:$8 sm:$0xf] %v10337
  %10390 = vst [vmem:[%s1468] ss:$8 sm:$0xf0] %v10337
  %10391 = vst [vmem:[%s1471] ss:$8 sm:$0xf] %v10386
  %10392 = vst [vmem:[%s1471] ss:$8 sm:$0xf0] %v10386
  %10393 = vrot.lane.b32.xlu0 %v9153, 112
  %v10394 = vpop.permute.xlu0 %10393
  %10395 = vrot.lane.b32.xlu0 %v9154, 112
  %v10396 = vpop.permute.xlu0 %10395
  %10397 = vrot.lane.b32.xlu0 %v9155, 112
  %v10398 = vpop.permute.xlu0 %10397
  %10399 = vrot.lane.b32.xlu0 %v9156, 112
  %v10400 = vpop.permute.xlu0 %10399
  %10401 = vrot.lane.b32.xlu0 %v9157, 112
  %v10402 = vpop.permute.xlu0 %10401
  %10403 = vrot.lane.b32.xlu0 %v9158, 112
  %v10404 = vpop.permute.xlu0 %10403
  %10405 = vrot.lane.b32.xlu0 %v9159, 112
  %v10406 = vpop.permute.xlu0 %10405
  %10407 = vrot.lane.b32.xlu0 %v9160, 112
  %v10408 = vpop.permute.xlu0 %10407
  %10409 = vrot.lane.b32.xlu0 %v9161, 112
  %v10410 = vpop.permute.xlu0 %10409
  %10411 = vrot.lane.b32.xlu0 %v9162, 112
  %v10412 = vpop.permute.xlu0 %10411
  %10413 = vrot.lane.b32.xlu0 %v9163, 112
  %v10414 = vpop.permute.xlu0 %10413
  %10415 = vrot.lane.b32.xlu0 %v9164, 112
  %v10416 = vpop.permute.xlu0 %10415
  %10417 = vrot.lane.b32.xlu0 %v9165, 112
  %v10418 = vpop.permute.xlu0 %10417
  %10419 = vrot.lane.b32.xlu0 %v9166, 112
  %v10420 = vpop.permute.xlu0 %10419
  %10421 = vrot.lane.b32.xlu0 %v9167, 112
  %v10422 = vpop.permute.xlu0 %10421
  %10423 = vrot.lane.b32.xlu0 %v9168, 112
  %v10424 = vpop.permute.xlu0 %10423
  %v10425 = vsel %vm1506, %v10422, %v10424
  %v10426 = vsel %vm1506, %v10420, %v10422
  %v10427 = vsel %vm1506, %v10418, %v10420
  %v10428 = vsel %vm1506, %v10416, %v10418
  %v10429 = vsel %vm1506, %v10414, %v10416
  %v10430 = vsel %vm1506, %v10412, %v10414
  %v10431 = vsel %vm1506, %v10410, %v10412
  %v10432 = vsel %vm1506, %v10408, %v10410
  %v10433 = vsel %vm1506, %v10406, %v10408
  %v10434 = vsel %vm1506, %v10404, %v10406
  %v10435 = vsel %vm1506, %v10402, %v10404
  %v10436 = vsel %vm1506, %v10400, %v10402
  %v10437 = vsel %vm1506, %v10398, %v10400
  %v10438 = vsel %vm1506, %v10396, %v10398
  %v10439 = vsel %vm1506, %v10394, %v10396
  %v10440 = vsel %vm1506, %v10424, %v10394
  %v10441 = vsel %vm108, %v10439, 0.0
  %v10442 = vsel %vm109, %v10438, 0.0
  %v10443 = vsel %vm110, %v10437, 0.0
  %v10444 = vsel %vm111, %v10436, 0.0
  %v10445 = vsel %vm112, %v10435, 0.0
  %v10446 = vsel %vm113, %v10434, 0.0
  %v10447 = vsel %vm114, %v10433, 0.0
  %v10448 = vsel %vm115, %v10432, 0.0
  %v10449 = vsel %vm116, %v10431, 0.0
  %v10450 = vsel %vm117, %v10430, 0.0
  %v10451 = vsel %vm118, %v10429, 0.0
  %v10452 = vsel %vm119, %v10428, 0.0
  %v10453 = vsel %vm120, %v10427, 0.0
  %v10454 = vsel %vm121, %v10426, 0.0
  %v10455 = vsel %vm122, %v10425, 0.0
  %v10456 = vsel %vm123, %v10440, 0.0
  %v10473 = vcombine.low %v10441, %v10442
  %v10474 = vcombine.low %v10443, %v10444
  %v10475 = vcombine.low %v10445, %v10446
  %v10476 = vcombine.low %v10447, %v10448
  %v10478 = vunpack.c.l.s4 1966171168
  %v10479 = vunpack.c.0.s8 %v10478
  %v10480 = vlaneseq
  %v10481 = vshrl.u32 %v10480, 7
  %v10482 = vsub.s32 %v10479, %v10481
  %v10483 = vrot.slane %v10473, %v10482
  %v10485 = vunpack.c.l.s4 1966171168
  %v10486 = vunpack.c.0.s8 %v10485
  %v10487 = vlaneseq
  %v10488 = vshrl.u32 %v10487, 7
  %v10489 = vsub.s32 %v10486, %v10488
  %v10490 = vrot.slane %v10474, %v10489
  %v10492 = vunpack.c.l.s4 1966171168
  %v10493 = vunpack.c.0.s8 %v10492
  %v10494 = vlaneseq
  %v10495 = vshrl.u32 %v10494, 7
  %v10496 = vsub.s32 %v10493, %v10495
  %v10497 = vrot.slane %v10475, %v10496
  %v10499 = vunpack.c.l.s4 1966171168
  %v10500 = vunpack.c.0.s8 %v10499
  %v10501 = vlaneseq
  %v10502 = vshrl.u32 %v10501, 7
  %v10503 = vsub.s32 %v10500, %v10502
  %v10504 = vrot.slane %v10476, %v10503
  %v10505 = vcombine.low %v10483, %v10490
  %v10506 = vcombine.low %v10497, %v10504
  %v10508 = vunpack.c.l.s4 1966171168
  %v10509 = vunpack.c.0.s8 %v10508
  %v10510 = vlaneseq
  %v10511 = vshrl.u32 %v10510, 7
  %v10512 = vsub.s32 %v10509, %v10511
  %v10513 = vrot.slane %v10505, %v10512
  %v10515 = vunpack.c.l.s4 1966171168
  %v10516 = vunpack.c.0.s8 %v10515
  %v10517 = vlaneseq
  %v10518 = vshrl.u32 %v10517, 7
  %v10519 = vsub.s32 %v10516, %v10518
  %v10520 = vrot.slane %v10506, %v10519
  %v10521 = vcombine.low %v10513, %v10520
  %v10522 = vcombine.low %v10449, %v10450
  %v10523 = vcombine.low %v10451, %v10452
  %v10524 = vcombine.low %v10453, %v10454
  %v10525 = vcombine.low %v10455, %v10456
  %v10527 = vunpack.c.l.s4 1966171168
  %v10528 = vunpack.c.0.s8 %v10527
  %v10529 = vlaneseq
  %v10530 = vshrl.u32 %v10529, 7
  %v10531 = vsub.s32 %v10528, %v10530
  %v10532 = vrot.slane %v10522, %v10531
  %v10534 = vunpack.c.l.s4 1966171168
  %v10535 = vunpack.c.0.s8 %v10534
  %v10536 = vlaneseq
  %v10537 = vshrl.u32 %v10536, 7
  %v10538 = vsub.s32 %v10535, %v10537
  %v10539 = vrot.slane %v10523, %v10538
  %v10541 = vunpack.c.l.s4 1966171168
  %v10542 = vunpack.c.0.s8 %v10541
  %v10543 = vlaneseq
  %v10544 = vshrl.u32 %v10543, 7
  %v10545 = vsub.s32 %v10542, %v10544
  %v10546 = vrot.slane %v10524, %v10545
  %v10548 = vunpack.c.l.s4 1966171168
  %v10549 = vunpack.c.0.s8 %v10548
  %v10550 = vlaneseq
  %v10551 = vshrl.u32 %v10550, 7
  %v10552 = vsub.s32 %v10549, %v10551
  %v10553 = vrot.slane %v10525, %v10552
  %v10554 = vcombine.low %v10532, %v10539
  %v10555 = vcombine.low %v10546, %v10553
  %v10557 = vunpack.c.l.s4 1966171168
  %v10558 = vunpack.c.0.s8 %v10557
  %v10559 = vlaneseq
  %v10560 = vshrl.u32 %v10559, 7
  %v10561 = vsub.s32 %v10558, %v10560
  %v10562 = vrot.slane %v10554, %v10561
  %v10564 = vunpack.c.l.s4 1966171168
  %v10565 = vunpack.c.0.s8 %v10564
  %v10566 = vlaneseq
  %v10567 = vshrl.u32 %v10566, 7
  %v10568 = vsub.s32 %v10565, %v10567
  %v10569 = vrot.slane %v10555, %v10568
  %v10570 = vcombine.low %v10562, %v10569
  %10573 = vst [vmem:[%s1655] ss:$8 sm:$0xf] %v10521
  %10574 = vst [vmem:[%s1655] ss:$8 sm:$0xf0] %v10521
  %10575 = vst [vmem:[%s1658] ss:$8 sm:$0xf] %v10570
  %10576 = vst [vmem:[%s1658] ss:$8 sm:$0xf0] %v10570
  %10577 = vrot.lane.b32.xlu0 %v9153, 111
  %v10578 = vpop.permute.xlu0 %10577
  %10579 = vrot.lane.b32.xlu0 %v9154, 111
  %v10580 = vpop.permute.xlu0 %10579
  %10581 = vrot.lane.b32.xlu0 %v9155, 111
  %v10582 = vpop.permute.xlu0 %10581
  %10583 = vrot.lane.b32.xlu0 %v9156, 111
  %v10584 = vpop.permute.xlu0 %10583
  %10585 = vrot.lane.b32.xlu0 %v9157, 111
  %v10586 = vpop.permute.xlu0 %10585
  %10587 = vrot.lane.b32.xlu0 %v9158, 111
  %v10588 = vpop.permute.xlu0 %10587
  %10589 = vrot.lane.b32.xlu0 %v9159, 111
  %v10590 = vpop.permute.xlu0 %10589
  %10591 = vrot.lane.b32.xlu0 %v9160, 111
  %v10592 = vpop.permute.xlu0 %10591
  %10593 = vrot.lane.b32.xlu0 %v9161, 111
  %v10594 = vpop.permute.xlu0 %10593
  %10595 = vrot.lane.b32.xlu0 %v9162, 111
  %v10596 = vpop.permute.xlu0 %10595
  %10597 = vrot.lane.b32.xlu0 %v9163, 111
  %v10598 = vpop.permute.xlu0 %10597
  %10599 = vrot.lane.b32.xlu0 %v9164, 111
  %v10600 = vpop.permute.xlu0 %10599
  %10601 = vrot.lane.b32.xlu0 %v9165, 111
  %v10602 = vpop.permute.xlu0 %10601
  %10603 = vrot.lane.b32.xlu0 %v9166, 111
  %v10604 = vpop.permute.xlu0 %10603
  %10605 = vrot.lane.b32.xlu0 %v9167, 111
  %v10606 = vpop.permute.xlu0 %10605
  %10607 = vrot.lane.b32.xlu0 %v9168, 111
  %v10608 = vpop.permute.xlu0 %10607
  %v10609 = vsel %vm1693, %v10606, %v10608
  %v10610 = vsel %vm1693, %v10604, %v10606
  %v10611 = vsel %vm1693, %v10602, %v10604
  %v10612 = vsel %vm1693, %v10600, %v10602
  %v10613 = vsel %vm1693, %v10598, %v10600
  %v10614 = vsel %vm1693, %v10596, %v10598
  %v10615 = vsel %vm1693, %v10594, %v10596
  %v10616 = vsel %vm1693, %v10592, %v10594
  %v10617 = vsel %vm1693, %v10590, %v10592
  %v10618 = vsel %vm1693, %v10588, %v10590
  %v10619 = vsel %vm1693, %v10586, %v10588
  %v10620 = vsel %vm1693, %v10584, %v10586
  %v10621 = vsel %vm1693, %v10582, %v10584
  %v10622 = vsel %vm1693, %v10580, %v10582
  %v10623 = vsel %vm1693, %v10578, %v10580
  %v10624 = vsel %vm1693, %v10608, %v10578
  %v10625 = vsel %vm204, %v10623, 0.0
  %v10626 = vsel %vm205, %v10622, 0.0
  %v10627 = vsel %vm206, %v10621, 0.0
  %v10628 = vsel %vm207, %v10620, 0.0
  %v10629 = vsel %vm208, %v10619, 0.0
  %v10630 = vsel %vm209, %v10618, 0.0
  %v10631 = vsel %vm210, %v10617, 0.0
  %v10632 = vsel %vm211, %v10616, 0.0
  %v10633 = vsel %vm212, %v10615, 0.0
  %v10634 = vsel %vm213, %v10614, 0.0
  %v10635 = vsel %vm214, %v10613, 0.0
  %v10636 = vsel %vm215, %v10612, 0.0
  %v10637 = vsel %vm216, %v10611, 0.0
  %v10638 = vsel %vm217, %v10610, 0.0
  %v10639 = vsel %vm218, %v10609, 0.0
  %v10640 = vsel %vm219, %v10624, 0.0
  %v10657 = vcombine.low %v10625, %v10626
  %v10658 = vcombine.low %v10627, %v10628
  %v10659 = vcombine.low %v10629, %v10630
  %v10660 = vcombine.low %v10631, %v10632
  %v10662 = vunpack.c.l.s4 1966171168
  %v10663 = vunpack.c.0.s8 %v10662
  %v10664 = vlaneseq
  %v10665 = vshrl.u32 %v10664, 7
  %v10666 = vsub.s32 %v10663, %v10665
  %v10667 = vrot.slane %v10657, %v10666
  %v10669 = vunpack.c.l.s4 1966171168
  %v10670 = vunpack.c.0.s8 %v10669
  %v10671 = vlaneseq
  %v10672 = vshrl.u32 %v10671, 7
  %v10673 = vsub.s32 %v10670, %v10672
  %v10674 = vrot.slane %v10658, %v10673
  %v10676 = vunpack.c.l.s4 1966171168
  %v10677 = vunpack.c.0.s8 %v10676
  %v10678 = vlaneseq
  %v10679 = vshrl.u32 %v10678, 7
  %v10680 = vsub.s32 %v10677, %v10679
  %v10681 = vrot.slane %v10659, %v10680
  %v10683 = vunpack.c.l.s4 1966171168
  %v10684 = vunpack.c.0.s8 %v10683
  %v10685 = vlaneseq
  %v10686 = vshrl.u32 %v10685, 7
  %v10687 = vsub.s32 %v10684, %v10686
  %v10688 = vrot.slane %v10660, %v10687
  %v10689 = vcombine.low %v10667, %v10674
  %v10690 = vcombine.low %v10681, %v10688
  %v10692 = vunpack.c.l.s4 1966171168
  %v10693 = vunpack.c.0.s8 %v10692
  %v10694 = vlaneseq
  %v10695 = vshrl.u32 %v10694, 7
  %v10696 = vsub.s32 %v10693, %v10695
  %v10697 = vrot.slane %v10689, %v10696
  %v10699 = vunpack.c.l.s4 1966171168
  %v10700 = vunpack.c.0.s8 %v10699
  %v10701 = vlaneseq
  %v10702 = vshrl.u32 %v10701, 7
  %v10703 = vsub.s32 %v10700, %v10702
  %v10704 = vrot.slane %v10690, %v10703
  %v10705 = vcombine.low %v10697, %v10704
  %v10706 = vcombine.low %v10633, %v10634
  %v10707 = vcombine.low %v10635, %v10636
  %v10708 = vcombine.low %v10637, %v10638
  %v10709 = vcombine.low %v10639, %v10640
  %v10711 = vunpack.c.l.s4 1966171168
  %v10712 = vunpack.c.0.s8 %v10711
  %v10713 = vlaneseq
  %v10714 = vshrl.u32 %v10713, 7
  %v10715 = vsub.s32 %v10712, %v10714
  %v10716 = vrot.slane %v10706, %v10715
  %v10718 = vunpack.c.l.s4 1966171168
  %v10719 = vunpack.c.0.s8 %v10718
  %v10720 = vlaneseq
  %v10721 = vshrl.u32 %v10720, 7
  %v10722 = vsub.s32 %v10719, %v10721
  %v10723 = vrot.slane %v10707, %v10722
  %v10725 = vunpack.c.l.s4 1966171168
  %v10726 = vunpack.c.0.s8 %v10725
  %v10727 = vlaneseq
  %v10728 = vshrl.u32 %v10727, 7
  %v10729 = vsub.s32 %v10726, %v10728
  %v10730 = vrot.slane %v10708, %v10729
  %v10732 = vunpack.c.l.s4 1966171168
  %v10733 = vunpack.c.0.s8 %v10732
  %v10734 = vlaneseq
  %v10735 = vshrl.u32 %v10734, 7
  %v10736 = vsub.s32 %v10733, %v10735
  %v10737 = vrot.slane %v10709, %v10736
  %v10738 = vcombine.low %v10716, %v10723
  %v10739 = vcombine.low %v10730, %v10737
  %v10741 = vunpack.c.l.s4 1966171168
  %v10742 = vunpack.c.0.s8 %v10741
  %v10743 = vlaneseq
  %v10744 = vshrl.u32 %v10743, 7
  %v10745 = vsub.s32 %v10742, %v10744
  %v10746 = vrot.slane %v10738, %v10745
  %v10748 = vunpack.c.l.s4 1966171168
  %v10749 = vunpack.c.0.s8 %v10748
  %v10750 = vlaneseq
  %v10751 = vshrl.u32 %v10750, 7
  %v10752 = vsub.s32 %v10749, %v10751
  %v10753 = vrot.slane %v10739, %v10752
  %v10754 = vcombine.low %v10746, %v10753
  %10757 = vst [vmem:[%s1842] ss:$8 sm:$0xf] %v10705
  %10758 = vst [vmem:[%s1842] ss:$8 sm:$0xf0] %v10705
  %10759 = vst [vmem:[%s1845] ss:$8 sm:$0xf] %v10754
  %10760 = vst [vmem:[%s1845] ss:$8 sm:$0xf0] %v10754
  %v10761 = vld [vmem:[#allocation2] sm:$0xff]
  %v10762 = vld [vmem:[#allocation2 + $0x8] sm:$0xff]
  %v10763 = vld [vmem:[#allocation2 + $0x10] sm:$0xff]
  %v10764 = vld [vmem:[#allocation2 + $0x18] sm:$0xff]
  %v10765 = vld [vmem:[#allocation2 + $0x20] sm:$0xff]
  %v10766 = vld [vmem:[#allocation2 + $0x28] sm:$0xff]
  %v10767 = vld [vmem:[#allocation2 + $0x30] sm:$0xff]
  %v10768 = vld [vmem:[#allocation2 + $0x38] sm:$0xff]
  %v10769 = vld [vmem:[#allocation2 + $0x40] sm:$0xff]
  %v10770 = vld [vmem:[#allocation2 + $0x48] sm:$0xff]
  %v10771 = vld [vmem:[#allocation2 + $0x50] sm:$0xff]
  %v10772 = vld [vmem:[#allocation2 + $0x58] sm:$0xff]
  %v10773 = vld [vmem:[#allocation2 + $0x60] sm:$0xff]
  %v10774 = vld [vmem:[#allocation2 + $0x68] sm:$0xff]
  %v10775 = vld [vmem:[#allocation2 + $0x70] sm:$0xff]
  %v10776 = vld [vmem:[#allocation2 + $0x78] sm:$0xff]
  %v10777 = vld [vmem:[#allocation2 + $0x80] sm:$0xff]
  %v10778 = vld [vmem:[#allocation2 + $0x88] sm:$0xff]
  %v10779 = vld [vmem:[#allocation2 + $0x90] sm:$0xff]
  %v10780 = vld [vmem:[#allocation2 + $0x98] sm:$0xff]
  %v10781 = vld [vmem:[#allocation2 + $0xa0] sm:$0xff]
  %v10782 = vld [vmem:[#allocation2 + $0xa8] sm:$0xff]
  %v10783 = vld [vmem:[#allocation2 + $0xb0] sm:$0xff]
  %v10784 = vld [vmem:[#allocation2 + $0xb8] sm:$0xff]
  %v10785 = vld [vmem:[#allocation2 + $0xc0] sm:$0xff]
  %v10786 = vld [vmem:[#allocation2 + $0xc8] sm:$0xff]
  %v10787 = vld [vmem:[#allocation2 + $0xd0] sm:$0xff]
  %v10788 = vld [vmem:[#allocation2 + $0xd8] sm:$0xff]
  %v10789 = vld [vmem:[#allocation2 + $0xe0] sm:$0xff]
  %v10790 = vld [vmem:[#allocation2 + $0xe8] sm:$0xff]
  %v10791 = vld [vmem:[#allocation2 + $0xf0] sm:$0xff]
  %v10792 = vld [vmem:[#allocation2 + $0xf8] sm:$0xff]
  %10793 = vmatprep.subr.mxu0 0.0
  %10794 = vmatpush1.msra.mxu0 0.0
  %10795 = vmatprep.subr.mxu0 0.0
  %10796 = vmatpush1.msra.mxu0 0.0
  %10797 = vmatprep.subr.mxu0 0.0
  %10798 = vmatpush1.msra.mxu0 0.0
  %10799 = vmatprep.subr.mxu0 0.0
  %10800 = vmatpush1.msra.mxu0 0.0
  %10801 = vmatprep.subr.mxu0 0.0
  %10802 = vmatpush1.msra.mxu0 0.0
  %10803 = vmatprep.subr.mxu0 0.0
  %10804 = vmatpush1.msra.mxu0 0.0
  %10805 = vmatprep.subr.mxu0 0.0
  %10806 = vmatpush1.msra.mxu0 0.0
  %10807 = vmatprep.subr.mxu0 0.0
  %10808 = vmatpush1.msra.mxu0 0.0
  %10809 = vmatprep.subr.mxu0 0.0
  %10810 = vmatpush1.msra.mxu0 0.0
  %10811 = vmatprep.subr.mxu0 0.0
  %10812 = vmatpush1.msra.mxu0 0.0
  %10813 = vmatprep.subr.mxu0 0.0
  %10814 = vmatpush1.msra.mxu0 0.0
  %10815 = vmatprep.subr.mxu0 0.0
  %10816 = vmatpush1.msra.mxu0 0.0
  %10817 = vmatprep.subr.mxu0 0.0
  %10818 = vmatpush1.msra.mxu0 0.0
  %10819 = vmatprep.subr.mxu0 0.0
  %10820 = vmatpush1.msra.mxu0 0.0
  %10821 = vmatprep.subr.mxu0 %v10778
  %10822 = vmatpush1.msra.mxu0 %v10777
  %10823 = vmatprep.subr.mxu0 %v10762
  %10824 = vmatpush1.msra.mxu0 %v10761
  %10825 = vmatprep.subr.mxu0 0.0
  %10826 = vmatpush2.msra.mxu0 0.0
  %10827 = vmatprep.subr.mxu0 0.0
  %10828 = vmatpush2.msra.mxu0 0.0
  %10829 = vmatprep.subr.mxu0 0.0
  %10830 = vmatpush2.msra.mxu0 0.0
  %10831 = vmatprep.subr.mxu0 0.0
  %10832 = vmatpush2.msra.mxu0 0.0
  %10833 = vmatprep.subr.mxu0 0.0
  %10834 = vmatpush2.msra.mxu0 0.0
  %10835 = vmatprep.subr.mxu0 0.0
  %10836 = vmatpush2.msra.mxu0 0.0
  %10837 = vmatprep.subr.mxu0 0.0
  %10838 = vmatpush2.msra.mxu0 0.0
  %10839 = vmatprep.subr.mxu0 0.0
  %10840 = vmatpush2.msra.mxu0 0.0
  %10841 = vmatprep.subr.mxu0 0.0
  %10842 = vmatpush2.msra.mxu0 0.0
  %10843 = vmatprep.subr.mxu0 0.0
  %10844 = vmatpush2.msra.mxu0 0.0
  %10845 = vmatprep.subr.mxu0 0.0
  %10846 = vmatpush2.msra.mxu0 0.0
  %10847 = vmatprep.subr.mxu0 0.0
  %10848 = vmatpush2.msra.mxu0 0.0
  %10849 = vmatprep.subr.mxu0 0.0
  %10850 = vmatpush2.msra.mxu0 0.0
  %10851 = vmatprep.subr.mxu0 0.0
  %10852 = vmatpush2.msra.mxu0 0.0
  %10853 = vmatprep.subr.mxu0 0.0
  %10854 = vmatpush2.msra.mxu0 0.0
  %10855 = vmatprep.subr.mxu0 0.0
  %10856 = vmatpush2.msra.mxu0 0.0
  %10857 = vmatprep.mubr.f32.mxu0 0.0
  %10858 = vmatmul.mubr.f32.gmra.mxu0 %v1882
  %v10859 = vpop.f32.mrf.mxu0
  %v10860 = vadd.f32 0.0, %v10859
  %v10861 = vpop.f32.mrf.mxu0
  %v10862 = vadd.f32 0.0, %v10861
  %10863 = vmatprep.mubr.f32.mxu0 0.0
  %10864 = vmatmul.mubr.f32.gmra.mxu0 %v1885
  %v10865 = vpop.f32.mrf.mxu0
  %v10866 = vadd.f32 0.0, %v10865
  %v10867 = vpop.f32.mrf.mxu0
  %v10868 = vadd.f32 0.0, %v10867
  %10869 = vdwg.mxu0
  %10870 = vmatprep.subr.mxu0 0.0
  %10871 = vmatpush1.msra.mxu0 0.0
  %10872 = vmatprep.subr.mxu0 0.0
  %10873 = vmatpush1.msra.mxu0 0.0
  %10874 = vmatprep.subr.mxu0 0.0
  %10875 = vmatpush1.msra.mxu0 0.0
  %10876 = vmatprep.subr.mxu0 0.0
  %10877 = vmatpush1.msra.mxu0 0.0
  %10878 = vmatprep.subr.mxu0 0.0
  %10879 = vmatpush1.msra.mxu0 0.0
  %10880 = vmatprep.subr.mxu0 0.0
  %10881 = vmatpush1.msra.mxu0 0.0
  %10882 = vmatprep.subr.mxu0 0.0
  %10883 = vmatpush1.msra.mxu0 0.0
  %10884 = vmatprep.subr.mxu0 0.0
  %10885 = vmatpush1.msra.mxu0 0.0
  %10886 = vmatprep.subr.mxu0 0.0
  %10887 = vmatpush1.msra.mxu0 0.0
  %10888 = vmatprep.subr.mxu0 0.0
  %10889 = vmatpush1.msra.mxu0 0.0
  %10890 = vmatprep.subr.mxu0 0.0
  %10891 = vmatpush1.msra.mxu0 0.0
  %10892 = vmatprep.subr.mxu0 0.0
  %10893 = vmatpush1.msra.mxu0 0.0
  %10894 = vmatprep.subr.mxu0 0.0
  %10895 = vmatpush1.msra.mxu0 0.0
  %10896 = vmatprep.subr.mxu0 0.0
  %10897 = vmatpush1.msra.mxu0 0.0
  %10898 = vmatprep.subr.mxu0 %v10780
  %10899 = vmatpush1.msra.mxu0 %v10779
  %10900 = vmatprep.subr.mxu0 %v10764
  %10901 = vmatpush1.msra.mxu0 %v10763
  %10902 = vmatprep.subr.mxu0 0.0
  %10903 = vmatpush2.msra.mxu0 0.0
  %10904 = vmatprep.subr.mxu0 0.0
  %10905 = vmatpush2.msra.mxu0 0.0
  %10906 = vmatprep.subr.mxu0 0.0
  %10907 = vmatpush2.msra.mxu0 0.0
  %10908 = vmatprep.subr.mxu0 0.0
  %10909 = vmatpush2.msra.mxu0 0.0
  %10910 = vmatprep.subr.mxu0 0.0
  %10911 = vmatpush2.msra.mxu0 0.0
  %10912 = vmatprep.subr.mxu0 0.0
  %10913 = vmatpush2.msra.mxu0 0.0
  %10914 = vmatprep.subr.mxu0 0.0
  %10915 = vmatpush2.msra.mxu0 0.0
  %10916 = vmatprep.subr.mxu0 0.0
  %10917 = vmatpush2.msra.mxu0 0.0
  %10918 = vmatprep.subr.mxu0 0.0
  %10919 = vmatpush2.msra.mxu0 0.0
  %10920 = vmatprep.subr.mxu0 0.0
  %10921 = vmatpush2.msra.mxu0 0.0
  %10922 = vmatprep.subr.mxu0 0.0
  %10923 = vmatpush2.msra.mxu0 0.0
  %10924 = vmatprep.subr.mxu0 0.0
  %10925 = vmatpush2.msra.mxu0 0.0
  %10926 = vmatprep.subr.mxu0 0.0
  %10927 = vmatpush2.msra.mxu0 0.0
  %10928 = vmatprep.subr.mxu0 0.0
  %10929 = vmatpush2.msra.mxu0 0.0
  %10930 = vmatprep.subr.mxu0 0.0
  %10931 = vmatpush2.msra.mxu0 0.0
  %10932 = vmatprep.subr.mxu0 0.0
  %10933 = vmatpush2.msra.mxu0 0.0
  %10934 = vmatprep.mubr.f32.mxu0 0.0
  %10935 = vmatmul.mubr.f32.gmra.mxu0 %v1882
  %v10936 = vpop.f32.mrf.mxu0
  %v10937 = vadd.f32 0.0, %v10936
  %v10938 = vpop.f32.mrf.mxu0
  %v10939 = vadd.f32 0.0, %v10938
  %10940 = vmatprep.mubr.f32.mxu0 0.0
  %10941 = vmatmul.mubr.f32.gmra.mxu0 %v1885
  %v10942 = vpop.f32.mrf.mxu0
  %v10943 = vadd.f32 0.0, %v10942
  %v10944 = vpop.f32.mrf.mxu0
  %v10945 = vadd.f32 0.0, %v10944
  %10946 = vdwg.mxu0
  %10947 = vmatprep.subr.mxu0 0.0
  %10948 = vmatpush1.msra.mxu0 0.0
  %10949 = vmatprep.subr.mxu0 0.0
  %10950 = vmatpush1.msra.mxu0 0.0
  %10951 = vmatprep.subr.mxu0 0.0
  %10952 = vmatpush1.msra.mxu0 0.0
  %10953 = vmatprep.subr.mxu0 0.0
  %10954 = vmatpush1.msra.mxu0 0.0
  %10955 = vmatprep.subr.mxu0 0.0
  %10956 = vmatpush1.msra.mxu0 0.0
  %10957 = vmatprep.subr.mxu0 0.0
  %10958 = vmatpush1.msra.mxu0 0.0
  %10959 = vmatprep.subr.mxu0 0.0
  %10960 = vmatpush1.msra.mxu0 0.0
  %10961 = vmatprep.subr.mxu0 0.0
  %10962 = vmatpush1.msra.mxu0 0.0
  %10963 = vmatprep.subr.mxu0 0.0
  %10964 = vmatpush1.msra.mxu0 0.0
  %10965 = vmatprep.subr.mxu0 0.0
  %10966 = vmatpush1.msra.mxu0 0.0
  %10967 = vmatprep.subr.mxu0 0.0
  %10968 = vmatpush1.msra.mxu0 0.0
  %10969 = vmatprep.subr.mxu0 0.0
  %10970 = vmatpush1.msra.mxu0 0.0
  %10971 = vmatprep.subr.mxu0 0.0
  %10972 = vmatpush1.msra.mxu0 0.0
  %10973 = vmatprep.subr.mxu0 0.0
  %10974 = vmatpush1.msra.mxu0 0.0
  %10975 = vmatprep.subr.mxu0 %v10782
  %10976 = vmatpush1.msra.mxu0 %v10781
  %10977 = vmatprep.subr.mxu0 %v10766
  %10978 = vmatpush1.msra.mxu0 %v10765
  %10979 = vmatprep.subr.mxu0 0.0
  %10980 = vmatpush2.msra.mxu0 0.0
  %10981 = vmatprep.subr.mxu0 0.0
  %10982 = vmatpush2.msra.mxu0 0.0
  %10983 = vmatprep.subr.mxu0 0.0
  %10984 = vmatpush2.msra.mxu0 0.0
  %10985 = vmatprep.subr.mxu0 0.0
  %10986 = vmatpush2.msra.mxu0 0.0
  %10987 = vmatprep.subr.mxu0 0.0
  %10988 = vmatpush2.msra.mxu0 0.0
  %10989 = vmatprep.subr.mxu0 0.0
  %10990 = vmatpush2.msra.mxu0 0.0
  %10991 = vmatprep.subr.mxu0 0.0
  %10992 = vmatpush2.msra.mxu0 0.0
  %10993 = vmatprep.subr.mxu0 0.0
  %10994 = vmatpush2.msra.mxu0 0.0
  %10995 = vmatprep.subr.mxu0 0.0
  %10996 = vmatpush2.msra.mxu0 0.0
  %10997 = vmatprep.subr.mxu0 0.0
  %10998 = vmatpush2.msra.mxu0 0.0
  %10999 = vmatprep.subr.mxu0 0.0
  %11000 = vmatpush2.msra.mxu0 0.0
  %11001 = vmatprep.subr.mxu0 0.0
  %11002 = vmatpush2.msra.mxu0 0.0
  %11003 = vmatprep.subr.mxu0 0.0
  %11004 = vmatpush2.msra.mxu0 0.0
  %11005 = vmatprep.subr.mxu0 0.0
  %11006 = vmatpush2.msra.mxu0 0.0
  %11007 = vmatprep.subr.mxu0 0.0
  %11008 = vmatpush2.msra.mxu0 0.0
  %11009 = vmatprep.subr.mxu0 0.0
  %11010 = vmatpush2.msra.mxu0 0.0
  %11011 = vmatprep.mubr.f32.mxu0 0.0
  %11012 = vmatmul.mubr.f32.gmra.mxu0 %v1882
  %v11013 = vpop.f32.mrf.mxu0
  %v11014 = vadd.f32 0.0, %v11013
  %v11015 = vpop.f32.mrf.mxu0
  %v11016 = vadd.f32 0.0, %v11015
  %11017 = vmatprep.mubr.f32.mxu0 0.0
  %11018 = vmatmul.mubr.f32.gmra.mxu0 %v1885
  %v11019 = vpop.f32.mrf.mxu0
  %v11020 = vadd.f32 0.0, %v11019
  %v11021 = vpop.f32.mrf.mxu0
  %v11022 = vadd.f32 0.0, %v11021
  %11023 = vdwg.mxu0
  %11024 = vmatprep.subr.mxu0 0.0
  %11025 = vmatpush1.msra.mxu0 0.0
  %11026 = vmatprep.subr.mxu0 0.0
  %11027 = vmatpush1.msra.mxu0 0.0
  %11028 = vmatprep.subr.mxu0 0.0
  %11029 = vmatpush1.msra.mxu0 0.0
  %11030 = vmatprep.subr.mxu0 0.0
  %11031 = vmatpush1.msra.mxu0 0.0
  %11032 = vmatprep.subr.mxu0 0.0
  %11033 = vmatpush1.msra.mxu0 0.0
  %11034 = vmatprep.subr.mxu0 0.0
  %11035 = vmatpush1.msra.mxu0 0.0
  %11036 = vmatprep.subr.mxu0 0.0
  %11037 = vmatpush1.msra.mxu0 0.0
  %11038 = vmatprep.subr.mxu0 0.0
  %11039 = vmatpush1.msra.mxu0 0.0
  %11040 = vmatprep.subr.mxu0 0.0
  %11041 = vmatpush1.msra.mxu0 0.0
  %11042 = vmatprep.subr.mxu0 0.0
  %11043 = vmatpush1.msra.mxu0 0.0
  %11044 = vmatprep.subr.mxu0 0.0
  %11045 = vmatpush1.msra.mxu0 0.0
  %11046 = vmatprep.subr.mxu0 0.0
  %11047 = vmatpush1.msra.mxu0 0.0
  %11048 = vmatprep.subr.mxu0 0.0
  %11049 = vmatpush1.msra.mxu0 0.0
  %11050 = vmatprep.subr.mxu0 0.0
  %11051 = vmatpush1.msra.mxu0 0.0
  %11052 = vmatprep.subr.mxu0 %v10784
  %11053 = vmatpush1.msra.mxu0 %v10783
  %11054 = vmatprep.subr.mxu0 %v10768
  %11055 = vmatpush1.msra.mxu0 %v10767
  %11056 = vmatprep.subr.mxu0 0.0
  %11057 = vmatpush2.msra.mxu0 0.0
  %11058 = vmatprep.subr.mxu0 0.0
  %11059 = vmatpush2.msra.mxu0 0.0
  %11060 = vmatprep.subr.mxu0 0.0
  %11061 = vmatpush2.msra.mxu0 0.0
  %11062 = vmatprep.subr.mxu0 0.0
  %11063 = vmatpush2.msra.mxu0 0.0
  %11064 = vmatprep.subr.mxu0 0.0
  %11065 = vmatpush2.msra.mxu0 0.0
  %11066 = vmatprep.subr.mxu0 0.0
  %11067 = vmatpush2.msra.mxu0 0.0
  %11068 = vmatprep.subr.mxu0 0.0
  %11069 = vmatpush2.msra.mxu0 0.0
  %11070 = vmatprep.subr.mxu0 0.0
  %11071 = vmatpush2.msra.mxu0 0.0
  %11072 = vmatprep.subr.mxu0 0.0
  %11073 = vmatpush2.msra.mxu0 0.0
  %11074 = vmatprep.subr.mxu0 0.0
  %11075 = vmatpush2.msra.mxu0 0.0
  %11076 = vmatprep.subr.mxu0 0.0
  %11077 = vmatpush2.msra.mxu0 0.0
  %11078 = vmatprep.subr.mxu0 0.0
  %11079 = vmatpush2.msra.mxu0 0.0
  %11080 = vmatprep.subr.mxu0 0.0
  %11081 = vmatpush2.msra.mxu0 0.0
  %11082 = vmatprep.subr.mxu0 0.0
  %11083 = vmatpush2.msra.mxu0 0.0
  %11084 = vmatprep.subr.mxu0 0.0
  %11085 = vmatpush2.msra.mxu0 0.0
  %11086 = vmatprep.subr.mxu0 0.0
  %11087 = vmatpush2.msra.mxu0 0.0
  %11088 = vmatprep.mubr.f32.mxu0 0.0
  %11089 = vmatmul.mubr.f32.gmra.mxu0 %v1882
  %v11090 = vpop.f32.mrf.mxu0
  %v11091 = vadd.f32 0.0, %v11090
  %v11092 = vpop.f32.mrf.mxu0
  %v11093 = vadd.f32 0.0, %v11092
  %11094 = vmatprep.mubr.f32.mxu0 0.0
  %11095 = vmatmul.mubr.f32.gmra.mxu0 %v1885
  %v11096 = vpop.f32.mrf.mxu0
  %v11097 = vadd.f32 0.0, %v11096
  %v11098 = vpop.f32.mrf.mxu0
  %v11099 = vadd.f32 0.0, %v11098
  %11100 = vdwg.mxu0
  %11101 = vmatprep.subr.mxu0 0.0
  %11102 = vmatpush1.msra.mxu0 0.0
  %11103 = vmatprep.subr.mxu0 0.0
  %11104 = vmatpush1.msra.mxu0 0.0
  %11105 = vmatprep.subr.mxu0 0.0
  %11106 = vmatpush1.msra.mxu0 0.0
  %11107 = vmatprep.subr.mxu0 0.0
  %11108 = vmatpush1.msra.mxu0 0.0
  %11109 = vmatprep.subr.mxu0 0.0
  %11110 = vmatpush1.msra.mxu0 0.0
  %11111 = vmatprep.subr.mxu0 0.0
  %11112 = vmatpush1.msra.mxu0 0.0
  %11113 = vmatprep.subr.mxu0 0.0
  %11114 = vmatpush1.msra.mxu0 0.0
  %11115 = vmatprep.subr.mxu0 0.0
  %11116 = vmatpush1.msra.mxu0 0.0
  %11117 = vmatprep.subr.mxu0 0.0
  %11118 = vmatpush1.msra.mxu0 0.0
  %11119 = vmatprep.subr.mxu0 0.0
  %11120 = vmatpush1.msra.mxu0 0.0
  %11121 = vmatprep.subr.mxu0 0.0
  %11122 = vmatpush1.msra.mxu0 0.0
  %11123 = vmatprep.subr.mxu0 0.0
  %11124 = vmatpush1.msra.mxu0 0.0
  %11125 = vmatprep.subr.mxu0 0.0
  %11126 = vmatpush1.msra.mxu0 0.0
  %11127 = vmatprep.subr.mxu0 0.0
  %11128 = vmatpush1.msra.mxu0 0.0
  %11129 = vmatprep.subr.mxu0 %v10786
  %11130 = vmatpush1.msra.mxu0 %v10785
  %11131 = vmatprep.subr.mxu0 %v10770
  %11132 = vmatpush1.msra.mxu0 %v10769
  %11133 = vmatprep.subr.mxu0 0.0
  %11134 = vmatpush2.msra.mxu0 0.0
  %11135 = vmatprep.subr.mxu0 0.0
  %11136 = vmatpush2.msra.mxu0 0.0
  %11137 = vmatprep.subr.mxu0 0.0
  %11138 = vmatpush2.msra.mxu0 0.0
  %11139 = vmatprep.subr.mxu0 0.0
  %11140 = vmatpush2.msra.mxu0 0.0
  %11141 = vmatprep.subr.mxu0 0.0
  %11142 = vmatpush2.msra.mxu0 0.0
  %11143 = vmatprep.subr.mxu0 0.0
  %11144 = vmatpush2.msra.mxu0 0.0
  %11145 = vmatprep.subr.mxu0 0.0
  %11146 = vmatpush2.msra.mxu0 0.0
  %11147 = vmatprep.subr.mxu0 0.0
  %11148 = vmatpush2.msra.mxu0 0.0
  %11149 = vmatprep.subr.mxu0 0.0
  %11150 = vmatpush2.msra.mxu0 0.0
  %11151 = vmatprep.subr.mxu0 0.0
  %11152 = vmatpush2.msra.mxu0 0.0
  %11153 = vmatprep.subr.mxu0 0.0
  %11154 = vmatpush2.msra.mxu0 0.0
  %11155 = vmatprep.subr.mxu0 0.0
  %11156 = vmatpush2.msra.mxu0 0.0
  %11157 = vmatprep.subr.mxu0 0.0
  %11158 = vmatpush2.msra.mxu0 0.0
  %11159 = vmatprep.subr.mxu0 0.0
  %11160 = vmatpush2.msra.mxu0 0.0
  %11161 = vmatprep.subr.mxu0 0.0
  %11162 = vmatpush2.msra.mxu0 0.0
  %11163 = vmatprep.subr.mxu0 0.0
  %11164 = vmatpush2.msra.mxu0 0.0
  %11165 = vmatprep.mubr.f32.mxu0 0.0
  %11166 = vmatmul.mubr.f32.gmra.mxu0 %v1882
  %v11167 = vpop.f32.mrf.mxu0
  %v11168 = vadd.f32 0.0, %v11167
  %v11169 = vpop.f32.mrf.mxu0
  %v11170 = vadd.f32 0.0, %v11169
  %11171 = vmatprep.mubr.f32.mxu0 0.0
  %11172 = vmatmul.mubr.f32.gmra.mxu0 %v1885
  %v11173 = vpop.f32.mrf.mxu0
  %v11174 = vadd.f32 0.0, %v11173
  %v11175 = vpop.f32.mrf.mxu0
  %v11176 = vadd.f32 0.0, %v11175
  %11177 = vdwg.mxu0
  %11178 = vmatprep.subr.mxu0 0.0
  %11179 = vmatpush1.msra.mxu0 0.0
  %11180 = vmatprep.subr.mxu0 0.0
  %11181 = vmatpush1.msra.mxu0 0.0
  %11182 = vmatprep.subr.mxu0 0.0
  %11183 = vmatpush1.msra.mxu0 0.0
  %11184 = vmatprep.subr.mxu0 0.0
  %11185 = vmatpush1.msra.mxu0 0.0
  %11186 = vmatprep.subr.mxu0 0.0
  %11187 = vmatpush1.msra.mxu0 0.0
  %11188 = vmatprep.subr.mxu0 0.0
  %11189 = vmatpush1.msra.mxu0 0.0
  %11190 = vmatprep.subr.mxu0 0.0
  %11191 = vmatpush1.msra.mxu0 0.0
  %11192 = vmatprep.subr.mxu0 0.0
  %11193 = vmatpush1.msra.mxu0 0.0
  %11194 = vmatprep.subr.mxu0 0.0
  %11195 = vmatpush1.msra.mxu0 0.0
  %11196 = vmatprep.subr.mxu0 0.0
  %11197 = vmatpush1.msra.mxu0 0.0
  %11198 = vmatprep.subr.mxu0 0.0
  %11199 = vmatpush1.msra.mxu0 0.0
  %11200 = vmatprep.subr.mxu0 0.0
  %11201 = vmatpush1.msra.mxu0 0.0
  %11202 = vmatprep.subr.mxu0 0.0
  %11203 = vmatpush1.msra.mxu0 0.0
  %11204 = vmatprep.subr.mxu0 0.0
  %11205 = vmatpush1.msra.mxu0 0.0
  %11206 = vmatprep.subr.mxu0 %v10788
  %11207 = vmatpush1.msra.mxu0 %v10787
  %11208 = vmatprep.subr.mxu0 %v10772
  %11209 = vmatpush1.msra.mxu0 %v10771
  %11210 = vmatprep.subr.mxu0 0.0
  %11211 = vmatpush2.msra.mxu0 0.0
  %11212 = vmatprep.subr.mxu0 0.0
  %11213 = vmatpush2.msra.mxu0 0.0
  %11214 = vmatprep.subr.mxu0 0.0
  %11215 = vmatpush2.msra.mxu0 0.0
  %11216 = vmatprep.subr.mxu0 0.0
  %11217 = vmatpush2.msra.mxu0 0.0
  %11218 = vmatprep.subr.mxu0 0.0
  %11219 = vmatpush2.msra.mxu0 0.0
  %11220 = vmatprep.subr.mxu0 0.0
  %11221 = vmatpush2.msra.mxu0 0.0
  %11222 = vmatprep.subr.mxu0 0.0
  %11223 = vmatpush2.msra.mxu0 0.0
  %11224 = vmatprep.subr.mxu0 0.0
  %11225 = vmatpush2.msra.mxu0 0.0
  %11226 = vmatprep.subr.mxu0 0.0
  %11227 = vmatpush2.msra.mxu0 0.0
  %11228 = vmatprep.subr.mxu0 0.0
  %11229 = vmatpush2.msra.mxu0 0.0
  %11230 = vmatprep.subr.mxu0 0.0
  %11231 = vmatpush2.msra.mxu0 0.0
  %11232 = vmatprep.subr.mxu0 0.0
  %11233 = vmatpush2.msra.mxu0 0.0
  %11234 = vmatprep.subr.mxu0 0.0
  %11235 = vmatpush2.msra.mxu0 0.0
  %11236 = vmatprep.subr.mxu0 0.0
  %11237 = vmatpush2.msra.mxu0 0.0
  %11238 = vmatprep.subr.mxu0 0.0
  %11239 = vmatpush2.msra.mxu0 0.0
  %11240 = vmatprep.subr.mxu0 0.0
  %11241 = vmatpush2.msra.mxu0 0.0
  %11242 = vmatprep.mubr.f32.mxu0 0.0
  %11243 = vmatmul.mubr.f32.gmra.mxu0 %v1882
  %v11244 = vpop.f32.mrf.mxu0
  %v11245 = vadd.f32 0.0, %v11244
  %v11246 = vpop.f32.mrf.mxu0
  %v11247 = vadd.f32 0.0, %v11246
  %11248 = vmatprep.mubr.f32.mxu0 0.0
  %11249 = vmatmul.mubr.f32.gmra.mxu0 %v1885
  %v11250 = vpop.f32.mrf.mxu0
  %v11251 = vadd.f32 0.0, %v11250
  %v11252 = vpop.f32.mrf.mxu0
  %v11253 = vadd.f32 0.0, %v11252
  %11254 = vdwg.mxu0
  %11255 = vmatprep.subr.mxu0 0.0
  %11256 = vmatpush1.msra.mxu0 0.0
  %11257 = vmatprep.subr.mxu0 0.0
  %11258 = vmatpush1.msra.mxu0 0.0
  %11259 = vmatprep.subr.mxu0 0.0
  %11260 = vmatpush1.msra.mxu0 0.0
  %11261 = vmatprep.subr.mxu0 0.0
  %11262 = vmatpush1.msra.mxu0 0.0
  %11263 = vmatprep.subr.mxu0 0.0
  %11264 = vmatpush1.msra.mxu0 0.0
  %11265 = vmatprep.subr.mxu0 0.0
  %11266 = vmatpush1.msra.mxu0 0.0
  %11267 = vmatprep.subr.mxu0 0.0
  %11268 = vmatpush1.msra.mxu0 0.0
  %11269 = vmatprep.subr.mxu0 0.0
  %11270 = vmatpush1.msra.mxu0 0.0
  %11271 = vmatprep.subr.mxu0 0.0
  %11272 = vmatpush1.msra.mxu0 0.0
  %11273 = vmatprep.subr.mxu0 0.0
  %11274 = vmatpush1.msra.mxu0 0.0
  %11275 = vmatprep.subr.mxu0 0.0
  %11276 = vmatpush1.msra.mxu0 0.0
  %11277 = vmatprep.subr.mxu0 0.0
  %11278 = vmatpush1.msra.mxu0 0.0
  %11279 = vmatprep.subr.mxu0 0.0
  %11280 = vmatpush1.msra.mxu0 0.0
  %11281 = vmatprep.subr.mxu0 0.0
  %11282 = vmatpush1.msra.mxu0 0.0
  %11283 = vmatprep.subr.mxu0 %v10790
  %11284 = vmatpush1.msra.mxu0 %v10789
  %11285 = vmatprep.subr.mxu0 %v10774
  %11286 = vmatpush1.msra.mxu0 %v10773
  %11287 = vmatprep.subr.mxu0 0.0
  %11288 = vmatpush2.msra.mxu0 0.0
  %11289 = vmatprep.subr.mxu0 0.0
  %11290 = vmatpush2.msra.mxu0 0.0
  %11291 = vmatprep.subr.mxu0 0.0
  %11292 = vmatpush2.msra.mxu0 0.0
  %11293 = vmatprep.subr.mxu0 0.0
  %11294 = vmatpush2.msra.mxu0 0.0
  %11295 = vmatprep.subr.mxu0 0.0
  %11296 = vmatpush2.msra.mxu0 0.0
  %11297 = vmatprep.subr.mxu0 0.0
  %11298 = vmatpush2.msra.mxu0 0.0
  %11299 = vmatprep.subr.mxu0 0.0
  %11300 = vmatpush2.msra.mxu0 0.0
  %11301 = vmatprep.subr.mxu0 0.0
  %11302 = vmatpush2.msra.mxu0 0.0
  %11303 = vmatprep.subr.mxu0 0.0
  %11304 = vmatpush2.msra.mxu0 0.0
  %11305 = vmatprep.subr.mxu0 0.0
  %11306 = vmatpush2.msra.mxu0 0.0
  %11307 = vmatprep.subr.mxu0 0.0
  %11308 = vmatpush2.msra.mxu0 0.0
  %11309 = vmatprep.subr.mxu0 0.0
  %11310 = vmatpush2.msra.mxu0 0.0
  %11311 = vmatprep.subr.mxu0 0.0
  %11312 = vmatpush2.msra.mxu0 0.0
  %11313 = vmatprep.subr.mxu0 0.0
  %11314 = vmatpush2.msra.mxu0 0.0
  %11315 = vmatprep.subr.mxu0 0.0
  %11316 = vmatpush2.msra.mxu0 0.0
  %11317 = vmatprep.subr.mxu0 0.0
  %11318 = vmatpush2.msra.mxu0 0.0
  %11319 = vmatprep.mubr.f32.mxu0 0.0
  %11320 = vmatmul.mubr.f32.gmra.mxu0 %v1882
  %v11321 = vpop.f32.mrf.mxu0
  %v11322 = vadd.f32 0.0, %v11321
  %v11323 = vpop.f32.mrf.mxu0
  %v11324 = vadd.f32 0.0, %v11323
  %11325 = vmatprep.mubr.f32.mxu0 0.0
  %11326 = vmatmul.mubr.f32.gmra.mxu0 %v1885
  %v11327 = vpop.f32.mrf.mxu0
  %v11328 = vadd.f32 0.0, %v11327
  %v11329 = vpop.f32.mrf.mxu0
  %v11330 = vadd.f32 0.0, %v11329
  %11331 = vdwg.mxu0
  %11332 = vmatprep.subr.mxu0 0.0
  %11333 = vmatpush1.msra.mxu0 0.0
  %11334 = vmatprep.subr.mxu0 0.0
  %11335 = vmatpush1.msra.mxu0 0.0
  %11336 = vmatprep.subr.mxu0 0.0
  %11337 = vmatpush1.msra.mxu0 0.0
  %11338 = vmatprep.subr.mxu0 0.0
  %11339 = vmatpush1.msra.mxu0 0.0
  %11340 = vmatprep.subr.mxu0 0.0
  %11341 = vmatpush1.msra.mxu0 0.0
  %11342 = vmatprep.subr.mxu0 0.0
  %11343 = vmatpush1.msra.mxu0 0.0
  %11344 = vmatprep.subr.mxu0 0.0
  %11345 = vmatpush1.msra.mxu0 0.0
  %11346 = vmatprep.subr.mxu0 0.0
  %11347 = vmatpush1.msra.mxu0 0.0
  %11348 = vmatprep.subr.mxu0 0.0
  %11349 = vmatpush1.msra.mxu0 0.0
  %11350 = vmatprep.subr.mxu0 0.0
  %11351 = vmatpush1.msra.mxu0 0.0
  %11352 = vmatprep.subr.mxu0 0.0
  %11353 = vmatpush1.msra.mxu0 0.0
  %11354 = vmatprep.subr.mxu0 0.0
  %11355 = vmatpush1.msra.mxu0 0.0
  %11356 = vmatprep.subr.mxu0 0.0
  %11357 = vmatpush1.msra.mxu0 0.0
  %11358 = vmatprep.subr.mxu0 0.0
  %11359 = vmatpush1.msra.mxu0 0.0
  %11360 = vmatprep.subr.mxu0 %v10792
  %11361 = vmatpush1.msra.mxu0 %v10791
  %11362 = vmatprep.subr.mxu0 %v10776
  %11363 = vmatpush1.msra.mxu0 %v10775
  %11364 = vmatprep.subr.mxu0 0.0
  %11365 = vmatpush2.msra.mxu0 0.0
  %11366 = vmatprep.subr.mxu0 0.0
  %11367 = vmatpush2.msra.mxu0 0.0
  %11368 = vmatprep.subr.mxu0 0.0
  %11369 = vmatpush2.msra.mxu0 0.0
  %11370 = vmatprep.subr.mxu0 0.0
  %11371 = vmatpush2.msra.mxu0 0.0
  %11372 = vmatprep.subr.mxu0 0.0
  %11373 = vmatpush2.msra.mxu0 0.0
  %11374 = vmatprep.subr.mxu0 0.0
  %11375 = vmatpush2.msra.mxu0 0.0
  %11376 = vmatprep.subr.mxu0 0.0
  %11377 = vmatpush2.msra.mxu0 0.0
  %11378 = vmatprep.subr.mxu0 0.0
  %11379 = vmatpush2.msra.mxu0 0.0
  %11380 = vmatprep.subr.mxu0 0.0
  %11381 = vmatpush2.msra.mxu0 0.0
  %11382 = vmatprep.subr.mxu0 0.0
  %11383 = vmatpush2.msra.mxu0 0.0
  %11384 = vmatprep.subr.mxu0 0.0
  %11385 = vmatpush2.msra.mxu0 0.0
  %11386 = vmatprep.subr.mxu0 0.0
  %11387 = vmatpush2.msra.mxu0 0.0
  %11388 = vmatprep.subr.mxu0 0.0
  %11389 = vmatpush2.msra.mxu0 0.0
  %11390 = vmatprep.subr.mxu0 0.0
  %11391 = vmatpush2.msra.mxu0 0.0
  %11392 = vmatprep.subr.mxu0 0.0
  %11393 = vmatpush2.msra.mxu0 0.0
  %11394 = vmatprep.subr.mxu0 0.0
  %11395 = vmatpush2.msra.mxu0 0.0
  %11396 = vmatprep.mubr.f32.mxu0 0.0
  %11397 = vmatmul.mubr.f32.gmra.mxu0 %v1882
  %v11398 = vpop.f32.mrf.mxu0
  %v11399 = vadd.f32 0.0, %v11398
  %v11400 = vpop.f32.mrf.mxu0
  %v11401 = vadd.f32 0.0, %v11400
  %11402 = vmatprep.mubr.f32.mxu0 0.0
  %11403 = vmatmul.mubr.f32.gmra.mxu0 %v1885
  %v11404 = vpop.f32.mrf.mxu0
  %v11405 = vadd.f32 0.0, %v11404
  %v11406 = vpop.f32.mrf.mxu0
  %v11407 = vadd.f32 0.0, %v11406
  %11408 = vdwg.mxu0
  %v11409 = vmax.f32 %v10860, 0.0
  %v11410 = vmax.f32 %v10862, 0.0
  %v11411 = vmax.f32 %v10937, 0.0
  %v11412 = vmax.f32 %v10939, 0.0
  %v11413 = vmax.f32 %v11014, 0.0
  %v11414 = vmax.f32 %v11016, 0.0
  %v11415 = vmax.f32 %v11091, 0.0
  %v11416 = vmax.f32 %v11093, 0.0
  %v11417 = vmax.f32 %v11168, 0.0
  %v11418 = vmax.f32 %v11170, 0.0
  %v11419 = vmax.f32 %v11245, 0.0
  %v11420 = vmax.f32 %v11247, 0.0
  %v11421 = vmax.f32 %v11322, 0.0
  %v11422 = vmax.f32 %v11324, 0.0
  %v11423 = vmax.f32 %v11399, 0.0
  %v11424 = vmax.f32 %v11401, 0.0
  %v11425 = vmax.f32 %v10866, 0.0
  %v11426 = vmax.f32 %v10868, 0.0
  %v11427 = vmax.f32 %v10943, 0.0
  %v11428 = vmax.f32 %v10945, 0.0
  %v11429 = vmax.f32 %v11020, 0.0
  %v11430 = vmax.f32 %v11022, 0.0
  %v11431 = vmax.f32 %v11097, 0.0
  %v11432 = vmax.f32 %v11099, 0.0
  %v11433 = vmax.f32 %v11174, 0.0
  %v11434 = vmax.f32 %v11176, 0.0
  %v11435 = vmax.f32 %v11251, 0.0
  %v11436 = vmax.f32 %v11253, 0.0
  %v11437 = vmax.f32 %v11328, 0.0
  %v11438 = vmax.f32 %v11330, 0.0
  %v11439 = vmax.f32 %v11405, 0.0
  %v11440 = vmax.f32 %v11407, 0.0
  %11441 = vmatprep.subr.mxu0 0.0
  %11442 = vmatpush1.msra.mxu0 0.0
  %11443 = vmatprep.subr.mxu0 0.0
  %11444 = vmatpush1.msra.mxu0 0.0
  %11445 = vmatprep.subr.mxu0 0.0
  %11446 = vmatpush1.msra.mxu0 0.0
  %11447 = vmatprep.subr.mxu0 0.0
  %11448 = vmatpush1.msra.mxu0 0.0
  %11449 = vmatprep.subr.mxu0 0.0
  %11450 = vmatpush1.msra.mxu0 0.0
  %11451 = vmatprep.subr.mxu0 0.0
  %11452 = vmatpush1.msra.mxu0 0.0
  %11453 = vmatprep.subr.mxu0 0.0
  %11454 = vmatpush1.msra.mxu0 0.0
  %11455 = vmatprep.subr.mxu0 0.0
  %11456 = vmatpush1.msra.mxu0 0.0
  %11457 = vmatprep.subr.mxu0 0.0
  %11458 = vmatpush1.msra.mxu0 0.0
  %11459 = vmatprep.subr.mxu0 0.0
  %11460 = vmatpush1.msra.mxu0 0.0
  %11461 = vmatprep.subr.mxu0 0.0
  %11462 = vmatpush1.msra.mxu0 0.0
  %11463 = vmatprep.subr.mxu0 0.0
  %11464 = vmatpush1.msra.mxu0 0.0
  %11465 = vmatprep.subr.mxu0 0.0
  %11466 = vmatpush1.msra.mxu0 0.0
  %11467 = vmatprep.subr.mxu0 0.0
  %11468 = vmatpush1.msra.mxu0 0.0
  %11469 = vmatprep.subr.mxu0 %v11426
  %11470 = vmatpush1.msra.mxu0 %v11425
  %11471 = vmatprep.subr.mxu0 %v11410
  %11472 = vmatpush1.msra.mxu0 %v11409
  %11473 = vmatprep.subr.mxu0 0.0
  %11474 = vmatpush2.msra.mxu0 0.0
  %11475 = vmatprep.subr.mxu0 0.0
  %11476 = vmatpush2.msra.mxu0 0.0
  %11477 = vmatprep.subr.mxu0 0.0
  %11478 = vmatpush2.msra.mxu0 0.0
  %11479 = vmatprep.subr.mxu0 0.0
  %11480 = vmatpush2.msra.mxu0 0.0
  %11481 = vmatprep.subr.mxu0 0.0
  %11482 = vmatpush2.msra.mxu0 0.0
  %11483 = vmatprep.subr.mxu0 0.0
  %11484 = vmatpush2.msra.mxu0 0.0
  %11485 = vmatprep.subr.mxu0 0.0
  %11486 = vmatpush2.msra.mxu0 0.0
  %11487 = vmatprep.subr.mxu0 0.0
  %11488 = vmatpush2.msra.mxu0 0.0
  %11489 = vmatprep.subr.mxu0 0.0
  %11490 = vmatpush2.msra.mxu0 0.0
  %11491 = vmatprep.subr.mxu0 0.0
  %11492 = vmatpush2.msra.mxu0 0.0
  %11493 = vmatprep.subr.mxu0 0.0
  %11494 = vmatpush2.msra.mxu0 0.0
  %11495 = vmatprep.subr.mxu0 0.0
  %11496 = vmatpush2.msra.mxu0 0.0
  %11497 = vmatprep.subr.mxu0 0.0
  %11498 = vmatpush2.msra.mxu0 0.0
  %11499 = vmatprep.subr.mxu0 0.0
  %11500 = vmatpush2.msra.mxu0 0.0
  %11501 = vmatprep.subr.mxu0 0.0
  %11502 = vmatpush2.msra.mxu0 0.0
  %11503 = vmatprep.subr.mxu0 0.0
  %11504 = vmatpush2.msra.mxu0 0.0
  %11505 = vmatprep.mubr.f32.mxu0 0.0
  %11506 = vmatmul.mubr.f32.gmra.mxu0 %v2536
  %v11507 = vpop.f32.mrf.mxu0
  %v11508 = vadd.f32 0.0, %v11507
  %v11509 = vpop.f32.mrf.mxu0
  %v11510 = vadd.f32 0.0, %v11509
  %11511 = vmatprep.mubr.f32.mxu0 0.0
  %11512 = vmatmul.mubr.f32.gmra.mxu0 %v2539
  %v11513 = vpop.f32.mrf.mxu0
  %v11514 = vadd.f32 0.0, %v11513
  %v11515 = vpop.f32.mrf.mxu0
  %v11516 = vadd.f32 0.0, %v11515
  %11517 = vdwg.mxu0
  %11518 = vmatprep.subr.mxu0 0.0
  %11519 = vmatpush1.msra.mxu0 0.0
  %11520 = vmatprep.subr.mxu0 0.0
  %11521 = vmatpush1.msra.mxu0 0.0
  %11522 = vmatprep.subr.mxu0 0.0
  %11523 = vmatpush1.msra.mxu0 0.0
  %11524 = vmatprep.subr.mxu0 0.0
  %11525 = vmatpush1.msra.mxu0 0.0
  %11526 = vmatprep.subr.mxu0 0.0
  %11527 = vmatpush1.msra.mxu0 0.0
  %11528 = vmatprep.subr.mxu0 0.0
  %11529 = vmatpush1.msra.mxu0 0.0
  %11530 = vmatprep.subr.mxu0 0.0
  %11531 = vmatpush1.msra.mxu0 0.0
  %11532 = vmatprep.subr.mxu0 0.0
  %11533 = vmatpush1.msra.mxu0 0.0
  %11534 = vmatprep.subr.mxu0 0.0
  %11535 = vmatpush1.msra.mxu0 0.0
  %11536 = vmatprep.subr.mxu0 0.0
  %11537 = vmatpush1.msra.mxu0 0.0
  %11538 = vmatprep.subr.mxu0 0.0
  %11539 = vmatpush1.msra.mxu0 0.0
  %11540 = vmatprep.subr.mxu0 0.0
  %11541 = vmatpush1.msra.mxu0 0.0
  %11542 = vmatprep.subr.mxu0 0.0
  %11543 = vmatpush1.msra.mxu0 0.0
  %11544 = vmatprep.subr.mxu0 0.0
  %11545 = vmatpush1.msra.mxu0 0.0
  %11546 = vmatprep.subr.mxu0 %v11428
  %11547 = vmatpush1.msra.mxu0 %v11427
  %11548 = vmatprep.subr.mxu0 %v11412
  %11549 = vmatpush1.msra.mxu0 %v11411
  %11550 = vmatprep.subr.mxu0 0.0
  %11551 = vmatpush2.msra.mxu0 0.0
  %11552 = vmatprep.subr.mxu0 0.0
  %11553 = vmatpush2.msra.mxu0 0.0
  %11554 = vmatprep.subr.mxu0 0.0
  %11555 = vmatpush2.msra.mxu0 0.0
  %11556 = vmatprep.subr.mxu0 0.0
  %11557 = vmatpush2.msra.mxu0 0.0
  %11558 = vmatprep.subr.mxu0 0.0
  %11559 = vmatpush2.msra.mxu0 0.0
  %11560 = vmatprep.subr.mxu0 0.0
  %11561 = vmatpush2.msra.mxu0 0.0
  %11562 = vmatprep.subr.mxu0 0.0
  %11563 = vmatpush2.msra.mxu0 0.0
  %11564 = vmatprep.subr.mxu0 0.0
  %11565 = vmatpush2.msra.mxu0 0.0
  %11566 = vmatprep.subr.mxu0 0.0
  %11567 = vmatpush2.msra.mxu0 0.0
  %11568 = vmatprep.subr.mxu0 0.0
  %11569 = vmatpush2.msra.mxu0 0.0
  %11570 = vmatprep.subr.mxu0 0.0
  %11571 = vmatpush2.msra.mxu0 0.0
  %11572 = vmatprep.subr.mxu0 0.0
  %11573 = vmatpush2.msra.mxu0 0.0
  %11574 = vmatprep.subr.mxu0 0.0
  %11575 = vmatpush2.msra.mxu0 0.0
  %11576 = vmatprep.subr.mxu0 0.0
  %11577 = vmatpush2.msra.mxu0 0.0
  %11578 = vmatprep.subr.mxu0 0.0
  %11579 = vmatpush2.msra.mxu0 0.0
  %11580 = vmatprep.subr.mxu0 0.0
  %11581 = vmatpush2.msra.mxu0 0.0
  %11582 = vmatprep.mubr.f32.mxu0 0.0
  %11583 = vmatmul.mubr.f32.gmra.mxu0 %v2536
  %v11584 = vpop.f32.mrf.mxu0
  %v11585 = vadd.f32 0.0, %v11584
  %v11586 = vpop.f32.mrf.mxu0
  %v11587 = vadd.f32 0.0, %v11586
  %11588 = vmatprep.mubr.f32.mxu0 0.0
  %11589 = vmatmul.mubr.f32.gmra.mxu0 %v2539
  %v11590 = vpop.f32.mrf.mxu0
  %v11591 = vadd.f32 0.0, %v11590
  %v11592 = vpop.f32.mrf.mxu0
  %v11593 = vadd.f32 0.0, %v11592
  %11594 = vdwg.mxu0
  %11595 = vmatprep.subr.mxu0 0.0
  %11596 = vmatpush1.msra.mxu0 0.0
  %11597 = vmatprep.subr.mxu0 0.0
  %11598 = vmatpush1.msra.mxu0 0.0
  %11599 = vmatprep.subr.mxu0 0.0
  %11600 = vmatpush1.msra.mxu0 0.0
  %11601 = vmatprep.subr.mxu0 0.0
  %11602 = vmatpush1.msra.mxu0 0.0
  %11603 = vmatprep.subr.mxu0 0.0
  %11604 = vmatpush1.msra.mxu0 0.0
  %11605 = vmatprep.subr.mxu0 0.0
  %11606 = vmatpush1.msra.mxu0 0.0
  %11607 = vmatprep.subr.mxu0 0.0
  %11608 = vmatpush1.msra.mxu0 0.0
  %11609 = vmatprep.subr.mxu0 0.0
  %11610 = vmatpush1.msra.mxu0 0.0
  %11611 = vmatprep.subr.mxu0 0.0
  %11612 = vmatpush1.msra.mxu0 0.0
  %11613 = vmatprep.subr.mxu0 0.0
  %11614 = vmatpush1.msra.mxu0 0.0
  %11615 = vmatprep.subr.mxu0 0.0
  %11616 = vmatpush1.msra.mxu0 0.0
  %11617 = vmatprep.subr.mxu0 0.0
  %11618 = vmatpush1.msra.mxu0 0.0
  %11619 = vmatprep.subr.mxu0 0.0
  %11620 = vmatpush1.msra.mxu0 0.0
  %11621 = vmatprep.subr.mxu0 0.0
  %11622 = vmatpush1.msra.mxu0 0.0
  %11623 = vmatprep.subr.mxu0 %v11430
  %11624 = vmatpush1.msra.mxu0 %v11429
  %11625 = vmatprep.subr.mxu0 %v11414
  %11626 = vmatpush1.msra.mxu0 %v11413
  %11627 = vmatprep.subr.mxu0 0.0
  %11628 = vmatpush2.msra.mxu0 0.0
  %11629 = vmatprep.subr.mxu0 0.0
  %11630 = vmatpush2.msra.mxu0 0.0
  %11631 = vmatprep.subr.mxu0 0.0
  %11632 = vmatpush2.msra.mxu0 0.0
  %11633 = vmatprep.subr.mxu0 0.0
  %11634 = vmatpush2.msra.mxu0 0.0
  %11635 = vmatprep.subr.mxu0 0.0
  %11636 = vmatpush2.msra.mxu0 0.0
  %11637 = vmatprep.subr.mxu0 0.0
  %11638 = vmatpush2.msra.mxu0 0.0
  %11639 = vmatprep.subr.mxu0 0.0
  %11640 = vmatpush2.msra.mxu0 0.0
  %11641 = vmatprep.subr.mxu0 0.0
  %11642 = vmatpush2.msra.mxu0 0.0
  %11643 = vmatprep.subr.mxu0 0.0
  %11644 = vmatpush2.msra.mxu0 0.0
  %11645 = vmatprep.subr.mxu0 0.0
  %11646 = vmatpush2.msra.mxu0 0.0
  %11647 = vmatprep.subr.mxu0 0.0
  %11648 = vmatpush2.msra.mxu0 0.0
  %11649 = vmatprep.subr.mxu0 0.0
  %11650 = vmatpush2.msra.mxu0 0.0
  %11651 = vmatprep.subr.mxu0 0.0
  %11652 = vmatpush2.msra.mxu0 0.0
  %11653 = vmatprep.subr.mxu0 0.0
  %11654 = vmatpush2.msra.mxu0 0.0
  %11655 = vmatprep.subr.mxu0 0.0
  %11656 = vmatpush2.msra.mxu0 0.0
  %11657 = vmatprep.subr.mxu0 0.0
  %11658 = vmatpush2.msra.mxu0 0.0
  %11659 = vmatprep.mubr.f32.mxu0 0.0
  %11660 = vmatmul.mubr.f32.gmra.mxu0 %v2536
  %v11661 = vpop.f32.mrf.mxu0
  %v11662 = vadd.f32 0.0, %v11661
  %v11663 = vpop.f32.mrf.mxu0
  %v11664 = vadd.f32 0.0, %v11663
  %11665 = vmatprep.mubr.f32.mxu0 0.0
  %11666 = vmatmul.mubr.f32.gmra.mxu0 %v2539
  %v11667 = vpop.f32.mrf.mxu0
  %v11668 = vadd.f32 0.0, %v11667
  %v11669 = vpop.f32.mrf.mxu0
  %v11670 = vadd.f32 0.0, %v11669
  %11671 = vdwg.mxu0
  %11672 = vmatprep.subr.mxu0 0.0
  %11673 = vmatpush1.msra.mxu0 0.0
  %11674 = vmatprep.subr.mxu0 0.0
  %11675 = vmatpush1.msra.mxu0 0.0
  %11676 = vmatprep.subr.mxu0 0.0
  %11677 = vmatpush1.msra.mxu0 0.0
  %11678 = vmatprep.subr.mxu0 0.0
  %11679 = vmatpush1.msra.mxu0 0.0
  %11680 = vmatprep.subr.mxu0 0.0
  %11681 = vmatpush1.msra.mxu0 0.0
  %11682 = vmatprep.subr.mxu0 0.0
  %11683 = vmatpush1.msra.mxu0 0.0
  %11684 = vmatprep.subr.mxu0 0.0
  %11685 = vmatpush1.msra.mxu0 0.0
  %11686 = vmatprep.subr.mxu0 0.0
  %11687 = vmatpush1.msra.mxu0 0.0
  %11688 = vmatprep.subr.mxu0 0.0
  %11689 = vmatpush1.msra.mxu0 0.0
  %11690 = vmatprep.subr.mxu0 0.0
  %11691 = vmatpush1.msra.mxu0 0.0
  %11692 = vmatprep.subr.mxu0 0.0
  %11693 = vmatpush1.msra.mxu0 0.0
  %11694 = vmatprep.subr.mxu0 0.0
  %11695 = vmatpush1.msra.mxu0 0.0
  %11696 = vmatprep.subr.mxu0 0.0
  %11697 = vmatpush1.msra.mxu0 0.0
  %11698 = vmatprep.subr.mxu0 0.0
  %11699 = vmatpush1.msra.mxu0 0.0
  %11700 = vmatprep.subr.mxu0 %v11432
  %11701 = vmatpush1.msra.mxu0 %v11431
  %11702 = vmatprep.subr.mxu0 %v11416
  %11703 = vmatpush1.msra.mxu0 %v11415
  %11704 = vmatprep.subr.mxu0 0.0
  %11705 = vmatpush2.msra.mxu0 0.0
  %11706 = vmatprep.subr.mxu0 0.0
  %11707 = vmatpush2.msra.mxu0 0.0
  %11708 = vmatprep.subr.mxu0 0.0
  %11709 = vmatpush2.msra.mxu0 0.0
  %11710 = vmatprep.subr.mxu0 0.0
  %11711 = vmatpush2.msra.mxu0 0.0
  %11712 = vmatprep.subr.mxu0 0.0
  %11713 = vmatpush2.msra.mxu0 0.0
  %11714 = vmatprep.subr.mxu0 0.0
  %11715 = vmatpush2.msra.mxu0 0.0
  %11716 = vmatprep.subr.mxu0 0.0
  %11717 = vmatpush2.msra.mxu0 0.0
  %11718 = vmatprep.subr.mxu0 0.0
  %11719 = vmatpush2.msra.mxu0 0.0
  %11720 = vmatprep.subr.mxu0 0.0
  %11721 = vmatpush2.msra.mxu0 0.0
  %11722 = vmatprep.subr.mxu0 0.0
  %11723 = vmatpush2.msra.mxu0 0.0
  %11724 = vmatprep.subr.mxu0 0.0
  %11725 = vmatpush2.msra.mxu0 0.0
  %11726 = vmatprep.subr.mxu0 0.0
  %11727 = vmatpush2.msra.mxu0 0.0
  %11728 = vmatprep.subr.mxu0 0.0
  %11729 = vmatpush2.msra.mxu0 0.0
  %11730 = vmatprep.subr.mxu0 0.0
  %11731 = vmatpush2.msra.mxu0 0.0
  %11732 = vmatprep.subr.mxu0 0.0
  %11733 = vmatpush2.msra.mxu0 0.0
  %11734 = vmatprep.subr.mxu0 0.0
  %11735 = vmatpush2.msra.mxu0 0.0
  %11736 = vmatprep.mubr.f32.mxu0 0.0
  %11737 = vmatmul.mubr.f32.gmra.mxu0 %v2536
  %v11738 = vpop.f32.mrf.mxu0
  %v11739 = vadd.f32 0.0, %v11738
  %v11740 = vpop.f32.mrf.mxu0
  %v11741 = vadd.f32 0.0, %v11740
  %11742 = vmatprep.mubr.f32.mxu0 0.0
  %11743 = vmatmul.mubr.f32.gmra.mxu0 %v2539
  %v11744 = vpop.f32.mrf.mxu0
  %v11745 = vadd.f32 0.0, %v11744
  %v11746 = vpop.f32.mrf.mxu0
  %v11747 = vadd.f32 0.0, %v11746
  %11748 = vdwg.mxu0
  %11749 = vmatprep.subr.mxu0 0.0
  %11750 = vmatpush1.msra.mxu0 0.0
  %11751 = vmatprep.subr.mxu0 0.0
  %11752 = vmatpush1.msra.mxu0 0.0
  %11753 = vmatprep.subr.mxu0 0.0
  %11754 = vmatpush1.msra.mxu0 0.0
  %11755 = vmatprep.subr.mxu0 0.0
  %11756 = vmatpush1.msra.mxu0 0.0
  %11757 = vmatprep.subr.mxu0 0.0
  %11758 = vmatpush1.msra.mxu0 0.0
  %11759 = vmatprep.subr.mxu0 0.0
  %11760 = vmatpush1.msra.mxu0 0.0
  %11761 = vmatprep.subr.mxu0 0.0
  %11762 = vmatpush1.msra.mxu0 0.0
  %11763 = vmatprep.subr.mxu0 0.0
  %11764 = vmatpush1.msra.mxu0 0.0
  %11765 = vmatprep.subr.mxu0 0.0
  %11766 = vmatpush1.msra.mxu0 0.0
  %11767 = vmatprep.subr.mxu0 0.0
  %11768 = vmatpush1.msra.mxu0 0.0
  %11769 = vmatprep.subr.mxu0 0.0
  %11770 = vmatpush1.msra.mxu0 0.0
  %11771 = vmatprep.subr.mxu0 0.0
  %11772 = vmatpush1.msra.mxu0 0.0
  %11773 = vmatprep.subr.mxu0 0.0
  %11774 = vmatpush1.msra.mxu0 0.0
  %11775 = vmatprep.subr.mxu0 0.0
  %11776 = vmatpush1.msra.mxu0 0.0
  %11777 = vmatprep.subr.mxu0 %v11434
  %11778 = vmatpush1.msra.mxu0 %v11433
  %11779 = vmatprep.subr.mxu0 %v11418
  %11780 = vmatpush1.msra.mxu0 %v11417
  %11781 = vmatprep.subr.mxu0 0.0
  %11782 = vmatpush2.msra.mxu0 0.0
  %11783 = vmatprep.subr.mxu0 0.0
  %11784 = vmatpush2.msra.mxu0 0.0
  %11785 = vmatprep.subr.mxu0 0.0
  %11786 = vmatpush2.msra.mxu0 0.0
  %11787 = vmatprep.subr.mxu0 0.0
  %11788 = vmatpush2.msra.mxu0 0.0
  %11789 = vmatprep.subr.mxu0 0.0
  %11790 = vmatpush2.msra.mxu0 0.0
  %11791 = vmatprep.subr.mxu0 0.0
  %11792 = vmatpush2.msra.mxu0 0.0
  %11793 = vmatprep.subr.mxu0 0.0
  %11794 = vmatpush2.msra.mxu0 0.0
  %11795 = vmatprep.subr.mxu0 0.0
  %11796 = vmatpush2.msra.mxu0 0.0
  %11797 = vmatprep.subr.mxu0 0.0
  %11798 = vmatpush2.msra.mxu0 0.0
  %11799 = vmatprep.subr.mxu0 0.0
  %11800 = vmatpush2.msra.mxu0 0.0
  %11801 = vmatprep.subr.mxu0 0.0
  %11802 = vmatpush2.msra.mxu0 0.0
  %11803 = vmatprep.subr.mxu0 0.0
  %11804 = vmatpush2.msra.mxu0 0.0
  %11805 = vmatprep.subr.mxu0 0.0
  %11806 = vmatpush2.msra.mxu0 0.0
  %11807 = vmatprep.subr.mxu0 0.0
  %11808 = vmatpush2.msra.mxu0 0.0
  %11809 = vmatprep.subr.mxu0 0.0
  %11810 = vmatpush2.msra.mxu0 0.0
  %11811 = vmatprep.subr.mxu0 0.0
  %11812 = vmatpush2.msra.mxu0 0.0
  %11813 = vmatprep.mubr.f32.mxu0 0.0
  %11814 = vmatmul.mubr.f32.gmra.mxu0 %v2536
  %v11815 = vpop.f32.mrf.mxu0
  %v11816 = vadd.f32 0.0, %v11815
  %v11817 = vpop.f32.mrf.mxu0
  %v11818 = vadd.f32 0.0, %v11817
  %11819 = vmatprep.mubr.f32.mxu0 0.0
  %11820 = vmatmul.mubr.f32.gmra.mxu0 %v2539
  %v11821 = vpop.f32.mrf.mxu0
  %v11822 = vadd.f32 0.0, %v11821
  %v11823 = vpop.f32.mrf.mxu0
  %v11824 = vadd.f32 0.0, %v11823
  %11825 = vdwg.mxu0
  %11826 = vmatprep.subr.mxu0 0.0
  %11827 = vmatpush1.msra.mxu0 0.0
  %11828 = vmatprep.subr.mxu0 0.0
  %11829 = vmatpush1.msra.mxu0 0.0
  %11830 = vmatprep.subr.mxu0 0.0
  %11831 = vmatpush1.msra.mxu0 0.0
  %11832 = vmatprep.subr.mxu0 0.0
  %11833 = vmatpush1.msra.mxu0 0.0
  %11834 = vmatprep.subr.mxu0 0.0
  %11835 = vmatpush1.msra.mxu0 0.0
  %11836 = vmatprep.subr.mxu0 0.0
  %11837 = vmatpush1.msra.mxu0 0.0
  %11838 = vmatprep.subr.mxu0 0.0
  %11839 = vmatpush1.msra.mxu0 0.0
  %11840 = vmatprep.subr.mxu0 0.0
  %11841 = vmatpush1.msra.mxu0 0.0
  %11842 = vmatprep.subr.mxu0 0.0
  %11843 = vmatpush1.msra.mxu0 0.0
  %11844 = vmatprep.subr.mxu0 0.0
  %11845 = vmatpush1.msra.mxu0 0.0
  %11846 = vmatprep.subr.mxu0 0.0
  %11847 = vmatpush1.msra.mxu0 0.0
  %11848 = vmatprep.subr.mxu0 0.0
  %11849 = vmatpush1.msra.mxu0 0.0
  %11850 = vmatprep.subr.mxu0 0.0
  %11851 = vmatpush1.msra.mxu0 0.0
  %11852 = vmatprep.subr.mxu0 0.0
  %11853 = vmatpush1.msra.mxu0 0.0
  %11854 = vmatprep.subr.mxu0 %v11436
  %11855 = vmatpush1.msra.mxu0 %v11435
  %11856 = vmatprep.subr.mxu0 %v11420
  %11857 = vmatpush1.msra.mxu0 %v11419
  %11858 = vmatprep.subr.mxu0 0.0
  %11859 = vmatpush2.msra.mxu0 0.0
  %11860 = vmatprep.subr.mxu0 0.0
  %11861 = vmatpush2.msra.mxu0 0.0
  %11862 = vmatprep.subr.mxu0 0.0
  %11863 = vmatpush2.msra.mxu0 0.0
  %11864 = vmatprep.subr.mxu0 0.0
  %11865 = vmatpush2.msra.mxu0 0.0
  %11866 = vmatprep.subr.mxu0 0.0
  %11867 = vmatpush2.msra.mxu0 0.0
  %11868 = vmatprep.subr.mxu0 0.0
  %11869 = vmatpush2.msra.mxu0 0.0
  %11870 = vmatprep.subr.mxu0 0.0
  %11871 = vmatpush2.msra.mxu0 0.0
  %11872 = vmatprep.subr.mxu0 0.0
  %11873 = vmatpush2.msra.mxu0 0.0
  %11874 = vmatprep.subr.mxu0 0.0
  %11875 = vmatpush2.msra.mxu0 0.0
  %11876 = vmatprep.subr.mxu0 0.0
  %11877 = vmatpush2.msra.mxu0 0.0
  %11878 = vmatprep.subr.mxu0 0.0
  %11879 = vmatpush2.msra.mxu0 0.0
  %11880 = vmatprep.subr.mxu0 0.0
  %11881 = vmatpush2.msra.mxu0 0.0
  %11882 = vmatprep.subr.mxu0 0.0
  %11883 = vmatpush2.msra.mxu0 0.0
  %11884 = vmatprep.subr.mxu0 0.0
  %11885 = vmatpush2.msra.mxu0 0.0
  %11886 = vmatprep.subr.mxu0 0.0
  %11887 = vmatpush2.msra.mxu0 0.0
  %11888 = vmatprep.subr.mxu0 0.0
  %11889 = vmatpush2.msra.mxu0 0.0
  %11890 = vmatprep.mubr.f32.mxu0 0.0
  %11891 = vmatmul.mubr.f32.gmra.mxu0 %v2536
  %v11892 = vpop.f32.mrf.mxu0
  %v11893 = vadd.f32 0.0, %v11892
  %v11894 = vpop.f32.mrf.mxu0
  %v11895 = vadd.f32 0.0, %v11894
  %11896 = vmatprep.mubr.f32.mxu0 0.0
  %11897 = vmatmul.mubr.f32.gmra.mxu0 %v2539
  %v11898 = vpop.f32.mrf.mxu0
  %v11899 = vadd.f32 0.0, %v11898
  %v11900 = vpop.f32.mrf.mxu0
  %v11901 = vadd.f32 0.0, %v11900
  %11902 = vdwg.mxu0
  %11903 = vmatprep.subr.mxu0 0.0
  %11904 = vmatpush1.msra.mxu0 0.0
  %11905 = vmatprep.subr.mxu0 0.0
  %11906 = vmatpush1.msra.mxu0 0.0
  %11907 = vmatprep.subr.mxu0 0.0
  %11908 = vmatpush1.msra.mxu0 0.0
  %11909 = vmatprep.subr.mxu0 0.0
  %11910 = vmatpush1.msra.mxu0 0.0
  %11911 = vmatprep.subr.mxu0 0.0
  %11912 = vmatpush1.msra.mxu0 0.0
  %11913 = vmatprep.subr.mxu0 0.0
  %11914 = vmatpush1.msra.mxu0 0.0
  %11915 = vmatprep.subr.mxu0 0.0
  %11916 = vmatpush1.msra.mxu0 0.0
  %11917 = vmatprep.subr.mxu0 0.0
  %11918 = vmatpush1.msra.mxu0 0.0
  %11919 = vmatprep.subr.mxu0 0.0
  %11920 = vmatpush1.msra.mxu0 0.0
  %11921 = vmatprep.subr.mxu0 0.0
  %11922 = vmatpush1.msra.mxu0 0.0
  %11923 = vmatprep.subr.mxu0 0.0
  %11924 = vmatpush1.msra.mxu0 0.0
  %11925 = vmatprep.subr.mxu0 0.0
  %11926 = vmatpush1.msra.mxu0 0.0
  %11927 = vmatprep.subr.mxu0 0.0
  %11928 = vmatpush1.msra.mxu0 0.0
  %11929 = vmatprep.subr.mxu0 0.0
  %11930 = vmatpush1.msra.mxu0 0.0
  %11931 = vmatprep.subr.mxu0 %v11438
  %11932 = vmatpush1.msra.mxu0 %v11437
  %11933 = vmatprep.subr.mxu0 %v11422
  %11934 = vmatpush1.msra.mxu0 %v11421
  %11935 = vmatprep.subr.mxu0 0.0
  %11936 = vmatpush2.msra.mxu0 0.0
  %11937 = vmatprep.subr.mxu0 0.0
  %11938 = vmatpush2.msra.mxu0 0.0
  %11939 = vmatprep.subr.mxu0 0.0
  %11940 = vmatpush2.msra.mxu0 0.0
  %11941 = vmatprep.subr.mxu0 0.0
  %11942 = vmatpush2.msra.mxu0 0.0
  %11943 = vmatprep.subr.mxu0 0.0
  %11944 = vmatpush2.msra.mxu0 0.0
  %11945 = vmatprep.subr.mxu0 0.0
  %11946 = vmatpush2.msra.mxu0 0.0
  %11947 = vmatprep.subr.mxu0 0.0
  %11948 = vmatpush2.msra.mxu0 0.0
  %11949 = vmatprep.subr.mxu0 0.0
  %11950 = vmatpush2.msra.mxu0 0.0
  %11951 = vmatprep.subr.mxu0 0.0
  %11952 = vmatpush2.msra.mxu0 0.0
  %11953 = vmatprep.subr.mxu0 0.0
  %11954 = vmatpush2.msra.mxu0 0.0
  %11955 = vmatprep.subr.mxu0 0.0
  %11956 = vmatpush2.msra.mxu0 0.0
  %11957 = vmatprep.subr.mxu0 0.0
  %11958 = vmatpush2.msra.mxu0 0.0
  %11959 = vmatprep.subr.mxu0 0.0
  %11960 = vmatpush2.msra.mxu0 0.0
  %11961 = vmatprep.subr.mxu0 0.0
  %11962 = vmatpush2.msra.mxu0 0.0
  %11963 = vmatprep.subr.mxu0 0.0
  %11964 = vmatpush2.msra.mxu0 0.0
  %11965 = vmatprep.subr.mxu0 0.0
  %11966 = vmatpush2.msra.mxu0 0.0
  %11967 = vmatprep.mubr.f32.mxu0 0.0
  %11968 = vmatmul.mubr.f32.gmra.mxu0 %v2536
  %v11969 = vpop.f32.mrf.mxu0
  %v11970 = vadd.f32 0.0, %v11969
  %v11971 = vpop.f32.mrf.mxu0
  %v11972 = vadd.f32 0.0, %v11971
  %11973 = vmatprep.mubr.f32.mxu0 0.0
  %11974 = vmatmul.mubr.f32.gmra.mxu0 %v2539
  %v11975 = vpop.f32.mrf.mxu0
  %v11976 = vadd.f32 0.0, %v11975
  %v11977 = vpop.f32.mrf.mxu0
  %v11978 = vadd.f32 0.0, %v11977
  %11979 = vdwg.mxu0
  %11980 = vmatprep.subr.mxu0 0.0
  %11981 = vmatpush1.msra.mxu0 0.0
  %11982 = vmatprep.subr.mxu0 0.0
  %11983 = vmatpush1.msra.mxu0 0.0
  %11984 = vmatprep.subr.mxu0 0.0
  %11985 = vmatpush1.msra.mxu0 0.0
  %11986 = vmatprep.subr.mxu0 0.0
  %11987 = vmatpush1.msra.mxu0 0.0
  %11988 = vmatprep.subr.mxu0 0.0
  %11989 = vmatpush1.msra.mxu0 0.0
  %11990 = vmatprep.subr.mxu0 0.0
  %11991 = vmatpush1.msra.mxu0 0.0
  %11992 = vmatprep.subr.mxu0 0.0
  %11993 = vmatpush1.msra.mxu0 0.0
  %11994 = vmatprep.subr.mxu0 0.0
  %11995 = vmatpush1.msra.mxu0 0.0
  %11996 = vmatprep.subr.mxu0 0.0
  %11997 = vmatpush1.msra.mxu0 0.0
  %11998 = vmatprep.subr.mxu0 0.0
  %11999 = vmatpush1.msra.mxu0 0.0
  %12000 = vmatprep.subr.mxu0 0.0
  %12001 = vmatpush1.msra.mxu0 0.0
  %12002 = vmatprep.subr.mxu0 0.0
  %12003 = vmatpush1.msra.mxu0 0.0
  %12004 = vmatprep.subr.mxu0 0.0
  %12005 = vmatpush1.msra.mxu0 0.0
  %12006 = vmatprep.subr.mxu0 0.0
  %12007 = vmatpush1.msra.mxu0 0.0
  %12008 = vmatprep.subr.mxu0 %v11440
  %12009 = vmatpush1.msra.mxu0 %v11439
  %12010 = vmatprep.subr.mxu0 %v11424
  %12011 = vmatpush1.msra.mxu0 %v11423
  %12012 = vmatprep.subr.mxu0 0.0
  %12013 = vmatpush2.msra.mxu0 0.0
  %12014 = vmatprep.subr.mxu0 0.0
  %12015 = vmatpush2.msra.mxu0 0.0
  %12016 = vmatprep.subr.mxu0 0.0
  %12017 = vmatpush2.msra.mxu0 0.0
  %12018 = vmatprep.subr.mxu0 0.0
  %12019 = vmatpush2.msra.mxu0 0.0
  %12020 = vmatprep.subr.mxu0 0.0
  %12021 = vmatpush2.msra.mxu0 0.0
  %12022 = vmatprep.subr.mxu0 0.0
  %12023 = vmatpush2.msra.mxu0 0.0
  %12024 = vmatprep.subr.mxu0 0.0
  %12025 = vmatpush2.msra.mxu0 0.0
  %12026 = vmatprep.subr.mxu0 0.0
  %12027 = vmatpush2.msra.mxu0 0.0
  %12028 = vmatprep.subr.mxu0 0.0
  %12029 = vmatpush2.msra.mxu0 0.0
  %12030 = vmatprep.subr.mxu0 0.0
  %12031 = vmatpush2.msra.mxu0 0.0
  %12032 = vmatprep.subr.mxu0 0.0
  %12033 = vmatpush2.msra.mxu0 0.0
  %12034 = vmatprep.subr.mxu0 0.0
  %12035 = vmatpush2.msra.mxu0 0.0
  %12036 = vmatprep.subr.mxu0 0.0
  %12037 = vmatpush2.msra.mxu0 0.0
  %12038 = vmatprep.subr.mxu0 0.0
  %12039 = vmatpush2.msra.mxu0 0.0
  %12040 = vmatprep.subr.mxu0 0.0
  %12041 = vmatpush2.msra.mxu0 0.0
  %12042 = vmatprep.subr.mxu0 0.0
  %12043 = vmatpush2.msra.mxu0 0.0
  %12044 = vmatprep.mubr.f32.mxu0 0.0
  %12045 = vmatmul.mubr.f32.gmra.mxu0 %v2536
  %v12046 = vpop.f32.mrf.mxu0
  %v12047 = vadd.f32 0.0, %v12046
  %v12048 = vpop.f32.mrf.mxu0
  %v12049 = vadd.f32 0.0, %v12048
  %12050 = vmatprep.mubr.f32.mxu0 0.0
  %12051 = vmatmul.mubr.f32.gmra.mxu0 %v2539
  %v12052 = vpop.f32.mrf.mxu0
  %v12053 = vadd.f32 0.0, %v12052
  %v12054 = vpop.f32.mrf.mxu0
  %v12055 = vadd.f32 0.0, %v12054
  %12056 = vdwg.mxu0
  %12057 = vst [vmem:[#allocation3] sm:$0xff] %v11508
  %12058 = vst [vmem:[#allocation3 + $0x8] sm:$0xff] %v11510
  %12059 = vst [vmem:[#allocation3 + $0x10] sm:$0xff] %v11585
  %12060 = vst [vmem:[#allocation3 + $0x18] sm:$0xff] %v11587
  %12061 = vst [vmem:[#allocation3 + $0x20] sm:$0xff] %v11662
  %12062 = vst [vmem:[#allocation3 + $0x28] sm:$0xff] %v11664
  %12063 = vst [vmem:[#allocation3 + $0x30] sm:$0xff] %v11739
  %12064 = vst [vmem:[#allocation3 + $0x38] sm:$0xff] %v11741
  %12065 = vst [vmem:[#allocation3 + $0x40] sm:$0xff] %v11816
  %12066 = vst [vmem:[#allocation3 + $0x48] sm:$0xff] %v11818
  %12067 = vst [vmem:[#allocation3 + $0x50] sm:$0xff] %v11893
  %12068 = vst [vmem:[#allocation3 + $0x58] sm:$0xff] %v11895
  %12069 = vst [vmem:[#allocation3 + $0x60] sm:$0xff] %v11970
  %12070 = vst [vmem:[#allocation3 + $0x68] sm:$0xff] %v11972
  %12071 = vst [vmem:[#allocation3 + $0x70] sm:$0xff] %v12047
  %12072 = vst [vmem:[#allocation3 + $0x78] sm:$0xff] %v12049
  %12073 = vst [vmem:[#allocation3 + $0x80] sm:$0xff] %v11514
  %12074 = vst [vmem:[#allocation3 + $0x88] sm:$0xff] %v11516
  %12075 = vst [vmem:[#allocation3 + $0x90] sm:$0xff] %v11591
  %12076 = vst [vmem:[#allocation3 + $0x98] sm:$0xff] %v11593
  %12077 = vst [vmem:[#allocation3 + $0xa0] sm:$0xff] %v11668
  %12078 = vst [vmem:[#allocation3 + $0xa8] sm:$0xff] %v11670
  %12079 = vst [vmem:[#allocation3 + $0xb0] sm:$0xff] %v11745
  %12080 = vst [vmem:[#allocation3 + $0xb8] sm:$0xff] %v11747
  %12081 = vst [vmem:[#allocation3 + $0xc0] sm:$0xff] %v11822
  %12082 = vst [vmem:[#allocation3 + $0xc8] sm:$0xff] %v11824
  %12083 = vst [vmem:[#allocation3 + $0xd0] sm:$0xff] %v11899
  %12084 = vst [vmem:[#allocation3 + $0xd8] sm:$0xff] %v11901
  %12085 = vst [vmem:[#allocation3 + $0xe0] sm:$0xff] %v11976
  %12086 = vst [vmem:[#allocation3 + $0xe8] sm:$0xff] %v11978
  %12087 = vst [vmem:[#allocation3 + $0xf0] sm:$0xff] %v12053
  %12088 = vst [vmem:[#allocation3 + $0xf8] sm:$0xff] %v12055
  %v12089 = vld [vmem:[#allocation3] ss:$8 sm:$0xf]
  %v12090 = vld [vmem:[#allocation3] ss:$8 sm:$0xf0]
  %v12091 = vor.u32 %v12089, %v12090
  %v12092 = vld [vmem:[%s3192] ss:$8 sm:$0xf]
  %v12093 = vld [vmem:[%s3192] ss:$8 sm:$0xf0]
  %v12094 = vor.u32 %v12092, %v12093
  %v12097 = vlaneseq
  %v12098 = vshrl.u32 %v12097, 7
  %v12099 = vsub.s32 0, %v12098
  %v12100 = vrot.slane %v12091, %v12099
  %v12101 = vlaneseq
  %v12102 = vshrl.u32 %v12101, 7
  %v12103 = vsub.s32 1, %v12102
  %v12104 = vrot.slane %v12091, %v12103
  %v12105 = vlaneseq
  %v12106 = vshrl.u32 %v12105, 7
  %v12107 = vsub.s32 2, %v12106
  %v12108 = vrot.slane %v12091, %v12107
  %v12109 = vlaneseq
  %v12110 = vshrl.u32 %v12109, 7
  %v12111 = vsub.s32 3, %v12110
  %v12112 = vrot.slane %v12091, %v12111
  %v12113 = vlaneseq
  %v12114 = vshrl.u32 %v12113, 7
  %v12115 = vsub.s32 4, %v12114
  %v12116 = vrot.slane %v12091, %v12115
  %v12117 = vlaneseq
  %v12118 = vshrl.u32 %v12117, 7
  %v12119 = vsub.s32 5, %v12118
  %v12120 = vrot.slane %v12091, %v12119
  %v12121 = vlaneseq
  %v12122 = vshrl.u32 %v12121, 7
  %v12123 = vsub.s32 6, %v12122
  %v12124 = vrot.slane %v12091, %v12123
  %v12125 = vlaneseq
  %v12126 = vshrl.u32 %v12125, 7
  %v12127 = vsub.s32 7, %v12126
  %v12128 = vrot.slane %v12091, %v12127
  %v12129 = vlaneseq
  %v12130 = vshrl.u32 %v12129, 7
  %v12131 = vsub.s32 0, %v12130
  %v12132 = vrot.slane %v12094, %v12131
  %v12133 = vlaneseq
  %v12134 = vshrl.u32 %v12133, 7
  %v12135 = vsub.s32 1, %v12134
  %v12136 = vrot.slane %v12094, %v12135
  %v12137 = vlaneseq
  %v12138 = vshrl.u32 %v12137, 7
  %v12139 = vsub.s32 2, %v12138
  %v12140 = vrot.slane %v12094, %v12139
  %v12141 = vlaneseq
  %v12142 = vshrl.u32 %v12141, 7
  %v12143 = vsub.s32 3, %v12142
  %v12144 = vrot.slane %v12094, %v12143
  %v12145 = vlaneseq
  %v12146 = vshrl.u32 %v12145, 7
  %v12147 = vsub.s32 4, %v12146
  %v12148 = vrot.slane %v12094, %v12147
  %v12149 = vlaneseq
  %v12150 = vshrl.u32 %v12149, 7
  %v12151 = vsub.s32 5, %v12150
  %v12152 = vrot.slane %v12094, %v12151
  %v12153 = vlaneseq
  %v12154 = vshrl.u32 %v12153, 7
  %v12155 = vsub.s32 6, %v12154
  %v12156 = vrot.slane %v12094, %v12155
  %v12157 = vlaneseq
  %v12158 = vshrl.u32 %v12157, 7
  %v12159 = vsub.s32 7, %v12158
  %v12160 = vrot.slane %v12094, %v12159
  %12177 = vrot.lane.b32.xlu0 %v12100, 17
  %v12178 = vpop.permute.xlu0 %12177
  %12179 = vrot.lane.b32.xlu0 %v12104, 17
  %v12180 = vpop.permute.xlu0 %12179
  %12181 = vrot.lane.b32.xlu0 %v12108, 17
  %v12182 = vpop.permute.xlu0 %12181
  %12183 = vrot.lane.b32.xlu0 %v12112, 17
  %v12184 = vpop.permute.xlu0 %12183
  %12185 = vrot.lane.b32.xlu0 %v12116, 17
  %v12186 = vpop.permute.xlu0 %12185
  %12187 = vrot.lane.b32.xlu0 %v12120, 17
  %v12188 = vpop.permute.xlu0 %12187
  %12189 = vrot.lane.b32.xlu0 %v12124, 17
  %v12190 = vpop.permute.xlu0 %12189
  %12191 = vrot.lane.b32.xlu0 %v12128, 17
  %v12192 = vpop.permute.xlu0 %12191
  %12193 = vrot.lane.b32.xlu0 %v12132, 17
  %v12194 = vpop.permute.xlu0 %12193
  %12195 = vrot.lane.b32.xlu0 %v12136, 17
  %v12196 = vpop.permute.xlu0 %12195
  %12197 = vrot.lane.b32.xlu0 %v12140, 17
  %v12198 = vpop.permute.xlu0 %12197
  %12199 = vrot.lane.b32.xlu0 %v12144, 17
  %v12200 = vpop.permute.xlu0 %12199
  %12201 = vrot.lane.b32.xlu0 %v12148, 17
  %v12202 = vpop.permute.xlu0 %12201
  %12203 = vrot.lane.b32.xlu0 %v12152, 17
  %v12204 = vpop.permute.xlu0 %12203
  %12205 = vrot.lane.b32.xlu0 %v12156, 17
  %v12206 = vpop.permute.xlu0 %12205
  %12207 = vrot.lane.b32.xlu0 %v12160, 17
  %v12208 = vpop.permute.xlu0 %12207
  %v12209 = vsel %vm379, %v12206, %v12208
  %v12210 = vsel %vm379, %v12204, %v12206
  %v12211 = vsel %vm379, %v12202, %v12204
  %v12212 = vsel %vm379, %v12200, %v12202
  %v12213 = vsel %vm379, %v12198, %v12200
  %v12214 = vsel %vm379, %v12196, %v12198
  %v12215 = vsel %vm379, %v12194, %v12196
  %v12216 = vsel %vm379, %v12192, %v12194
  %v12217 = vsel %vm379, %v12190, %v12192
  %v12218 = vsel %vm379, %v12188, %v12190
  %v12219 = vsel %vm379, %v12186, %v12188
  %v12220 = vsel %vm379, %v12184, %v12186
  %v12221 = vsel %vm379, %v12182, %v12184
  %v12222 = vsel %vm379, %v12180, %v12182
  %v12223 = vsel %vm379, %v12178, %v12180
  %v12224 = vsel %vm379, %v12208, %v12178
  %v12225 = vsel %vm156, %v12224, 0.0
  %v12226 = vsel %vm157, %v12223, 0.0
  %v12227 = vsel %vm158, %v12222, 0.0
  %v12228 = vsel %vm159, %v12221, 0.0
  %v12229 = vsel %vm160, %v12220, 0.0
  %v12230 = vsel %vm161, %v12219, 0.0
  %v12231 = vsel %vm162, %v12218, 0.0
  %v12232 = vsel %vm163, %v12217, 0.0
  %v12233 = vsel %vm164, %v12216, 0.0
  %v12234 = vsel %vm165, %v12215, 0.0
  %v12235 = vsel %vm166, %v12214, 0.0
  %v12236 = vsel %vm167, %v12213, 0.0
  %v12237 = vsel %vm168, %v12212, 0.0
  %v12238 = vsel %vm169, %v12211, 0.0
  %v12239 = vsel %vm170, %v12210, 0.0
  %v12240 = vsel %vm171, %v12209, 0.0
  %v12241 = vld [vmem:[%s3342] ss:$8 sm:$0xf]
  %v12242 = vld [vmem:[%s3342] ss:$8 sm:$0xf0]
  %v12243 = vor.u32 %v12241, %v12242
  %v12244 = vld [vmem:[%s3346] ss:$8 sm:$0xf]
  %v12245 = vld [vmem:[%s3346] ss:$8 sm:$0xf0]
  %v12246 = vor.u32 %v12244, %v12245
  %v12249 = vlaneseq
  %v12250 = vshrl.u32 %v12249, 7
  %v12251 = vsub.s32 0, %v12250
  %v12252 = vrot.slane %v12243, %v12251
  %v12253 = vlaneseq
  %v12254 = vshrl.u32 %v12253, 7
  %v12255 = vsub.s32 1, %v12254
  %v12256 = vrot.slane %v12243, %v12255
  %v12257 = vlaneseq
  %v12258 = vshrl.u32 %v12257, 7
  %v12259 = vsub.s32 2, %v12258
  %v12260 = vrot.slane %v12243, %v12259
  %v12261 = vlaneseq
  %v12262 = vshrl.u32 %v12261, 7
  %v12263 = vsub.s32 3, %v12262
  %v12264 = vrot.slane %v12243, %v12263
  %v12265 = vlaneseq
  %v12266 = vshrl.u32 %v12265, 7
  %v12267 = vsub.s32 4, %v12266
  %v12268 = vrot.slane %v12243, %v12267
  %v12269 = vlaneseq
  %v12270 = vshrl.u32 %v12269, 7
  %v12271 = vsub.s32 5, %v12270
  %v12272 = vrot.slane %v12243, %v12271
  %v12273 = vlaneseq
  %v12274 = vshrl.u32 %v12273, 7
  %v12275 = vsub.s32 6, %v12274
  %v12276 = vrot.slane %v12243, %v12275
  %v12277 = vlaneseq
  %v12278 = vshrl.u32 %v12277, 7
  %v12279 = vsub.s32 7, %v12278
  %v12280 = vrot.slane %v12243, %v12279
  %v12281 = vlaneseq
  %v12282 = vshrl.u32 %v12281, 7
  %v12283 = vsub.s32 0, %v12282
  %v12284 = vrot.slane %v12246, %v12283
  %v12285 = vlaneseq
  %v12286 = vshrl.u32 %v12285, 7
  %v12287 = vsub.s32 1, %v12286
  %v12288 = vrot.slane %v12246, %v12287
  %v12289 = vlaneseq
  %v12290 = vshrl.u32 %v12289, 7
  %v12291 = vsub.s32 2, %v12290
  %v12292 = vrot.slane %v12246, %v12291
  %v12293 = vlaneseq
  %v12294 = vshrl.u32 %v12293, 7
  %v12295 = vsub.s32 3, %v12294
  %v12296 = vrot.slane %v12246, %v12295
  %v12297 = vlaneseq
  %v12298 = vshrl.u32 %v12297, 7
  %v12299 = vsub.s32 4, %v12298
  %v12300 = vrot.slane %v12246, %v12299
  %v12301 = vlaneseq
  %v12302 = vshrl.u32 %v12301, 7
  %v12303 = vsub.s32 5, %v12302
  %v12304 = vrot.slane %v12246, %v12303
  %v12305 = vlaneseq
  %v12306 = vshrl.u32 %v12305, 7
  %v12307 = vsub.s32 6, %v12306
  %v12308 = vrot.slane %v12246, %v12307
  %v12309 = vlaneseq
  %v12310 = vshrl.u32 %v12309, 7
  %v12311 = vsub.s32 7, %v12310
  %v12312 = vrot.slane %v12246, %v12311
  %12329 = vrot.lane.b32.xlu0 %v12252, 16
  %v12330 = vpop.permute.xlu0 %12329
  %12331 = vrot.lane.b32.xlu0 %v12256, 16
  %v12332 = vpop.permute.xlu0 %12331
  %12333 = vrot.lane.b32.xlu0 %v12260, 16
  %v12334 = vpop.permute.xlu0 %12333
  %12335 = vrot.lane.b32.xlu0 %v12264, 16
  %v12336 = vpop.permute.xlu0 %12335
  %12337 = vrot.lane.b32.xlu0 %v12268, 16
  %v12338 = vpop.permute.xlu0 %12337
  %12339 = vrot.lane.b32.xlu0 %v12272, 16
  %v12340 = vpop.permute.xlu0 %12339
  %12341 = vrot.lane.b32.xlu0 %v12276, 16
  %v12342 = vpop.permute.xlu0 %12341
  %12343 = vrot.lane.b32.xlu0 %v12280, 16
  %v12344 = vpop.permute.xlu0 %12343
  %12345 = vrot.lane.b32.xlu0 %v12284, 16
  %v12346 = vpop.permute.xlu0 %12345
  %12347 = vrot.lane.b32.xlu0 %v12288, 16
  %v12348 = vpop.permute.xlu0 %12347
  %12349 = vrot.lane.b32.xlu0 %v12292, 16
  %v12350 = vpop.permute.xlu0 %12349
  %12351 = vrot.lane.b32.xlu0 %v12296, 16
  %v12352 = vpop.permute.xlu0 %12351
  %12353 = vrot.lane.b32.xlu0 %v12300, 16
  %v12354 = vpop.permute.xlu0 %12353
  %12355 = vrot.lane.b32.xlu0 %v12304, 16
  %v12356 = vpop.permute.xlu0 %12355
  %12357 = vrot.lane.b32.xlu0 %v12308, 16
  %v12358 = vpop.permute.xlu0 %12357
  %12359 = vrot.lane.b32.xlu0 %v12312, 16
  %v12360 = vpop.permute.xlu0 %12359
  %v12361 = vsel %vm565, %v12358, %v12360
  %v12362 = vsel %vm565, %v12356, %v12358
  %v12363 = vsel %vm565, %v12354, %v12356
  %v12364 = vsel %vm565, %v12352, %v12354
  %v12365 = vsel %vm565, %v12350, %v12352
  %v12366 = vsel %vm565, %v12348, %v12350
  %v12367 = vsel %vm565, %v12346, %v12348
  %v12368 = vsel %vm565, %v12344, %v12346
  %v12369 = vsel %vm565, %v12342, %v12344
  %v12370 = vsel %vm565, %v12340, %v12342
  %v12371 = vsel %vm565, %v12338, %v12340
  %v12372 = vsel %vm565, %v12336, %v12338
  %v12373 = vsel %vm565, %v12334, %v12336
  %v12374 = vsel %vm565, %v12332, %v12334
  %v12375 = vsel %vm565, %v12330, %v12332
  %v12376 = vsel %vm565, %v12360, %v12330
  %v12377 = vsel %vm92, %v12376, 0.0
  %v12378 = vsel %vm93, %v12375, 0.0
  %v12379 = vsel %vm94, %v12374, 0.0
  %v12380 = vsel %vm95, %v12373, 0.0
  %v12381 = vsel %vm96, %v12372, 0.0
  %v12382 = vsel %vm97, %v12371, 0.0
  %v12383 = vsel %vm98, %v12370, 0.0
  %v12384 = vsel %vm99, %v12369, 0.0
  %v12385 = vsel %vm100, %v12368, 0.0
  %v12386 = vsel %vm101, %v12367, 0.0
  %v12387 = vsel %vm102, %v12366, 0.0
  %v12388 = vsel %vm103, %v12365, 0.0
  %v12389 = vsel %vm104, %v12364, 0.0
  %v12390 = vsel %vm105, %v12363, 0.0
  %v12391 = vsel %vm106, %v12362, 0.0
  %v12392 = vsel %vm107, %v12361, 0.0
  %v12393 = vadd.f32 %v12225, %v12377
  %v12394 = vadd.f32 %v12226, %v12378
  %v12395 = vadd.f32 %v12227, %v12379
  %v12396 = vadd.f32 %v12228, %v12380
  %v12397 = vadd.f32 %v12229, %v12381
  %v12398 = vadd.f32 %v12230, %v12382
  %v12399 = vadd.f32 %v12231, %v12383
  %v12400 = vadd.f32 %v12232, %v12384
  %v12401 = vadd.f32 %v12233, %v12385
  %v12402 = vadd.f32 %v12234, %v12386
  %v12403 = vadd.f32 %v12235, %v12387
  %v12404 = vadd.f32 %v12236, %v12388
  %v12405 = vadd.f32 %v12237, %v12389
  %v12406 = vadd.f32 %v12238, %v12390
  %v12407 = vadd.f32 %v12239, %v12391
  %v12408 = vadd.f32 %v12240, %v12392
  %v12409 = vld [vmem:[%s3512] ss:$8 sm:$0xf]
  %v12410 = vld [vmem:[%s3512] ss:$8 sm:$0xf0]
  %v12411 = vor.u32 %v12409, %v12410
  %v12412 = vld [vmem:[%s3516] ss:$8 sm:$0xf]
  %v12413 = vld [vmem:[%s3516] ss:$8 sm:$0xf0]
  %v12414 = vor.u32 %v12412, %v12413
  %v12417 = vlaneseq
  %v12418 = vshrl.u32 %v12417, 7
  %v12419 = vsub.s32 0, %v12418
  %v12420 = vrot.slane %v12411, %v12419
  %v12421 = vlaneseq
  %v12422 = vshrl.u32 %v12421, 7
  %v12423 = vsub.s32 1, %v12422
  %v12424 = vrot.slane %v12411, %v12423
  %v12425 = vlaneseq
  %v12426 = vshrl.u32 %v12425, 7
  %v12427 = vsub.s32 2, %v12426
  %v12428 = vrot.slane %v12411, %v12427
  %v12429 = vlaneseq
  %v12430 = vshrl.u32 %v12429, 7
  %v12431 = vsub.s32 3, %v12430
  %v12432 = vrot.slane %v12411, %v12431
  %v12433 = vlaneseq
  %v12434 = vshrl.u32 %v12433, 7
  %v12435 = vsub.s32 4, %v12434
  %v12436 = vrot.slane %v12411, %v12435
  %v12437 = vlaneseq
  %v12438 = vshrl.u32 %v12437, 7
  %v12439 = vsub.s32 5, %v12438
  %v12440 = vrot.slane %v12411, %v12439
  %v12441 = vlaneseq
  %v12442 = vshrl.u32 %v12441, 7
  %v12443 = vsub.s32 6, %v12442
  %v12444 = vrot.slane %v12411, %v12443
  %v12445 = vlaneseq
  %v12446 = vshrl.u32 %v12445, 7
  %v12447 = vsub.s32 7, %v12446
  %v12448 = vrot.slane %v12411, %v12447
  %v12449 = vlaneseq
  %v12450 = vshrl.u32 %v12449, 7
  %v12451 = vsub.s32 0, %v12450
  %v12452 = vrot.slane %v12414, %v12451
  %v12453 = vlaneseq
  %v12454 = vshrl.u32 %v12453, 7
  %v12455 = vsub.s32 1, %v12454
  %v12456 = vrot.slane %v12414, %v12455
  %v12457 = vlaneseq
  %v12458 = vshrl.u32 %v12457, 7
  %v12459 = vsub.s32 2, %v12458
  %v12460 = vrot.slane %v12414, %v12459
  %v12461 = vlaneseq
  %v12462 = vshrl.u32 %v12461, 7
  %v12463 = vsub.s32 3, %v12462
  %v12464 = vrot.slane %v12414, %v12463
  %v12465 = vlaneseq
  %v12466 = vshrl.u32 %v12465, 7
  %v12467 = vsub.s32 4, %v12466
  %v12468 = vrot.slane %v12414, %v12467
  %v12469 = vlaneseq
  %v12470 = vshrl.u32 %v12469, 7
  %v12471 = vsub.s32 5, %v12470
  %v12472 = vrot.slane %v12414, %v12471
  %v12473 = vlaneseq
  %v12474 = vshrl.u32 %v12473, 7
  %v12475 = vsub.s32 6, %v12474
  %v12476 = vrot.slane %v12414, %v12475
  %v12477 = vlaneseq
  %v12478 = vshrl.u32 %v12477, 7
  %v12479 = vsub.s32 7, %v12478
  %v12480 = vrot.slane %v12414, %v12479
  %12497 = vrot.lane.b32.xlu0 %v12420, 15
  %v12498 = vpop.permute.xlu0 %12497
  %12499 = vrot.lane.b32.xlu0 %v12424, 15
  %v12500 = vpop.permute.xlu0 %12499
  %12501 = vrot.lane.b32.xlu0 %v12428, 15
  %v12502 = vpop.permute.xlu0 %12501
  %12503 = vrot.lane.b32.xlu0 %v12432, 15
  %v12504 = vpop.permute.xlu0 %12503
  %12505 = vrot.lane.b32.xlu0 %v12436, 15
  %v12506 = vpop.permute.xlu0 %12505
  %12507 = vrot.lane.b32.xlu0 %v12440, 15
  %v12508 = vpop.permute.xlu0 %12507
  %12509 = vrot.lane.b32.xlu0 %v12444, 15
  %v12510 = vpop.permute.xlu0 %12509
  %12511 = vrot.lane.b32.xlu0 %v12448, 15
  %v12512 = vpop.permute.xlu0 %12511
  %12513 = vrot.lane.b32.xlu0 %v12452, 15
  %v12514 = vpop.permute.xlu0 %12513
  %12515 = vrot.lane.b32.xlu0 %v12456, 15
  %v12516 = vpop.permute.xlu0 %12515
  %12517 = vrot.lane.b32.xlu0 %v12460, 15
  %v12518 = vpop.permute.xlu0 %12517
  %12519 = vrot.lane.b32.xlu0 %v12464, 15
  %v12520 = vpop.permute.xlu0 %12519
  %12521 = vrot.lane.b32.xlu0 %v12468, 15
  %v12522 = vpop.permute.xlu0 %12521
  %12523 = vrot.lane.b32.xlu0 %v12472, 15
  %v12524 = vpop.permute.xlu0 %12523
  %12525 = vrot.lane.b32.xlu0 %v12476, 15
  %v12526 = vpop.permute.xlu0 %12525
  %12527 = vrot.lane.b32.xlu0 %v12480, 15
  %v12528 = vpop.permute.xlu0 %12527
  %v12529 = vsel %vm752, %v12526, %v12528
  %v12530 = vsel %vm752, %v12524, %v12526
  %v12531 = vsel %vm752, %v12522, %v12524
  %v12532 = vsel %vm752, %v12520, %v12522
  %v12533 = vsel %vm752, %v12518, %v12520
  %v12534 = vsel %vm752, %v12516, %v12518
  %v12535 = vsel %vm752, %v12514, %v12516
  %v12536 = vsel %vm752, %v12512, %v12514
  %v12537 = vsel %vm752, %v12510, %v12512
  %v12538 = vsel %vm752, %v12508, %v12510
  %v12539 = vsel %vm752, %v12506, %v12508
  %v12540 = vsel %vm752, %v12504, %v12506
  %v12541 = vsel %vm752, %v12502, %v12504
  %v12542 = vsel %vm752, %v12500, %v12502
  %v12543 = vsel %vm752, %v12498, %v12500
  %v12544 = vsel %vm752, %v12528, %v12498
  %v12545 = vsel %vm172, %v12544, 0.0
  %v12546 = vsel %vm173, %v12543, 0.0
  %v12547 = vsel %vm174, %v12542, 0.0
  %v12548 = vsel %vm175, %v12541, 0.0
  %v12549 = vsel %vm176, %v12540, 0.0
  %v12550 = vsel %vm177, %v12539, 0.0
  %v12551 = vsel %vm178, %v12538, 0.0
  %v12552 = vsel %vm179, %v12537, 0.0
  %v12553 = vsel %vm180, %v12536, 0.0
  %v12554 = vsel %vm181, %v12535, 0.0
  %v12555 = vsel %vm182, %v12534, 0.0
  %v12556 = vsel %vm183, %v12533, 0.0
  %v12557 = vsel %vm184, %v12532, 0.0
  %v12558 = vsel %vm185, %v12531, 0.0
  %v12559 = vsel %vm186, %v12530, 0.0
  %v12560 = vsel %vm187, %v12529, 0.0
  %v12561 = vadd.f32 %v12393, %v12545
  %v12562 = vadd.f32 %v12394, %v12546
  %v12563 = vadd.f32 %v12395, %v12547
  %v12564 = vadd.f32 %v12396, %v12548
  %v12565 = vadd.f32 %v12397, %v12549
  %v12566 = vadd.f32 %v12398, %v12550
  %v12567 = vadd.f32 %v12399, %v12551
  %v12568 = vadd.f32 %v12400, %v12552
  %v12569 = vadd.f32 %v12401, %v12553
  %v12570 = vadd.f32 %v12402, %v12554
  %v12571 = vadd.f32 %v12403, %v12555
  %v12572 = vadd.f32 %v12404, %v12556
  %v12573 = vadd.f32 %v12405, %v12557
  %v12574 = vadd.f32 %v12406, %v12558
  %v12575 = vadd.f32 %v12407, %v12559
  %v12576 = vadd.f32 %v12408, %v12560
  %v12577 = vld [vmem:[%s3682] ss:$8 sm:$0xf]
  %v12578 = vld [vmem:[%s3682] ss:$8 sm:$0xf0]
  %v12579 = vor.u32 %v12577, %v12578
  %v12580 = vld [vmem:[%s3686] ss:$8 sm:$0xf]
  %v12581 = vld [vmem:[%s3686] ss:$8 sm:$0xf0]
  %v12582 = vor.u32 %v12580, %v12581
  %v12585 = vlaneseq
  %v12586 = vshrl.u32 %v12585, 7
  %v12587 = vsub.s32 0, %v12586
  %v12588 = vrot.slane %v12579, %v12587
  %v12589 = vlaneseq
  %v12590 = vshrl.u32 %v12589, 7
  %v12591 = vsub.s32 1, %v12590
  %v12592 = vrot.slane %v12579, %v12591
  %v12593 = vlaneseq
  %v12594 = vshrl.u32 %v12593, 7
  %v12595 = vsub.s32 2, %v12594
  %v12596 = vrot.slane %v12579, %v12595
  %v12597 = vlaneseq
  %v12598 = vshrl.u32 %v12597, 7
  %v12599 = vsub.s32 3, %v12598
  %v12600 = vrot.slane %v12579, %v12599
  %v12601 = vlaneseq
  %v12602 = vshrl.u32 %v12601, 7
  %v12603 = vsub.s32 4, %v12602
  %v12604 = vrot.slane %v12579, %v12603
  %v12605 = vlaneseq
  %v12606 = vshrl.u32 %v12605, 7
  %v12607 = vsub.s32 5, %v12606
  %v12608 = vrot.slane %v12579, %v12607
  %v12609 = vlaneseq
  %v12610 = vshrl.u32 %v12609, 7
  %v12611 = vsub.s32 6, %v12610
  %v12612 = vrot.slane %v12579, %v12611
  %v12613 = vlaneseq
  %v12614 = vshrl.u32 %v12613, 7
  %v12615 = vsub.s32 7, %v12614
  %v12616 = vrot.slane %v12579, %v12615
  %v12617 = vlaneseq
  %v12618 = vshrl.u32 %v12617, 7
  %v12619 = vsub.s32 0, %v12618
  %v12620 = vrot.slane %v12582, %v12619
  %v12621 = vlaneseq
  %v12622 = vshrl.u32 %v12621, 7
  %v12623 = vsub.s32 1, %v12622
  %v12624 = vrot.slane %v12582, %v12623
  %v12625 = vlaneseq
  %v12626 = vshrl.u32 %v12625, 7
  %v12627 = vsub.s32 2, %v12626
  %v12628 = vrot.slane %v12582, %v12627
  %v12629 = vlaneseq
  %v12630 = vshrl.u32 %v12629, 7
  %v12631 = vsub.s32 3, %v12630
  %v12632 = vrot.slane %v12582, %v12631
  %v12633 = vlaneseq
  %v12634 = vshrl.u32 %v12633, 7
  %v12635 = vsub.s32 4, %v12634
  %v12636 = vrot.slane %v12582, %v12635
  %v12637 = vlaneseq
  %v12638 = vshrl.u32 %v12637, 7
  %v12639 = vsub.s32 5, %v12638
  %v12640 = vrot.slane %v12582, %v12639
  %v12641 = vlaneseq
  %v12642 = vshrl.u32 %v12641, 7
  %v12643 = vsub.s32 6, %v12642
  %v12644 = vrot.slane %v12582, %v12643
  %v12645 = vlaneseq
  %v12646 = vshrl.u32 %v12645, 7
  %v12647 = vsub.s32 7, %v12646
  %v12648 = vrot.slane %v12582, %v12647
  %12665 = vrot.lane.b32.xlu0 %v12588, 1
  %v12666 = vpop.permute.xlu0 %12665
  %12667 = vrot.lane.b32.xlu0 %v12592, 1
  %v12668 = vpop.permute.xlu0 %12667
  %12669 = vrot.lane.b32.xlu0 %v12596, 1
  %v12670 = vpop.permute.xlu0 %12669
  %12671 = vrot.lane.b32.xlu0 %v12600, 1
  %v12672 = vpop.permute.xlu0 %12671
  %12673 = vrot.lane.b32.xlu0 %v12604, 1
  %v12674 = vpop.permute.xlu0 %12673
  %12675 = vrot.lane.b32.xlu0 %v12608, 1
  %v12676 = vpop.permute.xlu0 %12675
  %12677 = vrot.lane.b32.xlu0 %v12612, 1
  %v12678 = vpop.permute.xlu0 %12677
  %12679 = vrot.lane.b32.xlu0 %v12616, 1
  %v12680 = vpop.permute.xlu0 %12679
  %12681 = vrot.lane.b32.xlu0 %v12620, 1
  %v12682 = vpop.permute.xlu0 %12681
  %12683 = vrot.lane.b32.xlu0 %v12624, 1
  %v12684 = vpop.permute.xlu0 %12683
  %12685 = vrot.lane.b32.xlu0 %v12628, 1
  %v12686 = vpop.permute.xlu0 %12685
  %12687 = vrot.lane.b32.xlu0 %v12632, 1
  %v12688 = vpop.permute.xlu0 %12687
  %12689 = vrot.lane.b32.xlu0 %v12636, 1
  %v12690 = vpop.permute.xlu0 %12689
  %12691 = vrot.lane.b32.xlu0 %v12640, 1
  %v12692 = vpop.permute.xlu0 %12691
  %12693 = vrot.lane.b32.xlu0 %v12644, 1
  %v12694 = vpop.permute.xlu0 %12693
  %12695 = vrot.lane.b32.xlu0 %v12648, 1
  %v12696 = vpop.permute.xlu0 %12695
  %v12697 = vsel %vm939, %v12694, %v12696
  %v12698 = vsel %vm939, %v12692, %v12694
  %v12699 = vsel %vm939, %v12690, %v12692
  %v12700 = vsel %vm939, %v12688, %v12690
  %v12701 = vsel %vm939, %v12686, %v12688
  %v12702 = vsel %vm939, %v12684, %v12686
  %v12703 = vsel %vm939, %v12682, %v12684
  %v12704 = vsel %vm939, %v12680, %v12682
  %v12705 = vsel %vm939, %v12678, %v12680
  %v12706 = vsel %vm939, %v12676, %v12678
  %v12707 = vsel %vm939, %v12674, %v12676
  %v12708 = vsel %vm939, %v12672, %v12674
  %v12709 = vsel %vm939, %v12670, %v12672
  %v12710 = vsel %vm939, %v12668, %v12670
  %v12711 = vsel %vm939, %v12666, %v12668
  %v12712 = vsel %vm939, %v12696, %v12666
  %v12713 = vsel %vm124, %v12712, 0.0
  %v12714 = vsel %vm125, %v12711, 0.0
  %v12715 = vsel %vm126, %v12710, 0.0
  %v12716 = vsel %vm127, %v12709, 0.0
  %v12717 = vsel %vm128, %v12708, 0.0
  %v12718 = vsel %vm129, %v12707, 0.0
  %v12719 = vsel %vm130, %v12706, 0.0
  %v12720 = vsel %vm131, %v12705, 0.0
  %v12721 = vsel %vm132, %v12704, 0.0
  %v12722 = vsel %vm133, %v12703, 0.0
  %v12723 = vsel %vm134, %v12702, 0.0
  %v12724 = vsel %vm135, %v12701, 0.0
  %v12725 = vsel %vm136, %v12700, 0.0
  %v12726 = vsel %vm137, %v12699, 0.0
  %v12727 = vsel %vm138, %v12698, 0.0
  %v12728 = vsel %vm139, %v12697, 0.0
  %v12729 = vadd.f32 %v12561, %v12713
  %v12730 = vadd.f32 %v12562, %v12714
  %v12731 = vadd.f32 %v12563, %v12715
  %v12732 = vadd.f32 %v12564, %v12716
  %v12733 = vadd.f32 %v12565, %v12717
  %v12734 = vadd.f32 %v12566, %v12718
  %v12735 = vadd.f32 %v12567, %v12719
  %v12736 = vadd.f32 %v12568, %v12720
  %v12737 = vadd.f32 %v12569, %v12721
  %v12738 = vadd.f32 %v12570, %v12722
  %v12739 = vadd.f32 %v12571, %v12723
  %v12740 = vadd.f32 %v12572, %v12724
  %v12741 = vadd.f32 %v12573, %v12725
  %v12742 = vadd.f32 %v12574, %v12726
  %v12743 = vadd.f32 %v12575, %v12727
  %v12744 = vadd.f32 %v12576, %v12728
  %v12745 = vld [vmem:[%s3852] ss:$8 sm:$0xf]
  %v12746 = vld [vmem:[%s3852] ss:$8 sm:$0xf0]
  %v12747 = vor.u32 %v12745, %v12746
  %v12748 = vld [vmem:[%s3856] ss:$8 sm:$0xf]
  %v12749 = vld [vmem:[%s3856] ss:$8 sm:$0xf0]
  %v12750 = vor.u32 %v12748, %v12749
  %v12753 = vlaneseq
  %v12754 = vshrl.u32 %v12753, 7
  %v12755 = vsub.s32 0, %v12754
  %v12756 = vrot.slane %v12747, %v12755
  %v12757 = vlaneseq
  %v12758 = vshrl.u32 %v12757, 7
  %v12759 = vsub.s32 1, %v12758
  %v12760 = vrot.slane %v12747, %v12759
  %v12761 = vlaneseq
  %v12762 = vshrl.u32 %v12761, 7
  %v12763 = vsub.s32 2, %v12762
  %v12764 = vrot.slane %v12747, %v12763
  %v12765 = vlaneseq
  %v12766 = vshrl.u32 %v12765, 7
  %v12767 = vsub.s32 3, %v12766
  %v12768 = vrot.slane %v12747, %v12767
  %v12769 = vlaneseq
  %v12770 = vshrl.u32 %v12769, 7
  %v12771 = vsub.s32 4, %v12770
  %v12772 = vrot.slane %v12747, %v12771
  %v12773 = vlaneseq
  %v12774 = vshrl.u32 %v12773, 7
  %v12775 = vsub.s32 5, %v12774
  %v12776 = vrot.slane %v12747, %v12775
  %v12777 = vlaneseq
  %v12778 = vshrl.u32 %v12777, 7
  %v12779 = vsub.s32 6, %v12778
  %v12780 = vrot.slane %v12747, %v12779
  %v12781 = vlaneseq
  %v12782 = vshrl.u32 %v12781, 7
  %v12783 = vsub.s32 7, %v12782
  %v12784 = vrot.slane %v12747, %v12783
  %v12785 = vlaneseq
  %v12786 = vshrl.u32 %v12785, 7
  %v12787 = vsub.s32 0, %v12786
  %v12788 = vrot.slane %v12750, %v12787
  %v12789 = vlaneseq
  %v12790 = vshrl.u32 %v12789, 7
  %v12791 = vsub.s32 1, %v12790
  %v12792 = vrot.slane %v12750, %v12791
  %v12793 = vlaneseq
  %v12794 = vshrl.u32 %v12793, 7
  %v12795 = vsub.s32 2, %v12794
  %v12796 = vrot.slane %v12750, %v12795
  %v12797 = vlaneseq
  %v12798 = vshrl.u32 %v12797, 7
  %v12799 = vsub.s32 3, %v12798
  %v12800 = vrot.slane %v12750, %v12799
  %v12801 = vlaneseq
  %v12802 = vshrl.u32 %v12801, 7
  %v12803 = vsub.s32 4, %v12802
  %v12804 = vrot.slane %v12750, %v12803
  %v12805 = vlaneseq
  %v12806 = vshrl.u32 %v12805, 7
  %v12807 = vsub.s32 5, %v12806
  %v12808 = vrot.slane %v12750, %v12807
  %v12809 = vlaneseq
  %v12810 = vshrl.u32 %v12809, 7
  %v12811 = vsub.s32 6, %v12810
  %v12812 = vrot.slane %v12750, %v12811
  %v12813 = vlaneseq
  %v12814 = vshrl.u32 %v12813, 7
  %v12815 = vsub.s32 7, %v12814
  %v12816 = vrot.slane %v12750, %v12815
  %v12833 = vadd.f32 %v12729, %v12756
  %v12834 = vadd.f32 %v12730, %v12760
  %v12835 = vadd.f32 %v12731, %v12764
  %v12836 = vadd.f32 %v12732, %v12768
  %v12837 = vadd.f32 %v12733, %v12772
  %v12838 = vadd.f32 %v12734, %v12776
  %v12839 = vadd.f32 %v12735, %v12780
  %v12840 = vadd.f32 %v12736, %v12784
  %v12841 = vadd.f32 %v12737, %v12788
  %v12842 = vadd.f32 %v12738, %v12792
  %v12843 = vadd.f32 %v12739, %v12796
  %v12844 = vadd.f32 %v12740, %v12800
  %v12845 = vadd.f32 %v12741, %v12804
  %v12846 = vadd.f32 %v12742, %v12808
  %v12847 = vadd.f32 %v12743, %v12812
  %v12848 = vadd.f32 %v12744, %v12816
  %v12849 = vld [vmem:[%s3958] ss:$8 sm:$0xf]
  %v12850 = vld [vmem:[%s3958] ss:$8 sm:$0xf0]
  %v12851 = vor.u32 %v12849, %v12850
  %v12852 = vld [vmem:[%s3962] ss:$8 sm:$0xf]
  %v12853 = vld [vmem:[%s3962] ss:$8 sm:$0xf0]
  %v12854 = vor.u32 %v12852, %v12853
  %v12857 = vlaneseq
  %v12858 = vshrl.u32 %v12857, 7
  %v12859 = vsub.s32 0, %v12858
  %v12860 = vrot.slane %v12851, %v12859
  %v12861 = vlaneseq
  %v12862 = vshrl.u32 %v12861, 7
  %v12863 = vsub.s32 1, %v12862
  %v12864 = vrot.slane %v12851, %v12863
  %v12865 = vlaneseq
  %v12866 = vshrl.u32 %v12865, 7
  %v12867 = vsub.s32 2, %v12866
  %v12868 = vrot.slane %v12851, %v12867
  %v12869 = vlaneseq
  %v12870 = vshrl.u32 %v12869, 7
  %v12871 = vsub.s32 3, %v12870
  %v12872 = vrot.slane %v12851, %v12871
  %v12873 = vlaneseq
  %v12874 = vshrl.u32 %v12873, 7
  %v12875 = vsub.s32 4, %v12874
  %v12876 = vrot.slane %v12851, %v12875
  %v12877 = vlaneseq
  %v12878 = vshrl.u32 %v12877, 7
  %v12879 = vsub.s32 5, %v12878
  %v12880 = vrot.slane %v12851, %v12879
  %v12881 = vlaneseq
  %v12882 = vshrl.u32 %v12881, 7
  %v12883 = vsub.s32 6, %v12882
  %v12884 = vrot.slane %v12851, %v12883
  %v12885 = vlaneseq
  %v12886 = vshrl.u32 %v12885, 7
  %v12887 = vsub.s32 7, %v12886
  %v12888 = vrot.slane %v12851, %v12887
  %v12889 = vlaneseq
  %v12890 = vshrl.u32 %v12889, 7
  %v12891 = vsub.s32 0, %v12890
  %v12892 = vrot.slane %v12854, %v12891
  %v12893 = vlaneseq
  %v12894 = vshrl.u32 %v12893, 7
  %v12895 = vsub.s32 1, %v12894
  %v12896 = vrot.slane %v12854, %v12895
  %v12897 = vlaneseq
  %v12898 = vshrl.u32 %v12897, 7
  %v12899 = vsub.s32 2, %v12898
  %v12900 = vrot.slane %v12854, %v12899
  %v12901 = vlaneseq
  %v12902 = vshrl.u32 %v12901, 7
  %v12903 = vsub.s32 3, %v12902
  %v12904 = vrot.slane %v12854, %v12903
  %v12905 = vlaneseq
  %v12906 = vshrl.u32 %v12905, 7
  %v12907 = vsub.s32 4, %v12906
  %v12908 = vrot.slane %v12854, %v12907
  %v12909 = vlaneseq
  %v12910 = vshrl.u32 %v12909, 7
  %v12911 = vsub.s32 5, %v12910
  %v12912 = vrot.slane %v12854, %v12911
  %v12913 = vlaneseq
  %v12914 = vshrl.u32 %v12913, 7
  %v12915 = vsub.s32 6, %v12914
  %v12916 = vrot.slane %v12854, %v12915
  %v12917 = vlaneseq
  %v12918 = vshrl.u32 %v12917, 7
  %v12919 = vsub.s32 7, %v12918
  %v12920 = vrot.slane %v12854, %v12919
  %12937 = vrot.lane.b32.xlu0 %v12860, 127
  %v12938 = vpop.permute.xlu0 %12937
  %12939 = vrot.lane.b32.xlu0 %v12864, 127
  %v12940 = vpop.permute.xlu0 %12939
  %12941 = vrot.lane.b32.xlu0 %v12868, 127
  %v12942 = vpop.permute.xlu0 %12941
  %12943 = vrot.lane.b32.xlu0 %v12872, 127
  %v12944 = vpop.permute.xlu0 %12943
  %12945 = vrot.lane.b32.xlu0 %v12876, 127
  %v12946 = vpop.permute.xlu0 %12945
  %12947 = vrot.lane.b32.xlu0 %v12880, 127
  %v12948 = vpop.permute.xlu0 %12947
  %12949 = vrot.lane.b32.xlu0 %v12884, 127
  %v12950 = vpop.permute.xlu0 %12949
  %12951 = vrot.lane.b32.xlu0 %v12888, 127
  %v12952 = vpop.permute.xlu0 %12951
  %12953 = vrot.lane.b32.xlu0 %v12892, 127
  %v12954 = vpop.permute.xlu0 %12953
  %12955 = vrot.lane.b32.xlu0 %v12896, 127
  %v12956 = vpop.permute.xlu0 %12955
  %12957 = vrot.lane.b32.xlu0 %v12900, 127
  %v12958 = vpop.permute.xlu0 %12957
  %12959 = vrot.lane.b32.xlu0 %v12904, 127
  %v12960 = vpop.permute.xlu0 %12959
  %12961 = vrot.lane.b32.xlu0 %v12908, 127
  %v12962 = vpop.permute.xlu0 %12961
  %12963 = vrot.lane.b32.xlu0 %v12912, 127
  %v12964 = vpop.permute.xlu0 %12963
  %12965 = vrot.lane.b32.xlu0 %v12916, 127
  %v12966 = vpop.permute.xlu0 %12965
  %12967 = vrot.lane.b32.xlu0 %v12920, 127
  %v12968 = vpop.permute.xlu0 %12967
  %v12969 = vsel %vm1132, %v12966, %v12968
  %v12970 = vsel %vm1132, %v12964, %v12966
  %v12971 = vsel %vm1132, %v12962, %v12964
  %v12972 = vsel %vm1132, %v12960, %v12962
  %v12973 = vsel %vm1132, %v12958, %v12960
  %v12974 = vsel %vm1132, %v12956, %v12958
  %v12975 = vsel %vm1132, %v12954, %v12956
  %v12976 = vsel %vm1132, %v12952, %v12954
  %v12977 = vsel %vm1132, %v12950, %v12952
  %v12978 = vsel %vm1132, %v12948, %v12950
  %v12979 = vsel %vm1132, %v12946, %v12948
  %v12980 = vsel %vm1132, %v12944, %v12946
  %v12981 = vsel %vm1132, %v12942, %v12944
  %v12982 = vsel %vm1132, %v12940, %v12942
  %v12983 = vsel %vm1132, %v12938, %v12940
  %v12984 = vsel %vm1132, %v12968, %v12938
  %v12985 = vsel %vm140, %v12983, 0.0
  %v12986 = vsel %vm141, %v12982, 0.0
  %v12987 = vsel %vm142, %v12981, 0.0
  %v12988 = vsel %vm143, %v12980, 0.0
  %v12989 = vsel %vm144, %v12979, 0.0
  %v12990 = vsel %vm145, %v12978, 0.0
  %v12991 = vsel %vm146, %v12977, 0.0
  %v12992 = vsel %vm147, %v12976, 0.0
  %v12993 = vsel %vm148, %v12975, 0.0
  %v12994 = vsel %vm149, %v12974, 0.0
  %v12995 = vsel %vm150, %v12973, 0.0
  %v12996 = vsel %vm151, %v12972, 0.0
  %v12997 = vsel %vm152, %v12971, 0.0
  %v12998 = vsel %vm153, %v12970, 0.0
  %v12999 = vsel %vm154, %v12969, 0.0
  %v13000 = vsel %vm155, %v12984, 0.0
  %v13001 = vadd.f32 %v12833, %v12985
  %v13002 = vadd.f32 %v12834, %v12986
  %v13003 = vadd.f32 %v12835, %v12987
  %v13004 = vadd.f32 %v12836, %v12988
  %v13005 = vadd.f32 %v12837, %v12989
  %v13006 = vadd.f32 %v12838, %v12990
  %v13007 = vadd.f32 %v12839, %v12991
  %v13008 = vadd.f32 %v12840, %v12992
  %v13009 = vadd.f32 %v12841, %v12993
  %v13010 = vadd.f32 %v12842, %v12994
  %v13011 = vadd.f32 %v12843, %v12995
  %v13012 = vadd.f32 %v12844, %v12996
  %v13013 = vadd.f32 %v12845, %v12997
  %v13014 = vadd.f32 %v12846, %v12998
  %v13015 = vadd.f32 %v12847, %v12999
  %v13016 = vadd.f32 %v12848, %v13000
  %v13017 = vld [vmem:[%s4128] ss:$8 sm:$0xf]
  %v13018 = vld [vmem:[%s4128] ss:$8 sm:$0xf0]
  %v13019 = vor.u32 %v13017, %v13018
  %v13020 = vld [vmem:[%s4132] ss:$8 sm:$0xf]
  %v13021 = vld [vmem:[%s4132] ss:$8 sm:$0xf0]
  %v13022 = vor.u32 %v13020, %v13021
  %v13025 = vlaneseq
  %v13026 = vshrl.u32 %v13025, 7
  %v13027 = vsub.s32 0, %v13026
  %v13028 = vrot.slane %v13019, %v13027
  %v13029 = vlaneseq
  %v13030 = vshrl.u32 %v13029, 7
  %v13031 = vsub.s32 1, %v13030
  %v13032 = vrot.slane %v13019, %v13031
  %v13033 = vlaneseq
  %v13034 = vshrl.u32 %v13033, 7
  %v13035 = vsub.s32 2, %v13034
  %v13036 = vrot.slane %v13019, %v13035
  %v13037 = vlaneseq
  %v13038 = vshrl.u32 %v13037, 7
  %v13039 = vsub.s32 3, %v13038
  %v13040 = vrot.slane %v13019, %v13039
  %v13041 = vlaneseq
  %v13042 = vshrl.u32 %v13041, 7
  %v13043 = vsub.s32 4, %v13042
  %v13044 = vrot.slane %v13019, %v13043
  %v13045 = vlaneseq
  %v13046 = vshrl.u32 %v13045, 7
  %v13047 = vsub.s32 5, %v13046
  %v13048 = vrot.slane %v13019, %v13047
  %v13049 = vlaneseq
  %v13050 = vshrl.u32 %v13049, 7
  %v13051 = vsub.s32 6, %v13050
  %v13052 = vrot.slane %v13019, %v13051
  %v13053 = vlaneseq
  %v13054 = vshrl.u32 %v13053, 7
  %v13055 = vsub.s32 7, %v13054
  %v13056 = vrot.slane %v13019, %v13055
  %v13057 = vlaneseq
  %v13058 = vshrl.u32 %v13057, 7
  %v13059 = vsub.s32 0, %v13058
  %v13060 = vrot.slane %v13022, %v13059
  %v13061 = vlaneseq
  %v13062 = vshrl.u32 %v13061, 7
  %v13063 = vsub.s32 1, %v13062
  %v13064 = vrot.slane %v13022, %v13063
  %v13065 = vlaneseq
  %v13066 = vshrl.u32 %v13065, 7
  %v13067 = vsub.s32 2, %v13066
  %v13068 = vrot.slane %v13022, %v13067
  %v13069 = vlaneseq
  %v13070 = vshrl.u32 %v13069, 7
  %v13071 = vsub.s32 3, %v13070
  %v13072 = vrot.slane %v13022, %v13071
  %v13073 = vlaneseq
  %v13074 = vshrl.u32 %v13073, 7
  %v13075 = vsub.s32 4, %v13074
  %v13076 = vrot.slane %v13022, %v13075
  %v13077 = vlaneseq
  %v13078 = vshrl.u32 %v13077, 7
  %v13079 = vsub.s32 5, %v13078
  %v13080 = vrot.slane %v13022, %v13079
  %v13081 = vlaneseq
  %v13082 = vshrl.u32 %v13081, 7
  %v13083 = vsub.s32 6, %v13082
  %v13084 = vrot.slane %v13022, %v13083
  %v13085 = vlaneseq
  %v13086 = vshrl.u32 %v13085, 7
  %v13087 = vsub.s32 7, %v13086
  %v13088 = vrot.slane %v13022, %v13087
  %13105 = vrot.lane.b32.xlu0 %v13028, 113
  %v13106 = vpop.permute.xlu0 %13105
  %13107 = vrot.lane.b32.xlu0 %v13032, 113
  %v13108 = vpop.permute.xlu0 %13107
  %13109 = vrot.lane.b32.xlu0 %v13036, 113
  %v13110 = vpop.permute.xlu0 %13109
  %13111 = vrot.lane.b32.xlu0 %v13040, 113
  %v13112 = vpop.permute.xlu0 %13111
  %13113 = vrot.lane.b32.xlu0 %v13044, 113
  %v13114 = vpop.permute.xlu0 %13113
  %13115 = vrot.lane.b32.xlu0 %v13048, 113
  %v13116 = vpop.permute.xlu0 %13115
  %13117 = vrot.lane.b32.xlu0 %v13052, 113
  %v13118 = vpop.permute.xlu0 %13117
  %13119 = vrot.lane.b32.xlu0 %v13056, 113
  %v13120 = vpop.permute.xlu0 %13119
  %13121 = vrot.lane.b32.xlu0 %v13060, 113
  %v13122 = vpop.permute.xlu0 %13121
  %13123 = vrot.lane.b32.xlu0 %v13064, 113
  %v13124 = vpop.permute.xlu0 %13123
  %13125 = vrot.lane.b32.xlu0 %v13068, 113
  %v13126 = vpop.permute.xlu0 %13125
  %13127 = vrot.lane.b32.xlu0 %v13072, 113
  %v13128 = vpop.permute.xlu0 %13127
  %13129 = vrot.lane.b32.xlu0 %v13076, 113
  %v13130 = vpop.permute.xlu0 %13129
  %13131 = vrot.lane.b32.xlu0 %v13080, 113
  %v13132 = vpop.permute.xlu0 %13131
  %13133 = vrot.lane.b32.xlu0 %v13084, 113
  %v13134 = vpop.permute.xlu0 %13133
  %13135 = vrot.lane.b32.xlu0 %v13088, 113
  %v13136 = vpop.permute.xlu0 %13135
  %v13137 = vsel %vm1319, %v13134, %v13136
  %v13138 = vsel %vm1319, %v13132, %v13134
  %v13139 = vsel %vm1319, %v13130, %v13132
  %v13140 = vsel %vm1319, %v13128, %v13130
  %v13141 = vsel %vm1319, %v13126, %v13128
  %v13142 = vsel %vm1319, %v13124, %v13126
  %v13143 = vsel %vm1319, %v13122, %v13124
  %v13144 = vsel %vm1319, %v13120, %v13122
  %v13145 = vsel %vm1319, %v13118, %v13120
  %v13146 = vsel %vm1319, %v13116, %v13118
  %v13147 = vsel %vm1319, %v13114, %v13116
  %v13148 = vsel %vm1319, %v13112, %v13114
  %v13149 = vsel %vm1319, %v13110, %v13112
  %v13150 = vsel %vm1319, %v13108, %v13110
  %v13151 = vsel %vm1319, %v13106, %v13108
  %v13152 = vsel %vm1319, %v13136, %v13106
  %v13153 = vsel %vm188, %v13151, 0.0
  %v13154 = vsel %vm189, %v13150, 0.0
  %v13155 = vsel %vm190, %v13149, 0.0
  %v13156 = vsel %vm191, %v13148, 0.0
  %v13157 = vsel %vm192, %v13147, 0.0
  %v13158 = vsel %vm193, %v13146, 0.0
  %v13159 = vsel %vm194, %v13145, 0.0
  %v13160 = vsel %vm195, %v13144, 0.0
  %v13161 = vsel %vm196, %v13143, 0.0
  %v13162 = vsel %vm197, %v13142, 0.0
  %v13163 = vsel %vm198, %v13141, 0.0
  %v13164 = vsel %vm199, %v13140, 0.0
  %v13165 = vsel %vm200, %v13139, 0.0
  %v13166 = vsel %vm201, %v13138, 0.0
  %v13167 = vsel %vm202, %v13137, 0.0
  %v13168 = vsel %vm203, %v13152, 0.0
  %v13169 = vadd.f32 %v13001, %v13153
  %v13170 = vadd.f32 %v13002, %v13154
  %v13171 = vadd.f32 %v13003, %v13155
  %v13172 = vadd.f32 %v13004, %v13156
  %v13173 = vadd.f32 %v13005, %v13157
  %v13174 = vadd.f32 %v13006, %v13158
  %v13175 = vadd.f32 %v13007, %v13159
  %v13176 = vadd.f32 %v13008, %v13160
  %v13177 = vadd.f32 %v13009, %v13161
  %v13178 = vadd.f32 %v13010, %v13162
  %v13179 = vadd.f32 %v13011, %v13163
  %v13180 = vadd.f32 %v13012, %v13164
  %v13181 = vadd.f32 %v13013, %v13165
  %v13182 = vadd.f32 %v13014, %v13166
  %v13183 = vadd.f32 %v13015, %v13167
  %v13184 = vadd.f32 %v13016, %v13168
  %v13185 = vld [vmem:[%s4298] ss:$8 sm:$0xf]
  %v13186 = vld [vmem:[%s4298] ss:$8 sm:$0xf0]
  %v13187 = vor.u32 %v13185, %v13186
  %v13188 = vld [vmem:[%s4302] ss:$8 sm:$0xf]
  %v13189 = vld [vmem:[%s4302] ss:$8 sm:$0xf0]
  %v13190 = vor.u32 %v13188, %v13189
  %v13193 = vlaneseq
  %v13194 = vshrl.u32 %v13193, 7
  %v13195 = vsub.s32 0, %v13194
  %v13196 = vrot.slane %v13187, %v13195
  %v13197 = vlaneseq
  %v13198 = vshrl.u32 %v13197, 7
  %v13199 = vsub.s32 1, %v13198
  %v13200 = vrot.slane %v13187, %v13199
  %v13201 = vlaneseq
  %v13202 = vshrl.u32 %v13201, 7
  %v13203 = vsub.s32 2, %v13202
  %v13204 = vrot.slane %v13187, %v13203
  %v13205 = vlaneseq
  %v13206 = vshrl.u32 %v13205, 7
  %v13207 = vsub.s32 3, %v13206
  %v13208 = vrot.slane %v13187, %v13207
  %v13209 = vlaneseq
  %v13210 = vshrl.u32 %v13209, 7
  %v13211 = vsub.s32 4, %v13210
  %v13212 = vrot.slane %v13187, %v13211
  %v13213 = vlaneseq
  %v13214 = vshrl.u32 %v13213, 7
  %v13215 = vsub.s32 5, %v13214
  %v13216 = vrot.slane %v13187, %v13215
  %v13217 = vlaneseq
  %v13218 = vshrl.u32 %v13217, 7
  %v13219 = vsub.s32 6, %v13218
  %v13220 = vrot.slane %v13187, %v13219
  %v13221 = vlaneseq
  %v13222 = vshrl.u32 %v13221, 7
  %v13223 = vsub.s32 7, %v13222
  %v13224 = vrot.slane %v13187, %v13223
  %v13225 = vlaneseq
  %v13226 = vshrl.u32 %v13225, 7
  %v13227 = vsub.s32 0, %v13226
  %v13228 = vrot.slane %v13190, %v13227
  %v13229 = vlaneseq
  %v13230 = vshrl.u32 %v13229, 7
  %v13231 = vsub.s32 1, %v13230
  %v13232 = vrot.slane %v13190, %v13231
  %v13233 = vlaneseq
  %v13234 = vshrl.u32 %v13233, 7
  %v13235 = vsub.s32 2, %v13234
  %v13236 = vrot.slane %v13190, %v13235
  %v13237 = vlaneseq
  %v13238 = vshrl.u32 %v13237, 7
  %v13239 = vsub.s32 3, %v13238
  %v13240 = vrot.slane %v13190, %v13239
  %v13241 = vlaneseq
  %v13242 = vshrl.u32 %v13241, 7
  %v13243 = vsub.s32 4, %v13242
  %v13244 = vrot.slane %v13190, %v13243
  %v13245 = vlaneseq
  %v13246 = vshrl.u32 %v13245, 7
  %v13247 = vsub.s32 5, %v13246
  %v13248 = vrot.slane %v13190, %v13247
  %v13249 = vlaneseq
  %v13250 = vshrl.u32 %v13249, 7
  %v13251 = vsub.s32 6, %v13250
  %v13252 = vrot.slane %v13190, %v13251
  %v13253 = vlaneseq
  %v13254 = vshrl.u32 %v13253, 7
  %v13255 = vsub.s32 7, %v13254
  %v13256 = vrot.slane %v13190, %v13255
  %13273 = vrot.lane.b32.xlu0 %v13196, 112
  %v13274 = vpop.permute.xlu0 %13273
  %13275 = vrot.lane.b32.xlu0 %v13200, 112
  %v13276 = vpop.permute.xlu0 %13275
  %13277 = vrot.lane.b32.xlu0 %v13204, 112
  %v13278 = vpop.permute.xlu0 %13277
  %13279 = vrot.lane.b32.xlu0 %v13208, 112
  %v13280 = vpop.permute.xlu0 %13279
  %13281 = vrot.lane.b32.xlu0 %v13212, 112
  %v13282 = vpop.permute.xlu0 %13281
  %13283 = vrot.lane.b32.xlu0 %v13216, 112
  %v13284 = vpop.permute.xlu0 %13283
  %13285 = vrot.lane.b32.xlu0 %v13220, 112
  %v13286 = vpop.permute.xlu0 %13285
  %13287 = vrot.lane.b32.xlu0 %v13224, 112
  %v13288 = vpop.permute.xlu0 %13287
  %13289 = vrot.lane.b32.xlu0 %v13228, 112
  %v13290 = vpop.permute.xlu0 %13289
  %13291 = vrot.lane.b32.xlu0 %v13232, 112
  %v13292 = vpop.permute.xlu0 %13291
  %13293 = vrot.lane.b32.xlu0 %v13236, 112
  %v13294 = vpop.permute.xlu0 %13293
  %13295 = vrot.lane.b32.xlu0 %v13240, 112
  %v13296 = vpop.permute.xlu0 %13295
  %13297 = vrot.lane.b32.xlu0 %v13244, 112
  %v13298 = vpop.permute.xlu0 %13297
  %13299 = vrot.lane.b32.xlu0 %v13248, 112
  %v13300 = vpop.permute.xlu0 %13299
  %13301 = vrot.lane.b32.xlu0 %v13252, 112
  %v13302 = vpop.permute.xlu0 %13301
  %13303 = vrot.lane.b32.xlu0 %v13256, 112
  %v13304 = vpop.permute.xlu0 %13303
  %v13305 = vsel %vm1506, %v13302, %v13304
  %v13306 = vsel %vm1506, %v13300, %v13302
  %v13307 = vsel %vm1506, %v13298, %v13300
  %v13308 = vsel %vm1506, %v13296, %v13298
  %v13309 = vsel %vm1506, %v13294, %v13296
  %v13310 = vsel %vm1506, %v13292, %v13294
  %v13311 = vsel %vm1506, %v13290, %v13292
  %v13312 = vsel %vm1506, %v13288, %v13290
  %v13313 = vsel %vm1506, %v13286, %v13288
  %v13314 = vsel %vm1506, %v13284, %v13286
  %v13315 = vsel %vm1506, %v13282, %v13284
  %v13316 = vsel %vm1506, %v13280, %v13282
  %v13317 = vsel %vm1506, %v13278, %v13280
  %v13318 = vsel %vm1506, %v13276, %v13278
  %v13319 = vsel %vm1506, %v13274, %v13276
  %v13320 = vsel %vm1506, %v13304, %v13274
  %v13321 = vsel %vm108, %v13319, 0.0
  %v13322 = vsel %vm109, %v13318, 0.0
  %v13323 = vsel %vm110, %v13317, 0.0
  %v13324 = vsel %vm111, %v13316, 0.0
  %v13325 = vsel %vm112, %v13315, 0.0
  %v13326 = vsel %vm113, %v13314, 0.0
  %v13327 = vsel %vm114, %v13313, 0.0
  %v13328 = vsel %vm115, %v13312, 0.0
  %v13329 = vsel %vm116, %v13311, 0.0
  %v13330 = vsel %vm117, %v13310, 0.0
  %v13331 = vsel %vm118, %v13309, 0.0
  %v13332 = vsel %vm119, %v13308, 0.0
  %v13333 = vsel %vm120, %v13307, 0.0
  %v13334 = vsel %vm121, %v13306, 0.0
  %v13335 = vsel %vm122, %v13305, 0.0
  %v13336 = vsel %vm123, %v13320, 0.0
  %v13337 = vadd.f32 %v13169, %v13321
  %v13338 = vadd.f32 %v13170, %v13322
  %v13339 = vadd.f32 %v13171, %v13323
  %v13340 = vadd.f32 %v13172, %v13324
  %v13341 = vadd.f32 %v13173, %v13325
  %v13342 = vadd.f32 %v13174, %v13326
  %v13343 = vadd.f32 %v13175, %v13327
  %v13344 = vadd.f32 %v13176, %v13328
  %v13345 = vadd.f32 %v13177, %v13329
  %v13346 = vadd.f32 %v13178, %v13330
  %v13347 = vadd.f32 %v13179, %v13331
  %v13348 = vadd.f32 %v13180, %v13332
  %v13349 = vadd.f32 %v13181, %v13333
  %v13350 = vadd.f32 %v13182, %v13334
  %v13351 = vadd.f32 %v13183, %v13335
  %v13352 = vadd.f32 %v13184, %v13336
  %v13353 = vld [vmem:[%s4468] ss:$8 sm:$0xf]
  %v13354 = vld [vmem:[%s4468] ss:$8 sm:$0xf0]
  %v13355 = vor.u32 %v13353, %v13354
  %v13356 = vld [vmem:[%s4472] ss:$8 sm:$0xf]
  %v13357 = vld [vmem:[%s4472] ss:$8 sm:$0xf0]
  %v13358 = vor.u32 %v13356, %v13357
  %v13361 = vlaneseq
  %v13362 = vshrl.u32 %v13361, 7
  %v13363 = vsub.s32 0, %v13362
  %v13364 = vrot.slane %v13355, %v13363
  %v13365 = vlaneseq
  %v13366 = vshrl.u32 %v13365, 7
  %v13367 = vsub.s32 1, %v13366
  %v13368 = vrot.slane %v13355, %v13367
  %v13369 = vlaneseq
  %v13370 = vshrl.u32 %v13369, 7
  %v13371 = vsub.s32 2, %v13370
  %v13372 = vrot.slane %v13355, %v13371
  %v13373 = vlaneseq
  %v13374 = vshrl.u32 %v13373, 7
  %v13375 = vsub.s32 3, %v13374
  %v13376 = vrot.slane %v13355, %v13375
  %v13377 = vlaneseq
  %v13378 = vshrl.u32 %v13377, 7
  %v13379 = vsub.s32 4, %v13378
  %v13380 = vrot.slane %v13355, %v13379
  %v13381 = vlaneseq
  %v13382 = vshrl.u32 %v13381, 7
  %v13383 = vsub.s32 5, %v13382
  %v13384 = vrot.slane %v13355, %v13383
  %v13385 = vlaneseq
  %v13386 = vshrl.u32 %v13385, 7
  %v13387 = vsub.s32 6, %v13386
  %v13388 = vrot.slane %v13355, %v13387
  %v13389 = vlaneseq
  %v13390 = vshrl.u32 %v13389, 7
  %v13391 = vsub.s32 7, %v13390
  %v13392 = vrot.slane %v13355, %v13391
  %v13393 = vlaneseq
  %v13394 = vshrl.u32 %v13393, 7
  %v13395 = vsub.s32 0, %v13394
  %v13396 = vrot.slane %v13358, %v13395
  %v13397 = vlaneseq
  %v13398 = vshrl.u32 %v13397, 7
  %v13399 = vsub.s32 1, %v13398
  %v13400 = vrot.slane %v13358, %v13399
  %v13401 = vlaneseq
  %v13402 = vshrl.u32 %v13401, 7
  %v13403 = vsub.s32 2, %v13402
  %v13404 = vrot.slane %v13358, %v13403
  %v13405 = vlaneseq
  %v13406 = vshrl.u32 %v13405, 7
  %v13407 = vsub.s32 3, %v13406
  %v13408 = vrot.slane %v13358, %v13407
  %v13409 = vlaneseq
  %v13410 = vshrl.u32 %v13409, 7
  %v13411 = vsub.s32 4, %v13410
  %v13412 = vrot.slane %v13358, %v13411
  %v13413 = vlaneseq
  %v13414 = vshrl.u32 %v13413, 7
  %v13415 = vsub.s32 5, %v13414
  %v13416 = vrot.slane %v13358, %v13415
  %v13417 = vlaneseq
  %v13418 = vshrl.u32 %v13417, 7
  %v13419 = vsub.s32 6, %v13418
  %v13420 = vrot.slane %v13358, %v13419
  %v13421 = vlaneseq
  %v13422 = vshrl.u32 %v13421, 7
  %v13423 = vsub.s32 7, %v13422
  %v13424 = vrot.slane %v13358, %v13423
  %13441 = vrot.lane.b32.xlu0 %v13364, 111
  %v13442 = vpop.permute.xlu0 %13441
  %13443 = vrot.lane.b32.xlu0 %v13368, 111
  %v13444 = vpop.permute.xlu0 %13443
  %13445 = vrot.lane.b32.xlu0 %v13372, 111
  %v13446 = vpop.permute.xlu0 %13445
  %13447 = vrot.lane.b32.xlu0 %v13376, 111
  %v13448 = vpop.permute.xlu0 %13447
  %13449 = vrot.lane.b32.xlu0 %v13380, 111
  %v13450 = vpop.permute.xlu0 %13449
  %13451 = vrot.lane.b32.xlu0 %v13384, 111
  %v13452 = vpop.permute.xlu0 %13451
  %13453 = vrot.lane.b32.xlu0 %v13388, 111
  %v13454 = vpop.permute.xlu0 %13453
  %13455 = vrot.lane.b32.xlu0 %v13392, 111
  %v13456 = vpop.permute.xlu0 %13455
  %13457 = vrot.lane.b32.xlu0 %v13396, 111
  %v13458 = vpop.permute.xlu0 %13457
  %13459 = vrot.lane.b32.xlu0 %v13400, 111
  %v13460 = vpop.permute.xlu0 %13459
  %13461 = vrot.lane.b32.xlu0 %v13404, 111
  %v13462 = vpop.permute.xlu0 %13461
  %13463 = vrot.lane.b32.xlu0 %v13408, 111
  %v13464 = vpop.permute.xlu0 %13463
  %13465 = vrot.lane.b32.xlu0 %v13412, 111
  %v13466 = vpop.permute.xlu0 %13465
  %13467 = vrot.lane.b32.xlu0 %v13416, 111
  %v13468 = vpop.permute.xlu0 %13467
  %13469 = vrot.lane.b32.xlu0 %v13420, 111
  %v13470 = vpop.permute.xlu0 %13469
  %13471 = vrot.lane.b32.xlu0 %v13424, 111
  %v13472 = vpop.permute.xlu0 %13471
  %v13473 = vsel %vm1693, %v13470, %v13472
  %v13474 = vsel %vm1693, %v13468, %v13470
  %v13475 = vsel %vm1693, %v13466, %v13468
  %v13476 = vsel %vm1693, %v13464, %v13466
  %v13477 = vsel %vm1693, %v13462, %v13464
  %v13478 = vsel %vm1693, %v13460, %v13462
  %v13479 = vsel %vm1693, %v13458, %v13460
  %v13480 = vsel %vm1693, %v13456, %v13458
  %v13481 = vsel %vm1693, %v13454, %v13456
  %v13482 = vsel %vm1693, %v13452, %v13454
  %v13483 = vsel %vm1693, %v13450, %v13452
  %v13484 = vsel %vm1693, %v13448, %v13450
  %v13485 = vsel %vm1693, %v13446, %v13448
  %v13486 = vsel %vm1693, %v13444, %v13446
  %v13487 = vsel %vm1693, %v13442, %v13444
  %v13488 = vsel %vm1693, %v13472, %v13442
  %v13489 = vsel %vm204, %v13487, 0.0
  %v13490 = vsel %vm205, %v13486, 0.0
  %v13491 = vsel %vm206, %v13485, 0.0
  %v13492 = vsel %vm207, %v13484, 0.0
  %v13493 = vsel %vm208, %v13483, 0.0
  %v13494 = vsel %vm209, %v13482, 0.0
  %v13495 = vsel %vm210, %v13481, 0.0
  %v13496 = vsel %vm211, %v13480, 0.0
  %v13497 = vsel %vm212, %v13479, 0.0
  %v13498 = vsel %vm213, %v13478, 0.0
  %v13499 = vsel %vm214, %v13477, 0.0
  %v13500 = vsel %vm215, %v13476, 0.0
  %v13501 = vsel %vm216, %v13475, 0.0
  %v13502 = vsel %vm217, %v13474, 0.0
  %v13503 = vsel %vm218, %v13473, 0.0
  %v13504 = vsel %vm219, %v13488, 0.0
  %v13505 = vadd.f32 %v13337, %v13489
  %v13506 = vadd.f32 %v13338, %v13490
  %v13507 = vadd.f32 %v13339, %v13491
  %v13508 = vadd.f32 %v13340, %v13492
  %v13509 = vadd.f32 %v13341, %v13493
  %v13510 = vadd.f32 %v13342, %v13494
  %v13511 = vadd.f32 %v13343, %v13495
  %v13512 = vadd.f32 %v13344, %v13496
  %v13513 = vadd.f32 %v13345, %v13497
  %v13514 = vadd.f32 %v13346, %v13498
  %v13515 = vadd.f32 %v13347, %v13499
  %v13516 = vadd.f32 %v13348, %v13500
  %v13517 = vadd.f32 %v13349, %v13501
  %v13518 = vadd.f32 %v13350, %v13502
  %v13519 = vadd.f32 %v13351, %v13503
  %v13520 = vadd.f32 %v13352, %v13504
  %v13521 = vadd.f32 %v13505, %v4638
  %v13522 = vadd.f32 %v13506, %v4638
  %v13523 = vadd.f32 %v13507, %v4638
  %v13524 = vadd.f32 %v13508, %v4638
  %v13525 = vadd.f32 %v13509, %v4638
  %v13526 = vadd.f32 %v13510, %v4638
  %v13527 = vadd.f32 %v13511, %v4638
  %v13528 = vadd.f32 %v13512, %v4638
  %v13529 = vadd.f32 %v13513, %v4638
  %v13530 = vadd.f32 %v13514, %v4638
  %v13531 = vadd.f32 %v13515, %v4638
  %v13532 = vadd.f32 %v13516, %v4638
  %v13533 = vadd.f32 %v13517, %v4638
  %v13534 = vadd.f32 %v13518, %v4638
  %v13535 = vadd.f32 %v13519, %v4638
  %v13536 = vadd.f32 %v13520, %v4638
  %v13537 = vld [vmem:[%s3] sm:$0xff]
  %s13538 = sld [smem:[#allocation5]]
  %v13540 = vlaneseq
  %v13541 = vshrl.u32 %v13540, 7
  %v13542 = vsub.s32 0, %v13541
  %v13543 = vrot.slane %v13537, %v13542
  %v13544 = vlaneseq
  %v13545 = vshrl.u32 %v13544, 7
  %v13546 = vsub.s32 1, %v13545
  %v13547 = vrot.slane %v13537, %v13546
  %v13548 = vlaneseq
  %v13549 = vshrl.u32 %v13548, 7
  %v13550 = vsub.s32 2, %v13549
  %v13551 = vrot.slane %v13537, %v13550
  %v13552 = vlaneseq
  %v13553 = vshrl.u32 %v13552, 7
  %v13554 = vsub.s32 3, %v13553
  %v13555 = vrot.slane %v13537, %v13554
  %v13556 = vlaneseq
  %v13557 = vshrl.u32 %v13556, 7
  %v13558 = vsub.s32 4, %v13557
  %v13559 = vrot.slane %v13537, %v13558
  %v13560 = vlaneseq
  %v13561 = vshrl.u32 %v13560, 7
  %v13562 = vsub.s32 5, %v13561
  %v13563 = vrot.slane %v13537, %v13562
  %v13564 = vlaneseq
  %v13565 = vshrl.u32 %v13564, 7
  %v13566 = vsub.s32 6, %v13565
  %v13567 = vrot.slane %v13537, %v13566
  %v13568 = vlaneseq
  %v13569 = vshrl.u32 %v13568, 7
  %v13570 = vsub.s32 7, %v13569
  %v13571 = vrot.slane %v13537, %v13570
  %v13580 = vmul.f32 %v13521, %v13543
  %v13581 = vmul.f32 %v13522, %v13547
  %v13582 = vmul.f32 %v13523, %v13551
  %v13583 = vmul.f32 %v13524, %v13555
  %v13584 = vmul.f32 %v13525, %v13559
  %v13585 = vmul.f32 %v13526, %v13563
  %v13586 = vmul.f32 %v13527, %v13567
  %v13587 = vmul.f32 %v13528, %v13571
  %vm13588 = vcmask 1040384
  %v13589 = vsel %vm13588, %v13580, 0.0
  %v13590 = vsel %vm13588, %v13581, 0.0
  %v13591 = vadd.f32 %v13589, %v13590
  %v13592 = vsel %vm13588, %v13582, 0.0
  %v13593 = vadd.f32 %v13591, %v13592
  %v13594 = vsel %vm13588, %v13583, 0.0
  %v13595 = vadd.f32 %v13593, %v13594
  %v13596 = vsel %vm13588, %v13584, 0.0
  %v13597 = vadd.f32 %v13595, %v13596
  %v13598 = vsel %vm13588, %v13585, 0.0
  %v13599 = vadd.f32 %v13597, %v13598
  %v13600 = vsel %vm13588, %v13586, 0.0
  %v13601 = vadd.f32 %v13599, %v13600
  %v13602 = vsel %vm13588, %v13587, 0.0
  %v13603 = vadd.f32 %v13601, %v13602
  %13604 = vadd.xlane.f32.xlu0 %v13603
  %v13605 = vpop.xlane.xlu0 %13604
  %v13606 = vstv %s13538
  %v13607 = vadd.f32 %v13605, %v13606
  %vm13608 = vcmask 0
  %13609 = vst.msk [vmem:[%s6] sm:$0x1] %vm13608, %v13607
  %v13610 = vmul.f32 %v13529, %v13543
  %v13611 = vmul.f32 %v13530, %v13547
  %v13612 = vmul.f32 %v13531, %v13551
  %v13613 = vmul.f32 %v13532, %v13555
  %v13614 = vmul.f32 %v13533, %v13559
  %v13615 = vmul.f32 %v13534, %v13563
  %v13616 = vmul.f32 %v13535, %v13567
  %v13617 = vmul.f32 %v13536, %v13571
  %v13618 = vsel %vm13588, %v13610, 0.0
  %v13619 = vsel %vm13588, %v13611, 0.0
  %v13620 = vadd.f32 %v13618, %v13619
  %v13621 = vsel %vm13588, %v13612, 0.0
  %v13622 = vadd.f32 %v13620, %v13621
  %v13623 = vsel %vm13588, %v13613, 0.0
  %v13624 = vadd.f32 %v13622, %v13623
  %v13625 = vsel %vm13588, %v13614, 0.0
  %v13626 = vadd.f32 %v13624, %v13625
  %v13627 = vsel %vm13588, %v13615, 0.0
  %v13628 = vadd.f32 %v13626, %v13627
  %v13629 = vsel %vm13588, %v13616, 0.0
  %v13630 = vadd.f32 %v13628, %v13629
  %v13631 = vsel %vm13588, %v13617, 0.0
  %v13632 = vadd.f32 %v13630, %v13631
  %13633 = vadd.xlane.f32.xlu0 %v13632
  %v13634 = vpop.xlane.xlu0 %13633
  %v13635 = vadd.f32 %v13634, %v13606
  %13636 = vst.msk [vmem:[%s6 + $0x1] sm:$0x1] %vm13608, %v13635
  // Predicated region
  $region26: #{modely_forward.1} parent=0 // pred_check
    _
  $region27: #{modely_forward.1} parent=0 // pred_check_branch
    %13638 = sbr.rel (0) target = $region29
  $region28: #{modely_forward.1} parent=0 // pred_region
    _
  $region29: #{modely_forward.1} parent=0 // pred_fallthru
    _
  // Predicated region
  $region30: #{modely_forward.1} parent=0 // pred_check
    _
  $region31: #{modely_forward.1} parent=0 // pred_check_branch
    %13640 = sbr.rel (0) target = $region33
  $region32: #{modely_forward.1} parent=0 // pred_region
    _
  $region33: #{modely_forward.1} parent=0 // pred_fallthru
    _

</llo_original>
